<compile_context>
chip_gen: v5e
topology: v5e:2x2
jax: 0.10.0
libtpu: 0.0.40
codegen_flags: <defaults>
</compile_context>

<pallas_src>
import functools
import math

import jax
import jax.numpy as jnp
from jax import lax
from jax.experimental import pallas as pl
from jax.experimental.pallas import tpu as pltpu

# ---- config of the synthetic "pretrained" encoder ----
VOCAB = 100
TYPE_VOCAB = 2
MAX_POS = 16
HIDDEN = 32
N_HEADS = 2
HEAD_DIM = HIDDEN // N_HEADS
FFN = 64
N_LAYERS = 2
LN_EPS = 1e-12

EMB_ROWS = 128                   # packed table rows: word | type | pos | zero pad
TYPE_OFF = VOCAB                 # 100
POS_OFF = VOCAB + TYPE_VOCAB     # 102
VEC_ROWS = 8                     # packed bias / LayerNorm slab (rows of 128 lanes)
assert POS_OFF + MAX_POS <= EMB_ROWS


# ---------------------------------------------------------------------------
# One fused Pallas kernel: whole encoder forward for a block of BB sentences
# ---------------------------------------------------------------------------
def _encoder_kernel(ids_ref, tt_ref, mkey_ref, mpool_ref,
                    emb_ref, qkvw_ref, qkvb_ref, wo_ref, ffn_ref, vec_ref,
                    out_ref, *, bb, seq, normalize):
    n = bb * seq
    scale = 1.0 / math.sqrt(HEAD_DIM)

    # ---- fused embedding gather: 3-hot(word|type|pos) @ packed table (1 MXU pass) ----
    ids = ids_ref[...]                                            # (bb, seq, 1) int32
    tts = tt_ref[...]                                             # (bb, seq, 1) int32
    col = lax.broadcasted_iota(jnp.int32, (bb, seq, EMB_ROWS), 2)
    pos = lax.broadcasted_iota(jnp.int32, (bb, seq, EMB_ROWS), 1)
    three_hot = ((col == ids) | (col == TYPE_OFF + tts) | (col == POS_OFF + pos))
    three_hot = three_hot.astype(jnp.float32).reshape(n, EMB_ROWS).astype(jnp.bfloat16)
    h = jnp.dot(three_hot, emb_ref[...], preferred_element_type=jnp.float32)  # (n, H)

    def layer_norm(y, g, b):                                      # g, b: (1, H)
        mu = jnp.mean(y, axis=-1, keepdims=True)
        var = jnp.mean(jnp.square(y - mu), axis=-1, keepdims=True)
        return (y - mu) * lax.rsqrt(var + LN_EPS) * g + b

    # embedding LayerNorm (gamma/beta live in row 0 of the packed vector slab)
    h = layer_norm(h, vec_ref[0:1, 0:HIDDEN], vec_ref[0:1, HIDDEN:2 * HIDDEN])

    # additive key-padding bias, broadcast ONCE and reused by every head & layer
    mk = mkey_ref[...]                                            # (bb, 1, seq) f32
    bias3 = jnp.broadcast_to((1.0 - mk) * (-1e9), (bb, seq, seq))

    for l in range(N_LAYERS):                                     # static unroll
        ra = 1 + 2 * l                                            # packed-vector rows
        rb = ra + 1
        h_bf = h.astype(jnp.bfloat16)
        attn = None
        for hd in range(N_HEADS):                                 # static unroll
            iq = (l * 3 + 0) * N_HEADS + hd
            ik = (l * 3 + 1) * N_HEADS + hd
            iv = (l * 3 + 2) * N_HEADS + hd
            # per-head projections: leading-axis weight select, no lane slicing
            q = jnp.dot(h_bf, qkvw_ref[iq], preferred_element_type=jnp.float32) + qkvb_ref[iq]
            k = jnp.dot(h_bf, qkvw_ref[ik], preferred_element_type=jnp.float32) + qkvb_ref[ik]
            v = jnp.dot(h_bf, qkvw_ref[iv], preferred_element_type=jnp.float32) + qkvb_ref[iv]
            q3 = q.reshape(bb, seq, HEAD_DIM)
            k3 = k.reshape(bb, seq, HEAD_DIM)
            v3 = v.reshape(bb, seq, HEAD_DIM)
            # batched attention (tiny matmuls; kept f32 for softmax accuracy)
            s = jnp.einsum("bqd,bkd->bqk", q3, k3,
                           preferred_element_type=jnp.float32) * scale + bias3
            s = s - jnp.max(s, axis=-1, keepdims=True)
            p = jnp.exp(s)
            p = p / jnp.sum(p, axis=-1, keepdims=True)            # exact divide
            ctx = jnp.einsum("bqk,bkd->bqd", p, v3,
                             preferred_element_type=jnp.float32)  # (bb, seq, Dh)
            ctx2 = ctx.reshape(n, HEAD_DIM).astype(jnp.bfloat16)
            # per-head rows of Wo, accumulated == concat-then-project
            proj = jnp.dot(ctx2, wo_ref[l * N_HEADS + hd],
                           preferred_element_type=jnp.float32)    # (n, H)
            attn = proj if attn is None else attn + proj
        attn = attn + vec_ref[ra:ra + 1, 0:HIDDEN]                # b_o

        # residual + LN1
        h = layer_norm(attn + h,
                       vec_ref[ra:ra + 1, HIDDEN:2 * HIDDEN],
                       vec_ref[ra:ra + 1, 2 * HIDDEN:3 * HIDDEN])

        # FFN (gelu) + residual + LN2; w2 stored transposed so both weights pack
        # as (H, FFN) slabs in one operand
        f = jnp.dot(h.astype(jnp.bfloat16), ffn_ref[2 * l],
                    preferred_element_type=jnp.float32) + vec_ref[rb:rb + 1, 0:FFN]
        f = jax.nn.gelu(f, approximate=True)
        f = lax.dot_general(f.astype(jnp.bfloat16), ffn_ref[2 * l + 1],
                            (((1,), (1,)), ((), ())),
                            preferred_element_type=jnp.float32) \
            + vec_ref[ra:ra + 1, 3 * HIDDEN:4 * HIDDEN]           # b_2
        h = layer_norm(f + h,
                       vec_ref[rb:rb + 1, FFN:FFN + HIDDEN],
                       vec_ref[rb:rb + 1, FFN + HIDDEN:FFN + 2 * HIDDEN])

    # ---- masked mean pooling on VPU/XLU (multiply + sublane sum, no M=1 MXU pass) ----
    mp = mpool_ref[...]                                           # (bb, seq, 1) f32
    h3 = h.reshape(bb, seq, HIDDEN)
    summed = jnp.sum(h3 * mp, axis=1)                             # (bb, H)
    denom = jnp.maximum(jnp.sum(mp, axis=1), 1e-9)                # clamp(min=1e-9)
    pooled = summed / denom

    if normalize:  # F.normalize(p=2, dim=1) — exact divide for exact unit norm
        nrm = jnp.sqrt(jnp.sum(pooled * pooled, axis=-1, keepdims=True))
        pooled = pooled / jnp.maximum(nrm, 1e-12)

    out_ref[...] = pooled.astype(out_ref.dtype)


# ---------------------------------------------------------------------------
# Parameter init (deterministic, synthetic) + packing into kernel operands
# ---------------------------------------------------------------------------
def init_params(key):
    keys = iter(jax.random.split(key, 64))

    def nrm(shape, scale=0.02):
        return scale * jax.random.normal(next(keys), shape, dtype=jnp.float32)

    params = {
        "word_emb": nrm((VOCAB, HIDDEN)),
        "type_emb": nrm((TYPE_VOCAB, HIDDEN)),
        "pos_emb": nrm((MAX_POS, HIDDEN)),
        "emb_ln_g": 1.0 + nrm((HIDDEN,), 0.05),
        "emb_ln_b": nrm((HIDDEN,), 0.05),
        "layers": [],
    }
    for _ in range(N_LAYERS):
        params["layers"].append({
            "wq": nrm((HIDDEN, HIDDEN)), "bq": nrm((HIDDEN,)),
            "wk": nrm((HIDDEN, HIDDEN)), "bk": nrm((HIDDEN,)),
            "wv": nrm((HIDDEN, HIDDEN)), "bv": nrm((HIDDEN,)),
            "wo": nrm((HIDDEN, HIDDEN)), "bo": nrm((HIDDEN,)),
            "ln1_g": 1.0 + nrm((HIDDEN,), 0.05), "ln1_b": nrm((HIDDEN,), 0.05),
            "w1": nrm((HIDDEN, FFN)), "b1": nrm((FFN,)),
            "w2": nrm((FFN, HIDDEN)), "b2": nrm((HIDDEN,)),
            "ln2_g": 1.0 + nrm((HIDDEN,), 0.05), "ln2_b": nrm((HIDDEN,), 0.05),
        })
    return params


def pack_params(params):
    """Pack natural-layout weights into a few VMEM-friendly slabs (bf16 matmul weights)."""
    emb = jnp.zeros((EMB_ROWS, HIDDEN), jnp.float32)
    emb = emb.at[0:VOCAB].set(params["word_emb"])
    emb = emb.at[TYPE_OFF:TYPE_OFF + TYPE_VOCAB].set(params["type_emb"])
    emb = emb.at[POS_OFF:POS_OFF + MAX_POS].set(params["pos_emb"])

    vec = jnp.zeros((VEC_ROWS, 128), jnp.float32)
    vec = vec.at[0, 0:HIDDEN].set(params["emb_ln_g"])
    vec = vec.at[0, HIDDEN:2 * HIDDEN].set(params["emb_ln_b"])

    qkvw, qkvb, wo, ffn = [], [], [], []
    for l, lyr in enumerate(params["layers"]):
        for wname, bname in (("wq", "bq"), ("wk", "bk"), ("wv", "bv")):
            for hd in range(N_HEADS):
                sl = slice(hd * HEAD_DIM, (hd + 1) * HEAD_DIM)
                qkvw.append(lyr[wname][:, sl])                        # (H, Dh)
                qkvb.append(lyr[bname][sl].reshape(1, HEAD_DIM))      # (1, Dh)
        for hd in range(N_HEADS):
            wo.append(lyr["wo"][hd * HEAD_DIM:(hd + 1) * HEAD_DIM, :])  # (Dh, H)
        ffn.append(lyr["w1"])                                          # (H, FFN)
        ffn.append(lyr["w2"].T)                                        # (H, FFN)

        ra = 1 + 2 * l
        rb = ra + 1
        vec = vec.at[ra, 0:HIDDEN].set(lyr["bo"])
        vec = vec.at[ra, HIDDEN:2 * HIDDEN].set(lyr["ln1_g"])
        vec = vec.at[ra, 2 * HIDDEN:3 * HIDDEN].set(lyr["ln1_b"])
        vec = vec.at[ra, 3 * HIDDEN:4 * HIDDEN].set(lyr["b2"])
        vec = vec.at[rb, 0:FFN].set(lyr["b1"])
        vec = vec.at[rb, FFN:FFN + HIDDEN].set(lyr["ln2_g"])
        vec = vec.at[rb, FFN + HIDDEN:FFN + 2 * HIDDEN].set(lyr["ln2_b"])

    return {
        "emb": emb.astype(jnp.bfloat16),                    # (128, H)
        "qkvw": jnp.stack(qkvw).astype(jnp.bfloat16),       # (L*3*NH, H, Dh)
        "qkvb": jnp.stack(qkvb),                            # (L*3*NH, 1, Dh) f32
        "wo": jnp.stack(wo).astype(jnp.bfloat16),           # (L*NH, Dh, H)
        "ffn": jnp.stack(ffn).astype(jnp.bfloat16),         # (L*2, H, FFN)  [w1 | w2^T]
        "vec": vec,                                         # (8, 128) f32
    }


# ---------------------------------------------------------------------------
# Forward pass: pad/shape the int inputs + one fused Pallas call
# ---------------------------------------------------------------------------
def sentence_encoder_forward(packed, input_ids, attention_mask,
                             token_type_ids=None, mode="query"):
    B, S = input_ids.shape
    if token_type_ids is None:
        token_type_ids = jnp.zeros_like(input_ids)

    s_pad = ((S + 7) // 8) * 8                 # sublane-aligned sequence length
    assert s_pad <= MAX_POS
    bb = 16 if B >= 32 else 8                  # sentences per grid step
    b_pad = ((B + bb - 1) // bb) * bb

    ids = jnp.zeros((b_pad, s_pad), jnp.int32).at[:B, :S].set(input_ids.astype(jnp.int32))
    tts = jnp.zeros((b_pad, s_pad), jnp.int32).at[:B, :S].set(token_type_ids.astype(jnp.int32))
    msk = jnp.zeros((b_pad, s_pad), jnp.float32).at[:B, :S].set(
        attention_mask.astype(jnp.float32))

    ids3 = ids.reshape(b_pad, s_pad, 1)
    tts3 = tts.reshape(b_pad, s_pad, 1)
    mkey = msk.reshape(b_pad, 1, s_pad)        # key-padding mask for attention
    mpool = msk.reshape(b_pad, s_pad, 1)       # pooling mask

    const2 = lambda g: (0, 0)
    const3 = lambda g: (0, 0, 0)
    kernel = functools.partial(_encoder_kernel, bb=bb, seq=s_pad,
                               normalize=(mode == "query"))

    out = pl.pallas_call(
        kernel,
        out_shape=jax.ShapeDtypeStruct((b_pad, HIDDEN), jnp.float32),
        grid=(b_pad // bb,),
        in_specs=[
            pl.BlockSpec((bb, s_pad, 1), lambda g: (g, 0, 0)),              # input ids
            pl.BlockSpec((bb, s_pad, 1), lambda g: (g, 0, 0)),              # token types
            pl.BlockSpec((bb, 1, s_pad), lambda g: (g, 0, 0)),              # key mask
            pl.BlockSpec((bb, s_pad, 1), lambda g: (g, 0, 0)),              # pool mask
            # weights: constant index maps -> DMA'd once, reused every step
            pl.BlockSpec((EMB_ROWS, HIDDEN), const2),                       # emb table
            pl.BlockSpec((N_LAYERS * 3 * N_HEADS, HIDDEN, HEAD_DIM), const3),  # qkv W
            pl.BlockSpec((N_LAYERS * 3 * N_HEADS, 1, HEAD_DIM), const3),       # qkv b
            pl.BlockSpec((N_LAYERS * N_HEADS, HEAD_DIM, HIDDEN), const3),      # Wo
            pl.BlockSpec((N_LAYERS * 2, HIDDEN, FFN), const3),                 # FFN W
            pl.BlockSpec((VEC_ROWS, 128), const2),                             # biases/LN
        ],
        out_specs=pl.BlockSpec((bb, HIDDEN), lambda g: (g, 0)),
        compiler_params=pltpu.CompilerParams(
            dimension_semantics=("parallel",)),     # batch blocks across v7x's 2 TCs
    )(ids3, tts3, mkey, mpool, packed["emb"], packed["qkvw"], packed["qkvb"],
      packed["wo"], packed["ffn"], packed["vec"])

    return out[:B]


@functools.partial(jax.jit, static_argnames=("mode",))
def encode(packed, input_ids, attention_mask, mode="query"):
    return sentence_encoder_forward(packed, input_ids, attention_mask, mode=mode)


# ---------------------------------------------------------------------------
# Pure-JAX reference (mirrors the kernel's bf16-operand matmuls) for the check
# ---------------------------------------------------------------------------
def _reference_forward(params, input_ids, attention_mask, token_type_ids=None, mode="query"):
    B, S = input_ids.shape
    if token_type_ids is None:
        token_type_ids = jnp.zeros_like(input_ids)
    bf = lambda a: a.astype(jnp.bfloat16)
    f32 = lambda a: a.astype(jnp.float32)

    def ln(y, g, b):
        mu = jnp.mean(y, -1, keepdims=True)
        var = jnp.mean(jnp.square(y - mu), -1, keepdims=True)
        return (y - mu) * lax.rsqrt(var + LN_EPS) * g + b

    h = (f32(bf(params["word_emb"]))[input_ids]
         + f32(bf(params["type_emb"]))[token_type_ids]
         + f32(bf(params["pos_emb"]))[:S][None])
    h = ln(h, params["emb_ln_g"], params["emb_ln_b"])

    m = attention_mask.astype(jnp.float32)
    bias = (1.0 - m)[:, None, None, :] * (-1e9)
    for lyr in params["layers"]:
        hb = bf(h)
        q = jnp.dot(hb, bf(lyr["wq"]), preferred_element_type=jnp.float32) + lyr["bq"]
        k = jnp.dot(hb, bf(lyr["wk"]), preferred_element_type=jnp.float32) + lyr["bk"]
        v = jnp.dot(hb, bf(lyr["wv"]), preferred_element_type=jnp.float32) + lyr["bv"]
        heads = lambda t: t.reshape(B, S, N_HEADS, HEAD_DIM).transpose(0, 2, 1, 3)
        qh, kh, vh = heads(q), heads(k), heads(v)
        s = jnp.einsum("bhqd,bhkd->bhqk", qh, kh) / math.sqrt(HEAD_DIM) + bias
        p = jax.nn.softmax(s, axis=-1)
        ctx = jnp.einsum("bhqk,bhkd->bhqd", p, vh).transpose(0, 2, 1, 3).reshape(B, S, HIDDEN)
        attn = jnp.dot(bf(ctx), bf(lyr["wo"]), preferred_element_type=jnp.float32) + lyr["bo"]
        h = ln(attn + h, lyr["ln1_g"], lyr["ln1_b"])
        f = jnp.dot(bf(h), bf(lyr["w1"]), preferred_element_type=jnp.float32) + lyr["b1"]
        f = jax.nn.gelu(f, approximate=True)
        f = jnp.dot(bf(f), bf(lyr["w2"]), preferred_element_type=jnp.float32) + lyr["b2"]
        h = ln(f + h, lyr["ln2_g"], lyr["ln2_b"])

    pooled = (jnp.sum(h * m[..., None], axis=1)
              / jnp.maximum(jnp.sum(m, axis=1, keepdims=True), 1e-9))
    if mode == "query":
        pooled = pooled / jnp.maximum(
            jnp.linalg.norm(pooled, axis=1, keepdims=True), 1e-12)
    return pooled


if __name__ == "__main__":
    key = jax.random.PRNGKey(0)
    pkey, ikey, lkey = jax.random.split(key, 3)
    params = init_params(pkey)
    packed = pack_params(params)

    B, S = 32, 8   # grid = B / 16 = 2 steps -> both v7x TensorCores get work
    input_ids = jax.random.randint(ikey, (B, S), 0, VOCAB, dtype=jnp.int32)
    lens = jax.random.randint(lkey, (B,), 1, S + 1)
    attention_mask = (jnp.arange(S)[None, :] < lens[:, None]).astype(jnp.int32)

    emb_q = jax.block_until_ready(encode(packed, input_ids, attention_mask, mode="query"))
    emb_d = jax.block_until_ready(encode(packed, input_ids, attention_mask, mode="doc"))

    assert emb_q.shape == (B, HIDDEN) and emb_d.shape == (B, HIDDEN)
    assert bool(jnp.all(jnp.isfinite(emb_q))) and bool(jnp.all(jnp.isfinite(emb_d)))
    # query-mode embeddings are exactly unit-norm (exact final divide)
    assert bool(jnp.allclose(jnp.linalg.norm(emb_q, axis=1), 1.0, atol=1e-5))

    # match the pure-JAX reference (same bf16-operand matmul math, exact softmax/pool)
    ref_q = _reference_forward(params, input_ids, attention_mask, mode="query")
    ref_d = _reference_forward(params, input_ids, attention_mask, mode="doc")
    assert bool(jnp.allclose(emb_q, ref_q, atol=5e-3, rtol=5e-3))
    assert bool(jnp.allclose(emb_d, ref_d, atol=5e-3, rtol=5e-3))

    # small batch exercises the padding path (B=2 padded to one BB=8 block)
    emb_small = jax.block_until_ready(
        encode(packed, input_ids[:2], attention_mask[:2], mode="query"))
    assert bool(jnp.allclose(emb_small, emb_q[:2], atol=1e-4, rtol=1e-4))

    print("KERNEL_OK")
</pallas_src>

<mosaic_0001>
module attributes {stable_mosaic.version = 11 : i64} {
  func.func @_encoder_kernel(%arg0: i32, %arg1: memref<16x8x1xi32, #tpu.memory_space<vmem>>, %arg2: memref<16x8x1xi32, #tpu.memory_space<vmem>>, %arg3: memref<16x1x8xf32, #tpu.memory_space<vmem>>, %arg4: memref<16x8x1xf32, #tpu.memory_space<vmem>>, %arg5: memref<128x32xbf16, #tpu.memory_space<vmem>>, %arg6: memref<12x32x16xbf16, #tpu.memory_space<vmem>>, %arg7: memref<12x1x16xf32, #tpu.memory_space<vmem>>, %arg8: memref<4x16x32xbf16, #tpu.memory_space<vmem>>, %arg9: memref<4x32x64xbf16, #tpu.memory_space<vmem>>, %arg10: memref<8x128xf32, #tpu.memory_space<vmem>>, %arg11: memref<16x32xf32, #tpu.memory_space<vmem>>) attributes {dimension_semantics = [#tpu.dimension_semantics<parallel>], iteration_bounds = array<i64: 2>, scalar_prefetch = 0 : i64, scratch_operands = 0 : i64, tpu.core_type = #tpu.core_type<tc>, window_params = [{transform_indices = @transform_0, window_bounds = array<i64: 16, 8, 1>}, {transform_indices = @transform_1, window_bounds = array<i64: 16, 8, 1>}, {transform_indices = @transform_2, window_bounds = array<i64: 16, 1, 8>}, {transform_indices = @transform_3, window_bounds = array<i64: 16, 8, 1>}, {pipeline_mode = #tpu.pipeline_mode<synchronous>, transform_indices = @transform_4, window_bounds = array<i64: 128, 32>}, {pipeline_mode = #tpu.pipeline_mode<synchronous>, transform_indices = @transform_5, window_bounds = array<i64: 12, 32, 16>}, {pipeline_mode = #tpu.pipeline_mode<synchronous>, transform_indices = @transform_6, window_bounds = array<i64: 12, 1, 16>}, {pipeline_mode = #tpu.pipeline_mode<synchronous>, transform_indices = @transform_7, window_bounds = array<i64: 4, 16, 32>}, {pipeline_mode = #tpu.pipeline_mode<synchronous>, transform_indices = @transform_8, window_bounds = array<i64: 4, 32, 64>}, {pipeline_mode = #tpu.pipeline_mode<synchronous>, transform_indices = @transform_9, window_bounds = array<i64: 8, 128>}, {transform_indices = @transform_10, window_bounds = array<i64: 16, 32>}]} {
    %c0 = arith.constant 0 : index
    %c0_0 = arith.constant 0 : index
    %c0_1 = arith.constant 0 : index
    %0 = vector.load %arg1[%c0, %c0_0, %c0_1] : memref<16x8x1xi32, #tpu.memory_space<vmem>>, vector<16x8x1xi32>
    %c0_2 = arith.constant 0 : index
    %c0_3 = arith.constant 0 : index
    %c0_4 = arith.constant 0 : index
    %1 = vector.load %arg2[%c0_2, %c0_3, %c0_4] : memref<16x8x1xi32, #tpu.memory_space<vmem>>, vector<16x8x1xi32>
    %2 = tpu.iota {dimensions = array<i32: 2>} : vector<16x8x128xi32>
    %3 = tpu.iota {dimensions = array<i32: 1>} : vector<16x8x128xi32>
    %4 = vector.broadcast %0 : vector<16x8x1xi32> to vector<16x8x128xi32>
    %5 = arith.cmpi eq, %2, %4 : vector<16x8x128xi32>
    %c100_i32 = arith.constant 100 : i32
    %6 = vector.broadcast %c100_i32 : i32 to vector<16x8x1xi32>
    %7 = arith.addi %6, %1 : vector<16x8x1xi32>
    %8 = vector.broadcast %7 : vector<16x8x1xi32> to vector<16x8x128xi32>
    %9 = arith.cmpi eq, %2, %8 : vector<16x8x128xi32>
    %10 = arith.ori %5, %9 : vector<16x8x128xi1>
    %c102_i32 = arith.constant 102 : i32
    %11 = vector.broadcast %c102_i32 : i32 to vector<16x8x128xi32>
    %12 = arith.addi %11, %3 : vector<16x8x128xi32>
    %13 = arith.cmpi eq, %2, %12 : vector<16x8x128xi32>
    %14 = arith.ori %10, %13 : vector<16x8x128xi1>
    %15 = arith.extui %14 : vector<16x8x128xi1> to vector<16x8x128xi32>
    %16 = arith.sitofp %15 : vector<16x8x128xi32> to vector<16x8x128xf32>
    %17 = vector.shape_cast %16 : vector<16x8x128xf32> to vector<128x128xf32>
    %18 = arith.truncf %17 : vector<128x128xf32> to vector<128x128xbf16>
    %c0_5 = arith.constant 0 : index
    %c0_6 = arith.constant 0 : index
    %19 = vector.load %arg5[%c0_5, %c0_6] : memref<128x32xbf16, #tpu.memory_space<vmem>>, vector<128x32xbf16>
    %cst = arith.constant dense<0.000000e+00> : vector<128x32xf32>
    %20 = tpu.matmul %18, %19, %cst {dimension_numbers = #tpu.dot_dimension_numbers<[1], [0], [0], [1], [0, 0, 1, 1], [], []>} : vector<128x128xbf16>, vector<128x32xbf16>, vector<128x32xf32> -> vector<128x32xf32>
    %c0_7 = arith.constant 0 : index
    %c0_8 = arith.constant 0 : index
    %21 = vector.load %arg10[%c0_7, %c0_8] : memref<8x128xf32, #tpu.memory_space<vmem>>, vector<1x32xf32>
    %c0_9 = arith.constant 0 : index
    %c32 = arith.constant 32 : index
    %22 = vector.load %arg10[%c0_9, %c32] : memref<8x128xf32, #tpu.memory_space<vmem>>, vector<1x32xf32>
    %cst_10 = arith.constant dense<0.000000e+00> : vector<128xf32>
    %23 = vector.multi_reduction <add>, %20, %cst_10 [1] : vector<128x32xf32> to vector<128xf32>
    %24 = vector.shape_cast %23 : vector<128xf32> to vector<128x1xf32>
    %cst_11 = arith.constant 3.200000e+01 : f32
    %25 = vector.broadcast %cst_11 : f32 to vector<128x1xf32>
    %26 = arith.divf %24, %25 : vector<128x1xf32>
    %27 = vector.broadcast %26 : vector<128x1xf32> to vector<128x32xf32>
    %28 = arith.subf %20, %27 : vector<128x32xf32>
    %29 = arith.mulf %28, %28 : vector<128x32xf32>
    %cst_12 = arith.constant dense<0.000000e+00> : vector<128xf32>
    %30 = vector.multi_reduction <add>, %29, %cst_12 [1] : vector<128x32xf32> to vector<128xf32>
    %31 = vector.shape_cast %30 : vector<128xf32> to vector<128x1xf32>
    %cst_13 = arith.constant 3.200000e+01 : f32
    %32 = vector.broadcast %cst_13 : f32 to vector<128x1xf32>
    %33 = arith.divf %31, %32 : vector<128x1xf32>
    %34 = vector.broadcast %26 : vector<128x1xf32> to vector<128x32xf32>
    %35 = arith.subf %20, %34 : vector<128x32xf32>
    %cst_14 = arith.constant 9.99999996E-13 : f32
    %36 = vector.broadcast %cst_14 : f32 to vector<128x1xf32>
    %37 = arith.addf %33, %36 : vector<128x1xf32>
    %38 = math.rsqrt %37 : vector<128x1xf32>
    %39 = vector.broadcast %38 : vector<128x1xf32> to vector<128x32xf32>
    %40 = arith.mulf %35, %39 : vector<128x32xf32>
    %41 = vector.broadcast %21 : vector<1x32xf32> to vector<128x32xf32>
    %42 = arith.mulf %40, %41 : vector<128x32xf32>
    %43 = vector.broadcast %22 : vector<1x32xf32> to vector<128x32xf32>
    %44 = arith.addf %42, %43 : vector<128x32xf32>
    %c0_15 = arith.constant 0 : index
    %c0_16 = arith.constant 0 : index
    %c0_17 = arith.constant 0 : index
    %45 = vector.load %arg3[%c0_15, %c0_16, %c0_17] : memref<16x1x8xf32, #tpu.memory_space<vmem>>, vector<16x1x8xf32>
    %cst_18 = arith.constant 1.000000e+00 : f32
    %46 = vector.broadcast %cst_18 : f32 to vector<16x1x8xf32>
    %47 = arith.subf %46, %45 : vector<16x1x8xf32>
    %cst_19 = arith.constant -1.000000e+09 : f32
    %48 = vector.broadcast %cst_19 : f32 to vector<16x1x8xf32>
    %49 = arith.mulf %47, %48 : vector<16x1x8xf32>
    %50 = vector.shape_cast %49 : vector<16x1x8xf32> to vector<16x1x8xf32>
    %51 = vector.broadcast %50 : vector<16x1x8xf32> to vector<16x8x8xf32>
    %52 = arith.truncf %44 : vector<128x32xf32> to vector<128x32xbf16>
    %c0_20 = arith.constant 0 : index
    %c0_21 = arith.constant 0 : index
    %c0_22 = arith.constant 0 : index
    %53 = vector.load %arg6[%c0_20, %c0_21, %c0_22] : memref<12x32x16xbf16, #tpu.memory_space<vmem>>, vector<1x32x16xbf16>
    %54 = vector.shape_cast %53 : vector<1x32x16xbf16> to vector<32x16xbf16>
    %cst_23 = arith.constant dense<0.000000e+00> : vector<128x16xf32>
    %55 = tpu.matmul %52, %54, %cst_23 {dimension_numbers = #tpu.dot_dimension_numbers<[1], [0], [0], [1], [0, 0, 1, 1], [], []>} : vector<128x32xbf16>, vector<32x16xbf16>, vector<128x16xf32> -> vector<128x16xf32>
    %c0_24 = arith.constant 0 : index
    %c0_25 = arith.constant 0 : index
    %c0_26 = arith.constant 0 : index
    %56 = vector.load %arg7[%c0_24, %c0_25, %c0_26] : memref<12x1x16xf32, #tpu.memory_space<vmem>>, vector<1x1x16xf32>
    %57 = vector.shape_cast %56 : vector<1x1x16xf32> to vector<1x16xf32>
    %58 = vector.broadcast %57 : vector<1x16xf32> to vector<128x16xf32>
    %59 = arith.addf %55, %58 : vector<128x16xf32>
    %c2 = arith.constant 2 : index
    %c0_27 = arith.constant 0 : index
    %c0_28 = arith.constant 0 : index
    %60 = vector.load %arg6[%c2, %c0_27, %c0_28] : memref<12x32x16xbf16, #tpu.memory_space<vmem>>, vector<1x32x16xbf16>
    %61 = vector.shape_cast %60 : vector<1x32x16xbf16> to vector<32x16xbf16>
    %cst_29 = arith.constant dense<0.000000e+00> : vector<128x16xf32>
    %62 = tpu.matmul %52, %61, %cst_29 {dimension_numbers = #tpu.dot_dimension_numbers<[1], [0], [0], [1], [0, 0, 1, 1], [], []>} : vector<128x32xbf16>, vector<32x16xbf16>, vector<128x16xf32> -> vector<128x16xf32>
    %c2_30 = arith.constant 2 : index
    %c0_31 = arith.constant 0 : index
    %c0_32 = arith.constant 0 : index
    %63 = vector.load %arg7[%c2_30, %c0_31, %c0_32] : memref<12x1x16xf32, #tpu.memory_space<vmem>>, vector<1x1x16xf32>
    %64 = vector.shape_cast %63 : vector<1x1x16xf32> to vector<1x16xf32>
    %65 = vector.broadcast %64 : vector<1x16xf32> to vector<128x16xf32>
    %66 = arith.addf %62, %65 : vector<128x16xf32>
    %c4 = arith.constant 4 : index
    %c0_33 = arith.constant 0 : index
    %c0_34 = arith.constant 0 : index
    %67 = vector.load %arg6[%c4, %c0_33, %c0_34] : memref<12x32x16xbf16, #tpu.memory_space<vmem>>, vector<1x32x16xbf16>
    %68 = vector.shape_cast %67 : vector<1x32x16xbf16> to vector<32x16xbf16>
    %cst_35 = arith.constant dense<0.000000e+00> : vector<128x16xf32>
    %69 = tpu.matmul %52, %68, %cst_35 {dimension_numbers = #tpu.dot_dimension_numbers<[1], [0], [0], [1], [0, 0, 1, 1], [], []>} : vector<128x32xbf16>, vector<32x16xbf16>, vector<128x16xf32> -> vector<128x16xf32>
    %c4_36 = arith.constant 4 : index
    %c0_37 = arith.constant 0 : index
    %c0_38 = arith.constant 0 : index
    %70 = vector.load %arg7[%c4_36, %c0_37, %c0_38] : memref<12x1x16xf32, #tpu.memory_space<vmem>>, vector<1x1x16xf32>
    %71 = vector.shape_cast %70 : vector<1x1x16xf32> to vector<1x16xf32>
    %72 = vector.broadcast %71 : vector<1x16xf32> to vector<128x16xf32>
    %73 = arith.addf %69, %72 : vector<128x16xf32>
    %74 = vector.shape_cast %59 : vector<128x16xf32> to vector<16x8x16xf32>
    %75 = vector.shape_cast %66 : vector<128x16xf32> to vector<16x8x16xf32>
    %76 = vector.shape_cast %73 : vector<128x16xf32> to vector<16x8x16xf32>
    "tpu.trace_start"() <{level = 10 : i32, message = "bqd,bkd->bqk"}> : () -> ()
    %cst_39 = arith.constant dense<0.000000e+00> : vector<16x8x8xf32>
    %77 = tpu.matmul %74, %75, %cst_39 {dimension_numbers = #tpu.dot_dimension_numbers<[2], [2], [1], [1], [0, 0, 0, 1, 1, 1], [0], [0]>} : vector<16x8x16xf32>, vector<16x8x16xf32>, vector<16x8x8xf32> -> vector<16x8x8xf32>
    "tpu.trace_stop"() : () -> ()
    %cst_40 = arith.constant 2.500000e-01 : f32
    %78 = vector.broadcast %cst_40 : f32 to vector<16x8x8xf32>
    %79 = arith.mulf %77, %78 : vector<16x8x8xf32>
    %80 = arith.addf %79, %51 : vector<16x8x8xf32>
    %cst_41 = arith.constant dense<0xFF800000> : vector<16x8xf32>
    %81 = vector.multi_reduction <maximumf>, %80, %cst_41 [2] : vector<16x8x8xf32> to vector<16x8xf32>
    %82 = vector.shape_cast %81 : vector<16x8xf32> to vector<16x8x1xf32>
    %83 = vector.broadcast %82 : vector<16x8x1xf32> to vector<16x8x8xf32>
    %84 = arith.subf %80, %83 : vector<16x8x8xf32>
    %85 = math.exp %84 : vector<16x8x8xf32>
    %cst_42 = arith.constant dense<0.000000e+00> : vector<16x8xf32>
    %86 = vector.multi_reduction <add>, %85, %cst_42 [2] : vector<16x8x8xf32> to vector<16x8xf32>
    %87 = vector.shape_cast %86 : vector<16x8xf32> to vector<16x8x1xf32>
    %88 = vector.broadcast %87 : vector<16x8x1xf32> to vector<16x8x8xf32>
    %89 = arith.divf %85, %88 : vector<16x8x8xf32>
    "tpu.trace_start"() <{level = 10 : i32, message = "bqk,bkd->bqd"}> : () -> ()
    %cst_43 = arith.constant dense<0.000000e+00> : vector<16x8x16xf32>
    %90 = tpu.matmul %89, %76, %cst_43 {dimension_numbers = #tpu.dot_dimension_numbers<[2], [1], [1], [2], [0, 0, 0, 1, 1, 2], [0], [0]>} : vector<16x8x8xf32>, vector<16x8x16xf32>, vector<16x8x16xf32> -> vector<16x8x16xf32>
    "tpu.trace_stop"() : () -> ()
    %91 = vector.shape_cast %90 : vector<16x8x16xf32> to vector<128x16xf32>
    %92 = arith.truncf %91 : vector<128x16xf32> to vector<128x16xbf16>
    %c0_44 = arith.constant 0 : index
    %c0_45 = arith.constant 0 : index
    %c0_46 = arith.constant 0 : index
    %93 = vector.load %arg8[%c0_44, %c0_45, %c0_46] : memref<4x16x32xbf16, #tpu.memory_space<vmem>>, vector<1x16x32xbf16>
    %94 = vector.shape_cast %93 : vector<1x16x32xbf16> to vector<16x32xbf16>
    %cst_47 = arith.constant dense<0.000000e+00> : vector<128x32xf32>
    %95 = tpu.matmul %92, %94, %cst_47 {dimension_numbers = #tpu.dot_dimension_numbers<[1], [0], [0], [1], [0, 0, 1, 1], [], []>} : vector<128x16xbf16>, vector<16x32xbf16>, vector<128x32xf32> -> vector<128x32xf32>
    %c1 = arith.constant 1 : index
    %c0_48 = arith.constant 0 : index
    %c0_49 = arith.constant 0 : index
    %96 = vector.load %arg6[%c1, %c0_48, %c0_49] : memref<12x32x16xbf16, #tpu.memory_space<vmem>>, vector<1x32x16xbf16>
    %97 = vector.shape_cast %96 : vector<1x32x16xbf16> to vector<32x16xbf16>
    %cst_50 = arith.constant dense<0.000000e+00> : vector<128x16xf32>
    %98 = tpu.matmul %52, %97, %cst_50 {dimension_numbers = #tpu.dot_dimension_numbers<[1], [0], [0], [1], [0, 0, 1, 1], [], []>} : vector<128x32xbf16>, vector<32x16xbf16>, vector<128x16xf32> -> vector<128x16xf32>
    %c1_51 = arith.constant 1 : index
    %c0_52 = arith.constant 0 : index
    %c0_53 = arith.constant 0 : index
    %99 = vector.load %arg7[%c1_51, %c0_52, %c0_53] : memref<12x1x16xf32, #tpu.memory_space<vmem>>, vector<1x1x16xf32>
    %100 = vector.shape_cast %99 : vector<1x1x16xf32> to vector<1x16xf32>
    %101 = vector.broadcast %100 : vector<1x16xf32> to vector<128x16xf32>
    %102 = arith.addf %98, %101 : vector<128x16xf32>
    %c3 = arith.constant 3 : index
    %c0_54 = arith.constant 0 : index
    %c0_55 = arith.constant 0 : index
    %103 = vector.load %arg6[%c3, %c0_54, %c0_55] : memref<12x32x16xbf16, #tpu.memory_space<vmem>>, vector<1x32x16xbf16>
    %104 = vector.shape_cast %103 : vector<1x32x16xbf16> to vector<32x16xbf16>
    %cst_56 = arith.constant dense<0.000000e+00> : vector<128x16xf32>
    %105 = tpu.matmul %52, %104, %cst_56 {dimension_numbers = #tpu.dot_dimension_numbers<[1], [0], [0], [1], [0, 0, 1, 1], [], []>} : vector<128x32xbf16>, vector<32x16xbf16>, vector<128x16xf32> -> vector<128x16xf32>
    %c3_57 = arith.constant 3 : index
    %c0_58 = arith.constant 0 : index
    %c0_59 = arith.constant 0 : index
    %106 = vector.load %arg7[%c3_57, %c0_58, %c0_59] : memref<12x1x16xf32, #tpu.memory_space<vmem>>, vector<1x1x16xf32>
    %107 = vector.shape_cast %106 : vector<1x1x16xf32> to vector<1x16xf32>
    %108 = vector.broadcast %107 : vector<1x16xf32> to vector<128x16xf32>
    %109 = arith.addf %105, %108 : vector<128x16xf32>
    %c5 = arith.constant 5 : index
    %c0_60 = arith.constant 0 : index
    %c0_61 = arith.constant 0 : index
    %110 = vector.load %arg6[%c5, %c0_60, %c0_61] : memref<12x32x16xbf16, #tpu.memory_space<vmem>>, vector<1x32x16xbf16>
    %111 = vector.shape_cast %110 : vector<1x32x16xbf16> to vector<32x16xbf16>
    %cst_62 = arith.constant dense<0.000000e+00> : vector<128x16xf32>
    %112 = tpu.matmul %52, %111, %cst_62 {dimension_numbers = #tpu.dot_dimension_numbers<[1], [0], [0], [1], [0, 0, 1, 1], [], []>} : vector<128x32xbf16>, vector<32x16xbf16>, vector<128x16xf32> -> vector<128x16xf32>
    %c5_63 = arith.constant 5 : index
    %c0_64 = arith.constant 0 : index
    %c0_65 = arith.constant 0 : index
    %113 = vector.load %arg7[%c5_63, %c0_64, %c0_65] : memref<12x1x16xf32, #tpu.memory_space<vmem>>, vector<1x1x16xf32>
    %114 = vector.shape_cast %113 : vector<1x1x16xf32> to vector<1x16xf32>
    %115 = vector.broadcast %114 : vector<1x16xf32> to vector<128x16xf32>
    %116 = arith.addf %112, %115 : vector<128x16xf32>
    %117 = vector.shape_cast %102 : vector<128x16xf32> to vector<16x8x16xf32>
    %118 = vector.shape_cast %109 : vector<128x16xf32> to vector<16x8x16xf32>
    %119 = vector.shape_cast %116 : vector<128x16xf32> to vector<16x8x16xf32>
    "tpu.trace_start"() <{level = 10 : i32, message = "bqd,bkd->bqk"}> : () -> ()
    %cst_66 = arith.constant dense<0.000000e+00> : vector<16x8x8xf32>
    %120 = tpu.matmul %117, %118, %cst_66 {dimension_numbers = #tpu.dot_dimension_numbers<[2], [2], [1], [1], [0, 0, 0, 1, 1, 1], [0], [0]>} : vector<16x8x16xf32>, vector<16x8x16xf32>, vector<16x8x8xf32> -> vector<16x8x8xf32>
    "tpu.trace_stop"() : () -> ()
    %cst_67 = arith.constant 2.500000e-01 : f32
    %121 = vector.broadcast %cst_67 : f32 to vector<16x8x8xf32>
    %122 = arith.mulf %120, %121 : vector<16x8x8xf32>
    %123 = arith.addf %122, %51 : vector<16x8x8xf32>
    %cst_68 = arith.constant dense<0xFF800000> : vector<16x8xf32>
    %124 = vector.multi_reduction <maximumf>, %123, %cst_68 [2] : vector<16x8x8xf32> to vector<16x8xf32>
    %125 = vector.shape_cast %124 : vector<16x8xf32> to vector<16x8x1xf32>
    %126 = vector.broadcast %125 : vector<16x8x1xf32> to vector<16x8x8xf32>
    %127 = arith.subf %123, %126 : vector<16x8x8xf32>
    %128 = math.exp %127 : vector<16x8x8xf32>
    %cst_69 = arith.constant dense<0.000000e+00> : vector<16x8xf32>
    %129 = vector.multi_reduction <add>, %128, %cst_69 [2] : vector<16x8x8xf32> to vector<16x8xf32>
    %130 = vector.shape_cast %129 : vector<16x8xf32> to vector<16x8x1xf32>
    %131 = vector.broadcast %130 : vector<16x8x1xf32> to vector<16x8x8xf32>
    %132 = arith.divf %128, %131 : vector<16x8x8xf32>
    "tpu.trace_start"() <{level = 10 : i32, message = "bqk,bkd->bqd"}> : () -> ()
    %cst_70 = arith.constant dense<0.000000e+00> : vector<16x8x16xf32>
    %133 = tpu.matmul %132, %119, %cst_70 {dimension_numbers = #tpu.dot_dimension_numbers<[2], [1], [1], [2], [0, 0, 0, 1, 1, 2], [0], [0]>} : vector<16x8x8xf32>, vector<16x8x16xf32>, vector<16x8x16xf32> -> vector<16x8x16xf32>
    "tpu.trace_stop"() : () -> ()
    %134 = vector.shape_cast %133 : vector<16x8x16xf32> to vector<128x16xf32>
    %135 = arith.truncf %134 : vector<128x16xf32> to vector<128x16xbf16>
    %c1_71 = arith.constant 1 : index
    %c0_72 = arith.constant 0 : index
    %c0_73 = arith.constant 0 : index
    %136 = vector.load %arg8[%c1_71, %c0_72, %c0_73] : memref<4x16x32xbf16, #tpu.memory_space<vmem>>, vector<1x16x32xbf16>
    %137 = vector.shape_cast %136 : vector<1x16x32xbf16> to vector<16x32xbf16>
    %cst_74 = arith.constant dense<0.000000e+00> : vector<128x32xf32>
    %138 = tpu.matmul %135, %137, %cst_74 {dimension_numbers = #tpu.dot_dimension_numbers<[1], [0], [0], [1], [0, 0, 1, 1], [], []>} : vector<128x16xbf16>, vector<16x32xbf16>, vector<128x32xf32> -> vector<128x32xf32>
    %139 = arith.addf %95, %138 : vector<128x32xf32>
    %c1_75 = arith.constant 1 : index
    %c0_76 = arith.constant 0 : index
    %140 = vector.load %arg10[%c1_75, %c0_76] : memref<8x128xf32, #tpu.memory_space<vmem>>, vector<1x32xf32>
    %141 = vector.broadcast %140 : vector<1x32xf32> to vector<128x32xf32>
    %142 = arith.addf %139, %141 : vector<128x32xf32>
    %143 = arith.addf %142, %44 : vector<128x32xf32>
    %c1_77 = arith.constant 1 : index
    %c32_78 = arith.constant 32 : index
    %144 = vector.load %arg10[%c1_77, %c32_78] : memref<8x128xf32, #tpu.memory_space<vmem>>, vector<1x32xf32>
    %c1_79 = arith.constant 1 : index
    %c64 = arith.constant 64 : index
    %145 = vector.load %arg10[%c1_79, %c64] : memref<8x128xf32, #tpu.memory_space<vmem>>, vector<1x32xf32>
    %cst_80 = arith.constant dense<0.000000e+00> : vector<128xf32>
    %146 = vector.multi_reduction <add>, %143, %cst_80 [1] : vector<128x32xf32> to vector<128xf32>
    %147 = vector.shape_cast %146 : vector<128xf32> to vector<128x1xf32>
    %cst_81 = arith.constant 3.200000e+01 : f32
    %148 = vector.broadcast %cst_81 : f32 to vector<128x1xf32>
    %149 = arith.divf %147, %148 : vector<128x1xf32>
    %150 = vector.broadcast %149 : vector<128x1xf32> to vector<128x32xf32>
    %151 = arith.subf %143, %150 : vector<128x32xf32>
    %152 = arith.mulf %151, %151 : vector<128x32xf32>
    %cst_82 = arith.constant dense<0.000000e+00> : vector<128xf32>
    %153 = vector.multi_reduction <add>, %152, %cst_82 [1] : vector<128x32xf32> to vector<128xf32>
    %154 = vector.shape_cast %153 : vector<128xf32> to vector<128x1xf32>
    %cst_83 = arith.constant 3.200000e+01 : f32
    %155 = vector.broadcast %cst_83 : f32 to vector<128x1xf32>
    %156 = arith.divf %154, %155 : vector<128x1xf32>
    %157 = vector.broadcast %149 : vector<128x1xf32> to vector<128x32xf32>
    %158 = arith.subf %143, %157 : vector<128x32xf32>
    %cst_84 = arith.constant 9.99999996E-13 : f32
    %159 = vector.broadcast %cst_84 : f32 to vector<128x1xf32>
    %160 = arith.addf %156, %159 : vector<128x1xf32>
    %161 = math.rsqrt %160 : vector<128x1xf32>
    %162 = vector.broadcast %161 : vector<128x1xf32> to vector<128x32xf32>
    %163 = arith.mulf %158, %162 : vector<128x32xf32>
    %164 = vector.broadcast %144 : vector<1x32xf32> to vector<128x32xf32>
    %165 = arith.mulf %163, %164 : vector<128x32xf32>
    %166 = vector.broadcast %145 : vector<1x32xf32> to vector<128x32xf32>
    %167 = arith.addf %165, %166 : vector<128x32xf32>
    %168 = arith.truncf %167 : vector<128x32xf32> to vector<128x32xbf16>
    %c0_85 = arith.constant 0 : index
    %c0_86 = arith.constant 0 : index
    %c0_87 = arith.constant 0 : index
    %169 = vector.load %arg9[%c0_85, %c0_86, %c0_87] : memref<4x32x64xbf16, #tpu.memory_space<vmem>>, vector<1x32x64xbf16>
    %170 = vector.shape_cast %169 : vector<1x32x64xbf16> to vector<32x64xbf16>
    %cst_88 = arith.constant dense<0.000000e+00> : vector<128x64xf32>
    %171 = tpu.matmul %168, %170, %cst_88 {dimension_numbers = #tpu.dot_dimension_numbers<[1], [0], [0], [1], [0, 0, 1, 1], [], []>} : vector<128x32xbf16>, vector<32x64xbf16>, vector<128x64xf32> -> vector<128x64xf32>
    %c2_89 = arith.constant 2 : index
    %c0_90 = arith.constant 0 : index
    %172 = vector.load %arg10[%c2_89, %c0_90] : memref<8x128xf32, #tpu.memory_space<vmem>>, vector<1x64xf32>
    %173 = vector.broadcast %172 : vector<1x64xf32> to vector<128x64xf32>
    %174 = arith.addf %171, %173 : vector<128x64xf32>
    %175 = arith.mulf %174, %174 : vector<128x64xf32>
    %176 = arith.mulf %174, %175 : vector<128x64xf32>
    %cst_91 = arith.constant 4.471500e-02 : f32
    %177 = vector.broadcast %cst_91 : f32 to vector<128x64xf32>
    %178 = arith.mulf %177, %176 : vector<128x64xf32>
    %179 = arith.addf %174, %178 : vector<128x64xf32>
    %cst_92 = arith.constant 0.797884583 : f32
    %180 = vector.broadcast %cst_92 : f32 to vector<128x64xf32>
    %181 = arith.mulf %180, %179 : vector<128x64xf32>
    %182 = math.tanh %181 : vector<128x64xf32>
    %cst_93 = arith.constant 1.000000e+00 : f32
    %183 = vector.broadcast %cst_93 : f32 to vector<128x64xf32>
    %184 = arith.addf %183, %182 : vector<128x64xf32>
    %cst_94 = arith.constant 5.000000e-01 : f32
    %185 = vector.broadcast %cst_94 : f32 to vector<128x64xf32>
    %186 = arith.mulf %185, %184 : vector<128x64xf32>
    %187 = arith.mulf %174, %186 : vector<128x64xf32>
    %188 = arith.truncf %187 : vector<128x64xf32> to vector<128x64xbf16>
    %c1_95 = arith.constant 1 : index
    %c0_96 = arith.constant 0 : index
    %c0_97 = arith.constant 0 : index
    %189 = vector.load %arg9[%c1_95, %c0_96, %c0_97] : memref<4x32x64xbf16, #tpu.memory_space<vmem>>, vector<1x32x64xbf16>
    %190 = vector.shape_cast %189 : vector<1x32x64xbf16> to vector<32x64xbf16>
    %cst_98 = arith.constant dense<0.000000e+00> : vector<128x32xf32>
    %191 = tpu.matmul %188, %190, %cst_98 {dimension_numbers = #tpu.dot_dimension_numbers<[1], [1], [0], [0], [0, 0, 1, 0], [], []>} : vector<128x64xbf16>, vector<32x64xbf16>, vector<128x32xf32> -> vector<128x32xf32>
    %c1_99 = arith.constant 1 : index
    %c96 = arith.constant 96 : index
    %192 = vector.load %arg10[%c1_99, %c96] : memref<8x128xf32, #tpu.memory_space<vmem>>, vector<1x32xf32>
    %193 = vector.broadcast %192 : vector<1x32xf32> to vector<128x32xf32>
    %194 = arith.addf %191, %193 : vector<128x32xf32>
    %195 = arith.addf %194, %167 : vector<128x32xf32>
    %c2_100 = arith.constant 2 : index
    %c64_101 = arith.constant 64 : index
    %196 = vector.load %arg10[%c2_100, %c64_101] : memref<8x128xf32, #tpu.memory_space<vmem>>, vector<1x32xf32>
    %c2_102 = arith.constant 2 : index
    %c96_103 = arith.constant 96 : index
    %197 = vector.load %arg10[%c2_102, %c96_103] : memref<8x128xf32, #tpu.memory_space<vmem>>, vector<1x32xf32>
    %cst_104 = arith.constant dense<0.000000e+00> : vector<128xf32>
    %198 = vector.multi_reduction <add>, %195, %cst_104 [1] : vector<128x32xf32> to vector<128xf32>
    %199 = vector.shape_cast %198 : vector<128xf32> to vector<128x1xf32>
    %cst_105 = arith.constant 3.200000e+01 : f32
    %200 = vector.broadcast %cst_105 : f32 to vector<128x1xf32>
    %201 = arith.divf %199, %200 : vector<128x1xf32>
    %202 = vector.broadcast %201 : vector<128x1xf32> to vector<128x32xf32>
    %203 = arith.subf %195, %202 : vector<128x32xf32>
    %204 = arith.mulf %203, %203 : vector<128x32xf32>
    %cst_106 = arith.constant dense<0.000000e+00> : vector<128xf32>
    %205 = vector.multi_reduction <add>, %204, %cst_106 [1] : vector<128x32xf32> to vector<128xf32>
    %206 = vector.shape_cast %205 : vector<128xf32> to vector<128x1xf32>
    %cst_107 = arith.constant 3.200000e+01 : f32
    %207 = vector.broadcast %cst_107 : f32 to vector<128x1xf32>
    %208 = arith.divf %206, %207 : vector<128x1xf32>
    %209 = vector.broadcast %201 : vector<128x1xf32> to vector<128x32xf32>
    %210 = arith.subf %195, %209 : vector<128x32xf32>
    %cst_108 = arith.constant 9.99999996E-13 : f32
    %211 = vector.broadcast %cst_108 : f32 to vector<128x1xf32>
    %212 = arith.addf %208, %211 : vector<128x1xf32>
    %213 = math.rsqrt %212 : vector<128x1xf32>
    %214 = vector.broadcast %213 : vector<128x1xf32> to vector<128x32xf32>
    %215 = arith.mulf %210, %214 : vector<128x32xf32>
    %216 = vector.broadcast %196 : vector<1x32xf32> to vector<128x32xf32>
    %217 = arith.mulf %215, %216 : vector<128x32xf32>
    %218 = vector.broadcast %197 : vector<1x32xf32> to vector<128x32xf32>
    %219 = arith.addf %217, %218 : vector<128x32xf32>
    %220 = arith.truncf %219 : vector<128x32xf32> to vector<128x32xbf16>
    %c6 = arith.constant 6 : index
    %c0_109 = arith.constant 0 : index
    %c0_110 = arith.constant 0 : index
    %221 = vector.load %arg6[%c6, %c0_109, %c0_110] : memref<12x32x16xbf16, #tpu.memory_space<vmem>>, vector<1x32x16xbf16>
    %222 = vector.shape_cast %221 : vector<1x32x16xbf16> to vector<32x16xbf16>
    %cst_111 = arith.constant dense<0.000000e+00> : vector<128x16xf32>
    %223 = tpu.matmul %220, %222, %cst_111 {dimension_numbers = #tpu.dot_dimension_numbers<[1], [0], [0], [1], [0, 0, 1, 1], [], []>} : vector<128x32xbf16>, vector<32x16xbf16>, vector<128x16xf32> -> vector<128x16xf32>
    %c6_112 = arith.constant 6 : index
    %c0_113 = arith.constant 0 : index
    %c0_114 = arith.constant 0 : index
    %224 = vector.load %arg7[%c6_112, %c0_113, %c0_114] : memref<12x1x16xf32, #tpu.memory_space<vmem>>, vector<1x1x16xf32>
    %225 = vector.shape_cast %224 : vector<1x1x16xf32> to vector<1x16xf32>
    %226 = vector.broadcast %225 : vector<1x16xf32> to vector<128x16xf32>
    %227 = arith.addf %223, %226 : vector<128x16xf32>
    %c8 = arith.constant 8 : index
    %c0_115 = arith.constant 0 : index
    %c0_116 = arith.constant 0 : index
    %228 = vector.load %arg6[%c8, %c0_115, %c0_116] : memref<12x32x16xbf16, #tpu.memory_space<vmem>>, vector<1x32x16xbf16>
    %229 = vector.shape_cast %228 : vector<1x32x16xbf16> to vector<32x16xbf16>
    %cst_117 = arith.constant dense<0.000000e+00> : vector<128x16xf32>
    %230 = tpu.matmul %220, %229, %cst_117 {dimension_numbers = #tpu.dot_dimension_numbers<[1], [0], [0], [1], [0, 0, 1, 1], [], []>} : vector<128x32xbf16>, vector<32x16xbf16>, vector<128x16xf32> -> vector<128x16xf32>
    %c8_118 = arith.constant 8 : index
    %c0_119 = arith.constant 0 : index
    %c0_120 = arith.constant 0 : index
    %231 = vector.load %arg7[%c8_118, %c0_119, %c0_120] : memref<12x1x16xf32, #tpu.memory_space<vmem>>, vector<1x1x16xf32>
    %232 = vector.shape_cast %231 : vector<1x1x16xf32> to vector<1x16xf32>
    %233 = vector.broadcast %232 : vector<1x16xf32> to vector<128x16xf32>
    %234 = arith.addf %230, %233 : vector<128x16xf32>
    %c10 = arith.constant 10 : index
    %c0_121 = arith.constant 0 : index
    %c0_122 = arith.constant 0 : index
    %235 = vector.load %arg6[%c10, %c0_121, %c0_122] : memref<12x32x16xbf16, #tpu.memory_space<vmem>>, vector<1x32x16xbf16>
    %236 = vector.shape_cast %235 : vector<1x32x16xbf16> to vector<32x16xbf16>
    %cst_123 = arith.constant dense<0.000000e+00> : vector<128x16xf32>
    %237 = tpu.matmul %220, %236, %cst_123 {dimension_numbers = #tpu.dot_dimension_numbers<[1], [0], [0], [1], [0, 0, 1, 1], [], []>} : vector<128x32xbf16>, vector<32x16xbf16>, vector<128x16xf32> -> vector<128x16xf32>
    %c10_124 = arith.constant 10 : index
    %c0_125 = arith.constant 0 : index
    %c0_126 = arith.constant 0 : index
    %238 = vector.load %arg7[%c10_124, %c0_125, %c0_126] : memref<12x1x16xf32, #tpu.memory_space<vmem>>, vector<1x1x16xf32>
    %239 = vector.shape_cast %238 : vector<1x1x16xf32> to vector<1x16xf32>
    %240 = vector.broadcast %239 : vector<1x16xf32> to vector<128x16xf32>
    %241 = arith.addf %237, %240 : vector<128x16xf32>
    %242 = vector.shape_cast %227 : vector<128x16xf32> to vector<16x8x16xf32>
    %243 = vector.shape_cast %234 : vector<128x16xf32> to vector<16x8x16xf32>
    %244 = vector.shape_cast %241 : vector<128x16xf32> to vector<16x8x16xf32>
    "tpu.trace_start"() <{level = 10 : i32, message = "bqd,bkd->bqk"}> : () -> ()
    %cst_127 = arith.constant dense<0.000000e+00> : vector<16x8x8xf32>
    %245 = tpu.matmul %242, %243, %cst_127 {dimension_numbers = #tpu.dot_dimension_numbers<[2], [2], [1], [1], [0, 0, 0, 1, 1, 1], [0], [0]>} : vector<16x8x16xf32>, vector<16x8x16xf32>, vector<16x8x8xf32> -> vector<16x8x8xf32>
    "tpu.trace_stop"() : () -> ()
    %cst_128 = arith.constant 2.500000e-01 : f32
    %246 = vector.broadcast %cst_128 : f32 to vector<16x8x8xf32>
    %247 = arith.mulf %245, %246 : vector<16x8x8xf32>
    %248 = arith.addf %247, %51 : vector<16x8x8xf32>
    %cst_129 = arith.constant dense<0xFF800000> : vector<16x8xf32>
    %249 = vector.multi_reduction <maximumf>, %248, %cst_129 [2] : vector<16x8x8xf32> to vector<16x8xf32>
    %250 = vector.shape_cast %249 : vector<16x8xf32> to vector<16x8x1xf32>
    %251 = vector.broadcast %250 : vector<16x8x1xf32> to vector<16x8x8xf32>
    %252 = arith.subf %248, %251 : vector<16x8x8xf32>
    %253 = math.exp %252 : vector<16x8x8xf32>
    %cst_130 = arith.constant dense<0.000000e+00> : vector<16x8xf32>
    %254 = vector.multi_reduction <add>, %253, %cst_130 [2] : vector<16x8x8xf32> to vector<16x8xf32>
    %255 = vector.shape_cast %254 : vector<16x8xf32> to vector<16x8x1xf32>
    %256 = vector.broadcast %255 : vector<16x8x1xf32> to vector<16x8x8xf32>
    %257 = arith.divf %253, %256 : vector<16x8x8xf32>
    "tpu.trace_start"() <{level = 10 : i32, message = "bqk,bkd->bqd"}> : () -> ()
    %cst_131 = arith.constant dense<0.000000e+00> : vector<16x8x16xf32>
    %258 = tpu.matmul %257, %244, %cst_131 {dimension_numbers = #tpu.dot_dimension_numbers<[2], [1], [1], [2], [0, 0, 0, 1, 1, 2], [0], [0]>} : vector<16x8x8xf32>, vector<16x8x16xf32>, vector<16x8x16xf32> -> vector<16x8x16xf32>
    "tpu.trace_stop"() : () -> ()
    %259 = vector.shape_cast %258 : vector<16x8x16xf32> to vector<128x16xf32>
    %260 = arith.truncf %259 : vector<128x16xf32> to vector<128x16xbf16>
    %c2_132 = arith.constant 2 : index
    %c0_133 = arith.constant 0 : index
    %c0_134 = arith.constant 0 : index
    %261 = vector.load %arg8[%c2_132, %c0_133, %c0_134] : memref<4x16x32xbf16, #tpu.memory_space<vmem>>, vector<1x16x32xbf16>
    %262 = vector.shape_cast %261 : vector<1x16x32xbf16> to vector<16x32xbf16>
    %cst_135 = arith.constant dense<0.000000e+00> : vector<128x32xf32>
    %263 = tpu.matmul %260, %262, %cst_135 {dimension_numbers = #tpu.dot_dimension_numbers<[1], [0], [0], [1], [0, 0, 1, 1], [], []>} : vector<128x16xbf16>, vector<16x32xbf16>, vector<128x32xf32> -> vector<128x32xf32>
    %c7 = arith.constant 7 : index
    %c0_136 = arith.constant 0 : index
    %c0_137 = arith.constant 0 : index
    %264 = vector.load %arg6[%c7, %c0_136, %c0_137] : memref<12x32x16xbf16, #tpu.memory_space<vmem>>, vector<1x32x16xbf16>
    %265 = vector.shape_cast %264 : vector<1x32x16xbf16> to vector<32x16xbf16>
    %cst_138 = arith.constant dense<0.000000e+00> : vector<128x16xf32>
    %266 = tpu.matmul %220, %265, %cst_138 {dimension_numbers = #tpu.dot_dimension_numbers<[1], [0], [0], [1], [0, 0, 1, 1], [], []>} : vector<128x32xbf16>, vector<32x16xbf16>, vector<128x16xf32> -> vector<128x16xf32>
    %c7_139 = arith.constant 7 : index
    %c0_140 = arith.constant 0 : index
    %c0_141 = arith.constant 0 : index
    %267 = vector.load %arg7[%c7_139, %c0_140, %c0_141] : memref<12x1x16xf32, #tpu.memory_space<vmem>>, vector<1x1x16xf32>
    %268 = vector.shape_cast %267 : vector<1x1x16xf32> to vector<1x16xf32>
    %269 = vector.broadcast %268 : vector<1x16xf32> to vector<128x16xf32>
    %270 = arith.addf %266, %269 : vector<128x16xf32>
    %c9 = arith.constant 9 : index
    %c0_142 = arith.constant 0 : index
    %c0_143 = arith.constant 0 : index
    %271 = vector.load %arg6[%c9, %c0_142, %c0_143] : memref<12x32x16xbf16, #tpu.memory_space<vmem>>, vector<1x32x16xbf16>
    %272 = vector.shape_cast %271 : vector<1x32x16xbf16> to vector<32x16xbf16>
    %cst_144 = arith.constant dense<0.000000e+00> : vector<128x16xf32>
    %273 = tpu.matmul %220, %272, %cst_144 {dimension_numbers = #tpu.dot_dimension_numbers<[1], [0], [0], [1], [0, 0, 1, 1], [], []>} : vector<128x32xbf16>, vector<32x16xbf16>, vector<128x16xf32> -> vector<128x16xf32>
    %c9_145 = arith.constant 9 : index
    %c0_146 = arith.constant 0 : index
    %c0_147 = arith.constant 0 : index
    %274 = vector.load %arg7[%c9_145, %c0_146, %c0_147] : memref<12x1x16xf32, #tpu.memory_space<vmem>>, vector<1x1x16xf32>
    %275 = vector.shape_cast %274 : vector<1x1x16xf32> to vector<1x16xf32>
    %276 = vector.broadcast %275 : vector<1x16xf32> to vector<128x16xf32>
    %277 = arith.addf %273, %276 : vector<128x16xf32>
    %c11 = arith.constant 11 : index
    %c0_148 = arith.constant 0 : index
    %c0_149 = arith.constant 0 : index
    %278 = vector.load %arg6[%c11, %c0_148, %c0_149] : memref<12x32x16xbf16, #tpu.memory_space<vmem>>, vector<1x32x16xbf16>
    %279 = vector.shape_cast %278 : vector<1x32x16xbf16> to vector<32x16xbf16>
    %cst_150 = arith.constant dense<0.000000e+00> : vector<128x16xf32>
    %280 = tpu.matmul %220, %279, %cst_150 {dimension_numbers = #tpu.dot_dimension_numbers<[1], [0], [0], [1], [0, 0, 1, 1], [], []>} : vector<128x32xbf16>, vector<32x16xbf16>, vector<128x16xf32> -> vector<128x16xf32>
    %c11_151 = arith.constant 11 : index
    %c0_152 = arith.constant 0 : index
    %c0_153 = arith.constant 0 : index
    %281 = vector.load %arg7[%c11_151, %c0_152, %c0_153] : memref<12x1x16xf32, #tpu.memory_space<vmem>>, vector<1x1x16xf32>
    %282 = vector.shape_cast %281 : vector<1x1x16xf32> to vector<1x16xf32>
    %283 = vector.broadcast %282 : vector<1x16xf32> to vector<128x16xf32>
    %284 = arith.addf %280, %283 : vector<128x16xf32>
    %285 = vector.shape_cast %270 : vector<128x16xf32> to vector<16x8x16xf32>
    %286 = vector.shape_cast %277 : vector<128x16xf32> to vector<16x8x16xf32>
    %287 = vector.shape_cast %284 : vector<128x16xf32> to vector<16x8x16xf32>
    "tpu.trace_start"() <{level = 10 : i32, message = "bqd,bkd->bqk"}> : () -> ()
    %cst_154 = arith.constant dense<0.000000e+00> : vector<16x8x8xf32>
    %288 = tpu.matmul %285, %286, %cst_154 {dimension_numbers = #tpu.dot_dimension_numbers<[2], [2], [1], [1], [0, 0, 0, 1, 1, 1], [0], [0]>} : vector<16x8x16xf32>, vector<16x8x16xf32>, vector<16x8x8xf32> -> vector<16x8x8xf32>
    "tpu.trace_stop"() : () -> ()
    %cst_155 = arith.constant 2.500000e-01 : f32
    %289 = vector.broadcast %cst_155 : f32 to vector<16x8x8xf32>
    %290 = arith.mulf %288, %289 : vector<16x8x8xf32>
    %291 = arith.addf %290, %51 : vector<16x8x8xf32>
    %cst_156 = arith.constant dense<0xFF800000> : vector<16x8xf32>
    %292 = vector.multi_reduction <maximumf>, %291, %cst_156 [2] : vector<16x8x8xf32> to vector<16x8xf32>
    %293 = vector.shape_cast %292 : vector<16x8xf32> to vector<16x8x1xf32>
    %294 = vector.broadcast %293 : vector<16x8x1xf32> to vector<16x8x8xf32>
    %295 = arith.subf %291, %294 : vector<16x8x8xf32>
    %296 = math.exp %295 : vector<16x8x8xf32>
    %cst_157 = arith.constant dense<0.000000e+00> : vector<16x8xf32>
    %297 = vector.multi_reduction <add>, %296, %cst_157 [2] : vector<16x8x8xf32> to vector<16x8xf32>
    %298 = vector.shape_cast %297 : vector<16x8xf32> to vector<16x8x1xf32>
    %299 = vector.broadcast %298 : vector<16x8x1xf32> to vector<16x8x8xf32>
    %300 = arith.divf %296, %299 : vector<16x8x8xf32>
    "tpu.trace_start"() <{level = 10 : i32, message = "bqk,bkd->bqd"}> : () -> ()
    %cst_158 = arith.constant dense<0.000000e+00> : vector<16x8x16xf32>
    %301 = tpu.matmul %300, %287, %cst_158 {dimension_numbers = #tpu.dot_dimension_numbers<[2], [1], [1], [2], [0, 0, 0, 1, 1, 2], [0], [0]>} : vector<16x8x8xf32>, vector<16x8x16xf32>, vector<16x8x16xf32> -> vector<16x8x16xf32>
    "tpu.trace_stop"() : () -> ()
    %302 = vector.shape_cast %301 : vector<16x8x16xf32> to vector<128x16xf32>
    %303 = arith.truncf %302 : vector<128x16xf32> to vector<128x16xbf16>
    %c3_159 = arith.constant 3 : index
    %c0_160 = arith.constant 0 : index
    %c0_161 = arith.constant 0 : index
    %304 = vector.load %arg8[%c3_159, %c0_160, %c0_161] : memref<4x16x32xbf16, #tpu.memory_space<vmem>>, vector<1x16x32xbf16>
    %305 = vector.shape_cast %304 : vector<1x16x32xbf16> to vector<16x32xbf16>
    %cst_162 = arith.constant dense<0.000000e+00> : vector<128x32xf32>
    %306 = tpu.matmul %303, %305, %cst_162 {dimension_numbers = #tpu.dot_dimension_numbers<[1], [0], [0], [1], [0, 0, 1, 1], [], []>} : vector<128x16xbf16>, vector<16x32xbf16>, vector<128x32xf32> -> vector<128x32xf32>
    %307 = arith.addf %263, %306 : vector<128x32xf32>
    %c3_163 = arith.constant 3 : index
    %c0_164 = arith.constant 0 : index
    %308 = vector.load %arg10[%c3_163, %c0_164] : memref<8x128xf32, #tpu.memory_space<vmem>>, vector<1x32xf32>
    %309 = vector.broadcast %308 : vector<1x32xf32> to vector<128x32xf32>
    %310 = arith.addf %307, %309 : vector<128x32xf32>
    %311 = arith.addf %310, %219 : vector<128x32xf32>
    %c3_165 = arith.constant 3 : index
    %c32_166 = arith.constant 32 : index
    %312 = vector.load %arg10[%c3_165, %c32_166] : memref<8x128xf32, #tpu.memory_space<vmem>>, vector<1x32xf32>
    %c3_167 = arith.constant 3 : index
    %c64_168 = arith.constant 64 : index
    %313 = vector.load %arg10[%c3_167, %c64_168] : memref<8x128xf32, #tpu.memory_space<vmem>>, vector<1x32xf32>
    %cst_169 = arith.constant dense<0.000000e+00> : vector<128xf32>
    %314 = vector.multi_reduction <add>, %311, %cst_169 [1] : vector<128x32xf32> to vector<128xf32>
    %315 = vector.shape_cast %314 : vector<128xf32> to vector<128x1xf32>
    %cst_170 = arith.constant 3.200000e+01 : f32
    %316 = vector.broadcast %cst_170 : f32 to vector<128x1xf32>
    %317 = arith.divf %315, %316 : vector<128x1xf32>
    %318 = vector.broadcast %317 : vector<128x1xf32> to vector<128x32xf32>
    %319 = arith.subf %311, %318 : vector<128x32xf32>
    %320 = arith.mulf %319, %319 : vector<128x32xf32>
    %cst_171 = arith.constant dense<0.000000e+00> : vector<128xf32>
    %321 = vector.multi_reduction <add>, %320, %cst_171 [1] : vector<128x32xf32> to vector<128xf32>
    %322 = vector.shape_cast %321 : vector<128xf32> to vector<128x1xf32>
    %cst_172 = arith.constant 3.200000e+01 : f32
    %323 = vector.broadcast %cst_172 : f32 to vector<128x1xf32>
    %324 = arith.divf %322, %323 : vector<128x1xf32>
    %325 = vector.broadcast %317 : vector<128x1xf32> to vector<128x32xf32>
    %326 = arith.subf %311, %325 : vector<128x32xf32>
    %cst_173 = arith.constant 9.99999996E-13 : f32
    %327 = vector.broadcast %cst_173 : f32 to vector<128x1xf32>
    %328 = arith.addf %324, %327 : vector<128x1xf32>
    %329 = math.rsqrt %328 : vector<128x1xf32>
    %330 = vector.broadcast %329 : vector<128x1xf32> to vector<128x32xf32>
    %331 = arith.mulf %326, %330 : vector<128x32xf32>
    %332 = vector.broadcast %312 : vector<1x32xf32> to vector<128x32xf32>
    %333 = arith.mulf %331, %332 : vector<128x32xf32>
    %334 = vector.broadcast %313 : vector<1x32xf32> to vector<128x32xf32>
    %335 = arith.addf %333, %334 : vector<128x32xf32>
    %336 = arith.truncf %335 : vector<128x32xf32> to vector<128x32xbf16>
    %c2_174 = arith.constant 2 : index
    %c0_175 = arith.constant 0 : index
    %c0_176 = arith.constant 0 : index
    %337 = vector.load %arg9[%c2_174, %c0_175, %c0_176] : memref<4x32x64xbf16, #tpu.memory_space<vmem>>, vector<1x32x64xbf16>
    %338 = vector.shape_cast %337 : vector<1x32x64xbf16> to vector<32x64xbf16>
    %cst_177 = arith.constant dense<0.000000e+00> : vector<128x64xf32>
    %339 = tpu.matmul %336, %338, %cst_177 {dimension_numbers = #tpu.dot_dimension_numbers<[1], [0], [0], [1], [0, 0, 1, 1], [], []>} : vector<128x32xbf16>, vector<32x64xbf16>, vector<128x64xf32> -> vector<128x64xf32>
    %c4_178 = arith.constant 4 : index
    %c0_179 = arith.constant 0 : index
    %340 = vector.load %arg10[%c4_178, %c0_179] : memref<8x128xf32, #tpu.memory_space<vmem>>, vector<1x64xf32>
    %341 = vector.broadcast %340 : vector<1x64xf32> to vector<128x64xf32>
    %342 = arith.addf %339, %341 : vector<128x64xf32>
    %343 = arith.mulf %342, %342 : vector<128x64xf32>
    %344 = arith.mulf %342, %343 : vector<128x64xf32>
    %cst_180 = arith.constant 4.471500e-02 : f32
    %345 = vector.broadcast %cst_180 : f32 to vector<128x64xf32>
    %346 = arith.mulf %345, %344 : vector<128x64xf32>
    %347 = arith.addf %342, %346 : vector<128x64xf32>
    %cst_181 = arith.constant 0.797884583 : f32
    %348 = vector.broadcast %cst_181 : f32 to vector<128x64xf32>
    %349 = arith.mulf %348, %347 : vector<128x64xf32>
    %350 = math.tanh %349 : vector<128x64xf32>
    %cst_182 = arith.constant 1.000000e+00 : f32
    %351 = vector.broadcast %cst_182 : f32 to vector<128x64xf32>
    %352 = arith.addf %351, %350 : vector<128x64xf32>
    %cst_183 = arith.constant 5.000000e-01 : f32
    %353 = vector.broadcast %cst_183 : f32 to vector<128x64xf32>
    %354 = arith.mulf %353, %352 : vector<128x64xf32>
    %355 = arith.mulf %342, %354 : vector<128x64xf32>
    %356 = arith.truncf %355 : vector<128x64xf32> to vector<128x64xbf16>
    %c3_184 = arith.constant 3 : index
    %c0_185 = arith.constant 0 : index
    %c0_186 = arith.constant 0 : index
    %357 = vector.load %arg9[%c3_184, %c0_185, %c0_186] : memref<4x32x64xbf16, #tpu.memory_space<vmem>>, vector<1x32x64xbf16>
    %358 = vector.shape_cast %357 : vector<1x32x64xbf16> to vector<32x64xbf16>
    %cst_187 = arith.constant dense<0.000000e+00> : vector<128x32xf32>
    %359 = tpu.matmul %356, %358, %cst_187 {dimension_numbers = #tpu.dot_dimension_numbers<[1], [1], [0], [0], [0, 0, 1, 0], [], []>} : vector<128x64xbf16>, vector<32x64xbf16>, vector<128x32xf32> -> vector<128x32xf32>
    %c3_188 = arith.constant 3 : index
    %c96_189 = arith.constant 96 : index
    %360 = vector.load %arg10[%c3_188, %c96_189] : memref<8x128xf32, #tpu.memory_space<vmem>>, vector<1x32xf32>
    %361 = vector.broadcast %360 : vector<1x32xf32> to vector<128x32xf32>
    %362 = arith.addf %359, %361 : vector<128x32xf32>
    %363 = arith.addf %362, %335 : vector<128x32xf32>
    %c4_190 = arith.constant 4 : index
    %c64_191 = arith.constant 64 : index
    %364 = vector.load %arg10[%c4_190, %c64_191] : memref<8x128xf32, #tpu.memory_space<vmem>>, vector<1x32xf32>
    %c4_192 = arith.constant 4 : index
    %c96_193 = arith.constant 96 : index
    %365 = vector.load %arg10[%c4_192, %c96_193] : memref<8x128xf32, #tpu.memory_space<vmem>>, vector<1x32xf32>
    %cst_194 = arith.constant dense<0.000000e+00> : vector<128xf32>
    %366 = vector.multi_reduction <add>, %363, %cst_194 [1] : vector<128x32xf32> to vector<128xf32>
    %367 = vector.shape_cast %366 : vector<128xf32> to vector<128x1xf32>
    %cst_195 = arith.constant 3.200000e+01 : f32
    %368 = vector.broadcast %cst_195 : f32 to vector<128x1xf32>
    %369 = arith.divf %367, %368 : vector<128x1xf32>
    %370 = vector.broadcast %369 : vector<128x1xf32> to vector<128x32xf32>
    %371 = arith.subf %363, %370 : vector<128x32xf32>
    %372 = arith.mulf %371, %371 : vector<128x32xf32>
    %cst_196 = arith.constant dense<0.000000e+00> : vector<128xf32>
    %373 = vector.multi_reduction <add>, %372, %cst_196 [1] : vector<128x32xf32> to vector<128xf32>
    %374 = vector.shape_cast %373 : vector<128xf32> to vector<128x1xf32>
    %cst_197 = arith.constant 3.200000e+01 : f32
    %375 = vector.broadcast %cst_197 : f32 to vector<128x1xf32>
    %376 = arith.divf %374, %375 : vector<128x1xf32>
    %377 = vector.broadcast %369 : vector<128x1xf32> to vector<128x32xf32>
    %378 = arith.subf %363, %377 : vector<128x32xf32>
    %cst_198 = arith.constant 9.99999996E-13 : f32
    %379 = vector.broadcast %cst_198 : f32 to vector<128x1xf32>
    %380 = arith.addf %376, %379 : vector<128x1xf32>
    %381 = math.rsqrt %380 : vector<128x1xf32>
    %382 = vector.broadcast %381 : vector<128x1xf32> to vector<128x32xf32>
    %383 = arith.mulf %378, %382 : vector<128x32xf32>
    %384 = vector.broadcast %364 : vector<1x32xf32> to vector<128x32xf32>
    %385 = arith.mulf %383, %384 : vector<128x32xf32>
    %386 = vector.broadcast %365 : vector<1x32xf32> to vector<128x32xf32>
    %387 = arith.addf %385, %386 : vector<128x32xf32>
    %c0_199 = arith.constant 0 : index
    %c0_200 = arith.constant 0 : index
    %c0_201 = arith.constant 0 : index
    %388 = vector.load %arg4[%c0_199, %c0_200, %c0_201] : memref<16x8x1xf32, #tpu.memory_space<vmem>>, vector<16x8x1xf32>
    %389 = vector.shape_cast %387 : vector<128x32xf32> to vector<16x8x32xf32>
    %390 = vector.broadcast %388 : vector<16x8x1xf32> to vector<16x8x32xf32>
    %391 = arith.mulf %389, %390 : vector<16x8x32xf32>
    %cst_202 = arith.constant dense<0.000000e+00> : vector<16x32xf32>
    %392 = vector.multi_reduction <add>, %391, %cst_202 [1] : vector<16x8x32xf32> to vector<16x32xf32>
    %cst_203 = arith.constant dense<0.000000e+00> : vector<16x1xf32>
    %393 = vector.multi_reduction <add>, %388, %cst_203 [1] : vector<16x8x1xf32> to vector<16x1xf32>
    %cst_204 = arith.constant 9.99999971E-10 : f32
    %394 = vector.broadcast %cst_204 : f32 to vector<16x1xf32>
    %395 = arith.maximumf %393, %394 : vector<16x1xf32>
    %396 = vector.broadcast %395 : vector<16x1xf32> to vector<16x32xf32>
    %397 = arith.divf %392, %396 : vector<16x32xf32>
    %398 = arith.mulf %397, %397 : vector<16x32xf32>
    %cst_205 = arith.constant dense<0.000000e+00> : vector<16xf32>
    %399 = vector.multi_reduction <add>, %398, %cst_205 [1] : vector<16x32xf32> to vector<16xf32>
    %400 = vector.shape_cast %399 : vector<16xf32> to vector<16x1xf32>
    %401 = math.sqrt %400 : vector<16x1xf32>
    %cst_206 = arith.constant 9.99999996E-13 : f32
    %402 = vector.broadcast %cst_206 : f32 to vector<16x1xf32>
    %403 = arith.maximumf %401, %402 : vector<16x1xf32>
    %404 = vector.broadcast %403 : vector<16x1xf32> to vector<16x32xf32>
    %405 = arith.divf %397, %404 : vector<16x32xf32>
    %c0_207 = arith.constant 0 : index
    %c0_208 = arith.constant 0 : index
    %406 = vector.load %arg11[%c0_207, %c0_208] : memref<16x32xf32, #tpu.memory_space<vmem>>, vector<16x32xf32>
    tpu.vector_store %arg11[%c0_207, %c0_208], %405 {strides = array<i32>} : memref<16x32xf32, #tpu.memory_space<vmem>>, vector<16x32xf32>,
    return
  }
  func.func @transform_0(%arg0: i32) -> (i32, i32, i32) {
    %c0_i32 = arith.constant 0 : i32
    %c0_i32_0 = arith.constant 0 : i32
    %c0_i32_1 = arith.constant 0 : i32
    return %arg0, %c0_i32, %c0_i32_0 : i32, i32, i32
  }
  func.func @transform_1(%arg0: i32) -> (i32, i32, i32) {
    %c0_i32 = arith.constant 0 : i32
    %c0_i32_0 = arith.constant 0 : i32
    %c0_i32_1 = arith.constant 0 : i32
    return %arg0, %c0_i32, %c0_i32_0 : i32, i32, i32
  }
  func.func @transform_2(%arg0: i32) -> (i32, i32, i32) {
    %c0_i32 = arith.constant 0 : i32
    %c0_i32_0 = arith.constant 0 : i32
    %c0_i32_1 = arith.constant 0 : i32
    return %arg0, %c0_i32, %c0_i32_0 : i32, i32, i32
  }
  func.func @transform_3(%arg0: i32) -> (i32, i32, i32) {
    %c0_i32 = arith.constant 0 : i32
    %c0_i32_0 = arith.constant 0 : i32
    %c0_i32_1 = arith.constant 0 : i32
    return %arg0, %c0_i32, %c0_i32_0 : i32, i32, i32
  }
  func.func @transform_4(%arg0: i32) -> (i32, i32) {
    %c0_i32 = arith.constant 0 : i32
    %c0_i32_0 = arith.constant 0 : i32
    %c0_i32_1 = arith.constant 0 : i32
    return %c0_i32, %c0_i32_0 : i32, i32
  }
  func.func @transform_5(%arg0: i32) -> (i32, i32, i32) {
    %c0_i32 = arith.constant 0 : i32
    %c0_i32_0 = arith.constant 0 : i32
    %c0_i32_1 = arith.constant 0 : i32
    %c0_i32_2 = arith.constant 0 : i32
    return %c0_i32, %c0_i32_0, %c0_i32_1 : i32, i32, i32
  }
  func.func @transform_6(%arg0: i32) -> (i32, i32, i32) {
    %c0_i32 = arith.constant 0 : i32
    %c0_i32_0 = arith.constant 0 : i32
    %c0_i32_1 = arith.constant 0 : i32
    %c0_i32_2 = arith.constant 0 : i32
    return %c0_i32, %c0_i32_0, %c0_i32_1 : i32, i32, i32
  }
  func.func @transform_7(%arg0: i32) -> (i32, i32, i32) {
    %c0_i32 = arith.constant 0 : i32
    %c0_i32_0 = arith.constant 0 : i32
    %c0_i32_1 = arith.constant 0 : i32
    %c0_i32_2 = arith.constant 0 : i32
    return %c0_i32, %c0_i32_0, %c0_i32_1 : i32, i32, i32
  }
  func.func @transform_8(%arg0: i32) -> (i32, i32, i32) {
    %c0_i32 = arith.constant 0 : i32
    %c0_i32_0 = arith.constant 0 : i32
    %c0_i32_1 = arith.constant 0 : i32
    %c0_i32_2 = arith.constant 0 : i32
    return %c0_i32, %c0_i32_0, %c0_i32_1 : i32, i32, i32
  }
  func.func @transform_9(%arg0: i32) -> (i32, i32) {
    %c0_i32 = arith.constant 0 : i32
    %c0_i32_0 = arith.constant 0 : i32
    %c0_i32_1 = arith.constant 0 : i32
    return %c0_i32, %c0_i32_0 : i32, i32
  }
  func.func @transform_10(%arg0: i32) -> (i32, i32) {
    %c0_i32 = arith.constant 0 : i32
    %c0_i32_0 = arith.constant 0 : i32
    return %arg0, %c0_i32 : i32, i32
  }
}

</mosaic_0001>

<llo_original>
// kernel: encode.1
$region0: #{encode.1}
  #allocation0 [shape = 'u32[]', space=smem, size = 0x4, offset = 0x4, fixed_abs, tag = 'smem constant byte address 0x4 - core index']
  #allocation1 [shape = 'u32[72,128]{1,0:T(1,128)}', space=vmem, size = 0x9000, scoped, tag = 'internal scratch']
  %s0 = inlined_call_operand.vmem [shape: s32[32,8,1], index: 0, kind: input, shape index: {}]
  %s1 = inlined_call_operand.vmem [shape: s32[32,8,1], index: 1, kind: input, shape index: {}]
  %s2 = inlined_call_operand.vmem [shape: f32[32,1,8], index: 2, kind: input, shape index: {}]
  %s3 = inlined_call_operand.vmem [shape: f32[32,8,1], index: 3, kind: input, shape index: {}]
  %s4 = inlined_call_operand.vmem [shape: bf16[128,32], index: 4, kind: input, shape index: {}]
  %s5 = inlined_call_operand.vmem [shape: bf16[12,32,16], index: 5, kind: input, shape index: {}]
  %s6 = inlined_call_operand.vmem [shape: f32[12,1,16], index: 6, kind: input, shape index: {}]
  %s7 = inlined_call_operand.vmem [shape: bf16[4,16,32], index: 7, kind: input, shape index: {}]
  %s8 = inlined_call_operand.vmem [shape: bf16[4,32,64], index: 8, kind: input, shape index: {}]
  %s9 = inlined_call_operand.vmem [shape: f32[8,128], index: 9, kind: input, shape index: {}]
  %s10 = inlined_call_operand.hbm [shape: f32[32,32], index: 10, kind: output, shape index: {}]
  %s11 = sld [smem:[#allocation0]]
  $region73: #{encode.1} parent=0
    _
  %s13 = ssub.s32 1, %s11
  %s14 = scalar_select 0, %s13, %s11
  $region1: #{encode.1} parent=0
    #allocation2 [shape = 'u8[16384]{0}', space=vmem, size = 0x4000, scoped, tag = 'output window, operand 0']
    #allocation3 [shape = 's32[2]{0}', space=sflag, size = 0x8, scoped, tag = 'scoped memory for encode.1']
    %15 = vsyncpa [#allocation3], 0
    %s16 = scalar_lea.sflag [#allocation3], 1
    %17 = vsyncpa %s16, 0
    loop: start=0, step=1, limit=4
    $region2: #{encode.1} parent=1 // loop_pre_header
      _
    $region3: #{encode.1} parent=1 // loop_header
      %s19 = sphi 0, %s23
      %p20 = scmp.ge.s32.totalorder %s19, 4
      %s29 = sphi 0, %s31
      %s32 = sphi 0, %s29
      %s33 = sphi 0, %s32
      %s49 = sphi 0, %s33
      %s55 = sphi 0, %s57
      %s58 = sphi 0, %s55
      %s59 = sphi 0, %s58
      %s75 = sphi 0, %s59
      %s81 = sphi 0, %s83
      %s84 = sphi 0, %s81
      %s85 = sphi 0, %s84
      %s101 = sphi 0, %s85
      %s107 = sphi 0, %s109
      %s110 = sphi 0, %s107
      %s111 = sphi 0, %s110
      %s127 = sphi 0, %s111
      %s131 = sphi 0, %s131
      %s133 = sphi 0, %s131
      %s134 = sphi 0, %s133
      %s148 = sphi 0, %s134
      %s152 = sphi 0, %s152
      %s154 = sphi 0, %s152
      %s155 = sphi 0, %s154
      %s169 = sphi 0, %s155
      %s173 = sphi 0, %s173
      %s175 = sphi 0, %s173
      %s176 = sphi 0, %s175
      %s190 = sphi 0, %s176
      %s194 = sphi 0, %s194
      %s196 = sphi 0, %s194
      %s197 = sphi 0, %s196
      %s211 = sphi 0, %s197
      %s215 = sphi 0, %s215
      %s217 = sphi 0, %s215
      %s218 = sphi 0, %s217
      %s232 = sphi 0, %s218
      %s236 = sphi 0, %s236
      %s238 = sphi 0, %s236
      %s239 = sphi 0, %s238
      %s253 = sphi 0, %s239
      %s259 = sphi 0, %s261
      %s262 = sphi 0, %s259
      %s263 = sphi 0, %s262
      %s279 = sphi 0, %s263
    $region4: #{encode.1} parent=1 // loop_header_branch
      %22 = sbr.rel (%p20) target = $region8
    $region5: #{encode.1} parent=1 // loop_body
      %s24 = ssub.s32 %s19, 1
      %s25 = ssub.s32 %s19, 2
      %s26 = sadd.s32 %s19, 1
      %s27 = ssub.s32 %s19, %s26
      %p28 = scmp.eq.s32.totalorder %s27, 0
      %s30 = sadd.s32 %s29, 1
      %s31 = scalar_select %p28, %s29, %s30
      %p34 = pneg %p28
      %p35 = scmp.eq.s32.totalorder %s19, 1
      %p36 = por %p34, %p35
      %p37 = scmp.ne.s32.totalorder %s29, %s32
      %p38 = scmp.eq.s32.totalorder %s19, 0
      %p39 = por %p37, %p38
      %p40 = scmp.ne.s32.totalorder %s29, %s32
      %p41 = scmp.eq.s32.totalorder %s24, 1
      %p42 = por %p40, %p41
      %p43 = scmp.ne.s32.totalorder %s32, %s33
      %p44 = scmp.eq.s32.totalorder %s24, 0
      %p45 = por %p43, %p44
      %p46 = scmp.ne.s32.totalorder %s32, %s33
      %p47 = scmp.eq.s32.totalorder %s25, 1
      %p48 = por %p46, %p47
      %p50 = scmp.ne.s32.totalorder %s33, %s49
      %p51 = scmp.eq.s32.totalorder %s25, 0
      %p52 = por %p50, %p51
      %s53 = ssub.s32 %s19, %s26
      %p54 = scmp.eq.s32.totalorder %s53, 0
      %s56 = sadd.s32 %s55, 1
      %s57 = scalar_select %p54, %s55, %s56
      %p60 = pneg %p54
      %p61 = scmp.eq.s32.totalorder %s19, 1
      %p62 = por %p60, %p61
      %p63 = scmp.ne.s32.totalorder %s55, %s58
      %p64 = scmp.eq.s32.totalorder %s19, 0
      %p65 = por %p63, %p64
      %p66 = scmp.ne.s32.totalorder %s55, %s58
      %p67 = scmp.eq.s32.totalorder %s24, 1
      %p68 = por %p66, %p67
      %p69 = scmp.ne.s32.totalorder %s58, %s59
      %p70 = scmp.eq.s32.totalorder %s24, 0
      %p71 = por %p69, %p70
      %p72 = scmp.ne.s32.totalorder %s58, %s59
      %p73 = scmp.eq.s32.totalorder %s25, 1
      %p74 = por %p72, %p73
      %p76 = scmp.ne.s32.totalorder %s59, %s75
      %p77 = scmp.eq.s32.totalorder %s25, 0
      %p78 = por %p76, %p77
      %s79 = ssub.s32 %s19, %s26
      %p80 = scmp.eq.s32.totalorder %s79, 0
      %s82 = sadd.s32 %s81, 1
      %s83 = scalar_select %p80, %s81, %s82
      %p86 = pneg %p80
      %p87 = scmp.eq.s32.totalorder %s19, 1
      %p88 = por %p86, %p87
      %p89 = scmp.ne.s32.totalorder %s81, %s84
      %p90 = scmp.eq.s32.totalorder %s19, 0
      %p91 = por %p89, %p90
      %p92 = scmp.ne.s32.totalorder %s81, %s84
      %p93 = scmp.eq.s32.totalorder %s24, 1
      %p94 = por %p92, %p93
      %p95 = scmp.ne.s32.totalorder %s84, %s85
      %p96 = scmp.eq.s32.totalorder %s24, 0
      %p97 = por %p95, %p96
      %p98 = scmp.ne.s32.totalorder %s84, %s85
      %p99 = scmp.eq.s32.totalorder %s25, 1
      %p100 = por %p98, %p99
      %p102 = scmp.ne.s32.totalorder %s85, %s101
      %p103 = scmp.eq.s32.totalorder %s25, 0
      %p104 = por %p102, %p103
      %s105 = ssub.s32 %s19, %s26
      %p106 = scmp.eq.s32.totalorder %s105, 0
      %s108 = sadd.s32 %s107, 1
      %s109 = scalar_select %p106, %s107, %s108
      %p112 = pneg %p106
      %p113 = scmp.eq.s32.totalorder %s19, 1
      %p114 = por %p112, %p113
      %p115 = scmp.ne.s32.totalorder %s107, %s110
      %p116 = scmp.eq.s32.totalorder %s19, 0
      %p117 = por %p115, %p116
      %p118 = scmp.ne.s32.totalorder %s107, %s110
      %p119 = scmp.eq.s32.totalorder %s24, 1
      %p120 = por %p118, %p119
      %p121 = scmp.ne.s32.totalorder %s110, %s111
      %p122 = scmp.eq.s32.totalorder %s24, 0
      %p123 = por %p121, %p122
      %p124 = scmp.ne.s32.totalorder %s110, %s111
      %p125 = scmp.eq.s32.totalorder %s25, 1
      %p126 = por %p124, %p125
      %p128 = scmp.ne.s32.totalorder %s111, %s127
      %p129 = scmp.eq.s32.totalorder %s25, 0
      %p130 = por %p128, %p129
      %s132 = sadd.s32 %s131, 1
      %p135 = scmp.eq.s32.totalorder %s19, 1
      %p136 = scmp.ne.s32.totalorder %s131, %s133
      %p137 = scmp.eq.s32.totalorder %s19, 0
      %p138 = por %p136, %p137
      %p139 = scmp.ne.s32.totalorder %s131, %s133
      %p140 = scmp.eq.s32.totalorder %s24, 1
      %p141 = por %p139, %p140
      %p142 = scmp.ne.s32.totalorder %s133, %s134
      %p143 = scmp.eq.s32.totalorder %s24, 0
      %p144 = por %p142, %p143
      %p145 = scmp.ne.s32.totalorder %s133, %s134
      %p146 = scmp.eq.s32.totalorder %s25, 1
      %p147 = por %p145, %p146
      %p149 = scmp.ne.s32.totalorder %s134, %s148
      %p150 = scmp.eq.s32.totalorder %s25, 0
      %p151 = por %p149, %p150
      %s153 = sadd.s32 %s152, 1
      %p156 = scmp.eq.s32.totalorder %s19, 1
      %p157 = scmp.ne.s32.totalorder %s152, %s154
      %p158 = scmp.eq.s32.totalorder %s19, 0
      %p159 = por %p157, %p158
      %p160 = scmp.ne.s32.totalorder %s152, %s154
      %p161 = scmp.eq.s32.totalorder %s24, 1
      %p162 = por %p160, %p161
      %p163 = scmp.ne.s32.totalorder %s154, %s155
      %p164 = scmp.eq.s32.totalorder %s24, 0
      %p165 = por %p163, %p164
      %p166 = scmp.ne.s32.totalorder %s154, %s155
      %p167 = scmp.eq.s32.totalorder %s25, 1
      %p168 = por %p166, %p167
      %p170 = scmp.ne.s32.totalorder %s155, %s169
      %p171 = scmp.eq.s32.totalorder %s25, 0
      %p172 = por %p170, %p171
      %s174 = sadd.s32 %s173, 1
      %p177 = scmp.eq.s32.totalorder %s19, 1
      %p178 = scmp.ne.s32.totalorder %s173, %s175
      %p179 = scmp.eq.s32.totalorder %s19, 0
      %p180 = por %p178, %p179
      %p181 = scmp.ne.s32.totalorder %s173, %s175
      %p182 = scmp.eq.s32.totalorder %s24, 1
      %p183 = por %p181, %p182
      %p184 = scmp.ne.s32.totalorder %s175, %s176
      %p185 = scmp.eq.s32.totalorder %s24, 0
      %p186 = por %p184, %p185
      %p187 = scmp.ne.s32.totalorder %s175, %s176
      %p188 = scmp.eq.s32.totalorder %s25, 1
      %p189 = por %p187, %p188
      %p191 = scmp.ne.s32.totalorder %s176, %s190
      %p192 = scmp.eq.s32.totalorder %s25, 0
      %p193 = por %p191, %p192
      %s195 = sadd.s32 %s194, 1
      %p198 = scmp.eq.s32.totalorder %s19, 1
      %p199 = scmp.ne.s32.totalorder %s194, %s196
      %p200 = scmp.eq.s32.totalorder %s19, 0
      %p201 = por %p199, %p200
      %p202 = scmp.ne.s32.totalorder %s194, %s196
      %p203 = scmp.eq.s32.totalorder %s24, 1
      %p204 = por %p202, %p203
      %p205 = scmp.ne.s32.totalorder %s196, %s197
      %p206 = scmp.eq.s32.totalorder %s24, 0
      %p207 = por %p205, %p206
      %p208 = scmp.ne.s32.totalorder %s196, %s197
      %p209 = scmp.eq.s32.totalorder %s25, 1
      %p210 = por %p208, %p209
      %p212 = scmp.ne.s32.totalorder %s197, %s211
      %p213 = scmp.eq.s32.totalorder %s25, 0
      %p214 = por %p212, %p213
      %s216 = sadd.s32 %s215, 1
      %p219 = scmp.eq.s32.totalorder %s19, 1
      %p220 = scmp.ne.s32.totalorder %s215, %s217
      %p221 = scmp.eq.s32.totalorder %s19, 0
      %p222 = por %p220, %p221
      %p223 = scmp.ne.s32.totalorder %s215, %s217
      %p224 = scmp.eq.s32.totalorder %s24, 1
      %p225 = por %p223, %p224
      %p226 = scmp.ne.s32.totalorder %s217, %s218
      %p227 = scmp.eq.s32.totalorder %s24, 0
      %p228 = por %p226, %p227
      %p229 = scmp.ne.s32.totalorder %s217, %s218
      %p230 = scmp.eq.s32.totalorder %s25, 1
      %p231 = por %p229, %p230
      %p233 = scmp.ne.s32.totalorder %s218, %s232
      %p234 = scmp.eq.s32.totalorder %s25, 0
      %p235 = por %p233, %p234
      %s237 = sadd.s32 %s236, 1
      %p240 = scmp.eq.s32.totalorder %s19, 1
      %p241 = scmp.ne.s32.totalorder %s236, %s238
      %p242 = scmp.eq.s32.totalorder %s19, 0
      %p243 = por %p241, %p242
      %p244 = scmp.ne.s32.totalorder %s236, %s238
      %p245 = scmp.eq.s32.totalorder %s24, 1
      %p246 = por %p244, %p245
      %p247 = scmp.ne.s32.totalorder %s238, %s239
      %p248 = scmp.eq.s32.totalorder %s24, 0
      %p249 = por %p247, %p248
      %p250 = scmp.ne.s32.totalorder %s238, %s239
      %p251 = scmp.eq.s32.totalorder %s25, 1
      %p252 = por %p250, %p251
      %p254 = scmp.ne.s32.totalorder %s239, %s253
      %p255 = scmp.eq.s32.totalorder %s25, 0
      %p256 = por %p254, %p255
      %s257 = ssub.s32 %s19, %s26
      %p258 = scmp.eq.s32.totalorder %s257, 0
      %s260 = sadd.s32 %s259, 1
      %s261 = scalar_select %p258, %s259, %s260
      %p264 = pneg %p258
      %p265 = scmp.eq.s32.totalorder %s19, 1
      %p266 = por %p264, %p265
      %p267 = scmp.ne.s32.totalorder %s259, %s262
      %p268 = scmp.eq.s32.totalorder %s19, 0
      %p269 = por %p267, %p268
      %p270 = scmp.ne.s32.totalorder %s259, %s262
      %p271 = scmp.eq.s32.totalorder %s24, 1
      %p272 = por %p270, %p271
      %p273 = scmp.ne.s32.totalorder %s262, %s263
      %p274 = scmp.eq.s32.totalorder %s24, 0
      %p275 = por %p273, %p274
      %p276 = scmp.ne.s32.totalorder %s262, %s263
      %p277 = scmp.eq.s32.totalorder %s25, 1
      %p278 = por %p276, %p277
      %p280 = scmp.ne.s32.totalorder %s263, %s279
      %p281 = scmp.eq.s32.totalorder %s25, 0
      %p282 = por %p280, %p281
      %p283 = scmp.le.s32.totalorder 1, %s19
      %p284 = scmp.lt.s32.totalorder %s19, 3
      %p285 = pnand %p283, %p284
      %p286 = pneg %p285
      // Predicated region
      $region9: #{encode.1} parent=5 // pred_check
        _
      $region10: #{encode.1} parent=5 // pred_check_branch
        %288 = sbr.rel (%p285) target = $region12
      $region11: #{encode.1} parent=5 // pred_region
        %s289 = ssub.s32 %s19, 1
        // Predicated region
        $region13: #{encode.1} parent=11 // pred_check
          %p290 = pneg %p144
        $region14: #{encode.1} parent=11 // pred_check_branch
          %292 = sbr.rel (%p290) target = $region16
        $region15: #{encode.1} parent=11 // pred_region
          _
        $region16: #{encode.1} parent=11 // pred_fallthru
          _
        // Predicated region
        $region17: #{encode.1} parent=11 // pred_check
          %p293 = pneg %p165
        $region18: #{encode.1} parent=11 // pred_check_branch
          %295 = sbr.rel (%p293) target = $region20
        $region19: #{encode.1} parent=11 // pred_region
          _
        $region20: #{encode.1} parent=11 // pred_fallthru
          _
        // Predicated region
        $region21: #{encode.1} parent=11 // pred_check
          %p296 = pneg %p186
        $region22: #{encode.1} parent=11 // pred_check_branch
          %298 = sbr.rel (%p296) target = $region24
        $region23: #{encode.1} parent=11 // pred_region
          _
        $region24: #{encode.1} parent=11 // pred_fallthru
          _
        // Predicated region
        $region25: #{encode.1} parent=11 // pred_check
          %p299 = pneg %p207
        $region26: #{encode.1} parent=11 // pred_check_branch
          %301 = sbr.rel (%p299) target = $region28
        $region27: #{encode.1} parent=11 // pred_region
          _
        $region28: #{encode.1} parent=11 // pred_fallthru
          _
        // Predicated region
        $region29: #{encode.1} parent=11 // pred_check
          %p302 = pneg %p228
        $region30: #{encode.1} parent=11 // pred_check_branch
          %304 = sbr.rel (%p302) target = $region32
        $region31: #{encode.1} parent=11 // pred_region
          _
        $region32: #{encode.1} parent=11 // pred_fallthru
          _
        // Predicated region
        $region33: #{encode.1} parent=11 // pred_check
          %p305 = pneg %p249
        $region34: #{encode.1} parent=11 // pred_check_branch
          %307 = sbr.rel (%p305) target = $region36
        $region35: #{encode.1} parent=11 // pred_region
          _
        $region36: #{encode.1} parent=11 // pred_fallthru
          _
      $region12: #{encode.1} parent=5 // pred_fallthru
        _
      %p308 = scmp.lt.s32.totalorder %s19, 2
      // Predicated region
      $region37: #{encode.1} parent=5 // pred_check
        %p309 = pneg %p308
      $region38: #{encode.1} parent=5 // pred_check_branch
        %311 = sbr.rel (%p309) target = $region40
      $region39: #{encode.1} parent=5 // pred_region
        // Predicated region
        $region41: #{encode.1} parent=39 // pred_check
          %p312 = pneg %p39
        $region42: #{encode.1} parent=39 // pred_check_branch
          %314 = sbr.rel (%p312) target = $region44
        $region43: #{encode.1} parent=39 // pred_region
          %s315 = smul.u32 16, %s19
          %p316 = scmp.lt.s32.totalorder %s315, 31
          %s317 = scalar_select %p316, %s315, 31
          %s318 = smul.addr %s317, 8
          %s319 = scalar_lea.vmem %s0, %s318
          %s320 = smul.u32 16, %s19
        $region44: #{encode.1} parent=39 // pred_fallthru
          _
        // Predicated region
        $region45: #{encode.1} parent=39 // pred_check
          %p321 = pneg %p65
        $region46: #{encode.1} parent=39 // pred_check_branch
          %323 = sbr.rel (%p321) target = $region48
        $region47: #{encode.1} parent=39 // pred_region
          %s324 = smul.u32 16, %s19
          %p325 = scmp.lt.s32.totalorder %s324, 31
          %s326 = scalar_select %p325, %s324, 31
          %s327 = smul.addr %s326, 8
          %s328 = scalar_lea.vmem %s1, %s327
          %s329 = smul.u32 16, %s19
        $region48: #{encode.1} parent=39 // pred_fallthru
          _
        // Predicated region
        $region49: #{encode.1} parent=39 // pred_check
          %p330 = pneg %p91
        $region50: #{encode.1} parent=39 // pred_check_branch
          %332 = sbr.rel (%p330) target = $region52
        $region51: #{encode.1} parent=39 // pred_region
          %s333 = smul.u32 16, %s19
          %p334 = scmp.lt.s32.totalorder %s333, 31
          %s335 = scalar_select %p334, %s333, 31
          %s336 = scalar_lea.vmem %s2, %s335
          %s337 = smul.u32 16, %s19
        $region52: #{encode.1} parent=39 // pred_fallthru
          _
        // Predicated region
        $region53: #{encode.1} parent=39 // pred_check
          %p338 = pneg %p117
        $region54: #{encode.1} parent=39 // pred_check_branch
          %340 = sbr.rel (%p338) target = $region56
        $region55: #{encode.1} parent=39 // pred_region
          %s341 = smul.u32 16, %s19
          %p342 = scmp.lt.s32.totalorder %s341, 31
          %s343 = scalar_select %p342, %s341, 31
          %s344 = smul.addr %s343, 8
          %s345 = scalar_lea.vmem %s3, %s344
          %s346 = smul.u32 16, %s19
        $region56: #{encode.1} parent=39 // pred_fallthru
          _
      $region40: #{encode.1} parent=5 // pred_fallthru
        _
      %p347 = scmp.le.s32.totalorder 1, %s19
      %p348 = scmp.lt.s32.totalorder %s19, 3
      %p349 = pnand %p347, %p348
      %p350 = pneg %p349
      // Predicated region
      $region57: #{encode.1} parent=5 // pred_check
        _
      $region58: #{encode.1} parent=5 // pred_check_branch
        %352 = sbr.rel (%p349) target = $region60
      $region59: #{encode.1} parent=5 // pred_region
        %s353 = ssub.s32 %s19, 1
        %s354 = smul.u32 16, %s24
        %p355 = scmp.lt.s32.totalorder %s354, 31
        %s356 = scalar_select %p355, %s354, 31
        %s357 = smul.addr %s356, 8
        %s358 = scalar_lea.vmem %s0, %s357
        %p359 = pneg %p45
        %p360 = pneg %p42
        %s361 = smul.u32 16, %s24
        %p362 = scmp.lt.s32.totalorder %s361, 31
        %s363 = scalar_select %p362, %s361, 31
        %s364 = smul.addr %s363, 8
        %s365 = scalar_lea.vmem %s1, %s364
        %p366 = pneg %p71
        %p367 = pneg %p68
        %s368 = smul.u32 16, %s24
        %p369 = scmp.lt.s32.totalorder %s368, 31
        %s370 = scalar_select %p369, %s368, 31
        %s371 = scalar_lea.vmem %s2, %s370
        %p372 = pneg %p97
        %p373 = pneg %p94
        %s374 = smul.u32 16, %s24
        %p375 = scmp.lt.s32.totalorder %s374, 31
        %s376 = scalar_select %p375, %s374, 31
        %s377 = smul.addr %s376, 8
        %s378 = scalar_lea.vmem %s3, %s377
        %p379 = pneg %p123
        %p380 = pneg %p120
        %p381 = pneg %p144
        %p382 = pneg %p141
        %p383 = pneg %p165
        %p384 = pneg %p162
        %p385 = pneg %p186
        %p386 = pneg %p183
        %p387 = pneg %p207
        %p388 = pneg %p204
        %p389 = pneg %p228
        %p390 = pneg %p225
        %p391 = pneg %p249
        %p392 = pneg %p246
        %p393 = pneg %p275
        %p394 = pneg %p272
        %s395 = sand.u32 %s262, 1
        %s396 = scalar_lea.sflag [#allocation3], %s395
        %s397 = sand.u32 %s262, 1
        %s398 = smul.addr %s397, 16
        %s399 = scalar_lea.vmem [#allocation2], %s398
        %s400 = smul.u32 16, %s24
        %p401 = scmp.lt.s32.totalorder %s400, 31
        %s402 = scalar_select %p401, %s400, 31
        %s403 = smul.addr %s402, 8
        %s404 = scalar_lea.vmem %s0, %s403
        %s405 = smul.u32 16, %s24
        %s406 = smul.u32 16, %s24
        %p407 = scmp.lt.s32.totalorder %s406, 31
        %s408 = scalar_select %p407, %s406, 31
        %s409 = smul.addr %s408, 8
        %s410 = scalar_lea.vmem %s1, %s409
        %s411 = smul.u32 16, %s24
        %s412 = smul.u32 16, %s24
        %p413 = scmp.lt.s32.totalorder %s412, 31
        %s414 = scalar_select %p413, %s412, 31
        %s415 = scalar_lea.vmem %s2, %s414
        %s416 = smul.u32 16, %s24
        %s417 = smul.u32 16, %s24
        %p418 = scmp.lt.s32.totalorder %s417, 31
        %s419 = scalar_select %p418, %s417, 31
        %s420 = smul.addr %s419, 8
        %s421 = scalar_lea.vmem %s3, %s420
        %s422 = smul.u32 16, %s24
        %s423 = smul.u32 2, %s24
        %v425 = vld [vmem:[%s404] sm:$0xff]
        %v426 = vld [vmem:[%s404 + $0x8] sm:$0xff]
        %v427 = vld [vmem:[%s404 + $0x10] sm:$0xff]
        %v428 = vld [vmem:[%s404 + $0x18] sm:$0xff]
        %v429 = vld [vmem:[%s404 + $0x20] sm:$0xff]
        %v430 = vld [vmem:[%s404 + $0x28] sm:$0xff]
        %v431 = vld [vmem:[%s404 + $0x30] sm:$0xff]
        %v432 = vld [vmem:[%s404 + $0x38] sm:$0xff]
        %v433 = vld [vmem:[%s404 + $0x40] sm:$0xff]
        %v434 = vld [vmem:[%s404 + $0x48] sm:$0xff]
        %v435 = vld [vmem:[%s404 + $0x50] sm:$0xff]
        %v436 = vld [vmem:[%s404 + $0x58] sm:$0xff]
        %v437 = vld [vmem:[%s404 + $0x60] sm:$0xff]
        %v438 = vld [vmem:[%s404 + $0x68] sm:$0xff]
        %v439 = vld [vmem:[%s404 + $0x70] sm:$0xff]
        %v440 = vld [vmem:[%s404 + $0x78] sm:$0xff]
        %v441 = vld [vmem:[%s410] sm:$0xff]
        %v442 = vld [vmem:[%s410 + $0x8] sm:$0xff]
        %v443 = vld [vmem:[%s410 + $0x10] sm:$0xff]
        %v444 = vld [vmem:[%s410 + $0x18] sm:$0xff]
        %v445 = vld [vmem:[%s410 + $0x20] sm:$0xff]
        %v446 = vld [vmem:[%s410 + $0x28] sm:$0xff]
        %v447 = vld [vmem:[%s410 + $0x30] sm:$0xff]
        %v448 = vld [vmem:[%s410 + $0x38] sm:$0xff]
        %v449 = vld [vmem:[%s410 + $0x40] sm:$0xff]
        %v450 = vld [vmem:[%s410 + $0x48] sm:$0xff]
        %v451 = vld [vmem:[%s410 + $0x50] sm:$0xff]
        %v452 = vld [vmem:[%s410 + $0x58] sm:$0xff]
        %v453 = vld [vmem:[%s410 + $0x60] sm:$0xff]
        %v454 = vld [vmem:[%s410 + $0x68] sm:$0xff]
        %v455 = vld [vmem:[%s410 + $0x70] sm:$0xff]
        %v456 = vld [vmem:[%s410 + $0x78] sm:$0xff]
        %v457 = vlaneseq
        %v458 = vand.u32 %v457, 127
        %v459 = vlaneseq
        %v460 = vshrl.u32 %v459, 7
        %461 = vset.pattern.permute.xlu0 0
        %462 = vperm.xlu0 %461, %v425
        %v463 = vpop.permute.xlu0 %462
        %464 = vset.pattern.permute.xlu0 0
        %465 = vperm.xlu0 %464, %v426
        %v466 = vpop.permute.xlu0 %465
        %467 = vset.pattern.permute.xlu0 0
        %468 = vperm.xlu0 %467, %v427
        %v469 = vpop.permute.xlu0 %468
        %470 = vset.pattern.permute.xlu0 0
        %471 = vperm.xlu0 %470, %v428
        %v472 = vpop.permute.xlu0 %471
        %473 = vset.pattern.permute.xlu0 0
        %474 = vperm.xlu0 %473, %v429
        %v475 = vpop.permute.xlu0 %474
        %476 = vset.pattern.permute.xlu0 0
        %477 = vperm.xlu0 %476, %v430
        %v478 = vpop.permute.xlu0 %477
        %479 = vset.pattern.permute.xlu0 0
        %480 = vperm.xlu0 %479, %v431
        %v481 = vpop.permute.xlu0 %480
        %482 = vset.pattern.permute.xlu0 0
        %483 = vperm.xlu0 %482, %v432
        %v484 = vpop.permute.xlu0 %483
        %485 = vset.pattern.permute.xlu0 0
        %486 = vperm.xlu0 %485, %v433
        %v487 = vpop.permute.xlu0 %486
        %488 = vset.pattern.permute.xlu0 0
        %489 = vperm.xlu0 %488, %v434
        %v490 = vpop.permute.xlu0 %489
        %491 = vset.pattern.permute.xlu0 0
        %492 = vperm.xlu0 %491, %v435
        %v493 = vpop.permute.xlu0 %492
        %494 = vset.pattern.permute.xlu0 0
        %495 = vperm.xlu0 %494, %v436
        %v496 = vpop.permute.xlu0 %495
        %497 = vset.pattern.permute.xlu0 0
        %498 = vperm.xlu0 %497, %v437
        %v499 = vpop.permute.xlu0 %498
        %500 = vset.pattern.permute.xlu0 0
        %501 = vperm.xlu0 %500, %v438
        %v502 = vpop.permute.xlu0 %501
        %503 = vset.pattern.permute.xlu0 0
        %504 = vperm.xlu0 %503, %v439
        %v505 = vpop.permute.xlu0 %504
        %506 = vset.pattern.permute.xlu0 0
        %507 = vperm.xlu0 %506, %v440
        %v508 = vpop.permute.xlu0 %507
        %vm509 = vcmp.eq.s32.totalorder %v458, %v463
        %vm510 = vcmp.eq.s32.totalorder %v458, %v466
        %vm511 = vcmp.eq.s32.totalorder %v458, %v469
        %vm512 = vcmp.eq.s32.totalorder %v458, %v472
        %vm513 = vcmp.eq.s32.totalorder %v458, %v475
        %vm514 = vcmp.eq.s32.totalorder %v458, %v478
        %vm515 = vcmp.eq.s32.totalorder %v458, %v481
        %vm516 = vcmp.eq.s32.totalorder %v458, %v484
        %vm517 = vcmp.eq.s32.totalorder %v458, %v487
        %vm518 = vcmp.eq.s32.totalorder %v458, %v490
        %vm519 = vcmp.eq.s32.totalorder %v458, %v493
        %vm520 = vcmp.eq.s32.totalorder %v458, %v496
        %vm521 = vcmp.eq.s32.totalorder %v458, %v499
        %vm522 = vcmp.eq.s32.totalorder %v458, %v502
        %vm523 = vcmp.eq.s32.totalorder %v458, %v505
        %vm524 = vcmp.eq.s32.totalorder %v458, %v508
        %v525 = vadd.s32 %v441, 100
        %v526 = vadd.s32 %v442, 100
        %v527 = vadd.s32 %v443, 100
        %v528 = vadd.s32 %v444, 100
        %v529 = vadd.s32 %v445, 100
        %v530 = vadd.s32 %v446, 100
        %v531 = vadd.s32 %v447, 100
        %v532 = vadd.s32 %v448, 100
        %v533 = vadd.s32 %v449, 100
        %v534 = vadd.s32 %v450, 100
        %v535 = vadd.s32 %v451, 100
        %v536 = vadd.s32 %v452, 100
        %v537 = vadd.s32 %v453, 100
        %v538 = vadd.s32 %v454, 100
        %v539 = vadd.s32 %v455, 100
        %v540 = vadd.s32 %v456, 100
        %541 = vset.pattern.permute.xlu0 0
        %542 = vperm.xlu0 %541, %v525
        %v543 = vpop.permute.xlu0 %542
        %544 = vset.pattern.permute.xlu0 0
        %545 = vperm.xlu0 %544, %v526
        %v546 = vpop.permute.xlu0 %545
        %547 = vset.pattern.permute.xlu0 0
        %548 = vperm.xlu0 %547, %v527
        %v549 = vpop.permute.xlu0 %548
        %550 = vset.pattern.permute.xlu0 0
        %551 = vperm.xlu0 %550, %v528
        %v552 = vpop.permute.xlu0 %551
        %553 = vset.pattern.permute.xlu0 0
        %554 = vperm.xlu0 %553, %v529
        %v555 = vpop.permute.xlu0 %554
        %556 = vset.pattern.permute.xlu0 0
        %557 = vperm.xlu0 %556, %v530
        %v558 = vpop.permute.xlu0 %557
        %559 = vset.pattern.permute.xlu0 0
        %560 = vperm.xlu0 %559, %v531
        %v561 = vpop.permute.xlu0 %560
        %562 = vset.pattern.permute.xlu0 0
        %563 = vperm.xlu0 %562, %v532
        %v564 = vpop.permute.xlu0 %563
        %565 = vset.pattern.permute.xlu0 0
        %566 = vperm.xlu0 %565, %v533
        %v567 = vpop.permute.xlu0 %566
        %568 = vset.pattern.permute.xlu0 0
        %569 = vperm.xlu0 %568, %v534
        %v570 = vpop.permute.xlu0 %569
        %571 = vset.pattern.permute.xlu0 0
        %572 = vperm.xlu0 %571, %v535
        %v573 = vpop.permute.xlu0 %572
        %574 = vset.pattern.permute.xlu0 0
        %575 = vperm.xlu0 %574, %v536
        %v576 = vpop.permute.xlu0 %575
        %577 = vset.pattern.permute.xlu0 0
        %578 = vperm.xlu0 %577, %v537
        %v579 = vpop.permute.xlu0 %578
        %580 = vset.pattern.permute.xlu0 0
        %581 = vperm.xlu0 %580, %v538
        %v582 = vpop.permute.xlu0 %581
        %583 = vset.pattern.permute.xlu0 0
        %584 = vperm.xlu0 %583, %v539
        %v585 = vpop.permute.xlu0 %584
        %586 = vset.pattern.permute.xlu0 0
        %587 = vperm.xlu0 %586, %v540
        %v588 = vpop.permute.xlu0 %587
        %vm589 = vcmp.eq.s32.totalorder %v458, %v543
        %vm590 = vcmp.eq.s32.totalorder %v458, %v546
        %vm591 = vcmp.eq.s32.totalorder %v458, %v549
        %vm592 = vcmp.eq.s32.totalorder %v458, %v552
        %vm593 = vcmp.eq.s32.totalorder %v458, %v555
        %vm594 = vcmp.eq.s32.totalorder %v458, %v558
        %vm595 = vcmp.eq.s32.totalorder %v458, %v561
        %vm596 = vcmp.eq.s32.totalorder %v458, %v564
        %vm597 = vcmp.eq.s32.totalorder %v458, %v567
        %vm598 = vcmp.eq.s32.totalorder %v458, %v570
        %vm599 = vcmp.eq.s32.totalorder %v458, %v573
        %vm600 = vcmp.eq.s32.totalorder %v458, %v576
        %vm601 = vcmp.eq.s32.totalorder %v458, %v579
        %vm602 = vcmp.eq.s32.totalorder %v458, %v582
        %vm603 = vcmp.eq.s32.totalorder %v458, %v585
        %vm604 = vcmp.eq.s32.totalorder %v458, %v588
        %vm605 = vmor %vm509, %vm589
        %vm606 = vmor %vm510, %vm590
        %vm607 = vmor %vm511, %vm591
        %vm608 = vmor %vm512, %vm592
        %vm609 = vmor %vm513, %vm593
        %vm610 = vmor %vm514, %vm594
        %vm611 = vmor %vm515, %vm595
        %vm612 = vmor %vm516, %vm596
        %vm613 = vmor %vm517, %vm597
        %vm614 = vmor %vm518, %vm598
        %vm615 = vmor %vm519, %vm599
        %vm616 = vmor %vm520, %vm600
        %vm617 = vmor %vm521, %vm601
        %vm618 = vmor %vm522, %vm602
        %vm619 = vmor %vm523, %vm603
        %vm620 = vmor %vm524, %vm604
        %v621 = vadd.s32 %v460, 102
        %vm622 = vcmp.eq.s32.totalorder %v458, %v621
        %vm623 = vmor %vm605, %vm622
        %vm624 = vmor %vm606, %vm622
        %vm625 = vmor %vm607, %vm622
        %vm626 = vmor %vm608, %vm622
        %vm627 = vmor %vm609, %vm622
        %vm628 = vmor %vm610, %vm622
        %vm629 = vmor %vm611, %vm622
        %vm630 = vmor %vm612, %vm622
        %vm631 = vmor %vm613, %vm622
        %vm632 = vmor %vm614, %vm622
        %vm633 = vmor %vm615, %vm622
        %vm634 = vmor %vm616, %vm622
        %vm635 = vmor %vm617, %vm622
        %vm636 = vmor %vm618, %vm622
        %vm637 = vmor %vm619, %vm622
        %vm638 = vmor %vm620, %vm622
        %v639 = vsel %vm623, 1, 0
        %v640 = vsel %vm624, 1, 0
        %v641 = vsel %vm625, 1, 0
        %v642 = vsel %vm626, 1, 0
        %v643 = vsel %vm627, 1, 0
        %v644 = vsel %vm628, 1, 0
        %v645 = vsel %vm629, 1, 0
        %v646 = vsel %vm630, 1, 0
        %v647 = vsel %vm631, 1, 0
        %v648 = vsel %vm632, 1, 0
        %v649 = vsel %vm633, 1, 0
        %v650 = vsel %vm634, 1, 0
        %v651 = vsel %vm635, 1, 0
        %v652 = vsel %vm636, 1, 0
        %v653 = vsel %vm637, 1, 0
        %v654 = vsel %vm638, 1, 0
        %v655 = vcvt.s32.f32 %v639
        %v656 = vcvt.s32.f32 %v640
        %v657 = vcvt.s32.f32 %v641
        %v658 = vcvt.s32.f32 %v642
        %v659 = vcvt.s32.f32 %v643
        %v660 = vcvt.s32.f32 %v644
        %v661 = vcvt.s32.f32 %v645
        %v662 = vcvt.s32.f32 %v646
        %v663 = vcvt.s32.f32 %v647
        %v664 = vcvt.s32.f32 %v648
        %v665 = vcvt.s32.f32 %v649
        %v666 = vcvt.s32.f32 %v650
        %v667 = vcvt.s32.f32 %v651
        %v668 = vcvt.s32.f32 %v652
        %v669 = vcvt.s32.f32 %v653
        %v670 = vcvt.s32.f32 %v654
        %v671 = vpack.c.bf16 %v656, %v655
        %v672 = vpack.c.bf16 %v658, %v657
        %v673 = vpack.c.bf16 %v660, %v659
        %v674 = vpack.c.bf16 %v662, %v661
        %v675 = vpack.c.bf16 %v664, %v663
        %v676 = vpack.c.bf16 %v666, %v665
        %v677 = vpack.c.bf16 %v668, %v667
        %v678 = vpack.c.bf16 %v670, %v669
        %v679 = vld [vmem:[%s4] sm:$0xf]
        %v680 = vld [vmem:[%s4 + $0x4] sm:$0xf]
        %v681 = vld [vmem:[%s4 + $0x8] sm:$0xf]
        %v682 = vld [vmem:[%s4 + $0xc] sm:$0xf]
        %v683 = vld [vmem:[%s4 + $0x10] sm:$0xf]
        %v684 = vld [vmem:[%s4 + $0x14] sm:$0xf]
        %v685 = vld [vmem:[%s4 + $0x18] sm:$0xf]
        %v686 = vld [vmem:[%s4 + $0x1c] sm:$0xf]
        %v687 = vld [vmem:[%s4 + $0x20] sm:$0xf]
        %v688 = vld [vmem:[%s4 + $0x24] sm:$0xf]
        %v689 = vld [vmem:[%s4 + $0x28] sm:$0xf]
        %v690 = vld [vmem:[%s4 + $0x2c] sm:$0xf]
        %v691 = vld [vmem:[%s4 + $0x30] sm:$0xf]
        %v692 = vld [vmem:[%s4 + $0x34] sm:$0xf]
        %v693 = vld [vmem:[%s4 + $0x38] sm:$0xf]
        %v694 = vld [vmem:[%s4 + $0x3c] sm:$0xf]
        %v711 = vunpack.c.l.b16 %v679
        %v712 = vunpack.c.l.b16 %v680
        %v713 = vunpack.c.l.b16 %v681
        %v714 = vunpack.c.l.b16 %v682
        %v715 = vunpack.c.l.b16 %v683
        %v716 = vunpack.c.l.b16 %v684
        %v717 = vunpack.c.l.b16 %v685
        %v718 = vunpack.c.l.b16 %v686
        %v719 = vunpack.c.l.b16 %v687
        %v720 = vunpack.c.l.b16 %v688
        %v721 = vunpack.c.l.b16 %v689
        %v722 = vunpack.c.l.b16 %v690
        %v723 = vunpack.c.l.b16 %v691
        %v724 = vunpack.c.l.b16 %v692
        %v725 = vunpack.c.l.b16 %v693
        %v726 = vunpack.c.l.b16 %v694
        %v727 = vpack.c.b16 %v712, %v711
        %v728 = vpack.c.b16 %v714, %v713
        %v729 = vpack.c.b16 %v716, %v715
        %v730 = vpack.c.b16 %v718, %v717
        %v731 = vpack.c.b16 %v720, %v719
        %v732 = vpack.c.b16 %v722, %v721
        %v733 = vpack.c.b16 %v724, %v723
        %v734 = vpack.c.b16 %v726, %v725
        %743 = vmatpush.bf16.msra.mxu0 %v734
        %744 = vmatpush.bf16.msra.mxu0 %v733
        %745 = vmatpush.bf16.msra.mxu0 %v732
        %746 = vmatpush.bf16.msra.mxu0 %v731
        %747 = vmatpush.bf16.msra.mxu0 %v730
        %748 = vmatpush.bf16.msra.mxu0 %v729
        %749 = vmatpush.bf16.msra.mxu0 %v728
        %750 = vmatpush.bf16.msra.mxu0 %v727
        %751 = vmatmul.bf16.gmra.mxu0 %v671
        %v752 = vpop.f32.mrf.mxu0
        %v753 = vadd.f32 0.0, %v752
        %v754 = vpop.f32.mrf.mxu0
        %v755 = vadd.f32 0.0, %v754
        %756 = vmatmul.bf16.gmra.mxu0 %v672
        %v757 = vpop.f32.mrf.mxu0
        %v758 = vadd.f32 0.0, %v757
        %v759 = vpop.f32.mrf.mxu0
        %v760 = vadd.f32 0.0, %v759
        %761 = vmatmul.bf16.gmra.mxu0 %v673
        %v762 = vpop.f32.mrf.mxu0
        %v763 = vadd.f32 0.0, %v762
        %v764 = vpop.f32.mrf.mxu0
        %v765 = vadd.f32 0.0, %v764
        %766 = vmatmul.bf16.gmra.mxu0 %v674
        %v767 = vpop.f32.mrf.mxu0
        %v768 = vadd.f32 0.0, %v767
        %v769 = vpop.f32.mrf.mxu0
        %v770 = vadd.f32 0.0, %v769
        %771 = vmatmul.bf16.gmra.mxu0 %v675
        %v772 = vpop.f32.mrf.mxu0
        %v773 = vadd.f32 0.0, %v772
        %v774 = vpop.f32.mrf.mxu0
        %v775 = vadd.f32 0.0, %v774
        %776 = vmatmul.bf16.gmra.mxu0 %v676
        %v777 = vpop.f32.mrf.mxu0
        %v778 = vadd.f32 0.0, %v777
        %v779 = vpop.f32.mrf.mxu0
        %v780 = vadd.f32 0.0, %v779
        %781 = vmatmul.bf16.gmra.mxu0 %v677
        %v782 = vpop.f32.mrf.mxu0
        %v783 = vadd.f32 0.0, %v782
        %v784 = vpop.f32.mrf.mxu0
        %v785 = vadd.f32 0.0, %v784
        %786 = vmatmul.bf16.gmra.mxu0 %v678
        %v787 = vpop.f32.mrf.mxu0
        %v788 = vadd.f32 0.0, %v787
        %v789 = vpop.f32.mrf.mxu0
        %v790 = vadd.f32 0.0, %v789
        %791 = vdwg.mxu0
        %v792 = vld [vmem:[%s9] sm:$0x1]
        %vm793 = vcmask 261120
        %v794 = vsel %vm793, %v753, 0.0
        %795 = vadd.xlane.f32.xlu0 %v794
        %v796 = vpop.xlane.xlu0 %795
        %v797 = vsel %vm793, %v755, 0.0
        %798 = vadd.xlane.f32.xlu0 %v797
        %v799 = vpop.xlane.xlu0 %798
        %v800 = vsel %vm793, %v758, 0.0
        %801 = vadd.xlane.f32.xlu0 %v800
        %v802 = vpop.xlane.xlu0 %801
        %v803 = vsel %vm793, %v760, 0.0
        %804 = vadd.xlane.f32.xlu0 %v803
        %v805 = vpop.xlane.xlu0 %804
        %v806 = vsel %vm793, %v763, 0.0
        %807 = vadd.xlane.f32.xlu0 %v806
        %v808 = vpop.xlane.xlu0 %807
        %v809 = vsel %vm793, %v765, 0.0
        %810 = vadd.xlane.f32.xlu0 %v809
        %v811 = vpop.xlane.xlu0 %810
        %v812 = vsel %vm793, %v768, 0.0
        %813 = vadd.xlane.f32.xlu0 %v812
        %v814 = vpop.xlane.xlu0 %813
        %v815 = vsel %vm793, %v770, 0.0
        %816 = vadd.xlane.f32.xlu0 %v815
        %v817 = vpop.xlane.xlu0 %816
        %v818 = vsel %vm793, %v773, 0.0
        %819 = vadd.xlane.f32.xlu0 %v818
        %v820 = vpop.xlane.xlu0 %819
        %v821 = vsel %vm793, %v775, 0.0
        %822 = vadd.xlane.f32.xlu0 %v821
        %v823 = vpop.xlane.xlu0 %822
        %v824 = vsel %vm793, %v778, 0.0
        %825 = vadd.xlane.f32.xlu0 %v824
        %v826 = vpop.xlane.xlu0 %825
        %v827 = vsel %vm793, %v780, 0.0
        %828 = vadd.xlane.f32.xlu0 %v827
        %v829 = vpop.xlane.xlu0 %828
        %v830 = vsel %vm793, %v783, 0.0
        %831 = vadd.xlane.f32.xlu0 %v830
        %v832 = vpop.xlane.xlu0 %831
        %v833 = vsel %vm793, %v785, 0.0
        %834 = vadd.xlane.f32.xlu0 %v833
        %v835 = vpop.xlane.xlu0 %834
        %v836 = vsel %vm793, %v788, 0.0
        %837 = vadd.xlane.f32.xlu0 %v836
        %v838 = vpop.xlane.xlu0 %837
        %v839 = vsel %vm793, %v790, 0.0
        %840 = vadd.xlane.f32.xlu0 %v839
        %v841 = vpop.xlane.xlu0 %840
        %v842 = vrcp.pop 32.0
        %v843 = vmul.f32 32.0, %v842
        %v844 = vsub.f32 1.0, %v843
        %v845 = vmul.f32 %v842, %v844
        %v846 = vadd.f32 %v842, %v845
        %vm847 = vweird.f32 %v842
        %v848 = vsel %vm847, %v842, %v846
        %v849 = vmul.f32 %v796, %v848
        %v850 = vmul.f32 %v799, %v848
        %v851 = vmul.f32 %v802, %v848
        %v852 = vmul.f32 %v805, %v848
        %v853 = vmul.f32 %v808, %v848
        %v854 = vmul.f32 %v811, %v848
        %v855 = vmul.f32 %v814, %v848
        %v856 = vmul.f32 %v817, %v848
        %v857 = vmul.f32 %v820, %v848
        %v858 = vmul.f32 %v823, %v848
        %v859 = vmul.f32 %v826, %v848
        %v860 = vmul.f32 %v829, %v848
        %v861 = vmul.f32 %v832, %v848
        %v862 = vmul.f32 %v835, %v848
        %v863 = vmul.f32 %v838, %v848
        %v864 = vmul.f32 %v841, %v848
        %v865 = vsub.f32 %v753, %v849
        %v866 = vsub.f32 %v755, %v850
        %v867 = vsub.f32 %v758, %v851
        %v868 = vsub.f32 %v760, %v852
        %v869 = vsub.f32 %v763, %v853
        %v870 = vsub.f32 %v765, %v854
        %v871 = vsub.f32 %v768, %v855
        %v872 = vsub.f32 %v770, %v856
        %v873 = vsub.f32 %v773, %v857
        %v874 = vsub.f32 %v775, %v858
        %v875 = vsub.f32 %v778, %v859
        %v876 = vsub.f32 %v780, %v860
        %v877 = vsub.f32 %v783, %v861
        %v878 = vsub.f32 %v785, %v862
        %v879 = vsub.f32 %v788, %v863
        %v880 = vsub.f32 %v790, %v864
        %v881 = vmul.f32 %v865, %v865
        %v882 = vmul.f32 %v866, %v866
        %v883 = vmul.f32 %v867, %v867
        %v884 = vmul.f32 %v868, %v868
        %v885 = vmul.f32 %v869, %v869
        %v886 = vmul.f32 %v870, %v870
        %v887 = vmul.f32 %v871, %v871
        %v888 = vmul.f32 %v872, %v872
        %v889 = vmul.f32 %v873, %v873
        %v890 = vmul.f32 %v874, %v874
        %v891 = vmul.f32 %v875, %v875
        %v892 = vmul.f32 %v876, %v876
        %v893 = vmul.f32 %v877, %v877
        %v894 = vmul.f32 %v878, %v878
        %v895 = vmul.f32 %v879, %v879
        %v896 = vmul.f32 %v880, %v880
        %v897 = vsel %vm793, %v881, 0.0
        %898 = vadd.xlane.f32.xlu0 %v897
        %v899 = vpop.xlane.xlu0 %898
        %v900 = vsel %vm793, %v882, 0.0
        %901 = vadd.xlane.f32.xlu0 %v900
        %v902 = vpop.xlane.xlu0 %901
        %v903 = vsel %vm793, %v883, 0.0
        %904 = vadd.xlane.f32.xlu0 %v903
        %v905 = vpop.xlane.xlu0 %904
        %v906 = vsel %vm793, %v884, 0.0
        %907 = vadd.xlane.f32.xlu0 %v906
        %v908 = vpop.xlane.xlu0 %907
        %v909 = vsel %vm793, %v885, 0.0
        %910 = vadd.xlane.f32.xlu0 %v909
        %v911 = vpop.xlane.xlu0 %910
        %v912 = vsel %vm793, %v886, 0.0
        %913 = vadd.xlane.f32.xlu0 %v912
        %v914 = vpop.xlane.xlu0 %913
        %v915 = vsel %vm793, %v887, 0.0
        %916 = vadd.xlane.f32.xlu0 %v915
        %v917 = vpop.xlane.xlu0 %916
        %v918 = vsel %vm793, %v888, 0.0
        %919 = vadd.xlane.f32.xlu0 %v918
        %v920 = vpop.xlane.xlu0 %919
        %v921 = vsel %vm793, %v889, 0.0
        %922 = vadd.xlane.f32.xlu0 %v921
        %v923 = vpop.xlane.xlu0 %922
        %v924 = vsel %vm793, %v890, 0.0
        %925 = vadd.xlane.f32.xlu0 %v924
        %v926 = vpop.xlane.xlu0 %925
        %v927 = vsel %vm793, %v891, 0.0
        %928 = vadd.xlane.f32.xlu0 %v927
        %v929 = vpop.xlane.xlu0 %928
        %v930 = vsel %vm793, %v892, 0.0
        %931 = vadd.xlane.f32.xlu0 %v930
        %v932 = vpop.xlane.xlu0 %931
        %v933 = vsel %vm793, %v893, 0.0
        %934 = vadd.xlane.f32.xlu0 %v933
        %v935 = vpop.xlane.xlu0 %934
        %v936 = vsel %vm793, %v894, 0.0
        %937 = vadd.xlane.f32.xlu0 %v936
        %v938 = vpop.xlane.xlu0 %937
        %v939 = vsel %vm793, %v895, 0.0
        %940 = vadd.xlane.f32.xlu0 %v939
        %v941 = vpop.xlane.xlu0 %940
        %v942 = vsel %vm793, %v896, 0.0
        %943 = vadd.xlane.f32.xlu0 %v942
        %v944 = vpop.xlane.xlu0 %943
        %v945 = vmul.f32 %v899, %v848
        %v946 = vmul.f32 %v902, %v848
        %v947 = vmul.f32 %v905, %v848
        %v948 = vmul.f32 %v908, %v848
        %v949 = vmul.f32 %v911, %v848
        %v950 = vmul.f32 %v914, %v848
        %v951 = vmul.f32 %v917, %v848
        %v952 = vmul.f32 %v920, %v848
        %v953 = vmul.f32 %v923, %v848
        %v954 = vmul.f32 %v926, %v848
        %v955 = vmul.f32 %v929, %v848
        %v956 = vmul.f32 %v932, %v848
        %v957 = vmul.f32 %v935, %v848
        %v958 = vmul.f32 %v938, %v848
        %v959 = vmul.f32 %v941, %v848
        %v960 = vmul.f32 %v944, %v848
        %v961 = vadd.f32 %v945, 1e-12
        %v962 = vadd.f32 %v946, 1e-12
        %v963 = vadd.f32 %v947, 1e-12
        %v964 = vadd.f32 %v948, 1e-12
        %v965 = vadd.f32 %v949, 1e-12
        %v966 = vadd.f32 %v950, 1e-12
        %v967 = vadd.f32 %v951, 1e-12
        %v968 = vadd.f32 %v952, 1e-12
        %v969 = vadd.f32 %v953, 1e-12
        %v970 = vadd.f32 %v954, 1e-12
        %v971 = vadd.f32 %v955, 1e-12
        %v972 = vadd.f32 %v956, 1e-12
        %v973 = vadd.f32 %v957, 1e-12
        %v974 = vadd.f32 %v958, 1e-12
        %v975 = vadd.f32 %v959, 1e-12
        %v976 = vadd.f32 %v960, 1e-12
        %v977 = vrsqrt.pop %v961
        %v978 = vmul.f32 %v977, %v961
        %v979 = vmul.f32 %v978, %v977
        %v980 = vmul.f32 0.5, %v979
        %v981 = vsub.f32 1.5, %v980
        %v982 = vmul.f32 %v977, %v981
        %vm983 = vweird.f32 %v961
        %vm984 = vweird.f32 %v977
        %vm985 = vmor %vm983, %vm984
        %v986 = vsel %vm985, %v977, %v982
        %v987 = vrsqrt.pop %v962
        %v988 = vmul.f32 %v987, %v962
        %v989 = vmul.f32 %v988, %v987
        %v990 = vmul.f32 0.5, %v989
        %v991 = vsub.f32 1.5, %v990
        %v992 = vmul.f32 %v987, %v991
        %vm993 = vweird.f32 %v962
        %vm994 = vweird.f32 %v987
        %vm995 = vmor %vm993, %vm994
        %v996 = vsel %vm995, %v987, %v992
        %v997 = vrsqrt.pop %v963
        %v998 = vmul.f32 %v997, %v963
        %v999 = vmul.f32 %v998, %v997
        %v1000 = vmul.f32 0.5, %v999
        %v1001 = vsub.f32 1.5, %v1000
        %v1002 = vmul.f32 %v997, %v1001
        %vm1003 = vweird.f32 %v963
        %vm1004 = vweird.f32 %v997
        %vm1005 = vmor %vm1003, %vm1004
        %v1006 = vsel %vm1005, %v997, %v1002
        %v1007 = vrsqrt.pop %v964
        %v1008 = vmul.f32 %v1007, %v964
        %v1009 = vmul.f32 %v1008, %v1007
        %v1010 = vmul.f32 0.5, %v1009
        %v1011 = vsub.f32 1.5, %v1010
        %v1012 = vmul.f32 %v1007, %v1011
        %vm1013 = vweird.f32 %v964
        %vm1014 = vweird.f32 %v1007
        %vm1015 = vmor %vm1013, %vm1014
        %v1016 = vsel %vm1015, %v1007, %v1012
        %v1017 = vrsqrt.pop %v965
        %v1018 = vmul.f32 %v1017, %v965
        %v1019 = vmul.f32 %v1018, %v1017
        %v1020 = vmul.f32 0.5, %v1019
        %v1021 = vsub.f32 1.5, %v1020
        %v1022 = vmul.f32 %v1017, %v1021
        %vm1023 = vweird.f32 %v965
        %vm1024 = vweird.f32 %v1017
        %vm1025 = vmor %vm1023, %vm1024
        %v1026 = vsel %vm1025, %v1017, %v1022
        %v1027 = vrsqrt.pop %v966
        %v1028 = vmul.f32 %v1027, %v966
        %v1029 = vmul.f32 %v1028, %v1027
        %v1030 = vmul.f32 0.5, %v1029
        %v1031 = vsub.f32 1.5, %v1030
        %v1032 = vmul.f32 %v1027, %v1031
        %vm1033 = vweird.f32 %v966
        %vm1034 = vweird.f32 %v1027
        %vm1035 = vmor %vm1033, %vm1034
        %v1036 = vsel %vm1035, %v1027, %v1032
        %v1037 = vrsqrt.pop %v967
        %v1038 = vmul.f32 %v1037, %v967
        %v1039 = vmul.f32 %v1038, %v1037
        %v1040 = vmul.f32 0.5, %v1039
        %v1041 = vsub.f32 1.5, %v1040
        %v1042 = vmul.f32 %v1037, %v1041
        %vm1043 = vweird.f32 %v967
        %vm1044 = vweird.f32 %v1037
        %vm1045 = vmor %vm1043, %vm1044
        %v1046 = vsel %vm1045, %v1037, %v1042
        %v1047 = vrsqrt.pop %v968
        %v1048 = vmul.f32 %v1047, %v968
        %v1049 = vmul.f32 %v1048, %v1047
        %v1050 = vmul.f32 0.5, %v1049
        %v1051 = vsub.f32 1.5, %v1050
        %v1052 = vmul.f32 %v1047, %v1051
        %vm1053 = vweird.f32 %v968
        %vm1054 = vweird.f32 %v1047
        %vm1055 = vmor %vm1053, %vm1054
        %v1056 = vsel %vm1055, %v1047, %v1052
        %v1057 = vrsqrt.pop %v969
        %v1058 = vmul.f32 %v1057, %v969
        %v1059 = vmul.f32 %v1058, %v1057
        %v1060 = vmul.f32 0.5, %v1059
        %v1061 = vsub.f32 1.5, %v1060
        %v1062 = vmul.f32 %v1057, %v1061
        %vm1063 = vweird.f32 %v969
        %vm1064 = vweird.f32 %v1057
        %vm1065 = vmor %vm1063, %vm1064
        %v1066 = vsel %vm1065, %v1057, %v1062
        %v1067 = vrsqrt.pop %v970
        %v1068 = vmul.f32 %v1067, %v970
        %v1069 = vmul.f32 %v1068, %v1067
        %v1070 = vmul.f32 0.5, %v1069
        %v1071 = vsub.f32 1.5, %v1070
        %v1072 = vmul.f32 %v1067, %v1071
        %vm1073 = vweird.f32 %v970
        %vm1074 = vweird.f32 %v1067
        %vm1075 = vmor %vm1073, %vm1074
        %v1076 = vsel %vm1075, %v1067, %v1072
        %v1077 = vrsqrt.pop %v971
        %v1078 = vmul.f32 %v1077, %v971
        %v1079 = vmul.f32 %v1078, %v1077
        %v1080 = vmul.f32 0.5, %v1079
        %v1081 = vsub.f32 1.5, %v1080
        %v1082 = vmul.f32 %v1077, %v1081
        %vm1083 = vweird.f32 %v971
        %vm1084 = vweird.f32 %v1077
        %vm1085 = vmor %vm1083, %vm1084
        %v1086 = vsel %vm1085, %v1077, %v1082
        %v1087 = vrsqrt.pop %v972
        %v1088 = vmul.f32 %v1087, %v972
        %v1089 = vmul.f32 %v1088, %v1087
        %v1090 = vmul.f32 0.5, %v1089
        %v1091 = vsub.f32 1.5, %v1090
        %v1092 = vmul.f32 %v1087, %v1091
        %vm1093 = vweird.f32 %v972
        %vm1094 = vweird.f32 %v1087
        %vm1095 = vmor %vm1093, %vm1094
        %v1096 = vsel %vm1095, %v1087, %v1092
        %v1097 = vrsqrt.pop %v973
        %v1098 = vmul.f32 %v1097, %v973
        %v1099 = vmul.f32 %v1098, %v1097
        %v1100 = vmul.f32 0.5, %v1099
        %v1101 = vsub.f32 1.5, %v1100
        %v1102 = vmul.f32 %v1097, %v1101
        %vm1103 = vweird.f32 %v973
        %vm1104 = vweird.f32 %v1097
        %vm1105 = vmor %vm1103, %vm1104
        %v1106 = vsel %vm1105, %v1097, %v1102
        %v1107 = vrsqrt.pop %v974
        %v1108 = vmul.f32 %v1107, %v974
        %v1109 = vmul.f32 %v1108, %v1107
        %v1110 = vmul.f32 0.5, %v1109
        %v1111 = vsub.f32 1.5, %v1110
        %v1112 = vmul.f32 %v1107, %v1111
        %vm1113 = vweird.f32 %v974
        %vm1114 = vweird.f32 %v1107
        %vm1115 = vmor %vm1113, %vm1114
        %v1116 = vsel %vm1115, %v1107, %v1112
        %v1117 = vrsqrt.pop %v975
        %v1118 = vmul.f32 %v1117, %v975
        %v1119 = vmul.f32 %v1118, %v1117
        %v1120 = vmul.f32 0.5, %v1119
        %v1121 = vsub.f32 1.5, %v1120
        %v1122 = vmul.f32 %v1117, %v1121
        %vm1123 = vweird.f32 %v975
        %vm1124 = vweird.f32 %v1117
        %vm1125 = vmor %vm1123, %vm1124
        %v1126 = vsel %vm1125, %v1117, %v1122
        %v1127 = vrsqrt.pop %v976
        %v1128 = vmul.f32 %v1127, %v976
        %v1129 = vmul.f32 %v1128, %v1127
        %v1130 = vmul.f32 0.5, %v1129
        %v1131 = vsub.f32 1.5, %v1130
        %v1132 = vmul.f32 %v1127, %v1131
        %vm1133 = vweird.f32 %v976
        %vm1134 = vweird.f32 %v1127
        %vm1135 = vmor %vm1133, %vm1134
        %v1136 = vsel %vm1135, %v1127, %v1132
        %v1137 = vmul.f32 %v865, %v986
        %v1138 = vmul.f32 %v866, %v996
        %v1139 = vmul.f32 %v867, %v1006
        %v1140 = vmul.f32 %v868, %v1016
        %v1141 = vmul.f32 %v869, %v1026
        %v1142 = vmul.f32 %v870, %v1036
        %v1143 = vmul.f32 %v871, %v1046
        %v1144 = vmul.f32 %v872, %v1056
        %v1145 = vmul.f32 %v873, %v1066
        %v1146 = vmul.f32 %v874, %v1076
        %v1147 = vmul.f32 %v875, %v1086
        %v1148 = vmul.f32 %v876, %v1096
        %v1149 = vmul.f32 %v877, %v1106
        %v1150 = vmul.f32 %v878, %v1116
        %v1151 = vmul.f32 %v879, %v1126
        %v1152 = vmul.f32 %v880, %v1136
        %v1153 = vperm.slane %v792, 0
        %v1154 = vmul.f32 %v1137, %v1153
        %v1155 = vmul.f32 %v1138, %v1153
        %v1156 = vmul.f32 %v1139, %v1153
        %v1157 = vmul.f32 %v1140, %v1153
        %v1158 = vmul.f32 %v1141, %v1153
        %v1159 = vmul.f32 %v1142, %v1153
        %v1160 = vmul.f32 %v1143, %v1153
        %v1161 = vmul.f32 %v1144, %v1153
        %v1162 = vmul.f32 %v1145, %v1153
        %v1163 = vmul.f32 %v1146, %v1153
        %v1164 = vmul.f32 %v1147, %v1153
        %v1165 = vmul.f32 %v1148, %v1153
        %v1166 = vmul.f32 %v1149, %v1153
        %v1167 = vmul.f32 %v1150, %v1153
        %v1168 = vmul.f32 %v1151, %v1153
        %v1169 = vmul.f32 %v1152, %v1153
        %1171 = vrot.lane.b32.xlu0 %v1153, 96
        %v1172 = vpop.permute.xlu0 %1171
        %v1174 = vadd.f32 %v1154, %v1172
        %v1175 = vadd.f32 %v1155, %v1172
        %v1176 = vadd.f32 %v1156, %v1172
        %v1177 = vadd.f32 %v1157, %v1172
        %v1178 = vadd.f32 %v1158, %v1172
        %v1179 = vadd.f32 %v1159, %v1172
        %v1180 = vadd.f32 %v1160, %v1172
        %v1181 = vadd.f32 %v1161, %v1172
        %v1182 = vadd.f32 %v1162, %v1172
        %v1183 = vadd.f32 %v1163, %v1172
        %v1184 = vadd.f32 %v1164, %v1172
        %v1185 = vadd.f32 %v1165, %v1172
        %v1186 = vadd.f32 %v1166, %v1172
        %v1187 = vadd.f32 %v1167, %v1172
        %v1188 = vadd.f32 %v1168, %v1172
        %v1189 = vadd.f32 %v1169, %v1172
        %v1190 = vld [vmem:[%s415] sm:$0x1]
        %v1191 = vld [vmem:[%s415 + $0x1] sm:$0x1]
        %v1192 = vld [vmem:[%s415 + $0x2] sm:$0x1]
        %v1193 = vld [vmem:[%s415 + $0x3] sm:$0x1]
        %v1194 = vld [vmem:[%s415 + $0x4] sm:$0x1]
        %v1195 = vld [vmem:[%s415 + $0x5] sm:$0x1]
        %v1196 = vld [vmem:[%s415 + $0x6] sm:$0x1]
        %v1197 = vld [vmem:[%s415 + $0x7] sm:$0x1]
        %v1198 = vld [vmem:[%s415 + $0x8] sm:$0x1]
        %v1199 = vld [vmem:[%s415 + $0x9] sm:$0x1]
        %v1200 = vld [vmem:[%s415 + $0xa] sm:$0x1]
        %v1201 = vld [vmem:[%s415 + $0xb] sm:$0x1]
        %v1202 = vld [vmem:[%s415 + $0xc] sm:$0x1]
        %v1203 = vld [vmem:[%s415 + $0xd] sm:$0x1]
        %v1204 = vld [vmem:[%s415 + $0xe] sm:$0x1]
        %v1205 = vld [vmem:[%s415 + $0xf] sm:$0x1]
        %v1206 = vsub.f32 1.0, %v1190
        %v1207 = vsub.f32 1.0, %v1191
        %v1208 = vsub.f32 1.0, %v1192
        %v1209 = vsub.f32 1.0, %v1193
        %v1210 = vsub.f32 1.0, %v1194
        %v1211 = vsub.f32 1.0, %v1195
        %v1212 = vsub.f32 1.0, %v1196
        %v1213 = vsub.f32 1.0, %v1197
        %v1214 = vsub.f32 1.0, %v1198
        %v1215 = vsub.f32 1.0, %v1199
        %v1216 = vsub.f32 1.0, %v1200
        %v1217 = vsub.f32 1.0, %v1201
        %v1218 = vsub.f32 1.0, %v1202
        %v1219 = vsub.f32 1.0, %v1203
        %v1220 = vsub.f32 1.0, %v1204
        %v1221 = vsub.f32 1.0, %v1205
        %v1222 = vmul.f32 %v1206, -1e+09
        %v1223 = vmul.f32 %v1207, -1e+09
        %v1224 = vmul.f32 %v1208, -1e+09
        %v1225 = vmul.f32 %v1209, -1e+09
        %v1226 = vmul.f32 %v1210, -1e+09
        %v1227 = vmul.f32 %v1211, -1e+09
        %v1228 = vmul.f32 %v1212, -1e+09
        %v1229 = vmul.f32 %v1213, -1e+09
        %v1230 = vmul.f32 %v1214, -1e+09
        %v1231 = vmul.f32 %v1215, -1e+09
        %v1232 = vmul.f32 %v1216, -1e+09
        %v1233 = vmul.f32 %v1217, -1e+09
        %v1234 = vmul.f32 %v1218, -1e+09
        %v1235 = vmul.f32 %v1219, -1e+09
        %v1236 = vmul.f32 %v1220, -1e+09
        %v1237 = vmul.f32 %v1221, -1e+09
        %v1254 = vperm.slane %v1222, 0
        %v1255 = vperm.slane %v1223, 0
        %v1256 = vperm.slane %v1224, 0
        %v1257 = vperm.slane %v1225, 0
        %v1258 = vperm.slane %v1226, 0
        %v1259 = vperm.slane %v1227, 0
        %v1260 = vperm.slane %v1228, 0
        %v1261 = vperm.slane %v1229, 0
        %v1262 = vperm.slane %v1230, 0
        %v1263 = vperm.slane %v1231, 0
        %v1264 = vperm.slane %v1232, 0
        %v1265 = vperm.slane %v1233, 0
        %v1266 = vperm.slane %v1234, 0
        %v1267 = vperm.slane %v1235, 0
        %v1268 = vperm.slane %v1236, 0
        %v1269 = vperm.slane %v1237, 0
        %v1286 = vpack.c.bf16 %v1175, %v1174
        %v1287 = vpack.c.bf16 %v1177, %v1176
        %v1288 = vpack.c.bf16 %v1179, %v1178
        %v1289 = vpack.c.bf16 %v1181, %v1180
        %v1290 = vpack.c.bf16 %v1183, %v1182
        %v1291 = vpack.c.bf16 %v1185, %v1184
        %v1292 = vpack.c.bf16 %v1187, %v1186
        %v1293 = vpack.c.bf16 %v1189, %v1188
        %v1294 = vld [vmem:[%s5] sm:$0xf]
        %v1295 = vld [vmem:[%s5 + $0x4] sm:$0xf]
        %v1296 = vld [vmem:[%s5 + $0x8] sm:$0xf]
        %v1297 = vld [vmem:[%s5 + $0xc] sm:$0xf]
        %v1298 = vld [vmem:[%s6] sm:$0x1]
        %v1300 = vperm.slane %v1298, 0
        %v1306 = vunpack.c.l.b16 %v1294
        %v1307 = vunpack.c.l.b16 %v1295
        %v1308 = vunpack.c.l.b16 %v1296
        %v1309 = vunpack.c.l.b16 %v1297
        %v1310 = vpack.c.b16 %v1307, %v1306
        %v1311 = vpack.c.b16 %v1309, %v1308
        %v1315 = vsel %vm793, %v1286, 0
        %v1318 = vsel %vm793, %v1287, 0
        %v1321 = vsel %vm793, %v1288, 0
        %v1324 = vsel %vm793, %v1289, 0
        %v1327 = vsel %vm793, %v1290, 0
        %v1330 = vsel %vm793, %v1291, 0
        %v1333 = vsel %vm793, %v1292, 0
        %v1336 = vsel %vm793, %v1293, 0
        %1338 = vmatpush.bf16.msra.mxu0 0
        %1339 = vmatpush.bf16.msra.mxu0 0
        %1340 = vmatpush.bf16.msra.mxu0 0
        %1341 = vmatpush.bf16.msra.mxu0 0
        %1342 = vmatpush.bf16.msra.mxu0 0
        %1343 = vmatpush.bf16.msra.mxu0 0
        %1344 = vmatpush.bf16.msra.mxu0 %v1311
        %1345 = vmatpush.bf16.msra.mxu0 %v1310
        %1346 = vmatmul.bf16.gmra.mxu0 %v1315
        %v1347 = vpop.f32.mrf.mxu0
        %v1348 = vadd.f32 %v1300, %v1347
        %v1349 = vpop.f32.mrf.mxu0
        %v1350 = vadd.f32 %v1300, %v1349
        %1351 = vmatmul.bf16.gmra.mxu0 %v1318
        %v1352 = vpop.f32.mrf.mxu0
        %v1353 = vadd.f32 %v1300, %v1352
        %v1354 = vpop.f32.mrf.mxu0
        %v1355 = vadd.f32 %v1300, %v1354
        %1356 = vmatmul.bf16.gmra.mxu0 %v1321
        %v1357 = vpop.f32.mrf.mxu0
        %v1358 = vadd.f32 %v1300, %v1357
        %v1359 = vpop.f32.mrf.mxu0
        %v1360 = vadd.f32 %v1300, %v1359
        %1361 = vmatmul.bf16.gmra.mxu0 %v1324
        %v1362 = vpop.f32.mrf.mxu0
        %v1363 = vadd.f32 %v1300, %v1362
        %v1364 = vpop.f32.mrf.mxu0
        %v1365 = vadd.f32 %v1300, %v1364
        %1366 = vmatmul.bf16.gmra.mxu0 %v1327
        %v1367 = vpop.f32.mrf.mxu0
        %v1368 = vadd.f32 %v1300, %v1367
        %v1369 = vpop.f32.mrf.mxu0
        %v1370 = vadd.f32 %v1300, %v1369
        %1371 = vmatmul.bf16.gmra.mxu0 %v1330
        %v1372 = vpop.f32.mrf.mxu0
        %v1373 = vadd.f32 %v1300, %v1372
        %v1374 = vpop.f32.mrf.mxu0
        %v1375 = vadd.f32 %v1300, %v1374
        %1376 = vmatmul.bf16.gmra.mxu0 %v1333
        %v1377 = vpop.f32.mrf.mxu0
        %v1378 = vadd.f32 %v1300, %v1377
        %v1379 = vpop.f32.mrf.mxu0
        %v1380 = vadd.f32 %v1300, %v1379
        %1381 = vmatmul.bf16.gmra.mxu0 %v1336
        %v1382 = vpop.f32.mrf.mxu0
        %v1383 = vadd.f32 %v1300, %v1382
        %v1384 = vpop.f32.mrf.mxu0
        %v1385 = vadd.f32 %v1300, %v1384
        %1386 = vdwg.mxu0
        %s1387 = scalar_lea.vmem %s5, 32
        %v1388 = vld [vmem:[%s1387] sm:$0xf]
        %v1389 = vld [vmem:[%s1387 + $0x4] sm:$0xf]
        %v1390 = vld [vmem:[%s1387 + $0x8] sm:$0xf]
        %v1391 = vld [vmem:[%s1387 + $0xc] sm:$0xf]
        %s1392 = scalar_lea.vmem %s6, 2
        %v1393 = vld [vmem:[%s1392] sm:$0x1]
        %v1395 = vperm.slane %v1393, 0
        %v1401 = vunpack.c.l.b16 %v1388
        %v1402 = vunpack.c.l.b16 %v1389
        %v1403 = vunpack.c.l.b16 %v1390
        %v1404 = vunpack.c.l.b16 %v1391
        %v1405 = vpack.c.b16 %v1402, %v1401
        %v1406 = vpack.c.b16 %v1404, %v1403
        %1409 = vmatpush.bf16.msra.mxu0 0
        %1410 = vmatpush.bf16.msra.mxu0 0
        %1411 = vmatpush.bf16.msra.mxu0 0
        %1412 = vmatpush.bf16.msra.mxu0 0
        %1413 = vmatpush.bf16.msra.mxu0 0
        %1414 = vmatpush.bf16.msra.mxu0 0
        %1415 = vmatpush.bf16.msra.mxu0 %v1406
        %1416 = vmatpush.bf16.msra.mxu0 %v1405
        %1417 = vmatmul.bf16.gmra.mxu0 %v1315
        %v1418 = vpop.f32.mrf.mxu0
        %v1419 = vadd.f32 %v1395, %v1418
        %v1420 = vpop.f32.mrf.mxu0
        %v1421 = vadd.f32 %v1395, %v1420
        %1422 = vmatmul.bf16.gmra.mxu0 %v1318
        %v1423 = vpop.f32.mrf.mxu0
        %v1424 = vadd.f32 %v1395, %v1423
        %v1425 = vpop.f32.mrf.mxu0
        %v1426 = vadd.f32 %v1395, %v1425
        %1427 = vmatmul.bf16.gmra.mxu0 %v1321
        %v1428 = vpop.f32.mrf.mxu0
        %v1429 = vadd.f32 %v1395, %v1428
        %v1430 = vpop.f32.mrf.mxu0
        %v1431 = vadd.f32 %v1395, %v1430
        %1432 = vmatmul.bf16.gmra.mxu0 %v1324
        %v1433 = vpop.f32.mrf.mxu0
        %v1434 = vadd.f32 %v1395, %v1433
        %v1435 = vpop.f32.mrf.mxu0
        %v1436 = vadd.f32 %v1395, %v1435
        %1437 = vmatmul.bf16.gmra.mxu0 %v1327
        %v1438 = vpop.f32.mrf.mxu0
        %v1439 = vadd.f32 %v1395, %v1438
        %v1440 = vpop.f32.mrf.mxu0
        %v1441 = vadd.f32 %v1395, %v1440
        %1442 = vmatmul.bf16.gmra.mxu0 %v1330
        %v1443 = vpop.f32.mrf.mxu0
        %v1444 = vadd.f32 %v1395, %v1443
        %v1445 = vpop.f32.mrf.mxu0
        %v1446 = vadd.f32 %v1395, %v1445
        %1447 = vmatmul.bf16.gmra.mxu0 %v1333
        %v1448 = vpop.f32.mrf.mxu0
        %v1449 = vadd.f32 %v1395, %v1448
        %v1450 = vpop.f32.mrf.mxu0
        %v1451 = vadd.f32 %v1395, %v1450
        %1452 = vmatmul.bf16.gmra.mxu0 %v1336
        %v1453 = vpop.f32.mrf.mxu0
        %v1454 = vadd.f32 %v1395, %v1453
        %v1455 = vpop.f32.mrf.mxu0
        %v1456 = vadd.f32 %v1395, %v1455
        %1457 = vdwg.mxu0
        %s1458 = scalar_lea.vmem %s5, 64
        %v1459 = vld [vmem:[%s1458] sm:$0xf]
        %v1460 = vld [vmem:[%s1458 + $0x4] sm:$0xf]
        %v1461 = vld [vmem:[%s1458 + $0x8] sm:$0xf]
        %v1462 = vld [vmem:[%s1458 + $0xc] sm:$0xf]
        %s1463 = scalar_lea.vmem %s6, 4
        %v1464 = vld [vmem:[%s1463] sm:$0x1]
        %v1466 = vperm.slane %v1464, 0
        %v1472 = vunpack.c.l.b16 %v1459
        %v1473 = vunpack.c.l.b16 %v1460
        %v1474 = vunpack.c.l.b16 %v1461
        %v1475 = vunpack.c.l.b16 %v1462
        %v1476 = vpack.c.b16 %v1473, %v1472
        %v1477 = vpack.c.b16 %v1475, %v1474
        %1480 = vmatpush.bf16.msra.mxu0 0
        %1481 = vmatpush.bf16.msra.mxu0 0
        %1482 = vmatpush.bf16.msra.mxu0 0
        %1483 = vmatpush.bf16.msra.mxu0 0
        %1484 = vmatpush.bf16.msra.mxu0 0
        %1485 = vmatpush.bf16.msra.mxu0 0
        %1486 = vmatpush.bf16.msra.mxu0 %v1477
        %1487 = vmatpush.bf16.msra.mxu0 %v1476
        %1488 = vmatmul.bf16.gmra.mxu0 %v1315
        %v1489 = vpop.f32.mrf.mxu0
        %v1490 = vadd.f32 %v1466, %v1489
        %v1491 = vpop.f32.mrf.mxu0
        %v1492 = vadd.f32 %v1466, %v1491
        %1493 = vmatmul.bf16.gmra.mxu0 %v1318
        %v1494 = vpop.f32.mrf.mxu0
        %v1495 = vadd.f32 %v1466, %v1494
        %v1496 = vpop.f32.mrf.mxu0
        %v1497 = vadd.f32 %v1466, %v1496
        %1498 = vmatmul.bf16.gmra.mxu0 %v1321
        %v1499 = vpop.f32.mrf.mxu0
        %v1500 = vadd.f32 %v1466, %v1499
        %v1501 = vpop.f32.mrf.mxu0
        %v1502 = vadd.f32 %v1466, %v1501
        %1503 = vmatmul.bf16.gmra.mxu0 %v1324
        %v1504 = vpop.f32.mrf.mxu0
        %v1505 = vadd.f32 %v1466, %v1504
        %v1506 = vpop.f32.mrf.mxu0
        %v1507 = vadd.f32 %v1466, %v1506
        %1508 = vmatmul.bf16.gmra.mxu0 %v1327
        %v1509 = vpop.f32.mrf.mxu0
        %v1510 = vadd.f32 %v1466, %v1509
        %v1511 = vpop.f32.mrf.mxu0
        %v1512 = vadd.f32 %v1466, %v1511
        %1513 = vmatmul.bf16.gmra.mxu0 %v1330
        %v1514 = vpop.f32.mrf.mxu0
        %v1515 = vadd.f32 %v1466, %v1514
        %v1516 = vpop.f32.mrf.mxu0
        %v1517 = vadd.f32 %v1466, %v1516
        %1518 = vmatmul.bf16.gmra.mxu0 %v1333
        %v1519 = vpop.f32.mrf.mxu0
        %v1520 = vadd.f32 %v1466, %v1519
        %v1521 = vpop.f32.mrf.mxu0
        %v1522 = vadd.f32 %v1466, %v1521
        %1523 = vmatmul.bf16.gmra.mxu0 %v1336
        %v1524 = vpop.f32.mrf.mxu0
        %v1525 = vadd.f32 %v1466, %v1524
        %v1526 = vpop.f32.mrf.mxu0
        %v1527 = vadd.f32 %v1466, %v1526
        %1528 = vdwg.mxu0
        %vm1529 = vcmask 130048
        %v1531 = vsel %vm1529, %v1348, 0
        %v1534 = vsel %vm1529, %v1419, 0
        %1536 = vmatpush.xpose.msra.mxu0 0.0
        %1537 = vmatpush.xpose.msra.mxu0 0.0
        %1538 = vmatpush.xpose.msra.mxu0 0.0
        %1539 = vmatpush.xpose.msra.mxu0 0.0
        %1540 = vmatpush.xpose.msra.mxu0 0.0
        %1541 = vmatpush.xpose.msra.mxu0 0.0
        %1542 = vmatpush.xpose.msra.mxu0 0.0
        %1543 = vmatpush.xpose.msra.mxu0 0.0
        %1544 = vmatpush.xpose.msra.mxu0 0.0
        %1545 = vmatpush.xpose.msra.mxu0 0.0
        %1546 = vmatpush.xpose.msra.mxu0 0.0
        %1547 = vmatpush.xpose.msra.mxu0 0.0
        %1548 = vmatpush.xpose.msra.mxu0 0.0
        %1549 = vmatpush.xpose.msra.mxu0 0.0
        %1550 = vmatpush.xpose.msra.mxu0 0.0
        %1551 = vmatpush.xpose.msra.mxu0 %v1534
        %1552 = vmatmul.f32.gmra.mxu0 %v1531
        %v1553 = vpop.f32.mrf.mxu0
        %v1554 = vadd.f32 0.0, %v1553
        %1555 = vdwg.mxu0
        %v1557 = vsel %vm1529, %v1350, 0
        %v1560 = vsel %vm1529, %v1421, 0
        %1562 = vmatpush.xpose.msra.mxu0 0.0
        %1563 = vmatpush.xpose.msra.mxu0 0.0
        %1564 = vmatpush.xpose.msra.mxu0 0.0
        %1565 = vmatpush.xpose.msra.mxu0 0.0
        %1566 = vmatpush.xpose.msra.mxu0 0.0
        %1567 = vmatpush.xpose.msra.mxu0 0.0
        %1568 = vmatpush.xpose.msra.mxu0 0.0
        %1569 = vmatpush.xpose.msra.mxu0 0.0
        %1570 = vmatpush.xpose.msra.mxu0 0.0
        %1571 = vmatpush.xpose.msra.mxu0 0.0
        %1572 = vmatpush.xpose.msra.mxu0 0.0
        %1573 = vmatpush.xpose.msra.mxu0 0.0
        %1574 = vmatpush.xpose.msra.mxu0 0.0
        %1575 = vmatpush.xpose.msra.mxu0 0.0
        %1576 = vmatpush.xpose.msra.mxu0 0.0
        %1577 = vmatpush.xpose.msra.mxu0 %v1560
        %1578 = vmatmul.f32.gmra.mxu0 %v1557
        %v1579 = vpop.f32.mrf.mxu0
        %v1580 = vadd.f32 0.0, %v1579
        %1581 = vdwg.mxu0
        %v1583 = vsel %vm1529, %v1353, 0
        %v1586 = vsel %vm1529, %v1424, 0
        %1588 = vmatpush.xpose.msra.mxu0 0.0
        %1589 = vmatpush.xpose.msra.mxu0 0.0
        %1590 = vmatpush.xpose.msra.mxu0 0.0
        %1591 = vmatpush.xpose.msra.mxu0 0.0
        %1592 = vmatpush.xpose.msra.mxu0 0.0
        %1593 = vmatpush.xpose.msra.mxu0 0.0
        %1594 = vmatpush.xpose.msra.mxu0 0.0
        %1595 = vmatpush.xpose.msra.mxu0 0.0
        %1596 = vmatpush.xpose.msra.mxu0 0.0
        %1597 = vmatpush.xpose.msra.mxu0 0.0
        %1598 = vmatpush.xpose.msra.mxu0 0.0
        %1599 = vmatpush.xpose.msra.mxu0 0.0
        %1600 = vmatpush.xpose.msra.mxu0 0.0
        %1601 = vmatpush.xpose.msra.mxu0 0.0
        %1602 = vmatpush.xpose.msra.mxu0 0.0
        %1603 = vmatpush.xpose.msra.mxu0 %v1586
        %1604 = vmatmul.f32.gmra.mxu0 %v1583
        %v1605 = vpop.f32.mrf.mxu0
        %v1606 = vadd.f32 0.0, %v1605
        %1607 = vdwg.mxu0
        %v1609 = vsel %vm1529, %v1355, 0
        %v1612 = vsel %vm1529, %v1426, 0
        %1614 = vmatpush.xpose.msra.mxu0 0.0
        %1615 = vmatpush.xpose.msra.mxu0 0.0
        %1616 = vmatpush.xpose.msra.mxu0 0.0
        %1617 = vmatpush.xpose.msra.mxu0 0.0
        %1618 = vmatpush.xpose.msra.mxu0 0.0
        %1619 = vmatpush.xpose.msra.mxu0 0.0
        %1620 = vmatpush.xpose.msra.mxu0 0.0
        %1621 = vmatpush.xpose.msra.mxu0 0.0
        %1622 = vmatpush.xpose.msra.mxu0 0.0
        %1623 = vmatpush.xpose.msra.mxu0 0.0
        %1624 = vmatpush.xpose.msra.mxu0 0.0
        %1625 = vmatpush.xpose.msra.mxu0 0.0
        %1626 = vmatpush.xpose.msra.mxu0 0.0
        %1627 = vmatpush.xpose.msra.mxu0 0.0
        %1628 = vmatpush.xpose.msra.mxu0 0.0
        %1629 = vmatpush.xpose.msra.mxu0 %v1612
        %1630 = vmatmul.f32.gmra.mxu0 %v1609
        %v1631 = vpop.f32.mrf.mxu0
        %v1632 = vadd.f32 0.0, %v1631
        %1633 = vdwg.mxu0
        %v1635 = vsel %vm1529, %v1358, 0
        %v1638 = vsel %vm1529, %v1429, 0
        %1640 = vmatpush.xpose.msra.mxu0 0.0
        %1641 = vmatpush.xpose.msra.mxu0 0.0
        %1642 = vmatpush.xpose.msra.mxu0 0.0
        %1643 = vmatpush.xpose.msra.mxu0 0.0
        %1644 = vmatpush.xpose.msra.mxu0 0.0
        %1645 = vmatpush.xpose.msra.mxu0 0.0
        %1646 = vmatpush.xpose.msra.mxu0 0.0
        %1647 = vmatpush.xpose.msra.mxu0 0.0
        %1648 = vmatpush.xpose.msra.mxu0 0.0
        %1649 = vmatpush.xpose.msra.mxu0 0.0
        %1650 = vmatpush.xpose.msra.mxu0 0.0
        %1651 = vmatpush.xpose.msra.mxu0 0.0
        %1652 = vmatpush.xpose.msra.mxu0 0.0
        %1653 = vmatpush.xpose.msra.mxu0 0.0
        %1654 = vmatpush.xpose.msra.mxu0 0.0
        %1655 = vmatpush.xpose.msra.mxu0 %v1638
        %1656 = vmatmul.f32.gmra.mxu0 %v1635
        %v1657 = vpop.f32.mrf.mxu0
        %v1658 = vadd.f32 0.0, %v1657
        %1659 = vdwg.mxu0
        %v1661 = vsel %vm1529, %v1360, 0
        %v1664 = vsel %vm1529, %v1431, 0
        %1666 = vmatpush.xpose.msra.mxu0 0.0
        %1667 = vmatpush.xpose.msra.mxu0 0.0
        %1668 = vmatpush.xpose.msra.mxu0 0.0
        %1669 = vmatpush.xpose.msra.mxu0 0.0
        %1670 = vmatpush.xpose.msra.mxu0 0.0
        %1671 = vmatpush.xpose.msra.mxu0 0.0
        %1672 = vmatpush.xpose.msra.mxu0 0.0
        %1673 = vmatpush.xpose.msra.mxu0 0.0
        %1674 = vmatpush.xpose.msra.mxu0 0.0
        %1675 = vmatpush.xpose.msra.mxu0 0.0
        %1676 = vmatpush.xpose.msra.mxu0 0.0
        %1677 = vmatpush.xpose.msra.mxu0 0.0
        %1678 = vmatpush.xpose.msra.mxu0 0.0
        %1679 = vmatpush.xpose.msra.mxu0 0.0
        %1680 = vmatpush.xpose.msra.mxu0 0.0
        %1681 = vmatpush.xpose.msra.mxu0 %v1664
        %1682 = vmatmul.f32.gmra.mxu0 %v1661
        %v1683 = vpop.f32.mrf.mxu0
        %v1684 = vadd.f32 0.0, %v1683
        %1685 = vdwg.mxu0
        %v1687 = vsel %vm1529, %v1363, 0
        %v1690 = vsel %vm1529, %v1434, 0
        %1692 = vmatpush.xpose.msra.mxu0 0.0
        %1693 = vmatpush.xpose.msra.mxu0 0.0
        %1694 = vmatpush.xpose.msra.mxu0 0.0
        %1695 = vmatpush.xpose.msra.mxu0 0.0
        %1696 = vmatpush.xpose.msra.mxu0 0.0
        %1697 = vmatpush.xpose.msra.mxu0 0.0
        %1698 = vmatpush.xpose.msra.mxu0 0.0
        %1699 = vmatpush.xpose.msra.mxu0 0.0
        %1700 = vmatpush.xpose.msra.mxu0 0.0
        %1701 = vmatpush.xpose.msra.mxu0 0.0
        %1702 = vmatpush.xpose.msra.mxu0 0.0
        %1703 = vmatpush.xpose.msra.mxu0 0.0
        %1704 = vmatpush.xpose.msra.mxu0 0.0
        %1705 = vmatpush.xpose.msra.mxu0 0.0
        %1706 = vmatpush.xpose.msra.mxu0 0.0
        %1707 = vmatpush.xpose.msra.mxu0 %v1690
        %1708 = vmatmul.f32.gmra.mxu0 %v1687
        %v1709 = vpop.f32.mrf.mxu0
        %v1710 = vadd.f32 0.0, %v1709
        %1711 = vdwg.mxu0
        %v1713 = vsel %vm1529, %v1365, 0
        %v1716 = vsel %vm1529, %v1436, 0
        %1718 = vmatpush.xpose.msra.mxu0 0.0
        %1719 = vmatpush.xpose.msra.mxu0 0.0
        %1720 = vmatpush.xpose.msra.mxu0 0.0
        %1721 = vmatpush.xpose.msra.mxu0 0.0
        %1722 = vmatpush.xpose.msra.mxu0 0.0
        %1723 = vmatpush.xpose.msra.mxu0 0.0
        %1724 = vmatpush.xpose.msra.mxu0 0.0
        %1725 = vmatpush.xpose.msra.mxu0 0.0
        %1726 = vmatpush.xpose.msra.mxu0 0.0
        %1727 = vmatpush.xpose.msra.mxu0 0.0
        %1728 = vmatpush.xpose.msra.mxu0 0.0
        %1729 = vmatpush.xpose.msra.mxu0 0.0
        %1730 = vmatpush.xpose.msra.mxu0 0.0
        %1731 = vmatpush.xpose.msra.mxu0 0.0
        %1732 = vmatpush.xpose.msra.mxu0 0.0
        %1733 = vmatpush.xpose.msra.mxu0 %v1716
        %1734 = vmatmul.f32.gmra.mxu0 %v1713
        %v1735 = vpop.f32.mrf.mxu0
        %v1736 = vadd.f32 0.0, %v1735
        %1737 = vdwg.mxu0
        %v1739 = vsel %vm1529, %v1368, 0
        %v1742 = vsel %vm1529, %v1439, 0
        %1744 = vmatpush.xpose.msra.mxu0 0.0
        %1745 = vmatpush.xpose.msra.mxu0 0.0
        %1746 = vmatpush.xpose.msra.mxu0 0.0
        %1747 = vmatpush.xpose.msra.mxu0 0.0
        %1748 = vmatpush.xpose.msra.mxu0 0.0
        %1749 = vmatpush.xpose.msra.mxu0 0.0
        %1750 = vmatpush.xpose.msra.mxu0 0.0
        %1751 = vmatpush.xpose.msra.mxu0 0.0
        %1752 = vmatpush.xpose.msra.mxu0 0.0
        %1753 = vmatpush.xpose.msra.mxu0 0.0
        %1754 = vmatpush.xpose.msra.mxu0 0.0
        %1755 = vmatpush.xpose.msra.mxu0 0.0
        %1756 = vmatpush.xpose.msra.mxu0 0.0
        %1757 = vmatpush.xpose.msra.mxu0 0.0
        %1758 = vmatpush.xpose.msra.mxu0 0.0
        %1759 = vmatpush.xpose.msra.mxu0 %v1742
        %1760 = vmatmul.f32.gmra.mxu0 %v1739
        %v1761 = vpop.f32.mrf.mxu0
        %v1762 = vadd.f32 0.0, %v1761
        %1763 = vdwg.mxu0
        %v1765 = vsel %vm1529, %v1370, 0
        %v1768 = vsel %vm1529, %v1441, 0
        %1770 = vmatpush.xpose.msra.mxu0 0.0
        %1771 = vmatpush.xpose.msra.mxu0 0.0
        %1772 = vmatpush.xpose.msra.mxu0 0.0
        %1773 = vmatpush.xpose.msra.mxu0 0.0
        %1774 = vmatpush.xpose.msra.mxu0 0.0
        %1775 = vmatpush.xpose.msra.mxu0 0.0
        %1776 = vmatpush.xpose.msra.mxu0 0.0
        %1777 = vmatpush.xpose.msra.mxu0 0.0
        %1778 = vmatpush.xpose.msra.mxu0 0.0
        %1779 = vmatpush.xpose.msra.mxu0 0.0
        %1780 = vmatpush.xpose.msra.mxu0 0.0
        %1781 = vmatpush.xpose.msra.mxu0 0.0
        %1782 = vmatpush.xpose.msra.mxu0 0.0
        %1783 = vmatpush.xpose.msra.mxu0 0.0
        %1784 = vmatpush.xpose.msra.mxu0 0.0
        %1785 = vmatpush.xpose.msra.mxu0 %v1768
        %1786 = vmatmul.f32.gmra.mxu0 %v1765
        %v1787 = vpop.f32.mrf.mxu0
        %v1788 = vadd.f32 0.0, %v1787
        %1789 = vdwg.mxu0
        %v1791 = vsel %vm1529, %v1373, 0
        %v1794 = vsel %vm1529, %v1444, 0
        %1796 = vmatpush.xpose.msra.mxu0 0.0
        %1797 = vmatpush.xpose.msra.mxu0 0.0
        %1798 = vmatpush.xpose.msra.mxu0 0.0
        %1799 = vmatpush.xpose.msra.mxu0 0.0
        %1800 = vmatpush.xpose.msra.mxu0 0.0
        %1801 = vmatpush.xpose.msra.mxu0 0.0
        %1802 = vmatpush.xpose.msra.mxu0 0.0
        %1803 = vmatpush.xpose.msra.mxu0 0.0
        %1804 = vmatpush.xpose.msra.mxu0 0.0
        %1805 = vmatpush.xpose.msra.mxu0 0.0
        %1806 = vmatpush.xpose.msra.mxu0 0.0
        %1807 = vmatpush.xpose.msra.mxu0 0.0
        %1808 = vmatpush.xpose.msra.mxu0 0.0
        %1809 = vmatpush.xpose.msra.mxu0 0.0
        %1810 = vmatpush.xpose.msra.mxu0 0.0
        %1811 = vmatpush.xpose.msra.mxu0 %v1794
        %1812 = vmatmul.f32.gmra.mxu0 %v1791
        %v1813 = vpop.f32.mrf.mxu0
        %v1814 = vadd.f32 0.0, %v1813
        %1815 = vdwg.mxu0
        %v1817 = vsel %vm1529, %v1375, 0
        %v1820 = vsel %vm1529, %v1446, 0
        %1822 = vmatpush.xpose.msra.mxu0 0.0
        %1823 = vmatpush.xpose.msra.mxu0 0.0
        %1824 = vmatpush.xpose.msra.mxu0 0.0
        %1825 = vmatpush.xpose.msra.mxu0 0.0
        %1826 = vmatpush.xpose.msra.mxu0 0.0
        %1827 = vmatpush.xpose.msra.mxu0 0.0
        %1828 = vmatpush.xpose.msra.mxu0 0.0
        %1829 = vmatpush.xpose.msra.mxu0 0.0
        %1830 = vmatpush.xpose.msra.mxu0 0.0
        %1831 = vmatpush.xpose.msra.mxu0 0.0
        %1832 = vmatpush.xpose.msra.mxu0 0.0
        %1833 = vmatpush.xpose.msra.mxu0 0.0
        %1834 = vmatpush.xpose.msra.mxu0 0.0
        %1835 = vmatpush.xpose.msra.mxu0 0.0
        %1836 = vmatpush.xpose.msra.mxu0 0.0
        %1837 = vmatpush.xpose.msra.mxu0 %v1820
        %1838 = vmatmul.f32.gmra.mxu0 %v1817
        %v1839 = vpop.f32.mrf.mxu0
        %v1840 = vadd.f32 0.0, %v1839
        %1841 = vdwg.mxu0
        %v1843 = vsel %vm1529, %v1378, 0
        %v1846 = vsel %vm1529, %v1449, 0
        %1848 = vmatpush.xpose.msra.mxu0 0.0
        %1849 = vmatpush.xpose.msra.mxu0 0.0
        %1850 = vmatpush.xpose.msra.mxu0 0.0
        %1851 = vmatpush.xpose.msra.mxu0 0.0
        %1852 = vmatpush.xpose.msra.mxu0 0.0
        %1853 = vmatpush.xpose.msra.mxu0 0.0
        %1854 = vmatpush.xpose.msra.mxu0 0.0
        %1855 = vmatpush.xpose.msra.mxu0 0.0
        %1856 = vmatpush.xpose.msra.mxu0 0.0
        %1857 = vmatpush.xpose.msra.mxu0 0.0
        %1858 = vmatpush.xpose.msra.mxu0 0.0
        %1859 = vmatpush.xpose.msra.mxu0 0.0
        %1860 = vmatpush.xpose.msra.mxu0 0.0
        %1861 = vmatpush.xpose.msra.mxu0 0.0
        %1862 = vmatpush.xpose.msra.mxu0 0.0
        %1863 = vmatpush.xpose.msra.mxu0 %v1846
        %1864 = vmatmul.f32.gmra.mxu0 %v1843
        %v1865 = vpop.f32.mrf.mxu0
        %v1866 = vadd.f32 0.0, %v1865
        %1867 = vdwg.mxu0
        %v1869 = vsel %vm1529, %v1380, 0
        %v1872 = vsel %vm1529, %v1451, 0
        %1874 = vmatpush.xpose.msra.mxu0 0.0
        %1875 = vmatpush.xpose.msra.mxu0 0.0
        %1876 = vmatpush.xpose.msra.mxu0 0.0
        %1877 = vmatpush.xpose.msra.mxu0 0.0
        %1878 = vmatpush.xpose.msra.mxu0 0.0
        %1879 = vmatpush.xpose.msra.mxu0 0.0
        %1880 = vmatpush.xpose.msra.mxu0 0.0
        %1881 = vmatpush.xpose.msra.mxu0 0.0
        %1882 = vmatpush.xpose.msra.mxu0 0.0
        %1883 = vmatpush.xpose.msra.mxu0 0.0
        %1884 = vmatpush.xpose.msra.mxu0 0.0
        %1885 = vmatpush.xpose.msra.mxu0 0.0
        %1886 = vmatpush.xpose.msra.mxu0 0.0
        %1887 = vmatpush.xpose.msra.mxu0 0.0
        %1888 = vmatpush.xpose.msra.mxu0 0.0
        %1889 = vmatpush.xpose.msra.mxu0 %v1872
        %1890 = vmatmul.f32.gmra.mxu0 %v1869
        %v1891 = vpop.f32.mrf.mxu0
        %v1892 = vadd.f32 0.0, %v1891
        %1893 = vdwg.mxu0
        %v1895 = vsel %vm1529, %v1383, 0
        %v1898 = vsel %vm1529, %v1454, 0
        %1900 = vmatpush.xpose.msra.mxu0 0.0
        %1901 = vmatpush.xpose.msra.mxu0 0.0
        %1902 = vmatpush.xpose.msra.mxu0 0.0
        %1903 = vmatpush.xpose.msra.mxu0 0.0
        %1904 = vmatpush.xpose.msra.mxu0 0.0
        %1905 = vmatpush.xpose.msra.mxu0 0.0
        %1906 = vmatpush.xpose.msra.mxu0 0.0
        %1907 = vmatpush.xpose.msra.mxu0 0.0
        %1908 = vmatpush.xpose.msra.mxu0 0.0
        %1909 = vmatpush.xpose.msra.mxu0 0.0
        %1910 = vmatpush.xpose.msra.mxu0 0.0
        %1911 = vmatpush.xpose.msra.mxu0 0.0
        %1912 = vmatpush.xpose.msra.mxu0 0.0
        %1913 = vmatpush.xpose.msra.mxu0 0.0
        %1914 = vmatpush.xpose.msra.mxu0 0.0
        %1915 = vmatpush.xpose.msra.mxu0 %v1898
        %1916 = vmatmul.f32.gmra.mxu0 %v1895
        %v1917 = vpop.f32.mrf.mxu0
        %v1918 = vadd.f32 0.0, %v1917
        %1919 = vdwg.mxu0
        %v1921 = vsel %vm1529, %v1385, 0
        %v1924 = vsel %vm1529, %v1456, 0
        %1926 = vmatpush.xpose.msra.mxu0 0.0
        %1927 = vmatpush.xpose.msra.mxu0 0.0
        %1928 = vmatpush.xpose.msra.mxu0 0.0
        %1929 = vmatpush.xpose.msra.mxu0 0.0
        %1930 = vmatpush.xpose.msra.mxu0 0.0
        %1931 = vmatpush.xpose.msra.mxu0 0.0
        %1932 = vmatpush.xpose.msra.mxu0 0.0
        %1933 = vmatpush.xpose.msra.mxu0 0.0
        %1934 = vmatpush.xpose.msra.mxu0 0.0
        %1935 = vmatpush.xpose.msra.mxu0 0.0
        %1936 = vmatpush.xpose.msra.mxu0 0.0
        %1937 = vmatpush.xpose.msra.mxu0 0.0
        %1938 = vmatpush.xpose.msra.mxu0 0.0
        %1939 = vmatpush.xpose.msra.mxu0 0.0
        %1940 = vmatpush.xpose.msra.mxu0 0.0
        %1941 = vmatpush.xpose.msra.mxu0 %v1924
        %1942 = vmatmul.f32.gmra.mxu0 %v1921
        %v1943 = vpop.f32.mrf.mxu0
        %v1944 = vadd.f32 0.0, %v1943
        %1945 = vdwg.mxu0
        %v1946 = vmul.f32 %v1554, 0.25
        %v1947 = vmul.f32 %v1580, 0.25
        %v1948 = vmul.f32 %v1606, 0.25
        %v1949 = vmul.f32 %v1632, 0.25
        %v1950 = vmul.f32 %v1658, 0.25
        %v1951 = vmul.f32 %v1684, 0.25
        %v1952 = vmul.f32 %v1710, 0.25
        %v1953 = vmul.f32 %v1736, 0.25
        %v1954 = vmul.f32 %v1762, 0.25
        %v1955 = vmul.f32 %v1788, 0.25
        %v1956 = vmul.f32 %v1814, 0.25
        %v1957 = vmul.f32 %v1840, 0.25
        %v1958 = vmul.f32 %v1866, 0.25
        %v1959 = vmul.f32 %v1892, 0.25
        %v1960 = vmul.f32 %v1918, 0.25
        %v1961 = vmul.f32 %v1944, 0.25
        %v1962 = vadd.f32 %v1946, %v1254
        %v1963 = vadd.f32 %v1947, %v1255
        %v1964 = vadd.f32 %v1948, %v1256
        %v1965 = vadd.f32 %v1949, %v1257
        %v1966 = vadd.f32 %v1950, %v1258
        %v1967 = vadd.f32 %v1951, %v1259
        %v1968 = vadd.f32 %v1952, %v1260
        %v1969 = vadd.f32 %v1953, %v1261
        %v1970 = vadd.f32 %v1954, %v1262
        %v1971 = vadd.f32 %v1955, %v1263
        %v1972 = vadd.f32 %v1956, %v1264
        %v1973 = vadd.f32 %v1957, %v1265
        %v1974 = vadd.f32 %v1958, %v1266
        %v1975 = vadd.f32 %v1959, %v1267
        %v1976 = vadd.f32 %v1960, %v1268
        %v1977 = vadd.f32 %v1961, %v1269
        %vm1978 = vcmask 64512
        %v1979 = vsel %vm1978, %v1962, -inf
        %1980 = vmax.xlane.f32.xlu0 %v1979
        %v1981 = vpop.xlane.xlu0 %1980
        %v1982 = vsel %vm1978, %v1963, -inf
        %1983 = vmax.xlane.f32.xlu0 %v1982
        %v1984 = vpop.xlane.xlu0 %1983
        %v1985 = vsel %vm1978, %v1964, -inf
        %1986 = vmax.xlane.f32.xlu0 %v1985
        %v1987 = vpop.xlane.xlu0 %1986
        %v1988 = vsel %vm1978, %v1965, -inf
        %1989 = vmax.xlane.f32.xlu0 %v1988
        %v1990 = vpop.xlane.xlu0 %1989
        %v1991 = vsel %vm1978, %v1966, -inf
        %1992 = vmax.xlane.f32.xlu0 %v1991
        %v1993 = vpop.xlane.xlu0 %1992
        %v1994 = vsel %vm1978, %v1967, -inf
        %1995 = vmax.xlane.f32.xlu0 %v1994
        %v1996 = vpop.xlane.xlu0 %1995
        %v1997 = vsel %vm1978, %v1968, -inf
        %1998 = vmax.xlane.f32.xlu0 %v1997
        %v1999 = vpop.xlane.xlu0 %1998
        %v2000 = vsel %vm1978, %v1969, -inf
        %2001 = vmax.xlane.f32.xlu0 %v2000
        %v2002 = vpop.xlane.xlu0 %2001
        %v2003 = vsel %vm1978, %v1970, -inf
        %2004 = vmax.xlane.f32.xlu0 %v2003
        %v2005 = vpop.xlane.xlu0 %2004
        %v2006 = vsel %vm1978, %v1971, -inf
        %2007 = vmax.xlane.f32.xlu0 %v2006
        %v2008 = vpop.xlane.xlu0 %2007
        %v2009 = vsel %vm1978, %v1972, -inf
        %2010 = vmax.xlane.f32.xlu0 %v2009
        %v2011 = vpop.xlane.xlu0 %2010
        %v2012 = vsel %vm1978, %v1973, -inf
        %2013 = vmax.xlane.f32.xlu0 %v2012
        %v2014 = vpop.xlane.xlu0 %2013
        %v2015 = vsel %vm1978, %v1974, -inf
        %2016 = vmax.xlane.f32.xlu0 %v2015
        %v2017 = vpop.xlane.xlu0 %2016
        %v2018 = vsel %vm1978, %v1975, -inf
        %2019 = vmax.xlane.f32.xlu0 %v2018
        %v2020 = vpop.xlane.xlu0 %2019
        %v2021 = vsel %vm1978, %v1976, -inf
        %2022 = vmax.xlane.f32.xlu0 %v2021
        %v2023 = vpop.xlane.xlu0 %2022
        %v2024 = vsel %vm1978, %v1977, -inf
        %2025 = vmax.xlane.f32.xlu0 %v2024
        %v2026 = vpop.xlane.xlu0 %2025
        %v2027 = vsub.f32 %v1962, %v1981
        %v2028 = vsub.f32 %v1963, %v1984
        %v2029 = vsub.f32 %v1964, %v1987
        %v2030 = vsub.f32 %v1965, %v1990
        %v2031 = vsub.f32 %v1966, %v1993
        %v2032 = vsub.f32 %v1967, %v1996
        %v2033 = vsub.f32 %v1968, %v1999
        %v2034 = vsub.f32 %v1969, %v2002
        %v2035 = vsub.f32 %v1970, %v2005
        %v2036 = vsub.f32 %v1971, %v2008
        %v2037 = vsub.f32 %v1972, %v2011
        %v2038 = vsub.f32 %v1973, %v2014
        %v2039 = vsub.f32 %v1974, %v2017
        %v2040 = vsub.f32 %v1975, %v2020
        %v2041 = vsub.f32 %v1976, %v2023
        %v2042 = vsub.f32 %v1977, %v2026
        %v2043 = vmul.f32 %v2027, 1.442695
        %v2044 = vpow.pop %v2043
        %v2045 = vmul.f32 %v2028, 1.442695
        %v2046 = vpow.pop %v2045
        %v2047 = vmul.f32 %v2029, 1.442695
        %v2048 = vpow.pop %v2047
        %v2049 = vmul.f32 %v2030, 1.442695
        %v2050 = vpow.pop %v2049
        %v2051 = vmul.f32 %v2031, 1.442695
        %v2052 = vpow.pop %v2051
        %v2053 = vmul.f32 %v2032, 1.442695
        %v2054 = vpow.pop %v2053
        %v2055 = vmul.f32 %v2033, 1.442695
        %v2056 = vpow.pop %v2055
        %v2057 = vmul.f32 %v2034, 1.442695
        %v2058 = vpow.pop %v2057
        %v2059 = vmul.f32 %v2035, 1.442695
        %v2060 = vpow.pop %v2059
        %v2061 = vmul.f32 %v2036, 1.442695
        %v2062 = vpow.pop %v2061
        %v2063 = vmul.f32 %v2037, 1.442695
        %v2064 = vpow.pop %v2063
        %v2065 = vmul.f32 %v2038, 1.442695
        %v2066 = vpow.pop %v2065
        %v2067 = vmul.f32 %v2039, 1.442695
        %v2068 = vpow.pop %v2067
        %v2069 = vmul.f32 %v2040, 1.442695
        %v2070 = vpow.pop %v2069
        %v2071 = vmul.f32 %v2041, 1.442695
        %v2072 = vpow.pop %v2071
        %v2073 = vmul.f32 %v2042, 1.442695
        %v2074 = vpow.pop %v2073
        %v2075 = vsel %vm1978, %v2044, 0.0
        %2076 = vadd.xlane.f32.xlu0 %v2075
        %v2077 = vpop.xlane.xlu0 %2076
        %v2078 = vsel %vm1978, %v2046, 0.0
        %2079 = vadd.xlane.f32.xlu0 %v2078
        %v2080 = vpop.xlane.xlu0 %2079
        %v2081 = vsel %vm1978, %v2048, 0.0
        %2082 = vadd.xlane.f32.xlu0 %v2081
        %v2083 = vpop.xlane.xlu0 %2082
        %v2084 = vsel %vm1978, %v2050, 0.0
        %2085 = vadd.xlane.f32.xlu0 %v2084
        %v2086 = vpop.xlane.xlu0 %2085
        %v2087 = vsel %vm1978, %v2052, 0.0
        %2088 = vadd.xlane.f32.xlu0 %v2087
        %v2089 = vpop.xlane.xlu0 %2088
        %v2090 = vsel %vm1978, %v2054, 0.0
        %2091 = vadd.xlane.f32.xlu0 %v2090
        %v2092 = vpop.xlane.xlu0 %2091
        %v2093 = vsel %vm1978, %v2056, 0.0
        %2094 = vadd.xlane.f32.xlu0 %v2093
        %v2095 = vpop.xlane.xlu0 %2094
        %v2096 = vsel %vm1978, %v2058, 0.0
        %2097 = vadd.xlane.f32.xlu0 %v2096
        %v2098 = vpop.xlane.xlu0 %2097
        %v2099 = vsel %vm1978, %v2060, 0.0
        %2100 = vadd.xlane.f32.xlu0 %v2099
        %v2101 = vpop.xlane.xlu0 %2100
        %v2102 = vsel %vm1978, %v2062, 0.0
        %2103 = vadd.xlane.f32.xlu0 %v2102
        %v2104 = vpop.xlane.xlu0 %2103
        %v2105 = vsel %vm1978, %v2064, 0.0
        %2106 = vadd.xlane.f32.xlu0 %v2105
        %v2107 = vpop.xlane.xlu0 %2106
        %v2108 = vsel %vm1978, %v2066, 0.0
        %2109 = vadd.xlane.f32.xlu0 %v2108
        %v2110 = vpop.xlane.xlu0 %2109
        %v2111 = vsel %vm1978, %v2068, 0.0
        %2112 = vadd.xlane.f32.xlu0 %v2111
        %v2113 = vpop.xlane.xlu0 %2112
        %v2114 = vsel %vm1978, %v2070, 0.0
        %2115 = vadd.xlane.f32.xlu0 %v2114
        %v2116 = vpop.xlane.xlu0 %2115
        %v2117 = vsel %vm1978, %v2072, 0.0
        %2118 = vadd.xlane.f32.xlu0 %v2117
        %v2119 = vpop.xlane.xlu0 %2118
        %v2120 = vsel %vm1978, %v2074, 0.0
        %2121 = vadd.xlane.f32.xlu0 %v2120
        %v2122 = vpop.xlane.xlu0 %2121
        %v2123 = vrcp.pop %v2077
        %v2124 = vmul.f32 %v2077, %v2123
        %v2125 = vsub.f32 1.0, %v2124
        %v2126 = vmul.f32 %v2123, %v2125
        %v2127 = vadd.f32 %v2123, %v2126
        %vm2128 = vweird.f32 %v2077
        %vm2129 = vweird.f32 %v2123
        %vm2130 = vmor %vm2128, %vm2129
        %v2131 = vsel %vm2130, %v2123, %v2127
        %v2132 = vand.u32 2147483647, %v2077
        %vm2133 = vcmp.eq.f32.partialorder %v2132, 8.507059e+37
        %v2134 = vand.u32 %v2077, 2147483648
        %v2135 = vor.u32 1.1754944e-38, %v2134
        %v2136 = vsel %vm2133, %v2135, %v2131
        %v2137 = vmul.f32 %v2044, %v2136
        %v2138 = vrcp.pop %v2080
        %v2139 = vmul.f32 %v2080, %v2138
        %v2140 = vsub.f32 1.0, %v2139
        %v2141 = vmul.f32 %v2138, %v2140
        %v2142 = vadd.f32 %v2138, %v2141
        %vm2143 = vweird.f32 %v2080
        %vm2144 = vweird.f32 %v2138
        %vm2145 = vmor %vm2143, %vm2144
        %v2146 = vsel %vm2145, %v2138, %v2142
        %v2147 = vand.u32 2147483647, %v2080
        %vm2148 = vcmp.eq.f32.partialorder %v2147, 8.507059e+37
        %v2149 = vand.u32 %v2080, 2147483648
        %v2150 = vor.u32 1.1754944e-38, %v2149
        %v2151 = vsel %vm2148, %v2150, %v2146
        %v2152 = vmul.f32 %v2046, %v2151
        %v2153 = vrcp.pop %v2083
        %v2154 = vmul.f32 %v2083, %v2153
        %v2155 = vsub.f32 1.0, %v2154
        %v2156 = vmul.f32 %v2153, %v2155
        %v2157 = vadd.f32 %v2153, %v2156
        %vm2158 = vweird.f32 %v2083
        %vm2159 = vweird.f32 %v2153
        %vm2160 = vmor %vm2158, %vm2159
        %v2161 = vsel %vm2160, %v2153, %v2157
        %v2162 = vand.u32 2147483647, %v2083
        %vm2163 = vcmp.eq.f32.partialorder %v2162, 8.507059e+37
        %v2164 = vand.u32 %v2083, 2147483648
        %v2165 = vor.u32 1.1754944e-38, %v2164
        %v2166 = vsel %vm2163, %v2165, %v2161
        %v2167 = vmul.f32 %v2048, %v2166
        %v2168 = vrcp.pop %v2086
        %v2169 = vmul.f32 %v2086, %v2168
        %v2170 = vsub.f32 1.0, %v2169
        %v2171 = vmul.f32 %v2168, %v2170
        %v2172 = vadd.f32 %v2168, %v2171
        %vm2173 = vweird.f32 %v2086
        %vm2174 = vweird.f32 %v2168
        %vm2175 = vmor %vm2173, %vm2174
        %v2176 = vsel %vm2175, %v2168, %v2172
        %v2177 = vand.u32 2147483647, %v2086
        %vm2178 = vcmp.eq.f32.partialorder %v2177, 8.507059e+37
        %v2179 = vand.u32 %v2086, 2147483648
        %v2180 = vor.u32 1.1754944e-38, %v2179
        %v2181 = vsel %vm2178, %v2180, %v2176
        %v2182 = vmul.f32 %v2050, %v2181
        %v2183 = vrcp.pop %v2089
        %v2184 = vmul.f32 %v2089, %v2183
        %v2185 = vsub.f32 1.0, %v2184
        %v2186 = vmul.f32 %v2183, %v2185
        %v2187 = vadd.f32 %v2183, %v2186
        %vm2188 = vweird.f32 %v2089
        %vm2189 = vweird.f32 %v2183
        %vm2190 = vmor %vm2188, %vm2189
        %v2191 = vsel %vm2190, %v2183, %v2187
        %v2192 = vand.u32 2147483647, %v2089
        %vm2193 = vcmp.eq.f32.partialorder %v2192, 8.507059e+37
        %v2194 = vand.u32 %v2089, 2147483648
        %v2195 = vor.u32 1.1754944e-38, %v2194
        %v2196 = vsel %vm2193, %v2195, %v2191
        %v2197 = vmul.f32 %v2052, %v2196
        %v2198 = vrcp.pop %v2092
        %v2199 = vmul.f32 %v2092, %v2198
        %v2200 = vsub.f32 1.0, %v2199
        %v2201 = vmul.f32 %v2198, %v2200
        %v2202 = vadd.f32 %v2198, %v2201
        %vm2203 = vweird.f32 %v2092
        %vm2204 = vweird.f32 %v2198
        %vm2205 = vmor %vm2203, %vm2204
        %v2206 = vsel %vm2205, %v2198, %v2202
        %v2207 = vand.u32 2147483647, %v2092
        %vm2208 = vcmp.eq.f32.partialorder %v2207, 8.507059e+37
        %v2209 = vand.u32 %v2092, 2147483648
        %v2210 = vor.u32 1.1754944e-38, %v2209
        %v2211 = vsel %vm2208, %v2210, %v2206
        %v2212 = vmul.f32 %v2054, %v2211
        %v2213 = vrcp.pop %v2095
        %v2214 = vmul.f32 %v2095, %v2213
        %v2215 = vsub.f32 1.0, %v2214
        %v2216 = vmul.f32 %v2213, %v2215
        %v2217 = vadd.f32 %v2213, %v2216
        %vm2218 = vweird.f32 %v2095
        %vm2219 = vweird.f32 %v2213
        %vm2220 = vmor %vm2218, %vm2219
        %v2221 = vsel %vm2220, %v2213, %v2217
        %v2222 = vand.u32 2147483647, %v2095
        %vm2223 = vcmp.eq.f32.partialorder %v2222, 8.507059e+37
        %v2224 = vand.u32 %v2095, 2147483648
        %v2225 = vor.u32 1.1754944e-38, %v2224
        %v2226 = vsel %vm2223, %v2225, %v2221
        %v2227 = vmul.f32 %v2056, %v2226
        %v2228 = vrcp.pop %v2098
        %v2229 = vmul.f32 %v2098, %v2228
        %v2230 = vsub.f32 1.0, %v2229
        %v2231 = vmul.f32 %v2228, %v2230
        %v2232 = vadd.f32 %v2228, %v2231
        %vm2233 = vweird.f32 %v2098
        %vm2234 = vweird.f32 %v2228
        %vm2235 = vmor %vm2233, %vm2234
        %v2236 = vsel %vm2235, %v2228, %v2232
        %v2237 = vand.u32 2147483647, %v2098
        %vm2238 = vcmp.eq.f32.partialorder %v2237, 8.507059e+37
        %v2239 = vand.u32 %v2098, 2147483648
        %v2240 = vor.u32 1.1754944e-38, %v2239
        %v2241 = vsel %vm2238, %v2240, %v2236
        %v2242 = vmul.f32 %v2058, %v2241
        %v2243 = vrcp.pop %v2101
        %v2244 = vmul.f32 %v2101, %v2243
        %v2245 = vsub.f32 1.0, %v2244
        %v2246 = vmul.f32 %v2243, %v2245
        %v2247 = vadd.f32 %v2243, %v2246
        %vm2248 = vweird.f32 %v2101
        %vm2249 = vweird.f32 %v2243
        %vm2250 = vmor %vm2248, %vm2249
        %v2251 = vsel %vm2250, %v2243, %v2247
        %v2252 = vand.u32 2147483647, %v2101
        %vm2253 = vcmp.eq.f32.partialorder %v2252, 8.507059e+37
        %v2254 = vand.u32 %v2101, 2147483648
        %v2255 = vor.u32 1.1754944e-38, %v2254
        %v2256 = vsel %vm2253, %v2255, %v2251
        %v2257 = vmul.f32 %v2060, %v2256
        %v2258 = vrcp.pop %v2104
        %v2259 = vmul.f32 %v2104, %v2258
        %v2260 = vsub.f32 1.0, %v2259
        %v2261 = vmul.f32 %v2258, %v2260
        %v2262 = vadd.f32 %v2258, %v2261
        %vm2263 = vweird.f32 %v2104
        %vm2264 = vweird.f32 %v2258
        %vm2265 = vmor %vm2263, %vm2264
        %v2266 = vsel %vm2265, %v2258, %v2262
        %v2267 = vand.u32 2147483647, %v2104
        %vm2268 = vcmp.eq.f32.partialorder %v2267, 8.507059e+37
        %v2269 = vand.u32 %v2104, 2147483648
        %v2270 = vor.u32 1.1754944e-38, %v2269
        %v2271 = vsel %vm2268, %v2270, %v2266
        %v2272 = vmul.f32 %v2062, %v2271
        %v2273 = vrcp.pop %v2107
        %v2274 = vmul.f32 %v2107, %v2273
        %v2275 = vsub.f32 1.0, %v2274
        %v2276 = vmul.f32 %v2273, %v2275
        %v2277 = vadd.f32 %v2273, %v2276
        %vm2278 = vweird.f32 %v2107
        %vm2279 = vweird.f32 %v2273
        %vm2280 = vmor %vm2278, %vm2279
        %v2281 = vsel %vm2280, %v2273, %v2277
        %v2282 = vand.u32 2147483647, %v2107
        %vm2283 = vcmp.eq.f32.partialorder %v2282, 8.507059e+37
        %v2284 = vand.u32 %v2107, 2147483648
        %v2285 = vor.u32 1.1754944e-38, %v2284
        %v2286 = vsel %vm2283, %v2285, %v2281
        %v2287 = vmul.f32 %v2064, %v2286
        %v2288 = vrcp.pop %v2110
        %v2289 = vmul.f32 %v2110, %v2288
        %v2290 = vsub.f32 1.0, %v2289
        %v2291 = vmul.f32 %v2288, %v2290
        %v2292 = vadd.f32 %v2288, %v2291
        %vm2293 = vweird.f32 %v2110
        %vm2294 = vweird.f32 %v2288
        %vm2295 = vmor %vm2293, %vm2294
        %v2296 = vsel %vm2295, %v2288, %v2292
        %v2297 = vand.u32 2147483647, %v2110
        %vm2298 = vcmp.eq.f32.partialorder %v2297, 8.507059e+37
        %v2299 = vand.u32 %v2110, 2147483648
        %v2300 = vor.u32 1.1754944e-38, %v2299
        %v2301 = vsel %vm2298, %v2300, %v2296
        %v2302 = vmul.f32 %v2066, %v2301
        %v2303 = vrcp.pop %v2113
        %v2304 = vmul.f32 %v2113, %v2303
        %v2305 = vsub.f32 1.0, %v2304
        %v2306 = vmul.f32 %v2303, %v2305
        %v2307 = vadd.f32 %v2303, %v2306
        %vm2308 = vweird.f32 %v2113
        %vm2309 = vweird.f32 %v2303
        %vm2310 = vmor %vm2308, %vm2309
        %v2311 = vsel %vm2310, %v2303, %v2307
        %v2312 = vand.u32 2147483647, %v2113
        %vm2313 = vcmp.eq.f32.partialorder %v2312, 8.507059e+37
        %v2314 = vand.u32 %v2113, 2147483648
        %v2315 = vor.u32 1.1754944e-38, %v2314
        %v2316 = vsel %vm2313, %v2315, %v2311
        %v2317 = vmul.f32 %v2068, %v2316
        %v2318 = vrcp.pop %v2116
        %v2319 = vmul.f32 %v2116, %v2318
        %v2320 = vsub.f32 1.0, %v2319
        %v2321 = vmul.f32 %v2318, %v2320
        %v2322 = vadd.f32 %v2318, %v2321
        %vm2323 = vweird.f32 %v2116
        %vm2324 = vweird.f32 %v2318
        %vm2325 = vmor %vm2323, %vm2324
        %v2326 = vsel %vm2325, %v2318, %v2322
        %v2327 = vand.u32 2147483647, %v2116
        %vm2328 = vcmp.eq.f32.partialorder %v2327, 8.507059e+37
        %v2329 = vand.u32 %v2116, 2147483648
        %v2330 = vor.u32 1.1754944e-38, %v2329
        %v2331 = vsel %vm2328, %v2330, %v2326
        %v2332 = vmul.f32 %v2070, %v2331
        %v2333 = vrcp.pop %v2119
        %v2334 = vmul.f32 %v2119, %v2333
        %v2335 = vsub.f32 1.0, %v2334
        %v2336 = vmul.f32 %v2333, %v2335
        %v2337 = vadd.f32 %v2333, %v2336
        %vm2338 = vweird.f32 %v2119
        %vm2339 = vweird.f32 %v2333
        %vm2340 = vmor %vm2338, %vm2339
        %v2341 = vsel %vm2340, %v2333, %v2337
        %v2342 = vand.u32 2147483647, %v2119
        %vm2343 = vcmp.eq.f32.partialorder %v2342, 8.507059e+37
        %v2344 = vand.u32 %v2119, 2147483648
        %v2345 = vor.u32 1.1754944e-38, %v2344
        %v2346 = vsel %vm2343, %v2345, %v2341
        %v2347 = vmul.f32 %v2072, %v2346
        %v2348 = vrcp.pop %v2122
        %v2349 = vmul.f32 %v2122, %v2348
        %v2350 = vsub.f32 1.0, %v2349
        %v2351 = vmul.f32 %v2348, %v2350
        %v2352 = vadd.f32 %v2348, %v2351
        %vm2353 = vweird.f32 %v2122
        %vm2354 = vweird.f32 %v2348
        %vm2355 = vmor %vm2353, %vm2354
        %v2356 = vsel %vm2355, %v2348, %v2352
        %v2357 = vand.u32 2147483647, %v2122
        %vm2358 = vcmp.eq.f32.partialorder %v2357, 8.507059e+37
        %v2359 = vand.u32 %v2122, 2147483648
        %v2360 = vor.u32 1.1754944e-38, %v2359
        %v2361 = vsel %vm2358, %v2360, %v2356
        %v2362 = vmul.f32 %v2074, %v2361
        %v2364 = vsel %vm1978, %v2137, 0
        %2366 = vmatpush.msra.mxu0 0.0
        %2367 = vmatpush.msra.mxu0 0.0
        %2368 = vmatpush.msra.mxu0 0.0
        %2369 = vmatpush.msra.mxu0 0.0
        %2370 = vmatpush.msra.mxu0 0.0
        %2371 = vmatpush.msra.mxu0 0.0
        %2372 = vmatpush.msra.mxu0 0.0
        %2373 = vmatpush.msra.mxu0 0.0
        %2374 = vmatpush.msra.mxu0 0.0
        %2375 = vmatpush.msra.mxu0 0.0
        %2376 = vmatpush.msra.mxu0 0.0
        %2377 = vmatpush.msra.mxu0 0.0
        %2378 = vmatpush.msra.mxu0 0.0
        %2379 = vmatpush.msra.mxu0 0.0
        %2380 = vmatpush.msra.mxu0 0.0
        %2381 = vmatpush.msra.mxu0 %v1490
        %2382 = vmatmul.f32.gmra.mxu0 %v2364
        %v2383 = vpop.f32.mrf.mxu0
        %v2384 = vadd.f32 0.0, %v2383
        %2385 = vdwg.mxu0
        %v2387 = vsel %vm1978, %v2152, 0
        %2389 = vmatpush.msra.mxu0 0.0
        %2390 = vmatpush.msra.mxu0 0.0
        %2391 = vmatpush.msra.mxu0 0.0
        %2392 = vmatpush.msra.mxu0 0.0
        %2393 = vmatpush.msra.mxu0 0.0
        %2394 = vmatpush.msra.mxu0 0.0
        %2395 = vmatpush.msra.mxu0 0.0
        %2396 = vmatpush.msra.mxu0 0.0
        %2397 = vmatpush.msra.mxu0 0.0
        %2398 = vmatpush.msra.mxu0 0.0
        %2399 = vmatpush.msra.mxu0 0.0
        %2400 = vmatpush.msra.mxu0 0.0
        %2401 = vmatpush.msra.mxu0 0.0
        %2402 = vmatpush.msra.mxu0 0.0
        %2403 = vmatpush.msra.mxu0 0.0
        %2404 = vmatpush.msra.mxu0 %v1492
        %2405 = vmatmul.f32.gmra.mxu0 %v2387
        %v2406 = vpop.f32.mrf.mxu0
        %v2407 = vadd.f32 0.0, %v2406
        %2408 = vdwg.mxu0
        %v2410 = vsel %vm1978, %v2167, 0
        %2412 = vmatpush.msra.mxu0 0.0
        %2413 = vmatpush.msra.mxu0 0.0
        %2414 = vmatpush.msra.mxu0 0.0
        %2415 = vmatpush.msra.mxu0 0.0
        %2416 = vmatpush.msra.mxu0 0.0
        %2417 = vmatpush.msra.mxu0 0.0
        %2418 = vmatpush.msra.mxu0 0.0
        %2419 = vmatpush.msra.mxu0 0.0
        %2420 = vmatpush.msra.mxu0 0.0
        %2421 = vmatpush.msra.mxu0 0.0
        %2422 = vmatpush.msra.mxu0 0.0
        %2423 = vmatpush.msra.mxu0 0.0
        %2424 = vmatpush.msra.mxu0 0.0
        %2425 = vmatpush.msra.mxu0 0.0
        %2426 = vmatpush.msra.mxu0 0.0
        %2427 = vmatpush.msra.mxu0 %v1495
        %2428 = vmatmul.f32.gmra.mxu0 %v2410
        %v2429 = vpop.f32.mrf.mxu0
        %v2430 = vadd.f32 0.0, %v2429
        %2431 = vdwg.mxu0
        %v2433 = vsel %vm1978, %v2182, 0
        %2435 = vmatpush.msra.mxu0 0.0
        %2436 = vmatpush.msra.mxu0 0.0
        %2437 = vmatpush.msra.mxu0 0.0
        %2438 = vmatpush.msra.mxu0 0.0
        %2439 = vmatpush.msra.mxu0 0.0
        %2440 = vmatpush.msra.mxu0 0.0
        %2441 = vmatpush.msra.mxu0 0.0
        %2442 = vmatpush.msra.mxu0 0.0
        %2443 = vmatpush.msra.mxu0 0.0
        %2444 = vmatpush.msra.mxu0 0.0
        %2445 = vmatpush.msra.mxu0 0.0
        %2446 = vmatpush.msra.mxu0 0.0
        %2447 = vmatpush.msra.mxu0 0.0
        %2448 = vmatpush.msra.mxu0 0.0
        %2449 = vmatpush.msra.mxu0 0.0
        %2450 = vmatpush.msra.mxu0 %v1497
        %2451 = vmatmul.f32.gmra.mxu0 %v2433
        %v2452 = vpop.f32.mrf.mxu0
        %v2453 = vadd.f32 0.0, %v2452
        %2454 = vdwg.mxu0
        %v2456 = vsel %vm1978, %v2197, 0
        %2458 = vmatpush.msra.mxu0 0.0
        %2459 = vmatpush.msra.mxu0 0.0
        %2460 = vmatpush.msra.mxu0 0.0
        %2461 = vmatpush.msra.mxu0 0.0
        %2462 = vmatpush.msra.mxu0 0.0
        %2463 = vmatpush.msra.mxu0 0.0
        %2464 = vmatpush.msra.mxu0 0.0
        %2465 = vmatpush.msra.mxu0 0.0
        %2466 = vmatpush.msra.mxu0 0.0
        %2467 = vmatpush.msra.mxu0 0.0
        %2468 = vmatpush.msra.mxu0 0.0
        %2469 = vmatpush.msra.mxu0 0.0
        %2470 = vmatpush.msra.mxu0 0.0
        %2471 = vmatpush.msra.mxu0 0.0
        %2472 = vmatpush.msra.mxu0 0.0
        %2473 = vmatpush.msra.mxu0 %v1500
        %2474 = vmatmul.f32.gmra.mxu0 %v2456
        %v2475 = vpop.f32.mrf.mxu0
        %v2476 = vadd.f32 0.0, %v2475
        %2477 = vdwg.mxu0
        %v2479 = vsel %vm1978, %v2212, 0
        %2481 = vmatpush.msra.mxu0 0.0
        %2482 = vmatpush.msra.mxu0 0.0
        %2483 = vmatpush.msra.mxu0 0.0
        %2484 = vmatpush.msra.mxu0 0.0
        %2485 = vmatpush.msra.mxu0 0.0
        %2486 = vmatpush.msra.mxu0 0.0
        %2487 = vmatpush.msra.mxu0 0.0
        %2488 = vmatpush.msra.mxu0 0.0
        %2489 = vmatpush.msra.mxu0 0.0
        %2490 = vmatpush.msra.mxu0 0.0
        %2491 = vmatpush.msra.mxu0 0.0
        %2492 = vmatpush.msra.mxu0 0.0
        %2493 = vmatpush.msra.mxu0 0.0
        %2494 = vmatpush.msra.mxu0 0.0
        %2495 = vmatpush.msra.mxu0 0.0
        %2496 = vmatpush.msra.mxu0 %v1502
        %2497 = vmatmul.f32.gmra.mxu0 %v2479
        %v2498 = vpop.f32.mrf.mxu0
        %v2499 = vadd.f32 0.0, %v2498
        %2500 = vdwg.mxu0
        %v2502 = vsel %vm1978, %v2227, 0
        %2504 = vmatpush.msra.mxu0 0.0
        %2505 = vmatpush.msra.mxu0 0.0
        %2506 = vmatpush.msra.mxu0 0.0
        %2507 = vmatpush.msra.mxu0 0.0
        %2508 = vmatpush.msra.mxu0 0.0
        %2509 = vmatpush.msra.mxu0 0.0
        %2510 = vmatpush.msra.mxu0 0.0
        %2511 = vmatpush.msra.mxu0 0.0
        %2512 = vmatpush.msra.mxu0 0.0
        %2513 = vmatpush.msra.mxu0 0.0
        %2514 = vmatpush.msra.mxu0 0.0
        %2515 = vmatpush.msra.mxu0 0.0
        %2516 = vmatpush.msra.mxu0 0.0
        %2517 = vmatpush.msra.mxu0 0.0
        %2518 = vmatpush.msra.mxu0 0.0
        %2519 = vmatpush.msra.mxu0 %v1505
        %2520 = vmatmul.f32.gmra.mxu0 %v2502
        %v2521 = vpop.f32.mrf.mxu0
        %v2522 = vadd.f32 0.0, %v2521
        %2523 = vdwg.mxu0
        %v2525 = vsel %vm1978, %v2242, 0
        %2527 = vmatpush.msra.mxu0 0.0
        %2528 = vmatpush.msra.mxu0 0.0
        %2529 = vmatpush.msra.mxu0 0.0
        %2530 = vmatpush.msra.mxu0 0.0
        %2531 = vmatpush.msra.mxu0 0.0
        %2532 = vmatpush.msra.mxu0 0.0
        %2533 = vmatpush.msra.mxu0 0.0
        %2534 = vmatpush.msra.mxu0 0.0
        %2535 = vmatpush.msra.mxu0 0.0
        %2536 = vmatpush.msra.mxu0 0.0
        %2537 = vmatpush.msra.mxu0 0.0
        %2538 = vmatpush.msra.mxu0 0.0
        %2539 = vmatpush.msra.mxu0 0.0
        %2540 = vmatpush.msra.mxu0 0.0
        %2541 = vmatpush.msra.mxu0 0.0
        %2542 = vmatpush.msra.mxu0 %v1507
        %2543 = vmatmul.f32.gmra.mxu0 %v2525
        %v2544 = vpop.f32.mrf.mxu0
        %v2545 = vadd.f32 0.0, %v2544
        %2546 = vdwg.mxu0
        %v2548 = vsel %vm1978, %v2257, 0
        %2550 = vmatpush.msra.mxu0 0.0
        %2551 = vmatpush.msra.mxu0 0.0
        %2552 = vmatpush.msra.mxu0 0.0
        %2553 = vmatpush.msra.mxu0 0.0
        %2554 = vmatpush.msra.mxu0 0.0
        %2555 = vmatpush.msra.mxu0 0.0
        %2556 = vmatpush.msra.mxu0 0.0
        %2557 = vmatpush.msra.mxu0 0.0
        %2558 = vmatpush.msra.mxu0 0.0
        %2559 = vmatpush.msra.mxu0 0.0
        %2560 = vmatpush.msra.mxu0 0.0
        %2561 = vmatpush.msra.mxu0 0.0
        %2562 = vmatpush.msra.mxu0 0.0
        %2563 = vmatpush.msra.mxu0 0.0
        %2564 = vmatpush.msra.mxu0 0.0
        %2565 = vmatpush.msra.mxu0 %v1510
        %2566 = vmatmul.f32.gmra.mxu0 %v2548
        %v2567 = vpop.f32.mrf.mxu0
        %v2568 = vadd.f32 0.0, %v2567
        %2569 = vdwg.mxu0
        %v2571 = vsel %vm1978, %v2272, 0
        %2573 = vmatpush.msra.mxu0 0.0
        %2574 = vmatpush.msra.mxu0 0.0
        %2575 = vmatpush.msra.mxu0 0.0
        %2576 = vmatpush.msra.mxu0 0.0
        %2577 = vmatpush.msra.mxu0 0.0
        %2578 = vmatpush.msra.mxu0 0.0
        %2579 = vmatpush.msra.mxu0 0.0
        %2580 = vmatpush.msra.mxu0 0.0
        %2581 = vmatpush.msra.mxu0 0.0
        %2582 = vmatpush.msra.mxu0 0.0
        %2583 = vmatpush.msra.mxu0 0.0
        %2584 = vmatpush.msra.mxu0 0.0
        %2585 = vmatpush.msra.mxu0 0.0
        %2586 = vmatpush.msra.mxu0 0.0
        %2587 = vmatpush.msra.mxu0 0.0
        %2588 = vmatpush.msra.mxu0 %v1512
        %2589 = vmatmul.f32.gmra.mxu0 %v2571
        %v2590 = vpop.f32.mrf.mxu0
        %v2591 = vadd.f32 0.0, %v2590
        %2592 = vdwg.mxu0
        %v2594 = vsel %vm1978, %v2287, 0
        %2596 = vmatpush.msra.mxu0 0.0
        %2597 = vmatpush.msra.mxu0 0.0
        %2598 = vmatpush.msra.mxu0 0.0
        %2599 = vmatpush.msra.mxu0 0.0
        %2600 = vmatpush.msra.mxu0 0.0
        %2601 = vmatpush.msra.mxu0 0.0
        %2602 = vmatpush.msra.mxu0 0.0
        %2603 = vmatpush.msra.mxu0 0.0
        %2604 = vmatpush.msra.mxu0 0.0
        %2605 = vmatpush.msra.mxu0 0.0
        %2606 = vmatpush.msra.mxu0 0.0
        %2607 = vmatpush.msra.mxu0 0.0
        %2608 = vmatpush.msra.mxu0 0.0
        %2609 = vmatpush.msra.mxu0 0.0
        %2610 = vmatpush.msra.mxu0 0.0
        %2611 = vmatpush.msra.mxu0 %v1515
        %2612 = vmatmul.f32.gmra.mxu0 %v2594
        %v2613 = vpop.f32.mrf.mxu0
        %v2614 = vadd.f32 0.0, %v2613
        %2615 = vdwg.mxu0
        %v2617 = vsel %vm1978, %v2302, 0
        %2619 = vmatpush.msra.mxu0 0.0
        %2620 = vmatpush.msra.mxu0 0.0
        %2621 = vmatpush.msra.mxu0 0.0
        %2622 = vmatpush.msra.mxu0 0.0
        %2623 = vmatpush.msra.mxu0 0.0
        %2624 = vmatpush.msra.mxu0 0.0
        %2625 = vmatpush.msra.mxu0 0.0
        %2626 = vmatpush.msra.mxu0 0.0
        %2627 = vmatpush.msra.mxu0 0.0
        %2628 = vmatpush.msra.mxu0 0.0
        %2629 = vmatpush.msra.mxu0 0.0
        %2630 = vmatpush.msra.mxu0 0.0
        %2631 = vmatpush.msra.mxu0 0.0
        %2632 = vmatpush.msra.mxu0 0.0
        %2633 = vmatpush.msra.mxu0 0.0
        %2634 = vmatpush.msra.mxu0 %v1517
        %2635 = vmatmul.f32.gmra.mxu0 %v2617
        %v2636 = vpop.f32.mrf.mxu0
        %v2637 = vadd.f32 0.0, %v2636
        %2638 = vdwg.mxu0
        %v2640 = vsel %vm1978, %v2317, 0
        %2642 = vmatpush.msra.mxu0 0.0
        %2643 = vmatpush.msra.mxu0 0.0
        %2644 = vmatpush.msra.mxu0 0.0
        %2645 = vmatpush.msra.mxu0 0.0
        %2646 = vmatpush.msra.mxu0 0.0
        %2647 = vmatpush.msra.mxu0 0.0
        %2648 = vmatpush.msra.mxu0 0.0
        %2649 = vmatpush.msra.mxu0 0.0
        %2650 = vmatpush.msra.mxu0 0.0
        %2651 = vmatpush.msra.mxu0 0.0
        %2652 = vmatpush.msra.mxu0 0.0
        %2653 = vmatpush.msra.mxu0 0.0
        %2654 = vmatpush.msra.mxu0 0.0
        %2655 = vmatpush.msra.mxu0 0.0
        %2656 = vmatpush.msra.mxu0 0.0
        %2657 = vmatpush.msra.mxu0 %v1520
        %2658 = vmatmul.f32.gmra.mxu0 %v2640
        %v2659 = vpop.f32.mrf.mxu0
        %v2660 = vadd.f32 0.0, %v2659
        %2661 = vdwg.mxu0
        %v2663 = vsel %vm1978, %v2332, 0
        %2665 = vmatpush.msra.mxu0 0.0
        %2666 = vmatpush.msra.mxu0 0.0
        %2667 = vmatpush.msra.mxu0 0.0
        %2668 = vmatpush.msra.mxu0 0.0
        %2669 = vmatpush.msra.mxu0 0.0
        %2670 = vmatpush.msra.mxu0 0.0
        %2671 = vmatpush.msra.mxu0 0.0
        %2672 = vmatpush.msra.mxu0 0.0
        %2673 = vmatpush.msra.mxu0 0.0
        %2674 = vmatpush.msra.mxu0 0.0
        %2675 = vmatpush.msra.mxu0 0.0
        %2676 = vmatpush.msra.mxu0 0.0
        %2677 = vmatpush.msra.mxu0 0.0
        %2678 = vmatpush.msra.mxu0 0.0
        %2679 = vmatpush.msra.mxu0 0.0
        %2680 = vmatpush.msra.mxu0 %v1522
        %2681 = vmatmul.f32.gmra.mxu0 %v2663
        %v2682 = vpop.f32.mrf.mxu0
        %v2683 = vadd.f32 0.0, %v2682
        %2684 = vdwg.mxu0
        %v2686 = vsel %vm1978, %v2347, 0
        %2688 = vmatpush.msra.mxu0 0.0
        %2689 = vmatpush.msra.mxu0 0.0
        %2690 = vmatpush.msra.mxu0 0.0
        %2691 = vmatpush.msra.mxu0 0.0
        %2692 = vmatpush.msra.mxu0 0.0
        %2693 = vmatpush.msra.mxu0 0.0
        %2694 = vmatpush.msra.mxu0 0.0
        %2695 = vmatpush.msra.mxu0 0.0
        %2696 = vmatpush.msra.mxu0 0.0
        %2697 = vmatpush.msra.mxu0 0.0
        %2698 = vmatpush.msra.mxu0 0.0
        %2699 = vmatpush.msra.mxu0 0.0
        %2700 = vmatpush.msra.mxu0 0.0
        %2701 = vmatpush.msra.mxu0 0.0
        %2702 = vmatpush.msra.mxu0 0.0
        %2703 = vmatpush.msra.mxu0 %v1525
        %2704 = vmatmul.f32.gmra.mxu0 %v2686
        %v2705 = vpop.f32.mrf.mxu0
        %v2706 = vadd.f32 0.0, %v2705
        %2707 = vdwg.mxu0
        %v2709 = vsel %vm1978, %v2362, 0
        %2711 = vmatpush.msra.mxu0 0.0
        %2712 = vmatpush.msra.mxu0 0.0
        %2713 = vmatpush.msra.mxu0 0.0
        %2714 = vmatpush.msra.mxu0 0.0
        %2715 = vmatpush.msra.mxu0 0.0
        %2716 = vmatpush.msra.mxu0 0.0
        %2717 = vmatpush.msra.mxu0 0.0
        %2718 = vmatpush.msra.mxu0 0.0
        %2719 = vmatpush.msra.mxu0 0.0
        %2720 = vmatpush.msra.mxu0 0.0
        %2721 = vmatpush.msra.mxu0 0.0
        %2722 = vmatpush.msra.mxu0 0.0
        %2723 = vmatpush.msra.mxu0 0.0
        %2724 = vmatpush.msra.mxu0 0.0
        %2725 = vmatpush.msra.mxu0 0.0
        %2726 = vmatpush.msra.mxu0 %v1527
        %2727 = vmatmul.f32.gmra.mxu0 %v2709
        %v2728 = vpop.f32.mrf.mxu0
        %v2729 = vadd.f32 0.0, %v2728
        %2730 = vdwg.mxu0
        %v2731 = vpack.c.bf16 %v2407, %v2384
        %v2732 = vpack.c.bf16 %v2453, %v2430
        %v2733 = vpack.c.bf16 %v2499, %v2476
        %v2734 = vpack.c.bf16 %v2545, %v2522
        %v2735 = vpack.c.bf16 %v2591, %v2568
        %v2736 = vpack.c.bf16 %v2637, %v2614
        %v2737 = vpack.c.bf16 %v2683, %v2660
        %v2738 = vpack.c.bf16 %v2729, %v2706
        %v2739 = vld [vmem:[%s7] sm:$0xf]
        %v2740 = vld [vmem:[%s7 + $0x4] sm:$0xf]
        %s2741 = scalar_lea.vmem %s5, 16
        %v2742 = vld [vmem:[%s2741] sm:$0xf]
        %v2743 = vld [vmem:[%s2741 + $0x4] sm:$0xf]
        %v2744 = vld [vmem:[%s2741 + $0x8] sm:$0xf]
        %v2745 = vld [vmem:[%s2741 + $0xc] sm:$0xf]
        %s2746 = scalar_lea.vmem %s6, 1
        %v2747 = vld [vmem:[%s2746] sm:$0x1]
        %v2749 = vperm.slane %v2747, 0
        %v2755 = vunpack.c.l.b16 %v2742
        %v2756 = vunpack.c.l.b16 %v2743
        %v2757 = vunpack.c.l.b16 %v2744
        %v2758 = vunpack.c.l.b16 %v2745
        %v2759 = vpack.c.b16 %v2756, %v2755
        %v2760 = vpack.c.b16 %v2758, %v2757
        %2763 = vmatpush.bf16.msra.mxu0 0
        %2764 = vmatpush.bf16.msra.mxu0 0
        %2765 = vmatpush.bf16.msra.mxu0 0
        %2766 = vmatpush.bf16.msra.mxu0 0
        %2767 = vmatpush.bf16.msra.mxu0 0
        %2768 = vmatpush.bf16.msra.mxu0 0
        %2769 = vmatpush.bf16.msra.mxu0 %v2760
        %2770 = vmatpush.bf16.msra.mxu0 %v2759
        %2771 = vmatmul.bf16.gmra.mxu0 %v1315
        %v2772 = vpop.f32.mrf.mxu0
        %v2773 = vadd.f32 %v2749, %v2772
        %v2774 = vpop.f32.mrf.mxu0
        %v2775 = vadd.f32 %v2749, %v2774
        %2776 = vmatmul.bf16.gmra.mxu0 %v1318
        %v2777 = vpop.f32.mrf.mxu0
        %v2778 = vadd.f32 %v2749, %v2777
        %v2779 = vpop.f32.mrf.mxu0
        %v2780 = vadd.f32 %v2749, %v2779
        %2781 = vmatmul.bf16.gmra.mxu0 %v1321
        %v2782 = vpop.f32.mrf.mxu0
        %v2783 = vadd.f32 %v2749, %v2782
        %v2784 = vpop.f32.mrf.mxu0
        %v2785 = vadd.f32 %v2749, %v2784
        %2786 = vmatmul.bf16.gmra.mxu0 %v1324
        %v2787 = vpop.f32.mrf.mxu0
        %v2788 = vadd.f32 %v2749, %v2787
        %v2789 = vpop.f32.mrf.mxu0
        %v2790 = vadd.f32 %v2749, %v2789
        %2791 = vmatmul.bf16.gmra.mxu0 %v1327
        %v2792 = vpop.f32.mrf.mxu0
        %v2793 = vadd.f32 %v2749, %v2792
        %v2794 = vpop.f32.mrf.mxu0
        %v2795 = vadd.f32 %v2749, %v2794
        %2796 = vmatmul.bf16.gmra.mxu0 %v1330
        %v2797 = vpop.f32.mrf.mxu0
        %v2798 = vadd.f32 %v2749, %v2797
        %v2799 = vpop.f32.mrf.mxu0
        %v2800 = vadd.f32 %v2749, %v2799
        %2801 = vmatmul.bf16.gmra.mxu0 %v1333
        %v2802 = vpop.f32.mrf.mxu0
        %v2803 = vadd.f32 %v2749, %v2802
        %v2804 = vpop.f32.mrf.mxu0
        %v2805 = vadd.f32 %v2749, %v2804
        %2806 = vmatmul.bf16.gmra.mxu0 %v1336
        %v2807 = vpop.f32.mrf.mxu0
        %v2808 = vadd.f32 %v2749, %v2807
        %v2809 = vpop.f32.mrf.mxu0
        %v2810 = vadd.f32 %v2749, %v2809
        %2811 = vdwg.mxu0
        %s2812 = scalar_lea.vmem %s5, 48
        %v2813 = vld [vmem:[%s2812] sm:$0xf]
        %v2814 = vld [vmem:[%s2812 + $0x4] sm:$0xf]
        %v2815 = vld [vmem:[%s2812 + $0x8] sm:$0xf]
        %v2816 = vld [vmem:[%s2812 + $0xc] sm:$0xf]
        %s2817 = scalar_lea.vmem %s6, 3
        %v2818 = vld [vmem:[%s2817] sm:$0x1]
        %v2820 = vperm.slane %v2818, 0
        %v2826 = vunpack.c.l.b16 %v2813
        %v2827 = vunpack.c.l.b16 %v2814
        %v2828 = vunpack.c.l.b16 %v2815
        %v2829 = vunpack.c.l.b16 %v2816
        %v2830 = vpack.c.b16 %v2827, %v2826
        %v2831 = vpack.c.b16 %v2829, %v2828
        %2834 = vmatpush.bf16.msra.mxu0 0
        %2835 = vmatpush.bf16.msra.mxu0 0
        %2836 = vmatpush.bf16.msra.mxu0 0
        %2837 = vmatpush.bf16.msra.mxu0 0
        %2838 = vmatpush.bf16.msra.mxu0 0
        %2839 = vmatpush.bf16.msra.mxu0 0
        %2840 = vmatpush.bf16.msra.mxu0 %v2831
        %2841 = vmatpush.bf16.msra.mxu0 %v2830
        %2842 = vmatmul.bf16.gmra.mxu0 %v1315
        %v2843 = vpop.f32.mrf.mxu0
        %v2844 = vadd.f32 %v2820, %v2843
        %v2845 = vpop.f32.mrf.mxu0
        %v2846 = vadd.f32 %v2820, %v2845
        %2847 = vmatmul.bf16.gmra.mxu0 %v1318
        %v2848 = vpop.f32.mrf.mxu0
        %v2849 = vadd.f32 %v2820, %v2848
        %v2850 = vpop.f32.mrf.mxu0
        %v2851 = vadd.f32 %v2820, %v2850
        %2852 = vmatmul.bf16.gmra.mxu0 %v1321
        %v2853 = vpop.f32.mrf.mxu0
        %v2854 = vadd.f32 %v2820, %v2853
        %v2855 = vpop.f32.mrf.mxu0
        %v2856 = vadd.f32 %v2820, %v2855
        %2857 = vmatmul.bf16.gmra.mxu0 %v1324
        %v2858 = vpop.f32.mrf.mxu0
        %v2859 = vadd.f32 %v2820, %v2858
        %v2860 = vpop.f32.mrf.mxu0
        %v2861 = vadd.f32 %v2820, %v2860
        %2862 = vmatmul.bf16.gmra.mxu0 %v1327
        %v2863 = vpop.f32.mrf.mxu0
        %v2864 = vadd.f32 %v2820, %v2863
        %v2865 = vpop.f32.mrf.mxu0
        %v2866 = vadd.f32 %v2820, %v2865
        %2867 = vmatmul.bf16.gmra.mxu0 %v1330
        %v2868 = vpop.f32.mrf.mxu0
        %v2869 = vadd.f32 %v2820, %v2868
        %v2870 = vpop.f32.mrf.mxu0
        %v2871 = vadd.f32 %v2820, %v2870
        %2872 = vmatmul.bf16.gmra.mxu0 %v1333
        %v2873 = vpop.f32.mrf.mxu0
        %v2874 = vadd.f32 %v2820, %v2873
        %v2875 = vpop.f32.mrf.mxu0
        %v2876 = vadd.f32 %v2820, %v2875
        %2877 = vmatmul.bf16.gmra.mxu0 %v1336
        %v2878 = vpop.f32.mrf.mxu0
        %v2879 = vadd.f32 %v2820, %v2878
        %v2880 = vpop.f32.mrf.mxu0
        %v2881 = vadd.f32 %v2820, %v2880
        %2882 = vdwg.mxu0
        %s2883 = scalar_lea.vmem %s5, 80
        %v2884 = vld [vmem:[%s2883] sm:$0xf]
        %v2885 = vld [vmem:[%s2883 + $0x4] sm:$0xf]
        %v2886 = vld [vmem:[%s2883 + $0x8] sm:$0xf]
        %v2887 = vld [vmem:[%s2883 + $0xc] sm:$0xf]
        %s2888 = scalar_lea.vmem %s6, 5
        %v2889 = vld [vmem:[%s2888] sm:$0x1]
        %v2891 = vperm.slane %v2889, 0
        %v2897 = vunpack.c.l.b16 %v2884
        %v2898 = vunpack.c.l.b16 %v2885
        %v2899 = vunpack.c.l.b16 %v2886
        %v2900 = vunpack.c.l.b16 %v2887
        %v2901 = vpack.c.b16 %v2898, %v2897
        %v2902 = vpack.c.b16 %v2900, %v2899
        %2905 = vmatpush.bf16.msra.mxu0 0
        %2906 = vmatpush.bf16.msra.mxu0 0
        %2907 = vmatpush.bf16.msra.mxu0 0
        %2908 = vmatpush.bf16.msra.mxu0 0
        %2909 = vmatpush.bf16.msra.mxu0 0
        %2910 = vmatpush.bf16.msra.mxu0 0
        %2911 = vmatpush.bf16.msra.mxu0 %v2902
        %2912 = vmatpush.bf16.msra.mxu0 %v2901
        %2913 = vmatmul.bf16.gmra.mxu0 %v1315
        %v2914 = vpop.f32.mrf.mxu0
        %v2915 = vadd.f32 %v2891, %v2914
        %v2916 = vpop.f32.mrf.mxu0
        %v2917 = vadd.f32 %v2891, %v2916
        %2918 = vmatmul.bf16.gmra.mxu0 %v1318
        %v2919 = vpop.f32.mrf.mxu0
        %v2920 = vadd.f32 %v2891, %v2919
        %v2921 = vpop.f32.mrf.mxu0
        %v2922 = vadd.f32 %v2891, %v2921
        %2923 = vmatmul.bf16.gmra.mxu0 %v1321
        %v2924 = vpop.f32.mrf.mxu0
        %v2925 = vadd.f32 %v2891, %v2924
        %v2926 = vpop.f32.mrf.mxu0
        %v2927 = vadd.f32 %v2891, %v2926
        %2928 = vmatmul.bf16.gmra.mxu0 %v1324
        %v2929 = vpop.f32.mrf.mxu0
        %v2930 = vadd.f32 %v2891, %v2929
        %v2931 = vpop.f32.mrf.mxu0
        %v2932 = vadd.f32 %v2891, %v2931
        %2933 = vmatmul.bf16.gmra.mxu0 %v1327
        %v2934 = vpop.f32.mrf.mxu0
        %v2935 = vadd.f32 %v2891, %v2934
        %v2936 = vpop.f32.mrf.mxu0
        %v2937 = vadd.f32 %v2891, %v2936
        %2938 = vmatmul.bf16.gmra.mxu0 %v1330
        %v2939 = vpop.f32.mrf.mxu0
        %v2940 = vadd.f32 %v2891, %v2939
        %v2941 = vpop.f32.mrf.mxu0
        %v2942 = vadd.f32 %v2891, %v2941
        %2943 = vmatmul.bf16.gmra.mxu0 %v1333
        %v2944 = vpop.f32.mrf.mxu0
        %v2945 = vadd.f32 %v2891, %v2944
        %v2946 = vpop.f32.mrf.mxu0
        %v2947 = vadd.f32 %v2891, %v2946
        %2948 = vmatmul.bf16.gmra.mxu0 %v1336
        %v2949 = vpop.f32.mrf.mxu0
        %v2950 = vadd.f32 %v2891, %v2949
        %v2951 = vpop.f32.mrf.mxu0
        %v2952 = vadd.f32 %v2891, %v2951
        %2953 = vdwg.mxu0
        %v2955 = vsel %vm1529, %v2773, 0
        %v2958 = vsel %vm1529, %v2844, 0
        %2960 = vmatpush.xpose.msra.mxu0 0.0
        %2961 = vmatpush.xpose.msra.mxu0 0.0
        %2962 = vmatpush.xpose.msra.mxu0 0.0
        %2963 = vmatpush.xpose.msra.mxu0 0.0
        %2964 = vmatpush.xpose.msra.mxu0 0.0
        %2965 = vmatpush.xpose.msra.mxu0 0.0
        %2966 = vmatpush.xpose.msra.mxu0 0.0
        %2967 = vmatpush.xpose.msra.mxu0 0.0
        %2968 = vmatpush.xpose.msra.mxu0 0.0
        %2969 = vmatpush.xpose.msra.mxu0 0.0
        %2970 = vmatpush.xpose.msra.mxu0 0.0
        %2971 = vmatpush.xpose.msra.mxu0 0.0
        %2972 = vmatpush.xpose.msra.mxu0 0.0
        %2973 = vmatpush.xpose.msra.mxu0 0.0
        %2974 = vmatpush.xpose.msra.mxu0 0.0
        %2975 = vmatpush.xpose.msra.mxu0 %v2958
        %2976 = vmatmul.f32.gmra.mxu0 %v2955
        %v2977 = vpop.f32.mrf.mxu0
        %v2978 = vadd.f32 0.0, %v2977
        %2979 = vdwg.mxu0
        %v2981 = vsel %vm1529, %v2775, 0
        %v2984 = vsel %vm1529, %v2846, 0
        %2986 = vmatpush.xpose.msra.mxu0 0.0
        %2987 = vmatpush.xpose.msra.mxu0 0.0
        %2988 = vmatpush.xpose.msra.mxu0 0.0
        %2989 = vmatpush.xpose.msra.mxu0 0.0
        %2990 = vmatpush.xpose.msra.mxu0 0.0
        %2991 = vmatpush.xpose.msra.mxu0 0.0
        %2992 = vmatpush.xpose.msra.mxu0 0.0
        %2993 = vmatpush.xpose.msra.mxu0 0.0
        %2994 = vmatpush.xpose.msra.mxu0 0.0
        %2995 = vmatpush.xpose.msra.mxu0 0.0
        %2996 = vmatpush.xpose.msra.mxu0 0.0
        %2997 = vmatpush.xpose.msra.mxu0 0.0
        %2998 = vmatpush.xpose.msra.mxu0 0.0
        %2999 = vmatpush.xpose.msra.mxu0 0.0
        %3000 = vmatpush.xpose.msra.mxu0 0.0
        %3001 = vmatpush.xpose.msra.mxu0 %v2984
        %3002 = vmatmul.f32.gmra.mxu0 %v2981
        %v3003 = vpop.f32.mrf.mxu0
        %v3004 = vadd.f32 0.0, %v3003
        %3005 = vdwg.mxu0
        %v3007 = vsel %vm1529, %v2778, 0
        %v3010 = vsel %vm1529, %v2849, 0
        %3012 = vmatpush.xpose.msra.mxu0 0.0
        %3013 = vmatpush.xpose.msra.mxu0 0.0
        %3014 = vmatpush.xpose.msra.mxu0 0.0
        %3015 = vmatpush.xpose.msra.mxu0 0.0
        %3016 = vmatpush.xpose.msra.mxu0 0.0
        %3017 = vmatpush.xpose.msra.mxu0 0.0
        %3018 = vmatpush.xpose.msra.mxu0 0.0
        %3019 = vmatpush.xpose.msra.mxu0 0.0
        %3020 = vmatpush.xpose.msra.mxu0 0.0
        %3021 = vmatpush.xpose.msra.mxu0 0.0
        %3022 = vmatpush.xpose.msra.mxu0 0.0
        %3023 = vmatpush.xpose.msra.mxu0 0.0
        %3024 = vmatpush.xpose.msra.mxu0 0.0
        %3025 = vmatpush.xpose.msra.mxu0 0.0
        %3026 = vmatpush.xpose.msra.mxu0 0.0
        %3027 = vmatpush.xpose.msra.mxu0 %v3010
        %3028 = vmatmul.f32.gmra.mxu0 %v3007
        %v3029 = vpop.f32.mrf.mxu0
        %v3030 = vadd.f32 0.0, %v3029
        %3031 = vdwg.mxu0
        %v3033 = vsel %vm1529, %v2780, 0
        %v3036 = vsel %vm1529, %v2851, 0
        %3038 = vmatpush.xpose.msra.mxu0 0.0
        %3039 = vmatpush.xpose.msra.mxu0 0.0
        %3040 = vmatpush.xpose.msra.mxu0 0.0
        %3041 = vmatpush.xpose.msra.mxu0 0.0
        %3042 = vmatpush.xpose.msra.mxu0 0.0
        %3043 = vmatpush.xpose.msra.mxu0 0.0
        %3044 = vmatpush.xpose.msra.mxu0 0.0
        %3045 = vmatpush.xpose.msra.mxu0 0.0
        %3046 = vmatpush.xpose.msra.mxu0 0.0
        %3047 = vmatpush.xpose.msra.mxu0 0.0
        %3048 = vmatpush.xpose.msra.mxu0 0.0
        %3049 = vmatpush.xpose.msra.mxu0 0.0
        %3050 = vmatpush.xpose.msra.mxu0 0.0
        %3051 = vmatpush.xpose.msra.mxu0 0.0
        %3052 = vmatpush.xpose.msra.mxu0 0.0
        %3053 = vmatpush.xpose.msra.mxu0 %v3036
        %3054 = vmatmul.f32.gmra.mxu0 %v3033
        %v3055 = vpop.f32.mrf.mxu0
        %v3056 = vadd.f32 0.0, %v3055
        %3057 = vdwg.mxu0
        %v3059 = vsel %vm1529, %v2783, 0
        %v3062 = vsel %vm1529, %v2854, 0
        %3064 = vmatpush.xpose.msra.mxu0 0.0
        %3065 = vmatpush.xpose.msra.mxu0 0.0
        %3066 = vmatpush.xpose.msra.mxu0 0.0
        %3067 = vmatpush.xpose.msra.mxu0 0.0
        %3068 = vmatpush.xpose.msra.mxu0 0.0
        %3069 = vmatpush.xpose.msra.mxu0 0.0
        %3070 = vmatpush.xpose.msra.mxu0 0.0
        %3071 = vmatpush.xpose.msra.mxu0 0.0
        %3072 = vmatpush.xpose.msra.mxu0 0.0
        %3073 = vmatpush.xpose.msra.mxu0 0.0
        %3074 = vmatpush.xpose.msra.mxu0 0.0
        %3075 = vmatpush.xpose.msra.mxu0 0.0
        %3076 = vmatpush.xpose.msra.mxu0 0.0
        %3077 = vmatpush.xpose.msra.mxu0 0.0
        %3078 = vmatpush.xpose.msra.mxu0 0.0
        %3079 = vmatpush.xpose.msra.mxu0 %v3062
        %3080 = vmatmul.f32.gmra.mxu0 %v3059
        %v3081 = vpop.f32.mrf.mxu0
        %v3082 = vadd.f32 0.0, %v3081
        %3083 = vdwg.mxu0
        %v3085 = vsel %vm1529, %v2785, 0
        %v3088 = vsel %vm1529, %v2856, 0
        %3090 = vmatpush.xpose.msra.mxu0 0.0
        %3091 = vmatpush.xpose.msra.mxu0 0.0
        %3092 = vmatpush.xpose.msra.mxu0 0.0
        %3093 = vmatpush.xpose.msra.mxu0 0.0
        %3094 = vmatpush.xpose.msra.mxu0 0.0
        %3095 = vmatpush.xpose.msra.mxu0 0.0
        %3096 = vmatpush.xpose.msra.mxu0 0.0
        %3097 = vmatpush.xpose.msra.mxu0 0.0
        %3098 = vmatpush.xpose.msra.mxu0 0.0
        %3099 = vmatpush.xpose.msra.mxu0 0.0
        %3100 = vmatpush.xpose.msra.mxu0 0.0
        %3101 = vmatpush.xpose.msra.mxu0 0.0
        %3102 = vmatpush.xpose.msra.mxu0 0.0
        %3103 = vmatpush.xpose.msra.mxu0 0.0
        %3104 = vmatpush.xpose.msra.mxu0 0.0
        %3105 = vmatpush.xpose.msra.mxu0 %v3088
        %3106 = vmatmul.f32.gmra.mxu0 %v3085
        %v3107 = vpop.f32.mrf.mxu0
        %v3108 = vadd.f32 0.0, %v3107
        %3109 = vdwg.mxu0
        %v3111 = vsel %vm1529, %v2788, 0
        %v3114 = vsel %vm1529, %v2859, 0
        %3116 = vmatpush.xpose.msra.mxu0 0.0
        %3117 = vmatpush.xpose.msra.mxu0 0.0
        %3118 = vmatpush.xpose.msra.mxu0 0.0
        %3119 = vmatpush.xpose.msra.mxu0 0.0
        %3120 = vmatpush.xpose.msra.mxu0 0.0
        %3121 = vmatpush.xpose.msra.mxu0 0.0
        %3122 = vmatpush.xpose.msra.mxu0 0.0
        %3123 = vmatpush.xpose.msra.mxu0 0.0
        %3124 = vmatpush.xpose.msra.mxu0 0.0
        %3125 = vmatpush.xpose.msra.mxu0 0.0
        %3126 = vmatpush.xpose.msra.mxu0 0.0
        %3127 = vmatpush.xpose.msra.mxu0 0.0
        %3128 = vmatpush.xpose.msra.mxu0 0.0
        %3129 = vmatpush.xpose.msra.mxu0 0.0
        %3130 = vmatpush.xpose.msra.mxu0 0.0
        %3131 = vmatpush.xpose.msra.mxu0 %v3114
        %3132 = vmatmul.f32.gmra.mxu0 %v3111
        %v3133 = vpop.f32.mrf.mxu0
        %v3134 = vadd.f32 0.0, %v3133
        %3135 = vdwg.mxu0
        %v3137 = vsel %vm1529, %v2790, 0
        %v3140 = vsel %vm1529, %v2861, 0
        %3142 = vmatpush.xpose.msra.mxu0 0.0
        %3143 = vmatpush.xpose.msra.mxu0 0.0
        %3144 = vmatpush.xpose.msra.mxu0 0.0
        %3145 = vmatpush.xpose.msra.mxu0 0.0
        %3146 = vmatpush.xpose.msra.mxu0 0.0
        %3147 = vmatpush.xpose.msra.mxu0 0.0
        %3148 = vmatpush.xpose.msra.mxu0 0.0
        %3149 = vmatpush.xpose.msra.mxu0 0.0
        %3150 = vmatpush.xpose.msra.mxu0 0.0
        %3151 = vmatpush.xpose.msra.mxu0 0.0
        %3152 = vmatpush.xpose.msra.mxu0 0.0
        %3153 = vmatpush.xpose.msra.mxu0 0.0
        %3154 = vmatpush.xpose.msra.mxu0 0.0
        %3155 = vmatpush.xpose.msra.mxu0 0.0
        %3156 = vmatpush.xpose.msra.mxu0 0.0
        %3157 = vmatpush.xpose.msra.mxu0 %v3140
        %3158 = vmatmul.f32.gmra.mxu0 %v3137
        %v3159 = vpop.f32.mrf.mxu0
        %v3160 = vadd.f32 0.0, %v3159
        %3161 = vdwg.mxu0
        %v3163 = vsel %vm1529, %v2793, 0
        %v3166 = vsel %vm1529, %v2864, 0
        %3168 = vmatpush.xpose.msra.mxu0 0.0
        %3169 = vmatpush.xpose.msra.mxu0 0.0
        %3170 = vmatpush.xpose.msra.mxu0 0.0
        %3171 = vmatpush.xpose.msra.mxu0 0.0
        %3172 = vmatpush.xpose.msra.mxu0 0.0
        %3173 = vmatpush.xpose.msra.mxu0 0.0
        %3174 = vmatpush.xpose.msra.mxu0 0.0
        %3175 = vmatpush.xpose.msra.mxu0 0.0
        %3176 = vmatpush.xpose.msra.mxu0 0.0
        %3177 = vmatpush.xpose.msra.mxu0 0.0
        %3178 = vmatpush.xpose.msra.mxu0 0.0
        %3179 = vmatpush.xpose.msra.mxu0 0.0
        %3180 = vmatpush.xpose.msra.mxu0 0.0
        %3181 = vmatpush.xpose.msra.mxu0 0.0
        %3182 = vmatpush.xpose.msra.mxu0 0.0
        %3183 = vmatpush.xpose.msra.mxu0 %v3166
        %3184 = vmatmul.f32.gmra.mxu0 %v3163
        %v3185 = vpop.f32.mrf.mxu0
        %v3186 = vadd.f32 0.0, %v3185
        %3187 = vdwg.mxu0
        %v3189 = vsel %vm1529, %v2795, 0
        %v3192 = vsel %vm1529, %v2866, 0
        %3194 = vmatpush.xpose.msra.mxu0 0.0
        %3195 = vmatpush.xpose.msra.mxu0 0.0
        %3196 = vmatpush.xpose.msra.mxu0 0.0
        %3197 = vmatpush.xpose.msra.mxu0 0.0
        %3198 = vmatpush.xpose.msra.mxu0 0.0
        %3199 = vmatpush.xpose.msra.mxu0 0.0
        %3200 = vmatpush.xpose.msra.mxu0 0.0
        %3201 = vmatpush.xpose.msra.mxu0 0.0
        %3202 = vmatpush.xpose.msra.mxu0 0.0
        %3203 = vmatpush.xpose.msra.mxu0 0.0
        %3204 = vmatpush.xpose.msra.mxu0 0.0
        %3205 = vmatpush.xpose.msra.mxu0 0.0
        %3206 = vmatpush.xpose.msra.mxu0 0.0
        %3207 = vmatpush.xpose.msra.mxu0 0.0
        %3208 = vmatpush.xpose.msra.mxu0 0.0
        %3209 = vmatpush.xpose.msra.mxu0 %v3192
        %3210 = vmatmul.f32.gmra.mxu0 %v3189
        %v3211 = vpop.f32.mrf.mxu0
        %v3212 = vadd.f32 0.0, %v3211
        %3213 = vdwg.mxu0
        %v3215 = vsel %vm1529, %v2798, 0
        %v3218 = vsel %vm1529, %v2869, 0
        %3220 = vmatpush.xpose.msra.mxu0 0.0
        %3221 = vmatpush.xpose.msra.mxu0 0.0
        %3222 = vmatpush.xpose.msra.mxu0 0.0
        %3223 = vmatpush.xpose.msra.mxu0 0.0
        %3224 = vmatpush.xpose.msra.mxu0 0.0
        %3225 = vmatpush.xpose.msra.mxu0 0.0
        %3226 = vmatpush.xpose.msra.mxu0 0.0
        %3227 = vmatpush.xpose.msra.mxu0 0.0
        %3228 = vmatpush.xpose.msra.mxu0 0.0
        %3229 = vmatpush.xpose.msra.mxu0 0.0
        %3230 = vmatpush.xpose.msra.mxu0 0.0
        %3231 = vmatpush.xpose.msra.mxu0 0.0
        %3232 = vmatpush.xpose.msra.mxu0 0.0
        %3233 = vmatpush.xpose.msra.mxu0 0.0
        %3234 = vmatpush.xpose.msra.mxu0 0.0
        %3235 = vmatpush.xpose.msra.mxu0 %v3218
        %3236 = vmatmul.f32.gmra.mxu0 %v3215
        %v3237 = vpop.f32.mrf.mxu0
        %v3238 = vadd.f32 0.0, %v3237
        %3239 = vdwg.mxu0
        %v3241 = vsel %vm1529, %v2800, 0
        %v3244 = vsel %vm1529, %v2871, 0
        %3246 = vmatpush.xpose.msra.mxu0 0.0
        %3247 = vmatpush.xpose.msra.mxu0 0.0
        %3248 = vmatpush.xpose.msra.mxu0 0.0
        %3249 = vmatpush.xpose.msra.mxu0 0.0
        %3250 = vmatpush.xpose.msra.mxu0 0.0
        %3251 = vmatpush.xpose.msra.mxu0 0.0
        %3252 = vmatpush.xpose.msra.mxu0 0.0
        %3253 = vmatpush.xpose.msra.mxu0 0.0
        %3254 = vmatpush.xpose.msra.mxu0 0.0
        %3255 = vmatpush.xpose.msra.mxu0 0.0
        %3256 = vmatpush.xpose.msra.mxu0 0.0
        %3257 = vmatpush.xpose.msra.mxu0 0.0
        %3258 = vmatpush.xpose.msra.mxu0 0.0
        %3259 = vmatpush.xpose.msra.mxu0 0.0
        %3260 = vmatpush.xpose.msra.mxu0 0.0
        %3261 = vmatpush.xpose.msra.mxu0 %v3244
        %3262 = vmatmul.f32.gmra.mxu0 %v3241
        %v3263 = vpop.f32.mrf.mxu0
        %v3264 = vadd.f32 0.0, %v3263
        %3265 = vdwg.mxu0
        %v3267 = vsel %vm1529, %v2803, 0
        %v3270 = vsel %vm1529, %v2874, 0
        %3272 = vmatpush.xpose.msra.mxu0 0.0
        %3273 = vmatpush.xpose.msra.mxu0 0.0
        %3274 = vmatpush.xpose.msra.mxu0 0.0
        %3275 = vmatpush.xpose.msra.mxu0 0.0
        %3276 = vmatpush.xpose.msra.mxu0 0.0
        %3277 = vmatpush.xpose.msra.mxu0 0.0
        %3278 = vmatpush.xpose.msra.mxu0 0.0
        %3279 = vmatpush.xpose.msra.mxu0 0.0
        %3280 = vmatpush.xpose.msra.mxu0 0.0
        %3281 = vmatpush.xpose.msra.mxu0 0.0
        %3282 = vmatpush.xpose.msra.mxu0 0.0
        %3283 = vmatpush.xpose.msra.mxu0 0.0
        %3284 = vmatpush.xpose.msra.mxu0 0.0
        %3285 = vmatpush.xpose.msra.mxu0 0.0
        %3286 = vmatpush.xpose.msra.mxu0 0.0
        %3287 = vmatpush.xpose.msra.mxu0 %v3270
        %3288 = vmatmul.f32.gmra.mxu0 %v3267
        %v3289 = vpop.f32.mrf.mxu0
        %v3290 = vadd.f32 0.0, %v3289
        %3291 = vdwg.mxu0
        %v3293 = vsel %vm1529, %v2805, 0
        %v3296 = vsel %vm1529, %v2876, 0
        %3298 = vmatpush.xpose.msra.mxu0 0.0
        %3299 = vmatpush.xpose.msra.mxu0 0.0
        %3300 = vmatpush.xpose.msra.mxu0 0.0
        %3301 = vmatpush.xpose.msra.mxu0 0.0
        %3302 = vmatpush.xpose.msra.mxu0 0.0
        %3303 = vmatpush.xpose.msra.mxu0 0.0
        %3304 = vmatpush.xpose.msra.mxu0 0.0
        %3305 = vmatpush.xpose.msra.mxu0 0.0
        %3306 = vmatpush.xpose.msra.mxu0 0.0
        %3307 = vmatpush.xpose.msra.mxu0 0.0
        %3308 = vmatpush.xpose.msra.mxu0 0.0
        %3309 = vmatpush.xpose.msra.mxu0 0.0
        %3310 = vmatpush.xpose.msra.mxu0 0.0
        %3311 = vmatpush.xpose.msra.mxu0 0.0
        %3312 = vmatpush.xpose.msra.mxu0 0.0
        %3313 = vmatpush.xpose.msra.mxu0 %v3296
        %3314 = vmatmul.f32.gmra.mxu0 %v3293
        %v3315 = vpop.f32.mrf.mxu0
        %v3316 = vadd.f32 0.0, %v3315
        %3317 = vdwg.mxu0
        %v3319 = vsel %vm1529, %v2808, 0
        %v3322 = vsel %vm1529, %v2879, 0
        %3324 = vmatpush.xpose.msra.mxu0 0.0
        %3325 = vmatpush.xpose.msra.mxu0 0.0
        %3326 = vmatpush.xpose.msra.mxu0 0.0
        %3327 = vmatpush.xpose.msra.mxu0 0.0
        %3328 = vmatpush.xpose.msra.mxu0 0.0
        %3329 = vmatpush.xpose.msra.mxu0 0.0
        %3330 = vmatpush.xpose.msra.mxu0 0.0
        %3331 = vmatpush.xpose.msra.mxu0 0.0
        %3332 = vmatpush.xpose.msra.mxu0 0.0
        %3333 = vmatpush.xpose.msra.mxu0 0.0
        %3334 = vmatpush.xpose.msra.mxu0 0.0
        %3335 = vmatpush.xpose.msra.mxu0 0.0
        %3336 = vmatpush.xpose.msra.mxu0 0.0
        %3337 = vmatpush.xpose.msra.mxu0 0.0
        %3338 = vmatpush.xpose.msra.mxu0 0.0
        %3339 = vmatpush.xpose.msra.mxu0 %v3322
        %3340 = vmatmul.f32.gmra.mxu0 %v3319
        %v3341 = vpop.f32.mrf.mxu0
        %v3342 = vadd.f32 0.0, %v3341
        %3343 = vdwg.mxu0
        %v3345 = vsel %vm1529, %v2810, 0
        %v3348 = vsel %vm1529, %v2881, 0
        %3350 = vmatpush.xpose.msra.mxu0 0.0
        %3351 = vmatpush.xpose.msra.mxu0 0.0
        %3352 = vmatpush.xpose.msra.mxu0 0.0
        %3353 = vmatpush.xpose.msra.mxu0 0.0
        %3354 = vmatpush.xpose.msra.mxu0 0.0
        %3355 = vmatpush.xpose.msra.mxu0 0.0
        %3356 = vmatpush.xpose.msra.mxu0 0.0
        %3357 = vmatpush.xpose.msra.mxu0 0.0
        %3358 = vmatpush.xpose.msra.mxu0 0.0
        %3359 = vmatpush.xpose.msra.mxu0 0.0
        %3360 = vmatpush.xpose.msra.mxu0 0.0
        %3361 = vmatpush.xpose.msra.mxu0 0.0
        %3362 = vmatpush.xpose.msra.mxu0 0.0
        %3363 = vmatpush.xpose.msra.mxu0 0.0
        %3364 = vmatpush.xpose.msra.mxu0 0.0
        %3365 = vmatpush.xpose.msra.mxu0 %v3348
        %3366 = vmatmul.f32.gmra.mxu0 %v3345
        %v3367 = vpop.f32.mrf.mxu0
        %v3368 = vadd.f32 0.0, %v3367
        %3369 = vdwg.mxu0
        %v3370 = vmul.f32 %v2978, 0.25
        %v3371 = vmul.f32 %v3004, 0.25
        %v3372 = vmul.f32 %v3030, 0.25
        %v3373 = vmul.f32 %v3056, 0.25
        %v3374 = vmul.f32 %v3082, 0.25
        %v3375 = vmul.f32 %v3108, 0.25
        %v3376 = vmul.f32 %v3134, 0.25
        %v3377 = vmul.f32 %v3160, 0.25
        %v3378 = vmul.f32 %v3186, 0.25
        %v3379 = vmul.f32 %v3212, 0.25
        %v3380 = vmul.f32 %v3238, 0.25
        %v3381 = vmul.f32 %v3264, 0.25
        %v3382 = vmul.f32 %v3290, 0.25
        %v3383 = vmul.f32 %v3316, 0.25
        %v3384 = vmul.f32 %v3342, 0.25
        %v3385 = vmul.f32 %v3368, 0.25
        %v3386 = vadd.f32 %v3370, %v1254
        %v3387 = vadd.f32 %v3371, %v1255
        %v3388 = vadd.f32 %v3372, %v1256
        %v3389 = vadd.f32 %v3373, %v1257
        %v3390 = vadd.f32 %v3374, %v1258
        %v3391 = vadd.f32 %v3375, %v1259
        %v3392 = vadd.f32 %v3376, %v1260
        %v3393 = vadd.f32 %v3377, %v1261
        %v3394 = vadd.f32 %v3378, %v1262
        %v3395 = vadd.f32 %v3379, %v1263
        %v3396 = vadd.f32 %v3380, %v1264
        %v3397 = vadd.f32 %v3381, %v1265
        %v3398 = vadd.f32 %v3382, %v1266
        %v3399 = vadd.f32 %v3383, %v1267
        %v3400 = vadd.f32 %v3384, %v1268
        %v3401 = vadd.f32 %v3385, %v1269
        %v3402 = vsel %vm1978, %v3386, -inf
        %3403 = vmax.xlane.f32.xlu0 %v3402
        %v3404 = vpop.xlane.xlu0 %3403
        %v3405 = vsel %vm1978, %v3387, -inf
        %3406 = vmax.xlane.f32.xlu0 %v3405
        %v3407 = vpop.xlane.xlu0 %3406
        %v3408 = vsel %vm1978, %v3388, -inf
        %3409 = vmax.xlane.f32.xlu0 %v3408
        %v3410 = vpop.xlane.xlu0 %3409
        %v3411 = vsel %vm1978, %v3389, -inf
        %3412 = vmax.xlane.f32.xlu0 %v3411
        %v3413 = vpop.xlane.xlu0 %3412
        %v3414 = vsel %vm1978, %v3390, -inf
        %3415 = vmax.xlane.f32.xlu0 %v3414
        %v3416 = vpop.xlane.xlu0 %3415
        %v3417 = vsel %vm1978, %v3391, -inf
        %3418 = vmax.xlane.f32.xlu0 %v3417
        %v3419 = vpop.xlane.xlu0 %3418
        %v3420 = vsel %vm1978, %v3392, -inf
        %3421 = vmax.xlane.f32.xlu0 %v3420
        %v3422 = vpop.xlane.xlu0 %3421
        %v3423 = vsel %vm1978, %v3393, -inf
        %3424 = vmax.xlane.f32.xlu0 %v3423
        %v3425 = vpop.xlane.xlu0 %3424
        %v3426 = vsel %vm1978, %v3394, -inf
        %3427 = vmax.xlane.f32.xlu0 %v3426
        %v3428 = vpop.xlane.xlu0 %3427
        %v3429 = vsel %vm1978, %v3395, -inf
        %3430 = vmax.xlane.f32.xlu0 %v3429
        %v3431 = vpop.xlane.xlu0 %3430
        %v3432 = vsel %vm1978, %v3396, -inf
        %3433 = vmax.xlane.f32.xlu0 %v3432
        %v3434 = vpop.xlane.xlu0 %3433
        %v3435 = vsel %vm1978, %v3397, -inf
        %3436 = vmax.xlane.f32.xlu0 %v3435
        %v3437 = vpop.xlane.xlu0 %3436
        %v3438 = vsel %vm1978, %v3398, -inf
        %3439 = vmax.xlane.f32.xlu0 %v3438
        %v3440 = vpop.xlane.xlu0 %3439
        %v3441 = vsel %vm1978, %v3399, -inf
        %3442 = vmax.xlane.f32.xlu0 %v3441
        %v3443 = vpop.xlane.xlu0 %3442
        %v3444 = vsel %vm1978, %v3400, -inf
        %3445 = vmax.xlane.f32.xlu0 %v3444
        %v3446 = vpop.xlane.xlu0 %3445
        %v3447 = vsel %vm1978, %v3401, -inf
        %3448 = vmax.xlane.f32.xlu0 %v3447
        %v3449 = vpop.xlane.xlu0 %3448
        %v3450 = vsub.f32 %v3386, %v3404
        %v3451 = vsub.f32 %v3387, %v3407
        %v3452 = vsub.f32 %v3388, %v3410
        %v3453 = vsub.f32 %v3389, %v3413
        %v3454 = vsub.f32 %v3390, %v3416
        %v3455 = vsub.f32 %v3391, %v3419
        %v3456 = vsub.f32 %v3392, %v3422
        %v3457 = vsub.f32 %v3393, %v3425
        %v3458 = vsub.f32 %v3394, %v3428
        %v3459 = vsub.f32 %v3395, %v3431
        %v3460 = vsub.f32 %v3396, %v3434
        %v3461 = vsub.f32 %v3397, %v3437
        %v3462 = vsub.f32 %v3398, %v3440
        %v3463 = vsub.f32 %v3399, %v3443
        %v3464 = vsub.f32 %v3400, %v3446
        %v3465 = vsub.f32 %v3401, %v3449
        %v3466 = vmul.f32 %v3450, 1.442695
        %v3467 = vpow.pop %v3466
        %v3468 = vmul.f32 %v3451, 1.442695
        %v3469 = vpow.pop %v3468
        %v3470 = vmul.f32 %v3452, 1.442695
        %v3471 = vpow.pop %v3470
        %v3472 = vmul.f32 %v3453, 1.442695
        %v3473 = vpow.pop %v3472
        %v3474 = vmul.f32 %v3454, 1.442695
        %v3475 = vpow.pop %v3474
        %v3476 = vmul.f32 %v3455, 1.442695
        %v3477 = vpow.pop %v3476
        %v3478 = vmul.f32 %v3456, 1.442695
        %v3479 = vpow.pop %v3478
        %v3480 = vmul.f32 %v3457, 1.442695
        %v3481 = vpow.pop %v3480
        %v3482 = vmul.f32 %v3458, 1.442695
        %v3483 = vpow.pop %v3482
        %v3484 = vmul.f32 %v3459, 1.442695
        %v3485 = vpow.pop %v3484
        %v3486 = vmul.f32 %v3460, 1.442695
        %v3487 = vpow.pop %v3486
        %v3488 = vmul.f32 %v3461, 1.442695
        %v3489 = vpow.pop %v3488
        %v3490 = vmul.f32 %v3462, 1.442695
        %v3491 = vpow.pop %v3490
        %v3492 = vmul.f32 %v3463, 1.442695
        %v3493 = vpow.pop %v3492
        %v3494 = vmul.f32 %v3464, 1.442695
        %v3495 = vpow.pop %v3494
        %v3496 = vmul.f32 %v3465, 1.442695
        %v3497 = vpow.pop %v3496
        %v3498 = vsel %vm1978, %v3467, 0.0
        %3499 = vadd.xlane.f32.xlu0 %v3498
        %v3500 = vpop.xlane.xlu0 %3499
        %v3501 = vsel %vm1978, %v3469, 0.0
        %3502 = vadd.xlane.f32.xlu0 %v3501
        %v3503 = vpop.xlane.xlu0 %3502
        %v3504 = vsel %vm1978, %v3471, 0.0
        %3505 = vadd.xlane.f32.xlu0 %v3504
        %v3506 = vpop.xlane.xlu0 %3505
        %v3507 = vsel %vm1978, %v3473, 0.0
        %3508 = vadd.xlane.f32.xlu0 %v3507
        %v3509 = vpop.xlane.xlu0 %3508
        %v3510 = vsel %vm1978, %v3475, 0.0
        %3511 = vadd.xlane.f32.xlu0 %v3510
        %v3512 = vpop.xlane.xlu0 %3511
        %v3513 = vsel %vm1978, %v3477, 0.0
        %3514 = vadd.xlane.f32.xlu0 %v3513
        %v3515 = vpop.xlane.xlu0 %3514
        %v3516 = vsel %vm1978, %v3479, 0.0
        %3517 = vadd.xlane.f32.xlu0 %v3516
        %v3518 = vpop.xlane.xlu0 %3517
        %v3519 = vsel %vm1978, %v3481, 0.0
        %3520 = vadd.xlane.f32.xlu0 %v3519
        %v3521 = vpop.xlane.xlu0 %3520
        %v3522 = vsel %vm1978, %v3483, 0.0
        %3523 = vadd.xlane.f32.xlu0 %v3522
        %v3524 = vpop.xlane.xlu0 %3523
        %v3525 = vsel %vm1978, %v3485, 0.0
        %3526 = vadd.xlane.f32.xlu0 %v3525
        %v3527 = vpop.xlane.xlu0 %3526
        %v3528 = vsel %vm1978, %v3487, 0.0
        %3529 = vadd.xlane.f32.xlu0 %v3528
        %v3530 = vpop.xlane.xlu0 %3529
        %v3531 = vsel %vm1978, %v3489, 0.0
        %3532 = vadd.xlane.f32.xlu0 %v3531
        %v3533 = vpop.xlane.xlu0 %3532
        %v3534 = vsel %vm1978, %v3491, 0.0
        %3535 = vadd.xlane.f32.xlu0 %v3534
        %v3536 = vpop.xlane.xlu0 %3535
        %v3537 = vsel %vm1978, %v3493, 0.0
        %3538 = vadd.xlane.f32.xlu0 %v3537
        %v3539 = vpop.xlane.xlu0 %3538
        %v3540 = vsel %vm1978, %v3495, 0.0
        %3541 = vadd.xlane.f32.xlu0 %v3540
        %v3542 = vpop.xlane.xlu0 %3541
        %v3543 = vsel %vm1978, %v3497, 0.0
        %3544 = vadd.xlane.f32.xlu0 %v3543
        %v3545 = vpop.xlane.xlu0 %3544
        %v3546 = vrcp.pop %v3500
        %v3547 = vmul.f32 %v3500, %v3546
        %v3548 = vsub.f32 1.0, %v3547
        %v3549 = vmul.f32 %v3546, %v3548
        %v3550 = vadd.f32 %v3546, %v3549
        %vm3551 = vweird.f32 %v3500
        %vm3552 = vweird.f32 %v3546
        %vm3553 = vmor %vm3551, %vm3552
        %v3554 = vsel %vm3553, %v3546, %v3550
        %v3555 = vand.u32 2147483647, %v3500
        %vm3556 = vcmp.eq.f32.partialorder %v3555, 8.507059e+37
        %v3557 = vand.u32 %v3500, 2147483648
        %v3558 = vor.u32 1.1754944e-38, %v3557
        %v3559 = vsel %vm3556, %v3558, %v3554
        %v3560 = vmul.f32 %v3467, %v3559
        %v3561 = vrcp.pop %v3503
        %v3562 = vmul.f32 %v3503, %v3561
        %v3563 = vsub.f32 1.0, %v3562
        %v3564 = vmul.f32 %v3561, %v3563
        %v3565 = vadd.f32 %v3561, %v3564
        %vm3566 = vweird.f32 %v3503
        %vm3567 = vweird.f32 %v3561
        %vm3568 = vmor %vm3566, %vm3567
        %v3569 = vsel %vm3568, %v3561, %v3565
        %v3570 = vand.u32 2147483647, %v3503
        %vm3571 = vcmp.eq.f32.partialorder %v3570, 8.507059e+37
        %v3572 = vand.u32 %v3503, 2147483648
        %v3573 = vor.u32 1.1754944e-38, %v3572
        %v3574 = vsel %vm3571, %v3573, %v3569
        %v3575 = vmul.f32 %v3469, %v3574
        %v3576 = vrcp.pop %v3506
        %v3577 = vmul.f32 %v3506, %v3576
        %v3578 = vsub.f32 1.0, %v3577
        %v3579 = vmul.f32 %v3576, %v3578
        %v3580 = vadd.f32 %v3576, %v3579
        %vm3581 = vweird.f32 %v3506
        %vm3582 = vweird.f32 %v3576
        %vm3583 = vmor %vm3581, %vm3582
        %v3584 = vsel %vm3583, %v3576, %v3580
        %v3585 = vand.u32 2147483647, %v3506
        %vm3586 = vcmp.eq.f32.partialorder %v3585, 8.507059e+37
        %v3587 = vand.u32 %v3506, 2147483648
        %v3588 = vor.u32 1.1754944e-38, %v3587
        %v3589 = vsel %vm3586, %v3588, %v3584
        %v3590 = vmul.f32 %v3471, %v3589
        %v3591 = vrcp.pop %v3509
        %v3592 = vmul.f32 %v3509, %v3591
        %v3593 = vsub.f32 1.0, %v3592
        %v3594 = vmul.f32 %v3591, %v3593
        %v3595 = vadd.f32 %v3591, %v3594
        %vm3596 = vweird.f32 %v3509
        %vm3597 = vweird.f32 %v3591
        %vm3598 = vmor %vm3596, %vm3597
        %v3599 = vsel %vm3598, %v3591, %v3595
        %v3600 = vand.u32 2147483647, %v3509
        %vm3601 = vcmp.eq.f32.partialorder %v3600, 8.507059e+37
        %v3602 = vand.u32 %v3509, 2147483648
        %v3603 = vor.u32 1.1754944e-38, %v3602
        %v3604 = vsel %vm3601, %v3603, %v3599
        %v3605 = vmul.f32 %v3473, %v3604
        %v3606 = vrcp.pop %v3512
        %v3607 = vmul.f32 %v3512, %v3606
        %v3608 = vsub.f32 1.0, %v3607
        %v3609 = vmul.f32 %v3606, %v3608
        %v3610 = vadd.f32 %v3606, %v3609
        %vm3611 = vweird.f32 %v3512
        %vm3612 = vweird.f32 %v3606
        %vm3613 = vmor %vm3611, %vm3612
        %v3614 = vsel %vm3613, %v3606, %v3610
        %v3615 = vand.u32 2147483647, %v3512
        %vm3616 = vcmp.eq.f32.partialorder %v3615, 8.507059e+37
        %v3617 = vand.u32 %v3512, 2147483648
        %v3618 = vor.u32 1.1754944e-38, %v3617
        %v3619 = vsel %vm3616, %v3618, %v3614
        %v3620 = vmul.f32 %v3475, %v3619
        %v3621 = vrcp.pop %v3515
        %v3622 = vmul.f32 %v3515, %v3621
        %v3623 = vsub.f32 1.0, %v3622
        %v3624 = vmul.f32 %v3621, %v3623
        %v3625 = vadd.f32 %v3621, %v3624
        %vm3626 = vweird.f32 %v3515
        %vm3627 = vweird.f32 %v3621
        %vm3628 = vmor %vm3626, %vm3627
        %v3629 = vsel %vm3628, %v3621, %v3625
        %v3630 = vand.u32 2147483647, %v3515
        %vm3631 = vcmp.eq.f32.partialorder %v3630, 8.507059e+37
        %v3632 = vand.u32 %v3515, 2147483648
        %v3633 = vor.u32 1.1754944e-38, %v3632
        %v3634 = vsel %vm3631, %v3633, %v3629
        %v3635 = vmul.f32 %v3477, %v3634
        %v3636 = vrcp.pop %v3518
        %v3637 = vmul.f32 %v3518, %v3636
        %v3638 = vsub.f32 1.0, %v3637
        %v3639 = vmul.f32 %v3636, %v3638
        %v3640 = vadd.f32 %v3636, %v3639
        %vm3641 = vweird.f32 %v3518
        %vm3642 = vweird.f32 %v3636
        %vm3643 = vmor %vm3641, %vm3642
        %v3644 = vsel %vm3643, %v3636, %v3640
        %v3645 = vand.u32 2147483647, %v3518
        %vm3646 = vcmp.eq.f32.partialorder %v3645, 8.507059e+37
        %v3647 = vand.u32 %v3518, 2147483648
        %v3648 = vor.u32 1.1754944e-38, %v3647
        %v3649 = vsel %vm3646, %v3648, %v3644
        %v3650 = vmul.f32 %v3479, %v3649
        %v3651 = vrcp.pop %v3521
        %v3652 = vmul.f32 %v3521, %v3651
        %v3653 = vsub.f32 1.0, %v3652
        %v3654 = vmul.f32 %v3651, %v3653
        %v3655 = vadd.f32 %v3651, %v3654
        %vm3656 = vweird.f32 %v3521
        %vm3657 = vweird.f32 %v3651
        %vm3658 = vmor %vm3656, %vm3657
        %v3659 = vsel %vm3658, %v3651, %v3655
        %v3660 = vand.u32 2147483647, %v3521
        %vm3661 = vcmp.eq.f32.partialorder %v3660, 8.507059e+37
        %v3662 = vand.u32 %v3521, 2147483648
        %v3663 = vor.u32 1.1754944e-38, %v3662
        %v3664 = vsel %vm3661, %v3663, %v3659
        %v3665 = vmul.f32 %v3481, %v3664
        %v3666 = vrcp.pop %v3524
        %v3667 = vmul.f32 %v3524, %v3666
        %v3668 = vsub.f32 1.0, %v3667
        %v3669 = vmul.f32 %v3666, %v3668
        %v3670 = vadd.f32 %v3666, %v3669
        %vm3671 = vweird.f32 %v3524
        %vm3672 = vweird.f32 %v3666
        %vm3673 = vmor %vm3671, %vm3672
        %v3674 = vsel %vm3673, %v3666, %v3670
        %v3675 = vand.u32 2147483647, %v3524
        %vm3676 = vcmp.eq.f32.partialorder %v3675, 8.507059e+37
        %v3677 = vand.u32 %v3524, 2147483648
        %v3678 = vor.u32 1.1754944e-38, %v3677
        %v3679 = vsel %vm3676, %v3678, %v3674
        %v3680 = vmul.f32 %v3483, %v3679
        %v3681 = vrcp.pop %v3527
        %v3682 = vmul.f32 %v3527, %v3681
        %v3683 = vsub.f32 1.0, %v3682
        %v3684 = vmul.f32 %v3681, %v3683
        %v3685 = vadd.f32 %v3681, %v3684
        %vm3686 = vweird.f32 %v3527
        %vm3687 = vweird.f32 %v3681
        %vm3688 = vmor %vm3686, %vm3687
        %v3689 = vsel %vm3688, %v3681, %v3685
        %v3690 = vand.u32 2147483647, %v3527
        %vm3691 = vcmp.eq.f32.partialorder %v3690, 8.507059e+37
        %v3692 = vand.u32 %v3527, 2147483648
        %v3693 = vor.u32 1.1754944e-38, %v3692
        %v3694 = vsel %vm3691, %v3693, %v3689
        %v3695 = vmul.f32 %v3485, %v3694
        %v3696 = vrcp.pop %v3530
        %v3697 = vmul.f32 %v3530, %v3696
        %v3698 = vsub.f32 1.0, %v3697
        %v3699 = vmul.f32 %v3696, %v3698
        %v3700 = vadd.f32 %v3696, %v3699
        %vm3701 = vweird.f32 %v3530
        %vm3702 = vweird.f32 %v3696
        %vm3703 = vmor %vm3701, %vm3702
        %v3704 = vsel %vm3703, %v3696, %v3700
        %v3705 = vand.u32 2147483647, %v3530
        %vm3706 = vcmp.eq.f32.partialorder %v3705, 8.507059e+37
        %v3707 = vand.u32 %v3530, 2147483648
        %v3708 = vor.u32 1.1754944e-38, %v3707
        %v3709 = vsel %vm3706, %v3708, %v3704
        %v3710 = vmul.f32 %v3487, %v3709
        %v3711 = vrcp.pop %v3533
        %v3712 = vmul.f32 %v3533, %v3711
        %v3713 = vsub.f32 1.0, %v3712
        %v3714 = vmul.f32 %v3711, %v3713
        %v3715 = vadd.f32 %v3711, %v3714
        %vm3716 = vweird.f32 %v3533
        %vm3717 = vweird.f32 %v3711
        %vm3718 = vmor %vm3716, %vm3717
        %v3719 = vsel %vm3718, %v3711, %v3715
        %v3720 = vand.u32 2147483647, %v3533
        %vm3721 = vcmp.eq.f32.partialorder %v3720, 8.507059e+37
        %v3722 = vand.u32 %v3533, 2147483648
        %v3723 = vor.u32 1.1754944e-38, %v3722
        %v3724 = vsel %vm3721, %v3723, %v3719
        %v3725 = vmul.f32 %v3489, %v3724
        %v3726 = vrcp.pop %v3536
        %v3727 = vmul.f32 %v3536, %v3726
        %v3728 = vsub.f32 1.0, %v3727
        %v3729 = vmul.f32 %v3726, %v3728
        %v3730 = vadd.f32 %v3726, %v3729
        %vm3731 = vweird.f32 %v3536
        %vm3732 = vweird.f32 %v3726
        %vm3733 = vmor %vm3731, %vm3732
        %v3734 = vsel %vm3733, %v3726, %v3730
        %v3735 = vand.u32 2147483647, %v3536
        %vm3736 = vcmp.eq.f32.partialorder %v3735, 8.507059e+37
        %v3737 = vand.u32 %v3536, 2147483648
        %v3738 = vor.u32 1.1754944e-38, %v3737
        %v3739 = vsel %vm3736, %v3738, %v3734
        %v3740 = vmul.f32 %v3491, %v3739
        %v3741 = vrcp.pop %v3539
        %v3742 = vmul.f32 %v3539, %v3741
        %v3743 = vsub.f32 1.0, %v3742
        %v3744 = vmul.f32 %v3741, %v3743
        %v3745 = vadd.f32 %v3741, %v3744
        %vm3746 = vweird.f32 %v3539
        %vm3747 = vweird.f32 %v3741
        %vm3748 = vmor %vm3746, %vm3747
        %v3749 = vsel %vm3748, %v3741, %v3745
        %v3750 = vand.u32 2147483647, %v3539
        %vm3751 = vcmp.eq.f32.partialorder %v3750, 8.507059e+37
        %v3752 = vand.u32 %v3539, 2147483648
        %v3753 = vor.u32 1.1754944e-38, %v3752
        %v3754 = vsel %vm3751, %v3753, %v3749
        %v3755 = vmul.f32 %v3493, %v3754
        %v3756 = vrcp.pop %v3542
        %v3757 = vmul.f32 %v3542, %v3756
        %v3758 = vsub.f32 1.0, %v3757
        %v3759 = vmul.f32 %v3756, %v3758
        %v3760 = vadd.f32 %v3756, %v3759
        %vm3761 = vweird.f32 %v3542
        %vm3762 = vweird.f32 %v3756
        %vm3763 = vmor %vm3761, %vm3762
        %v3764 = vsel %vm3763, %v3756, %v3760
        %v3765 = vand.u32 2147483647, %v3542
        %vm3766 = vcmp.eq.f32.partialorder %v3765, 8.507059e+37
        %v3767 = vand.u32 %v3542, 2147483648
        %v3768 = vor.u32 1.1754944e-38, %v3767
        %v3769 = vsel %vm3766, %v3768, %v3764
        %v3770 = vmul.f32 %v3495, %v3769
        %v3771 = vrcp.pop %v3545
        %v3772 = vmul.f32 %v3545, %v3771
        %v3773 = vsub.f32 1.0, %v3772
        %v3774 = vmul.f32 %v3771, %v3773
        %v3775 = vadd.f32 %v3771, %v3774
        %vm3776 = vweird.f32 %v3545
        %vm3777 = vweird.f32 %v3771
        %vm3778 = vmor %vm3776, %vm3777
        %v3779 = vsel %vm3778, %v3771, %v3775
        %v3780 = vand.u32 2147483647, %v3545
        %vm3781 = vcmp.eq.f32.partialorder %v3780, 8.507059e+37
        %v3782 = vand.u32 %v3545, 2147483648
        %v3783 = vor.u32 1.1754944e-38, %v3782
        %v3784 = vsel %vm3781, %v3783, %v3779
        %v3785 = vmul.f32 %v3497, %v3784
        %v3787 = vsel %vm1978, %v3560, 0
        %3789 = vmatpush.msra.mxu0 0.0
        %3790 = vmatpush.msra.mxu0 0.0
        %3791 = vmatpush.msra.mxu0 0.0
        %3792 = vmatpush.msra.mxu0 0.0
        %3793 = vmatpush.msra.mxu0 0.0
        %3794 = vmatpush.msra.mxu0 0.0
        %3795 = vmatpush.msra.mxu0 0.0
        %3796 = vmatpush.msra.mxu0 0.0
        %3797 = vmatpush.msra.mxu0 0.0
        %3798 = vmatpush.msra.mxu0 0.0
        %3799 = vmatpush.msra.mxu0 0.0
        %3800 = vmatpush.msra.mxu0 0.0
        %3801 = vmatpush.msra.mxu0 0.0
        %3802 = vmatpush.msra.mxu0 0.0
        %3803 = vmatpush.msra.mxu0 0.0
        %3804 = vmatpush.msra.mxu0 %v2915
        %3805 = vmatmul.f32.gmra.mxu0 %v3787
        %v3806 = vpop.f32.mrf.mxu0
        %v3807 = vadd.f32 0.0, %v3806
        %3808 = vdwg.mxu0
        %v3810 = vsel %vm1978, %v3575, 0
        %3812 = vmatpush.msra.mxu0 0.0
        %3813 = vmatpush.msra.mxu0 0.0
        %3814 = vmatpush.msra.mxu0 0.0
        %3815 = vmatpush.msra.mxu0 0.0
        %3816 = vmatpush.msra.mxu0 0.0
        %3817 = vmatpush.msra.mxu0 0.0
        %3818 = vmatpush.msra.mxu0 0.0
        %3819 = vmatpush.msra.mxu0 0.0
        %3820 = vmatpush.msra.mxu0 0.0
        %3821 = vmatpush.msra.mxu0 0.0
        %3822 = vmatpush.msra.mxu0 0.0
        %3823 = vmatpush.msra.mxu0 0.0
        %3824 = vmatpush.msra.mxu0 0.0
        %3825 = vmatpush.msra.mxu0 0.0
        %3826 = vmatpush.msra.mxu0 0.0
        %3827 = vmatpush.msra.mxu0 %v2917
        %3828 = vmatmul.f32.gmra.mxu0 %v3810
        %v3829 = vpop.f32.mrf.mxu0
        %v3830 = vadd.f32 0.0, %v3829
        %3831 = vdwg.mxu0
        %v3833 = vsel %vm1978, %v3590, 0
        %3835 = vmatpush.msra.mxu0 0.0
        %3836 = vmatpush.msra.mxu0 0.0
        %3837 = vmatpush.msra.mxu0 0.0
        %3838 = vmatpush.msra.mxu0 0.0
        %3839 = vmatpush.msra.mxu0 0.0
        %3840 = vmatpush.msra.mxu0 0.0
        %3841 = vmatpush.msra.mxu0 0.0
        %3842 = vmatpush.msra.mxu0 0.0
        %3843 = vmatpush.msra.mxu0 0.0
        %3844 = vmatpush.msra.mxu0 0.0
        %3845 = vmatpush.msra.mxu0 0.0
        %3846 = vmatpush.msra.mxu0 0.0
        %3847 = vmatpush.msra.mxu0 0.0
        %3848 = vmatpush.msra.mxu0 0.0
        %3849 = vmatpush.msra.mxu0 0.0
        %3850 = vmatpush.msra.mxu0 %v2920
        %3851 = vmatmul.f32.gmra.mxu0 %v3833
        %v3852 = vpop.f32.mrf.mxu0
        %v3853 = vadd.f32 0.0, %v3852
        %3854 = vdwg.mxu0
        %v3856 = vsel %vm1978, %v3605, 0
        %3858 = vmatpush.msra.mxu0 0.0
        %3859 = vmatpush.msra.mxu0 0.0
        %3860 = vmatpush.msra.mxu0 0.0
        %3861 = vmatpush.msra.mxu0 0.0
        %3862 = vmatpush.msra.mxu0 0.0
        %3863 = vmatpush.msra.mxu0 0.0
        %3864 = vmatpush.msra.mxu0 0.0
        %3865 = vmatpush.msra.mxu0 0.0
        %3866 = vmatpush.msra.mxu0 0.0
        %3867 = vmatpush.msra.mxu0 0.0
        %3868 = vmatpush.msra.mxu0 0.0
        %3869 = vmatpush.msra.mxu0 0.0
        %3870 = vmatpush.msra.mxu0 0.0
        %3871 = vmatpush.msra.mxu0 0.0
        %3872 = vmatpush.msra.mxu0 0.0
        %3873 = vmatpush.msra.mxu0 %v2922
        %3874 = vmatmul.f32.gmra.mxu0 %v3856
        %v3875 = vpop.f32.mrf.mxu0
        %v3876 = vadd.f32 0.0, %v3875
        %3877 = vdwg.mxu0
        %v3879 = vsel %vm1978, %v3620, 0
        %3881 = vmatpush.msra.mxu0 0.0
        %3882 = vmatpush.msra.mxu0 0.0
        %3883 = vmatpush.msra.mxu0 0.0
        %3884 = vmatpush.msra.mxu0 0.0
        %3885 = vmatpush.msra.mxu0 0.0
        %3886 = vmatpush.msra.mxu0 0.0
        %3887 = vmatpush.msra.mxu0 0.0
        %3888 = vmatpush.msra.mxu0 0.0
        %3889 = vmatpush.msra.mxu0 0.0
        %3890 = vmatpush.msra.mxu0 0.0
        %3891 = vmatpush.msra.mxu0 0.0
        %3892 = vmatpush.msra.mxu0 0.0
        %3893 = vmatpush.msra.mxu0 0.0
        %3894 = vmatpush.msra.mxu0 0.0
        %3895 = vmatpush.msra.mxu0 0.0
        %3896 = vmatpush.msra.mxu0 %v2925
        %3897 = vmatmul.f32.gmra.mxu0 %v3879
        %v3898 = vpop.f32.mrf.mxu0
        %v3899 = vadd.f32 0.0, %v3898
        %3900 = vdwg.mxu0
        %v3902 = vsel %vm1978, %v3635, 0
        %3904 = vmatpush.msra.mxu0 0.0
        %3905 = vmatpush.msra.mxu0 0.0
        %3906 = vmatpush.msra.mxu0 0.0
        %3907 = vmatpush.msra.mxu0 0.0
        %3908 = vmatpush.msra.mxu0 0.0
        %3909 = vmatpush.msra.mxu0 0.0
        %3910 = vmatpush.msra.mxu0 0.0
        %3911 = vmatpush.msra.mxu0 0.0
        %3912 = vmatpush.msra.mxu0 0.0
        %3913 = vmatpush.msra.mxu0 0.0
        %3914 = vmatpush.msra.mxu0 0.0
        %3915 = vmatpush.msra.mxu0 0.0
        %3916 = vmatpush.msra.mxu0 0.0
        %3917 = vmatpush.msra.mxu0 0.0
        %3918 = vmatpush.msra.mxu0 0.0
        %3919 = vmatpush.msra.mxu0 %v2927
        %3920 = vmatmul.f32.gmra.mxu0 %v3902
        %v3921 = vpop.f32.mrf.mxu0
        %v3922 = vadd.f32 0.0, %v3921
        %3923 = vdwg.mxu0
        %v3925 = vsel %vm1978, %v3650, 0
        %3927 = vmatpush.msra.mxu0 0.0
        %3928 = vmatpush.msra.mxu0 0.0
        %3929 = vmatpush.msra.mxu0 0.0
        %3930 = vmatpush.msra.mxu0 0.0
        %3931 = vmatpush.msra.mxu0 0.0
        %3932 = vmatpush.msra.mxu0 0.0
        %3933 = vmatpush.msra.mxu0 0.0
        %3934 = vmatpush.msra.mxu0 0.0
        %3935 = vmatpush.msra.mxu0 0.0
        %3936 = vmatpush.msra.mxu0 0.0
        %3937 = vmatpush.msra.mxu0 0.0
        %3938 = vmatpush.msra.mxu0 0.0
        %3939 = vmatpush.msra.mxu0 0.0
        %3940 = vmatpush.msra.mxu0 0.0
        %3941 = vmatpush.msra.mxu0 0.0
        %3942 = vmatpush.msra.mxu0 %v2930
        %3943 = vmatmul.f32.gmra.mxu0 %v3925
        %v3944 = vpop.f32.mrf.mxu0
        %v3945 = vadd.f32 0.0, %v3944
        %3946 = vdwg.mxu0
        %v3948 = vsel %vm1978, %v3665, 0
        %3950 = vmatpush.msra.mxu0 0.0
        %3951 = vmatpush.msra.mxu0 0.0
        %3952 = vmatpush.msra.mxu0 0.0
        %3953 = vmatpush.msra.mxu0 0.0
        %3954 = vmatpush.msra.mxu0 0.0
        %3955 = vmatpush.msra.mxu0 0.0
        %3956 = vmatpush.msra.mxu0 0.0
        %3957 = vmatpush.msra.mxu0 0.0
        %3958 = vmatpush.msra.mxu0 0.0
        %3959 = vmatpush.msra.mxu0 0.0
        %3960 = vmatpush.msra.mxu0 0.0
        %3961 = vmatpush.msra.mxu0 0.0
        %3962 = vmatpush.msra.mxu0 0.0
        %3963 = vmatpush.msra.mxu0 0.0
        %3964 = vmatpush.msra.mxu0 0.0
        %3965 = vmatpush.msra.mxu0 %v2932
        %3966 = vmatmul.f32.gmra.mxu0 %v3948
        %v3967 = vpop.f32.mrf.mxu0
        %v3968 = vadd.f32 0.0, %v3967
        %3969 = vdwg.mxu0
        %v3971 = vsel %vm1978, %v3680, 0
        %3973 = vmatpush.msra.mxu0 0.0
        %3974 = vmatpush.msra.mxu0 0.0
        %3975 = vmatpush.msra.mxu0 0.0
        %3976 = vmatpush.msra.mxu0 0.0
        %3977 = vmatpush.msra.mxu0 0.0
        %3978 = vmatpush.msra.mxu0 0.0
        %3979 = vmatpush.msra.mxu0 0.0
        %3980 = vmatpush.msra.mxu0 0.0
        %3981 = vmatpush.msra.mxu0 0.0
        %3982 = vmatpush.msra.mxu0 0.0
        %3983 = vmatpush.msra.mxu0 0.0
        %3984 = vmatpush.msra.mxu0 0.0
        %3985 = vmatpush.msra.mxu0 0.0
        %3986 = vmatpush.msra.mxu0 0.0
        %3987 = vmatpush.msra.mxu0 0.0
        %3988 = vmatpush.msra.mxu0 %v2935
        %3989 = vmatmul.f32.gmra.mxu0 %v3971
        %v3990 = vpop.f32.mrf.mxu0
        %v3991 = vadd.f32 0.0, %v3990
        %3992 = vdwg.mxu0
        %v3994 = vsel %vm1978, %v3695, 0
        %3996 = vmatpush.msra.mxu0 0.0
        %3997 = vmatpush.msra.mxu0 0.0
        %3998 = vmatpush.msra.mxu0 0.0
        %3999 = vmatpush.msra.mxu0 0.0
        %4000 = vmatpush.msra.mxu0 0.0
        %4001 = vmatpush.msra.mxu0 0.0
        %4002 = vmatpush.msra.mxu0 0.0
        %4003 = vmatpush.msra.mxu0 0.0
        %4004 = vmatpush.msra.mxu0 0.0
        %4005 = vmatpush.msra.mxu0 0.0
        %4006 = vmatpush.msra.mxu0 0.0
        %4007 = vmatpush.msra.mxu0 0.0
        %4008 = vmatpush.msra.mxu0 0.0
        %4009 = vmatpush.msra.mxu0 0.0
        %4010 = vmatpush.msra.mxu0 0.0
        %4011 = vmatpush.msra.mxu0 %v2937
        %4012 = vmatmul.f32.gmra.mxu0 %v3994
        %v4013 = vpop.f32.mrf.mxu0
        %v4014 = vadd.f32 0.0, %v4013
        %4015 = vdwg.mxu0
        %v4017 = vsel %vm1978, %v3710, 0
        %4019 = vmatpush.msra.mxu0 0.0
        %4020 = vmatpush.msra.mxu0 0.0
        %4021 = vmatpush.msra.mxu0 0.0
        %4022 = vmatpush.msra.mxu0 0.0
        %4023 = vmatpush.msra.mxu0 0.0
        %4024 = vmatpush.msra.mxu0 0.0
        %4025 = vmatpush.msra.mxu0 0.0
        %4026 = vmatpush.msra.mxu0 0.0
        %4027 = vmatpush.msra.mxu0 0.0
        %4028 = vmatpush.msra.mxu0 0.0
        %4029 = vmatpush.msra.mxu0 0.0
        %4030 = vmatpush.msra.mxu0 0.0
        %4031 = vmatpush.msra.mxu0 0.0
        %4032 = vmatpush.msra.mxu0 0.0
        %4033 = vmatpush.msra.mxu0 0.0
        %4034 = vmatpush.msra.mxu0 %v2940
        %4035 = vmatmul.f32.gmra.mxu0 %v4017
        %v4036 = vpop.f32.mrf.mxu0
        %v4037 = vadd.f32 0.0, %v4036
        %4038 = vdwg.mxu0
        %v4040 = vsel %vm1978, %v3725, 0
        %4042 = vmatpush.msra.mxu0 0.0
        %4043 = vmatpush.msra.mxu0 0.0
        %4044 = vmatpush.msra.mxu0 0.0
        %4045 = vmatpush.msra.mxu0 0.0
        %4046 = vmatpush.msra.mxu0 0.0
        %4047 = vmatpush.msra.mxu0 0.0
        %4048 = vmatpush.msra.mxu0 0.0
        %4049 = vmatpush.msra.mxu0 0.0
        %4050 = vmatpush.msra.mxu0 0.0
        %4051 = vmatpush.msra.mxu0 0.0
        %4052 = vmatpush.msra.mxu0 0.0
        %4053 = vmatpush.msra.mxu0 0.0
        %4054 = vmatpush.msra.mxu0 0.0
        %4055 = vmatpush.msra.mxu0 0.0
        %4056 = vmatpush.msra.mxu0 0.0
        %4057 = vmatpush.msra.mxu0 %v2942
        %4058 = vmatmul.f32.gmra.mxu0 %v4040
        %v4059 = vpop.f32.mrf.mxu0
        %v4060 = vadd.f32 0.0, %v4059
        %4061 = vdwg.mxu0
        %v4063 = vsel %vm1978, %v3740, 0
        %4065 = vmatpush.msra.mxu0 0.0
        %4066 = vmatpush.msra.mxu0 0.0
        %4067 = vmatpush.msra.mxu0 0.0
        %4068 = vmatpush.msra.mxu0 0.0
        %4069 = vmatpush.msra.mxu0 0.0
        %4070 = vmatpush.msra.mxu0 0.0
        %4071 = vmatpush.msra.mxu0 0.0
        %4072 = vmatpush.msra.mxu0 0.0
        %4073 = vmatpush.msra.mxu0 0.0
        %4074 = vmatpush.msra.mxu0 0.0
        %4075 = vmatpush.msra.mxu0 0.0
        %4076 = vmatpush.msra.mxu0 0.0
        %4077 = vmatpush.msra.mxu0 0.0
        %4078 = vmatpush.msra.mxu0 0.0
        %4079 = vmatpush.msra.mxu0 0.0
        %4080 = vmatpush.msra.mxu0 %v2945
        %4081 = vmatmul.f32.gmra.mxu0 %v4063
        %v4082 = vpop.f32.mrf.mxu0
        %v4083 = vadd.f32 0.0, %v4082
        %4084 = vdwg.mxu0
        %v4086 = vsel %vm1978, %v3755, 0
        %4088 = vmatpush.msra.mxu0 0.0
        %4089 = vmatpush.msra.mxu0 0.0
        %4090 = vmatpush.msra.mxu0 0.0
        %4091 = vmatpush.msra.mxu0 0.0
        %4092 = vmatpush.msra.mxu0 0.0
        %4093 = vmatpush.msra.mxu0 0.0
        %4094 = vmatpush.msra.mxu0 0.0
        %4095 = vmatpush.msra.mxu0 0.0
        %4096 = vmatpush.msra.mxu0 0.0
        %4097 = vmatpush.msra.mxu0 0.0
        %4098 = vmatpush.msra.mxu0 0.0
        %4099 = vmatpush.msra.mxu0 0.0
        %4100 = vmatpush.msra.mxu0 0.0
        %4101 = vmatpush.msra.mxu0 0.0
        %4102 = vmatpush.msra.mxu0 0.0
        %4103 = vmatpush.msra.mxu0 %v2947
        %4104 = vmatmul.f32.gmra.mxu0 %v4086
        %v4105 = vpop.f32.mrf.mxu0
        %v4106 = vadd.f32 0.0, %v4105
        %4107 = vdwg.mxu0
        %v4109 = vsel %vm1978, %v3770, 0
        %4111 = vmatpush.msra.mxu0 0.0
        %4112 = vmatpush.msra.mxu0 0.0
        %4113 = vmatpush.msra.mxu0 0.0
        %4114 = vmatpush.msra.mxu0 0.0
        %4115 = vmatpush.msra.mxu0 0.0
        %4116 = vmatpush.msra.mxu0 0.0
        %4117 = vmatpush.msra.mxu0 0.0
        %4118 = vmatpush.msra.mxu0 0.0
        %4119 = vmatpush.msra.mxu0 0.0
        %4120 = vmatpush.msra.mxu0 0.0
        %4121 = vmatpush.msra.mxu0 0.0
        %4122 = vmatpush.msra.mxu0 0.0
        %4123 = vmatpush.msra.mxu0 0.0
        %4124 = vmatpush.msra.mxu0 0.0
        %4125 = vmatpush.msra.mxu0 0.0
        %4126 = vmatpush.msra.mxu0 %v2950
        %4127 = vmatmul.f32.gmra.mxu0 %v4109
        %v4128 = vpop.f32.mrf.mxu0
        %v4129 = vadd.f32 0.0, %v4128
        %4130 = vdwg.mxu0
        %v4132 = vsel %vm1978, %v3785, 0
        %4134 = vmatpush.msra.mxu0 0.0
        %4135 = vmatpush.msra.mxu0 0.0
        %4136 = vmatpush.msra.mxu0 0.0
        %4137 = vmatpush.msra.mxu0 0.0
        %4138 = vmatpush.msra.mxu0 0.0
        %4139 = vmatpush.msra.mxu0 0.0
        %4140 = vmatpush.msra.mxu0 0.0
        %4141 = vmatpush.msra.mxu0 0.0
        %4142 = vmatpush.msra.mxu0 0.0
        %4143 = vmatpush.msra.mxu0 0.0
        %4144 = vmatpush.msra.mxu0 0.0
        %4145 = vmatpush.msra.mxu0 0.0
        %4146 = vmatpush.msra.mxu0 0.0
        %4147 = vmatpush.msra.mxu0 0.0
        %4148 = vmatpush.msra.mxu0 0.0
        %4149 = vmatpush.msra.mxu0 %v2952
        %4150 = vmatmul.f32.gmra.mxu0 %v4132
        %v4151 = vpop.f32.mrf.mxu0
        %v4152 = vadd.f32 0.0, %v4151
        %4153 = vdwg.mxu0
        %v4154 = vpack.c.bf16 %v3830, %v3807
        %v4155 = vpack.c.bf16 %v3876, %v3853
        %v4156 = vpack.c.bf16 %v3922, %v3899
        %v4157 = vpack.c.bf16 %v3968, %v3945
        %v4158 = vpack.c.bf16 %v4014, %v3991
        %v4159 = vpack.c.bf16 %v4060, %v4037
        %v4160 = vpack.c.bf16 %v4106, %v4083
        %v4161 = vpack.c.bf16 %v4152, %v4129
        %s4162 = scalar_lea.vmem %s7, 8
        %v4163 = vld [vmem:[%s4162] sm:$0xf]
        %v4164 = vld [vmem:[%s4162 + $0x4] sm:$0xf]
        %v4167 = vunpack.c.l.b16 %v4163
        %v4168 = vunpack.c.l.b16 %v4164
        %v4169 = vpack.c.b16 %v4168, %v4167
        %v4172 = vsel %vm1529, %v4154, 0
        %v4175 = vsel %vm1529, %v4155, 0
        %v4178 = vsel %vm1529, %v4156, 0
        %v4181 = vsel %vm1529, %v4157, 0
        %v4184 = vsel %vm1529, %v4158, 0
        %v4187 = vsel %vm1529, %v4159, 0
        %v4190 = vsel %vm1529, %v4160, 0
        %v4193 = vsel %vm1529, %v4161, 0
        %4195 = vmatpush.bf16.msra.mxu0 0
        %4196 = vmatpush.bf16.msra.mxu0 0
        %4197 = vmatpush.bf16.msra.mxu0 0
        %4198 = vmatpush.bf16.msra.mxu0 0
        %4199 = vmatpush.bf16.msra.mxu0 0
        %4200 = vmatpush.bf16.msra.mxu0 0
        %4201 = vmatpush.bf16.msra.mxu0 0
        %4202 = vmatpush.bf16.msra.mxu0 %v4169
        %4203 = vmatmul.bf16.gmra.mxu0 %v4172
        %v4204 = vpop.f32.mrf.mxu0
        %v4205 = vadd.f32 0.0, %v4204
        %v4206 = vpop.f32.mrf.mxu0
        %v4207 = vadd.f32 0.0, %v4206
        %4208 = vmatmul.bf16.gmra.mxu0 %v4175
        %v4209 = vpop.f32.mrf.mxu0
        %v4210 = vadd.f32 0.0, %v4209
        %v4211 = vpop.f32.mrf.mxu0
        %v4212 = vadd.f32 0.0, %v4211
        %4213 = vmatmul.bf16.gmra.mxu0 %v4178
        %v4214 = vpop.f32.mrf.mxu0
        %v4215 = vadd.f32 0.0, %v4214
        %v4216 = vpop.f32.mrf.mxu0
        %v4217 = vadd.f32 0.0, %v4216
        %4218 = vmatmul.bf16.gmra.mxu0 %v4181
        %v4219 = vpop.f32.mrf.mxu0
        %v4220 = vadd.f32 0.0, %v4219
        %v4221 = vpop.f32.mrf.mxu0
        %v4222 = vadd.f32 0.0, %v4221
        %4223 = vmatmul.bf16.gmra.mxu0 %v4184
        %v4224 = vpop.f32.mrf.mxu0
        %v4225 = vadd.f32 0.0, %v4224
        %v4226 = vpop.f32.mrf.mxu0
        %v4227 = vadd.f32 0.0, %v4226
        %4228 = vmatmul.bf16.gmra.mxu0 %v4187
        %v4229 = vpop.f32.mrf.mxu0
        %v4230 = vadd.f32 0.0, %v4229
        %v4231 = vpop.f32.mrf.mxu0
        %v4232 = vadd.f32 0.0, %v4231
        %4233 = vmatmul.bf16.gmra.mxu0 %v4190
        %v4234 = vpop.f32.mrf.mxu0
        %v4235 = vadd.f32 0.0, %v4234
        %v4236 = vpop.f32.mrf.mxu0
        %v4237 = vadd.f32 0.0, %v4236
        %4238 = vmatmul.bf16.gmra.mxu0 %v4193
        %v4239 = vpop.f32.mrf.mxu0
        %v4240 = vadd.f32 0.0, %v4239
        %v4241 = vpop.f32.mrf.mxu0
        %v4242 = vadd.f32 0.0, %v4241
        %4243 = vdwg.mxu0
        %v4246 = vunpack.c.l.b16 %v2739
        %v4247 = vunpack.c.l.b16 %v2740
        %v4248 = vpack.c.b16 %v4247, %v4246
        %v4251 = vsel %vm1529, %v2731, 0
        %v4254 = vsel %vm1529, %v2732, 0
        %v4257 = vsel %vm1529, %v2733, 0
        %v4260 = vsel %vm1529, %v2734, 0
        %v4263 = vsel %vm1529, %v2735, 0
        %v4266 = vsel %vm1529, %v2736, 0
        %v4269 = vsel %vm1529, %v2737, 0
        %v4272 = vsel %vm1529, %v2738, 0
        %4274 = vmatpush.bf16.msra.mxu0 0
        %4275 = vmatpush.bf16.msra.mxu0 0
        %4276 = vmatpush.bf16.msra.mxu0 0
        %4277 = vmatpush.bf16.msra.mxu0 0
        %4278 = vmatpush.bf16.msra.mxu0 0
        %4279 = vmatpush.bf16.msra.mxu0 0
        %4280 = vmatpush.bf16.msra.mxu0 0
        %4281 = vmatpush.bf16.msra.mxu0 %v4248
        %4282 = vmatmul.bf16.gmra.mxu0 %v4251
        %v4283 = vpop.f32.mrf.mxu0
        %v4284 = vadd.f32 %v4205, %v4283
        %v4285 = vpop.f32.mrf.mxu0
        %v4286 = vadd.f32 %v4207, %v4285
        %4287 = vmatmul.bf16.gmra.mxu0 %v4254
        %v4288 = vpop.f32.mrf.mxu0
        %v4289 = vadd.f32 %v4210, %v4288
        %v4290 = vpop.f32.mrf.mxu0
        %v4291 = vadd.f32 %v4212, %v4290
        %4292 = vmatmul.bf16.gmra.mxu0 %v4257
        %v4293 = vpop.f32.mrf.mxu0
        %v4294 = vadd.f32 %v4215, %v4293
        %v4295 = vpop.f32.mrf.mxu0
        %v4296 = vadd.f32 %v4217, %v4295
        %4297 = vmatmul.bf16.gmra.mxu0 %v4260
        %v4298 = vpop.f32.mrf.mxu0
        %v4299 = vadd.f32 %v4220, %v4298
        %v4300 = vpop.f32.mrf.mxu0
        %v4301 = vadd.f32 %v4222, %v4300
        %4302 = vmatmul.bf16.gmra.mxu0 %v4263
        %v4303 = vpop.f32.mrf.mxu0
        %v4304 = vadd.f32 %v4225, %v4303
        %v4305 = vpop.f32.mrf.mxu0
        %v4306 = vadd.f32 %v4227, %v4305
        %4307 = vmatmul.bf16.gmra.mxu0 %v4266
        %v4308 = vpop.f32.mrf.mxu0
        %v4309 = vadd.f32 %v4230, %v4308
        %v4310 = vpop.f32.mrf.mxu0
        %v4311 = vadd.f32 %v4232, %v4310
        %4312 = vmatmul.bf16.gmra.mxu0 %v4269
        %v4313 = vpop.f32.mrf.mxu0
        %v4314 = vadd.f32 %v4235, %v4313
        %v4315 = vpop.f32.mrf.mxu0
        %v4316 = vadd.f32 %v4237, %v4315
        %4317 = vmatmul.bf16.gmra.mxu0 %v4272
        %v4318 = vpop.f32.mrf.mxu0
        %v4319 = vadd.f32 %v4240, %v4318
        %v4320 = vpop.f32.mrf.mxu0
        %v4321 = vadd.f32 %v4242, %v4320
        %4322 = vdwg.mxu0
        %v4323 = vld [vmem:[%s9 + $0x1] sm:$0x1]
        %v4324 = vperm.slane %v4323, 0
        %v4325 = vadd.f32 %v4284, %v4324
        %v4326 = vadd.f32 %v4286, %v4324
        %v4327 = vadd.f32 %v4289, %v4324
        %v4328 = vadd.f32 %v4291, %v4324
        %v4329 = vadd.f32 %v4294, %v4324
        %v4330 = vadd.f32 %v4296, %v4324
        %v4331 = vadd.f32 %v4299, %v4324
        %v4332 = vadd.f32 %v4301, %v4324
        %v4333 = vadd.f32 %v4304, %v4324
        %v4334 = vadd.f32 %v4306, %v4324
        %v4335 = vadd.f32 %v4309, %v4324
        %v4336 = vadd.f32 %v4311, %v4324
        %v4337 = vadd.f32 %v4314, %v4324
        %v4338 = vadd.f32 %v4316, %v4324
        %v4339 = vadd.f32 %v4319, %v4324
        %v4340 = vadd.f32 %v4321, %v4324
        %v4341 = vadd.f32 %v4325, %v1174
        %v4342 = vadd.f32 %v4326, %v1175
        %v4343 = vadd.f32 %v4327, %v1176
        %v4344 = vadd.f32 %v4328, %v1177
        %v4345 = vadd.f32 %v4329, %v1178
        %v4346 = vadd.f32 %v4330, %v1179
        %v4347 = vadd.f32 %v4331, %v1180
        %v4348 = vadd.f32 %v4332, %v1181
        %v4349 = vadd.f32 %v4333, %v1182
        %v4350 = vadd.f32 %v4334, %v1183
        %v4351 = vadd.f32 %v4335, %v1184
        %v4352 = vadd.f32 %v4336, %v1185
        %v4353 = vadd.f32 %v4337, %v1186
        %v4354 = vadd.f32 %v4338, %v1187
        %v4355 = vadd.f32 %v4339, %v1188
        %v4356 = vadd.f32 %v4340, %v1189
        %v4357 = vsel %vm793, %v4341, 0.0
        %4358 = vadd.xlane.f32.xlu0 %v4357
        %v4359 = vpop.xlane.xlu0 %4358
        %v4360 = vsel %vm793, %v4342, 0.0
        %4361 = vadd.xlane.f32.xlu0 %v4360
        %v4362 = vpop.xlane.xlu0 %4361
        %v4363 = vsel %vm793, %v4343, 0.0
        %4364 = vadd.xlane.f32.xlu0 %v4363
        %v4365 = vpop.xlane.xlu0 %4364
        %v4366 = vsel %vm793, %v4344, 0.0
        %4367 = vadd.xlane.f32.xlu0 %v4366
        %v4368 = vpop.xlane.xlu0 %4367
        %v4369 = vsel %vm793, %v4345, 0.0
        %4370 = vadd.xlane.f32.xlu0 %v4369
        %v4371 = vpop.xlane.xlu0 %4370
        %v4372 = vsel %vm793, %v4346, 0.0
        %4373 = vadd.xlane.f32.xlu0 %v4372
        %v4374 = vpop.xlane.xlu0 %4373
        %v4375 = vsel %vm793, %v4347, 0.0
        %4376 = vadd.xlane.f32.xlu0 %v4375
        %v4377 = vpop.xlane.xlu0 %4376
        %v4378 = vsel %vm793, %v4348, 0.0
        %4379 = vadd.xlane.f32.xlu0 %v4378
        %v4380 = vpop.xlane.xlu0 %4379
        %v4381 = vsel %vm793, %v4349, 0.0
        %4382 = vadd.xlane.f32.xlu0 %v4381
        %v4383 = vpop.xlane.xlu0 %4382
        %v4384 = vsel %vm793, %v4350, 0.0
        %4385 = vadd.xlane.f32.xlu0 %v4384
        %v4386 = vpop.xlane.xlu0 %4385
        %v4387 = vsel %vm793, %v4351, 0.0
        %4388 = vadd.xlane.f32.xlu0 %v4387
        %v4389 = vpop.xlane.xlu0 %4388
        %v4390 = vsel %vm793, %v4352, 0.0
        %4391 = vadd.xlane.f32.xlu0 %v4390
        %v4392 = vpop.xlane.xlu0 %4391
        %v4393 = vsel %vm793, %v4353, 0.0
        %4394 = vadd.xlane.f32.xlu0 %v4393
        %v4395 = vpop.xlane.xlu0 %4394
        %v4396 = vsel %vm793, %v4354, 0.0
        %4397 = vadd.xlane.f32.xlu0 %v4396
        %v4398 = vpop.xlane.xlu0 %4397
        %v4399 = vsel %vm793, %v4355, 0.0
        %4400 = vadd.xlane.f32.xlu0 %v4399
        %v4401 = vpop.xlane.xlu0 %4400
        %v4402 = vsel %vm793, %v4356, 0.0
        %4403 = vadd.xlane.f32.xlu0 %v4402
        %v4404 = vpop.xlane.xlu0 %4403
        %v4405 = vmul.f32 %v4359, %v848
        %v4406 = vmul.f32 %v4362, %v848
        %v4407 = vmul.f32 %v4365, %v848
        %v4408 = vmul.f32 %v4368, %v848
        %v4409 = vmul.f32 %v4371, %v848
        %v4410 = vmul.f32 %v4374, %v848
        %v4411 = vmul.f32 %v4377, %v848
        %v4412 = vmul.f32 %v4380, %v848
        %v4413 = vmul.f32 %v4383, %v848
        %v4414 = vmul.f32 %v4386, %v848
        %v4415 = vmul.f32 %v4389, %v848
        %v4416 = vmul.f32 %v4392, %v848
        %v4417 = vmul.f32 %v4395, %v848
        %v4418 = vmul.f32 %v4398, %v848
        %v4419 = vmul.f32 %v4401, %v848
        %v4420 = vmul.f32 %v4404, %v848
        %v4421 = vsub.f32 %v4341, %v4405
        %v4422 = vsub.f32 %v4342, %v4406
        %v4423 = vsub.f32 %v4343, %v4407
        %v4424 = vsub.f32 %v4344, %v4408
        %v4425 = vsub.f32 %v4345, %v4409
        %v4426 = vsub.f32 %v4346, %v4410
        %v4427 = vsub.f32 %v4347, %v4411
        %v4428 = vsub.f32 %v4348, %v4412
        %v4429 = vsub.f32 %v4349, %v4413
        %v4430 = vsub.f32 %v4350, %v4414
        %v4431 = vsub.f32 %v4351, %v4415
        %v4432 = vsub.f32 %v4352, %v4416
        %v4433 = vsub.f32 %v4353, %v4417
        %v4434 = vsub.f32 %v4354, %v4418
        %v4435 = vsub.f32 %v4355, %v4419
        %v4436 = vsub.f32 %v4356, %v4420
        %v4437 = vmul.f32 %v4421, %v4421
        %v4438 = vmul.f32 %v4422, %v4422
        %v4439 = vmul.f32 %v4423, %v4423
        %v4440 = vmul.f32 %v4424, %v4424
        %v4441 = vmul.f32 %v4425, %v4425
        %v4442 = vmul.f32 %v4426, %v4426
        %v4443 = vmul.f32 %v4427, %v4427
        %v4444 = vmul.f32 %v4428, %v4428
        %v4445 = vmul.f32 %v4429, %v4429
        %v4446 = vmul.f32 %v4430, %v4430
        %v4447 = vmul.f32 %v4431, %v4431
        %v4448 = vmul.f32 %v4432, %v4432
        %v4449 = vmul.f32 %v4433, %v4433
        %v4450 = vmul.f32 %v4434, %v4434
        %v4451 = vmul.f32 %v4435, %v4435
        %v4452 = vmul.f32 %v4436, %v4436
        %v4453 = vsel %vm793, %v4437, 0.0
        %4454 = vadd.xlane.f32.xlu0 %v4453
        %v4455 = vpop.xlane.xlu0 %4454
        %v4456 = vsel %vm793, %v4438, 0.0
        %4457 = vadd.xlane.f32.xlu0 %v4456
        %v4458 = vpop.xlane.xlu0 %4457
        %v4459 = vsel %vm793, %v4439, 0.0
        %4460 = vadd.xlane.f32.xlu0 %v4459
        %v4461 = vpop.xlane.xlu0 %4460
        %v4462 = vsel %vm793, %v4440, 0.0
        %4463 = vadd.xlane.f32.xlu0 %v4462
        %v4464 = vpop.xlane.xlu0 %4463
        %v4465 = vsel %vm793, %v4441, 0.0
        %4466 = vadd.xlane.f32.xlu0 %v4465
        %v4467 = vpop.xlane.xlu0 %4466
        %v4468 = vsel %vm793, %v4442, 0.0
        %4469 = vadd.xlane.f32.xlu0 %v4468
        %v4470 = vpop.xlane.xlu0 %4469
        %v4471 = vsel %vm793, %v4443, 0.0
        %4472 = vadd.xlane.f32.xlu0 %v4471
        %v4473 = vpop.xlane.xlu0 %4472
        %v4474 = vsel %vm793, %v4444, 0.0
        %4475 = vadd.xlane.f32.xlu0 %v4474
        %v4476 = vpop.xlane.xlu0 %4475
        %v4477 = vsel %vm793, %v4445, 0.0
        %4478 = vadd.xlane.f32.xlu0 %v4477
        %v4479 = vpop.xlane.xlu0 %4478
        %v4480 = vsel %vm793, %v4446, 0.0
        %4481 = vadd.xlane.f32.xlu0 %v4480
        %v4482 = vpop.xlane.xlu0 %4481
        %v4483 = vsel %vm793, %v4447, 0.0
        %4484 = vadd.xlane.f32.xlu0 %v4483
        %v4485 = vpop.xlane.xlu0 %4484
        %v4486 = vsel %vm793, %v4448, 0.0
        %4487 = vadd.xlane.f32.xlu0 %v4486
        %v4488 = vpop.xlane.xlu0 %4487
        %v4489 = vsel %vm793, %v4449, 0.0
        %4490 = vadd.xlane.f32.xlu0 %v4489
        %v4491 = vpop.xlane.xlu0 %4490
        %v4492 = vsel %vm793, %v4450, 0.0
        %4493 = vadd.xlane.f32.xlu0 %v4492
        %v4494 = vpop.xlane.xlu0 %4493
        %v4495 = vsel %vm793, %v4451, 0.0
        %4496 = vadd.xlane.f32.xlu0 %v4495
        %v4497 = vpop.xlane.xlu0 %4496
        %v4498 = vsel %vm793, %v4452, 0.0
        %4499 = vadd.xlane.f32.xlu0 %v4498
        %v4500 = vpop.xlane.xlu0 %4499
        %v4501 = vmul.f32 %v4455, %v848
        %v4502 = vmul.f32 %v4458, %v848
        %v4503 = vmul.f32 %v4461, %v848
        %v4504 = vmul.f32 %v4464, %v848
        %v4505 = vmul.f32 %v4467, %v848
        %v4506 = vmul.f32 %v4470, %v848
        %v4507 = vmul.f32 %v4473, %v848
        %v4508 = vmul.f32 %v4476, %v848
        %v4509 = vmul.f32 %v4479, %v848
        %v4510 = vmul.f32 %v4482, %v848
        %v4511 = vmul.f32 %v4485, %v848
        %v4512 = vmul.f32 %v4488, %v848
        %v4513 = vmul.f32 %v4491, %v848
        %v4514 = vmul.f32 %v4494, %v848
        %v4515 = vmul.f32 %v4497, %v848
        %v4516 = vmul.f32 %v4500, %v848
        %v4517 = vadd.f32 %v4501, 1e-12
        %v4518 = vadd.f32 %v4502, 1e-12
        %v4519 = vadd.f32 %v4503, 1e-12
        %v4520 = vadd.f32 %v4504, 1e-12
        %v4521 = vadd.f32 %v4505, 1e-12
        %v4522 = vadd.f32 %v4506, 1e-12
        %v4523 = vadd.f32 %v4507, 1e-12
        %v4524 = vadd.f32 %v4508, 1e-12
        %v4525 = vadd.f32 %v4509, 1e-12
        %v4526 = vadd.f32 %v4510, 1e-12
        %v4527 = vadd.f32 %v4511, 1e-12
        %v4528 = vadd.f32 %v4512, 1e-12
        %v4529 = vadd.f32 %v4513, 1e-12
        %v4530 = vadd.f32 %v4514, 1e-12
        %v4531 = vadd.f32 %v4515, 1e-12
        %v4532 = vadd.f32 %v4516, 1e-12
        %v4533 = vrsqrt.pop %v4517
        %v4534 = vmul.f32 %v4533, %v4517
        %v4535 = vmul.f32 %v4534, %v4533
        %v4536 = vmul.f32 0.5, %v4535
        %v4537 = vsub.f32 1.5, %v4536
        %v4538 = vmul.f32 %v4533, %v4537
        %vm4539 = vweird.f32 %v4517
        %vm4540 = vweird.f32 %v4533
        %vm4541 = vmor %vm4539, %vm4540
        %v4542 = vsel %vm4541, %v4533, %v4538
        %v4543 = vrsqrt.pop %v4518
        %v4544 = vmul.f32 %v4543, %v4518
        %v4545 = vmul.f32 %v4544, %v4543
        %v4546 = vmul.f32 0.5, %v4545
        %v4547 = vsub.f32 1.5, %v4546
        %v4548 = vmul.f32 %v4543, %v4547
        %vm4549 = vweird.f32 %v4518
        %vm4550 = vweird.f32 %v4543
        %vm4551 = vmor %vm4549, %vm4550
        %v4552 = vsel %vm4551, %v4543, %v4548
        %v4553 = vrsqrt.pop %v4519
        %v4554 = vmul.f32 %v4553, %v4519
        %v4555 = vmul.f32 %v4554, %v4553
        %v4556 = vmul.f32 0.5, %v4555
        %v4557 = vsub.f32 1.5, %v4556
        %v4558 = vmul.f32 %v4553, %v4557
        %vm4559 = vweird.f32 %v4519
        %vm4560 = vweird.f32 %v4553
        %vm4561 = vmor %vm4559, %vm4560
        %v4562 = vsel %vm4561, %v4553, %v4558
        %v4563 = vrsqrt.pop %v4520
        %v4564 = vmul.f32 %v4563, %v4520
        %v4565 = vmul.f32 %v4564, %v4563
        %v4566 = vmul.f32 0.5, %v4565
        %v4567 = vsub.f32 1.5, %v4566
        %v4568 = vmul.f32 %v4563, %v4567
        %vm4569 = vweird.f32 %v4520
        %vm4570 = vweird.f32 %v4563
        %vm4571 = vmor %vm4569, %vm4570
        %v4572 = vsel %vm4571, %v4563, %v4568
        %v4573 = vrsqrt.pop %v4521
        %v4574 = vmul.f32 %v4573, %v4521
        %v4575 = vmul.f32 %v4574, %v4573
        %v4576 = vmul.f32 0.5, %v4575
        %v4577 = vsub.f32 1.5, %v4576
        %v4578 = vmul.f32 %v4573, %v4577
        %vm4579 = vweird.f32 %v4521
        %vm4580 = vweird.f32 %v4573
        %vm4581 = vmor %vm4579, %vm4580
        %v4582 = vsel %vm4581, %v4573, %v4578
        %v4583 = vrsqrt.pop %v4522
        %v4584 = vmul.f32 %v4583, %v4522
        %v4585 = vmul.f32 %v4584, %v4583
        %v4586 = vmul.f32 0.5, %v4585
        %v4587 = vsub.f32 1.5, %v4586
        %v4588 = vmul.f32 %v4583, %v4587
        %vm4589 = vweird.f32 %v4522
        %vm4590 = vweird.f32 %v4583
        %vm4591 = vmor %vm4589, %vm4590
        %v4592 = vsel %vm4591, %v4583, %v4588
        %v4593 = vrsqrt.pop %v4523
        %v4594 = vmul.f32 %v4593, %v4523
        %v4595 = vmul.f32 %v4594, %v4593
        %v4596 = vmul.f32 0.5, %v4595
        %v4597 = vsub.f32 1.5, %v4596
        %v4598 = vmul.f32 %v4593, %v4597
        %vm4599 = vweird.f32 %v4523
        %vm4600 = vweird.f32 %v4593
        %vm4601 = vmor %vm4599, %vm4600
        %v4602 = vsel %vm4601, %v4593, %v4598
        %v4603 = vrsqrt.pop %v4524
        %v4604 = vmul.f32 %v4603, %v4524
        %v4605 = vmul.f32 %v4604, %v4603
        %v4606 = vmul.f32 0.5, %v4605
        %v4607 = vsub.f32 1.5, %v4606
        %v4608 = vmul.f32 %v4603, %v4607
        %vm4609 = vweird.f32 %v4524
        %vm4610 = vweird.f32 %v4603
        %vm4611 = vmor %vm4609, %vm4610
        %v4612 = vsel %vm4611, %v4603, %v4608
        %v4613 = vrsqrt.pop %v4525
        %v4614 = vmul.f32 %v4613, %v4525
        %v4615 = vmul.f32 %v4614, %v4613
        %v4616 = vmul.f32 0.5, %v4615
        %v4617 = vsub.f32 1.5, %v4616
        %v4618 = vmul.f32 %v4613, %v4617
        %vm4619 = vweird.f32 %v4525
        %vm4620 = vweird.f32 %v4613
        %vm4621 = vmor %vm4619, %vm4620
        %v4622 = vsel %vm4621, %v4613, %v4618
        %v4623 = vrsqrt.pop %v4526
        %v4624 = vmul.f32 %v4623, %v4526
        %v4625 = vmul.f32 %v4624, %v4623
        %v4626 = vmul.f32 0.5, %v4625
        %v4627 = vsub.f32 1.5, %v4626
        %v4628 = vmul.f32 %v4623, %v4627
        %vm4629 = vweird.f32 %v4526
        %vm4630 = vweird.f32 %v4623
        %vm4631 = vmor %vm4629, %vm4630
        %v4632 = vsel %vm4631, %v4623, %v4628
        %v4633 = vrsqrt.pop %v4527
        %v4634 = vmul.f32 %v4633, %v4527
        %v4635 = vmul.f32 %v4634, %v4633
        %v4636 = vmul.f32 0.5, %v4635
        %v4637 = vsub.f32 1.5, %v4636
        %v4638 = vmul.f32 %v4633, %v4637
        %vm4639 = vweird.f32 %v4527
        %vm4640 = vweird.f32 %v4633
        %vm4641 = vmor %vm4639, %vm4640
        %v4642 = vsel %vm4641, %v4633, %v4638
        %v4643 = vrsqrt.pop %v4528
        %v4644 = vmul.f32 %v4643, %v4528
        %v4645 = vmul.f32 %v4644, %v4643
        %v4646 = vmul.f32 0.5, %v4645
        %v4647 = vsub.f32 1.5, %v4646
        %v4648 = vmul.f32 %v4643, %v4647
        %vm4649 = vweird.f32 %v4528
        %vm4650 = vweird.f32 %v4643
        %vm4651 = vmor %vm4649, %vm4650
        %v4652 = vsel %vm4651, %v4643, %v4648
        %v4653 = vrsqrt.pop %v4529
        %v4654 = vmul.f32 %v4653, %v4529
        %v4655 = vmul.f32 %v4654, %v4653
        %v4656 = vmul.f32 0.5, %v4655
        %v4657 = vsub.f32 1.5, %v4656
        %v4658 = vmul.f32 %v4653, %v4657
        %vm4659 = vweird.f32 %v4529
        %vm4660 = vweird.f32 %v4653
        %vm4661 = vmor %vm4659, %vm4660
        %v4662 = vsel %vm4661, %v4653, %v4658
        %v4663 = vrsqrt.pop %v4530
        %v4664 = vmul.f32 %v4663, %v4530
        %v4665 = vmul.f32 %v4664, %v4663
        %v4666 = vmul.f32 0.5, %v4665
        %v4667 = vsub.f32 1.5, %v4666
        %v4668 = vmul.f32 %v4663, %v4667
        %vm4669 = vweird.f32 %v4530
        %vm4670 = vweird.f32 %v4663
        %vm4671 = vmor %vm4669, %vm4670
        %v4672 = vsel %vm4671, %v4663, %v4668
        %v4673 = vrsqrt.pop %v4531
        %v4674 = vmul.f32 %v4673, %v4531
        %v4675 = vmul.f32 %v4674, %v4673
        %v4676 = vmul.f32 0.5, %v4675
        %v4677 = vsub.f32 1.5, %v4676
        %v4678 = vmul.f32 %v4673, %v4677
        %vm4679 = vweird.f32 %v4531
        %vm4680 = vweird.f32 %v4673
        %vm4681 = vmor %vm4679, %vm4680
        %v4682 = vsel %vm4681, %v4673, %v4678
        %v4683 = vrsqrt.pop %v4532
        %v4684 = vmul.f32 %v4683, %v4532
        %v4685 = vmul.f32 %v4684, %v4683
        %v4686 = vmul.f32 0.5, %v4685
        %v4687 = vsub.f32 1.5, %v4686
        %v4688 = vmul.f32 %v4683, %v4687
        %vm4689 = vweird.f32 %v4532
        %vm4690 = vweird.f32 %v4683
        %vm4691 = vmor %vm4689, %vm4690
        %v4692 = vsel %vm4691, %v4683, %v4688
        %v4693 = vmul.f32 %v4421, %v4542
        %v4694 = vmul.f32 %v4422, %v4552
        %v4695 = vmul.f32 %v4423, %v4562
        %v4696 = vmul.f32 %v4424, %v4572
        %v4697 = vmul.f32 %v4425, %v4582
        %v4698 = vmul.f32 %v4426, %v4592
        %v4699 = vmul.f32 %v4427, %v4602
        %v4700 = vmul.f32 %v4428, %v4612
        %v4701 = vmul.f32 %v4429, %v4622
        %v4702 = vmul.f32 %v4430, %v4632
        %v4703 = vmul.f32 %v4431, %v4642
        %v4704 = vmul.f32 %v4432, %v4652
        %v4705 = vmul.f32 %v4433, %v4662
        %v4706 = vmul.f32 %v4434, %v4672
        %v4707 = vmul.f32 %v4435, %v4682
        %v4708 = vmul.f32 %v4436, %v4692
        %4710 = vrot.lane.b32.xlu0 %v4324, 96
        %v4711 = vpop.permute.xlu0 %4710
        %v4713 = vmul.f32 %v4693, %v4711
        %v4714 = vmul.f32 %v4694, %v4711
        %v4715 = vmul.f32 %v4695, %v4711
        %v4716 = vmul.f32 %v4696, %v4711
        %v4717 = vmul.f32 %v4697, %v4711
        %v4718 = vmul.f32 %v4698, %v4711
        %v4719 = vmul.f32 %v4699, %v4711
        %v4720 = vmul.f32 %v4700, %v4711
        %v4721 = vmul.f32 %v4701, %v4711
        %v4722 = vmul.f32 %v4702, %v4711
        %v4723 = vmul.f32 %v4703, %v4711
        %v4724 = vmul.f32 %v4704, %v4711
        %v4725 = vmul.f32 %v4705, %v4711
        %v4726 = vmul.f32 %v4706, %v4711
        %v4727 = vmul.f32 %v4707, %v4711
        %v4728 = vmul.f32 %v4708, %v4711
        %4729 = vrot.lane.b32.xlu0 %v4324, 64
        %v4730 = vpop.permute.xlu0 %4729
        %v4732 = vadd.f32 %v4713, %v4730
        %v4733 = vadd.f32 %v4714, %v4730
        %v4734 = vadd.f32 %v4715, %v4730
        %v4735 = vadd.f32 %v4716, %v4730
        %v4736 = vadd.f32 %v4717, %v4730
        %v4737 = vadd.f32 %v4718, %v4730
        %v4738 = vadd.f32 %v4719, %v4730
        %v4739 = vadd.f32 %v4720, %v4730
        %v4740 = vadd.f32 %v4721, %v4730
        %v4741 = vadd.f32 %v4722, %v4730
        %v4742 = vadd.f32 %v4723, %v4730
        %v4743 = vadd.f32 %v4724, %v4730
        %v4744 = vadd.f32 %v4725, %v4730
        %v4745 = vadd.f32 %v4726, %v4730
        %v4746 = vadd.f32 %v4727, %v4730
        %v4747 = vadd.f32 %v4728, %v4730
        %v4748 = vpack.c.bf16 %v4733, %v4732
        %v4749 = vpack.c.bf16 %v4735, %v4734
        %v4750 = vpack.c.bf16 %v4737, %v4736
        %v4751 = vpack.c.bf16 %v4739, %v4738
        %v4752 = vpack.c.bf16 %v4741, %v4740
        %v4753 = vpack.c.bf16 %v4743, %v4742
        %v4754 = vpack.c.bf16 %v4745, %v4744
        %v4755 = vpack.c.bf16 %v4747, %v4746
        %v4756 = vld [vmem:[%s8] sm:$0xf]
        %v4757 = vld [vmem:[%s8 + $0x4] sm:$0xf]
        %v4758 = vld [vmem:[%s8 + $0x8] sm:$0xf]
        %v4759 = vld [vmem:[%s8 + $0xc] sm:$0xf]
        %v4760 = vld [vmem:[%s9 + $0x2] sm:$0x1]
        %v4761 = vperm.slane %v4760, 0
        %v4766 = vunpack.c.l.b16 %v4756
        %v4767 = vunpack.c.l.b16 %v4757
        %v4768 = vunpack.c.l.b16 %v4758
        %v4769 = vunpack.c.l.b16 %v4759
        %v4770 = vpack.c.b16 %v4767, %v4766
        %v4771 = vpack.c.b16 %v4769, %v4768
        %v4775 = vsel %vm793, %v4748, 0
        %v4778 = vsel %vm793, %v4749, 0
        %v4781 = vsel %vm793, %v4750, 0
        %v4784 = vsel %vm793, %v4751, 0
        %v4787 = vsel %vm793, %v4752, 0
        %v4790 = vsel %vm793, %v4753, 0
        %v4793 = vsel %vm793, %v4754, 0
        %v4796 = vsel %vm793, %v4755, 0
        %4798 = vmatpush.bf16.msra.mxu0 0
        %4799 = vmatpush.bf16.msra.mxu0 0
        %4800 = vmatpush.bf16.msra.mxu0 0
        %4801 = vmatpush.bf16.msra.mxu0 0
        %4802 = vmatpush.bf16.msra.mxu0 0
        %4803 = vmatpush.bf16.msra.mxu0 0
        %4804 = vmatpush.bf16.msra.mxu0 %v4771
        %4805 = vmatpush.bf16.msra.mxu0 %v4770
        %4806 = vmatmul.bf16.gmra.mxu0 %v4775
        %v4807 = vpop.f32.mrf.mxu0
        %v4808 = vadd.f32 %v4761, %v4807
        %v4809 = vpop.f32.mrf.mxu0
        %v4810 = vadd.f32 %v4761, %v4809
        %4811 = vmatmul.bf16.gmra.mxu0 %v4778
        %v4812 = vpop.f32.mrf.mxu0
        %v4813 = vadd.f32 %v4761, %v4812
        %v4814 = vpop.f32.mrf.mxu0
        %v4815 = vadd.f32 %v4761, %v4814
        %4816 = vmatmul.bf16.gmra.mxu0 %v4781
        %v4817 = vpop.f32.mrf.mxu0
        %v4818 = vadd.f32 %v4761, %v4817
        %v4819 = vpop.f32.mrf.mxu0
        %v4820 = vadd.f32 %v4761, %v4819
        %4821 = vmatmul.bf16.gmra.mxu0 %v4784
        %v4822 = vpop.f32.mrf.mxu0
        %v4823 = vadd.f32 %v4761, %v4822
        %v4824 = vpop.f32.mrf.mxu0
        %v4825 = vadd.f32 %v4761, %v4824
        %4826 = vmatmul.bf16.gmra.mxu0 %v4787
        %v4827 = vpop.f32.mrf.mxu0
        %v4828 = vadd.f32 %v4761, %v4827
        %v4829 = vpop.f32.mrf.mxu0
        %v4830 = vadd.f32 %v4761, %v4829
        %4831 = vmatmul.bf16.gmra.mxu0 %v4790
        %v4832 = vpop.f32.mrf.mxu0
        %v4833 = vadd.f32 %v4761, %v4832
        %v4834 = vpop.f32.mrf.mxu0
        %v4835 = vadd.f32 %v4761, %v4834
        %4836 = vmatmul.bf16.gmra.mxu0 %v4793
        %v4837 = vpop.f32.mrf.mxu0
        %v4838 = vadd.f32 %v4761, %v4837
        %v4839 = vpop.f32.mrf.mxu0
        %v4840 = vadd.f32 %v4761, %v4839
        %4841 = vmatmul.bf16.gmra.mxu0 %v4796
        %v4842 = vpop.f32.mrf.mxu0
        %v4843 = vadd.f32 %v4761, %v4842
        %v4844 = vpop.f32.mrf.mxu0
        %v4845 = vadd.f32 %v4761, %v4844
        %4846 = vdwg.mxu0
        %v4847 = vmul.f32 %v4808, %v4808
        %v4848 = vmul.f32 %v4810, %v4810
        %v4849 = vmul.f32 %v4813, %v4813
        %v4850 = vmul.f32 %v4815, %v4815
        %v4851 = vmul.f32 %v4818, %v4818
        %v4852 = vmul.f32 %v4820, %v4820
        %v4853 = vmul.f32 %v4823, %v4823
        %v4854 = vmul.f32 %v4825, %v4825
        %v4855 = vmul.f32 %v4828, %v4828
        %v4856 = vmul.f32 %v4830, %v4830
        %v4857 = vmul.f32 %v4833, %v4833
        %v4858 = vmul.f32 %v4835, %v4835
        %v4859 = vmul.f32 %v4838, %v4838
        %v4860 = vmul.f32 %v4840, %v4840
        %v4861 = vmul.f32 %v4843, %v4843
        %v4862 = vmul.f32 %v4845, %v4845
        %v4863 = vmul.f32 %v4808, %v4847
        %v4864 = vmul.f32 %v4810, %v4848
        %v4865 = vmul.f32 %v4813, %v4849
        %v4866 = vmul.f32 %v4815, %v4850
        %v4867 = vmul.f32 %v4818, %v4851
        %v4868 = vmul.f32 %v4820, %v4852
        %v4869 = vmul.f32 %v4823, %v4853
        %v4870 = vmul.f32 %v4825, %v4854
        %v4871 = vmul.f32 %v4828, %v4855
        %v4872 = vmul.f32 %v4830, %v4856
        %v4873 = vmul.f32 %v4833, %v4857
        %v4874 = vmul.f32 %v4835, %v4858
        %v4875 = vmul.f32 %v4838, %v4859
        %v4876 = vmul.f32 %v4840, %v4860
        %v4877 = vmul.f32 %v4843, %v4861
        %v4878 = vmul.f32 %v4845, %v4862
        %v4879 = vmul.f32 %v4863, 0.044715
        %v4880 = vmul.f32 %v4864, 0.044715
        %v4881 = vmul.f32 %v4865, 0.044715
        %v4882 = vmul.f32 %v4866, 0.044715
        %v4883 = vmul.f32 %v4867, 0.044715
        %v4884 = vmul.f32 %v4868, 0.044715
        %v4885 = vmul.f32 %v4869, 0.044715
        %v4886 = vmul.f32 %v4870, 0.044715
        %v4887 = vmul.f32 %v4871, 0.044715
        %v4888 = vmul.f32 %v4872, 0.044715
        %v4889 = vmul.f32 %v4873, 0.044715
        %v4890 = vmul.f32 %v4874, 0.044715
        %v4891 = vmul.f32 %v4875, 0.044715
        %v4892 = vmul.f32 %v4876, 0.044715
        %v4893 = vmul.f32 %v4877, 0.044715
        %v4894 = vmul.f32 %v4878, 0.044715
        %v4895 = vadd.f32 %v4808, %v4879
        %v4896 = vadd.f32 %v4810, %v4880
        %v4897 = vadd.f32 %v4813, %v4881
        %v4898 = vadd.f32 %v4815, %v4882
        %v4899 = vadd.f32 %v4818, %v4883
        %v4900 = vadd.f32 %v4820, %v4884
        %v4901 = vadd.f32 %v4823, %v4885
        %v4902 = vadd.f32 %v4825, %v4886
        %v4903 = vadd.f32 %v4828, %v4887
        %v4904 = vadd.f32 %v4830, %v4888
        %v4905 = vadd.f32 %v4833, %v4889
        %v4906 = vadd.f32 %v4835, %v4890
        %v4907 = vadd.f32 %v4838, %v4891
        %v4908 = vadd.f32 %v4840, %v4892
        %v4909 = vadd.f32 %v4843, %v4893
        %v4910 = vadd.f32 %v4845, %v4894
        %v4911 = vmul.f32 %v4895, 0.7978846
        %v4912 = vmul.f32 %v4896, 0.7978846
        %v4913 = vmul.f32 %v4897, 0.7978846
        %v4914 = vmul.f32 %v4898, 0.7978846
        %v4915 = vmul.f32 %v4899, 0.7978846
        %v4916 = vmul.f32 %v4900, 0.7978846
        %v4917 = vmul.f32 %v4901, 0.7978846
        %v4918 = vmul.f32 %v4902, 0.7978846
        %v4919 = vmul.f32 %v4903, 0.7978846
        %v4920 = vmul.f32 %v4904, 0.7978846
        %v4921 = vmul.f32 %v4905, 0.7978846
        %v4922 = vmul.f32 %v4906, 0.7978846
        %v4923 = vmul.f32 %v4907, 0.7978846
        %v4924 = vmul.f32 %v4908, 0.7978846
        %v4925 = vmul.f32 %v4909, 0.7978846
        %v4926 = vmul.f32 %v4910, 0.7978846
        %v4927 = vtanh.pop %v4911
        %v4928 = vtanh.pop %v4912
        %v4929 = vtanh.pop %v4913
        %v4930 = vtanh.pop %v4914
        %v4931 = vtanh.pop %v4915
        %v4932 = vtanh.pop %v4916
        %v4933 = vtanh.pop %v4917
        %v4934 = vtanh.pop %v4918
        %v4935 = vtanh.pop %v4919
        %v4936 = vtanh.pop %v4920
        %v4937 = vtanh.pop %v4921
        %v4938 = vtanh.pop %v4922
        %v4939 = vtanh.pop %v4923
        %v4940 = vtanh.pop %v4924
        %v4941 = vtanh.pop %v4925
        %v4942 = vtanh.pop %v4926
        %v4943 = vadd.f32 %v4927, 1.0
        %v4944 = vadd.f32 %v4928, 1.0
        %v4945 = vadd.f32 %v4929, 1.0
        %v4946 = vadd.f32 %v4930, 1.0
        %v4947 = vadd.f32 %v4931, 1.0
        %v4948 = vadd.f32 %v4932, 1.0
        %v4949 = vadd.f32 %v4933, 1.0
        %v4950 = vadd.f32 %v4934, 1.0
        %v4951 = vadd.f32 %v4935, 1.0
        %v4952 = vadd.f32 %v4936, 1.0
        %v4953 = vadd.f32 %v4937, 1.0
        %v4954 = vadd.f32 %v4938, 1.0
        %v4955 = vadd.f32 %v4939, 1.0
        %v4956 = vadd.f32 %v4940, 1.0
        %v4957 = vadd.f32 %v4941, 1.0
        %v4958 = vadd.f32 %v4942, 1.0
        %v4959 = vmul.f32 %v4943, 0.5
        %v4960 = vmul.f32 %v4944, 0.5
        %v4961 = vmul.f32 %v4945, 0.5
        %v4962 = vmul.f32 %v4946, 0.5
        %v4963 = vmul.f32 %v4947, 0.5
        %v4964 = vmul.f32 %v4948, 0.5
        %v4965 = vmul.f32 %v4949, 0.5
        %v4966 = vmul.f32 %v4950, 0.5
        %v4967 = vmul.f32 %v4951, 0.5
        %v4968 = vmul.f32 %v4952, 0.5
        %v4969 = vmul.f32 %v4953, 0.5
        %v4970 = vmul.f32 %v4954, 0.5
        %v4971 = vmul.f32 %v4955, 0.5
        %v4972 = vmul.f32 %v4956, 0.5
        %v4973 = vmul.f32 %v4957, 0.5
        %v4974 = vmul.f32 %v4958, 0.5
        %v4975 = vmul.f32 %v4808, %v4959
        %v4976 = vmul.f32 %v4810, %v4960
        %v4977 = vmul.f32 %v4813, %v4961
        %v4978 = vmul.f32 %v4815, %v4962
        %v4979 = vmul.f32 %v4818, %v4963
        %v4980 = vmul.f32 %v4820, %v4964
        %v4981 = vmul.f32 %v4823, %v4965
        %v4982 = vmul.f32 %v4825, %v4966
        %v4983 = vmul.f32 %v4828, %v4967
        %v4984 = vmul.f32 %v4830, %v4968
        %v4985 = vmul.f32 %v4833, %v4969
        %v4986 = vmul.f32 %v4835, %v4970
        %v4987 = vmul.f32 %v4838, %v4971
        %v4988 = vmul.f32 %v4840, %v4972
        %v4989 = vmul.f32 %v4843, %v4973
        %v4990 = vmul.f32 %v4845, %v4974
        %v4991 = vpack.c.bf16 %v4976, %v4975
        %v4992 = vpack.c.bf16 %v4978, %v4977
        %v4993 = vpack.c.bf16 %v4980, %v4979
        %v4994 = vpack.c.bf16 %v4982, %v4981
        %v4995 = vpack.c.bf16 %v4984, %v4983
        %v4996 = vpack.c.bf16 %v4986, %v4985
        %v4997 = vpack.c.bf16 %v4988, %v4987
        %v4998 = vpack.c.bf16 %v4990, %v4989
        %s4999 = scalar_lea.vmem %s8, 16
        %v5000 = vld [vmem:[%s4999] sm:$0xf]
        %v5001 = vld [vmem:[%s4999 + $0x4] sm:$0xf]
        %v5002 = vld [vmem:[%s4999 + $0x8] sm:$0xf]
        %v5003 = vld [vmem:[%s4999 + $0xc] sm:$0xf]
        %v5008 = vunpack.c.l.b16 %v5000
        %v5009 = vunpack.c.l.b16 %v5001
        %v5010 = vunpack.c.l.b16 %v5002
        %v5011 = vunpack.c.l.b16 %v5003
        %v5012 = vpack.c.b16 %v5009, %v5008
        %v5013 = vpack.c.b16 %v5011, %v5010
        %5014 = vrot.lane.b32.xlu0 %v4324, 32
        %v5015 = vpop.permute.xlu0 %5014
        %vm5017 = vcmask 523264
        %v5019 = vsel %vm5017, %v4991, 0
        %v5022 = vsel %vm5017, %v4992, 0
        %v5025 = vsel %vm5017, %v4993, 0
        %v5028 = vsel %vm5017, %v4994, 0
        %v5031 = vsel %vm5017, %v4995, 0
        %v5034 = vsel %vm5017, %v4996, 0
        %v5037 = vsel %vm5017, %v4997, 0
        %v5040 = vsel %vm5017, %v4998, 0
        %v5043 = vsel %vm5017, %v5012, 0
        %v5046 = vsel %vm5017, %v5013, 0
        %5048 = vmatpush.bf16.xpose.msra.mxu0 0
        %5049 = vmatpush.bf16.xpose.msra.mxu0 0
        %5050 = vmatpush.bf16.xpose.msra.mxu0 0
        %5051 = vmatpush.bf16.xpose.msra.mxu0 0
        %5052 = vmatpush.bf16.xpose.msra.mxu0 0
        %5053 = vmatpush.bf16.xpose.msra.mxu0 0
        %5054 = vmatpush.bf16.xpose.msra.mxu0 %v5046
        %5055 = vmatpush.bf16.xpose.msra.mxu0 %v5043
        %5056 = vmatmul.bf16.gmra.mxu0 %v5019
        %v5057 = vpop.f32.mrf.mxu0
        %v5058 = vadd.f32 %v5015, %v5057
        %v5059 = vpop.f32.mrf.mxu0
        %v5060 = vadd.f32 %v5015, %v5059
        %5061 = vmatmul.bf16.gmra.mxu0 %v5022
        %v5062 = vpop.f32.mrf.mxu0
        %v5063 = vadd.f32 %v5015, %v5062
        %v5064 = vpop.f32.mrf.mxu0
        %v5065 = vadd.f32 %v5015, %v5064
        %5066 = vmatmul.bf16.gmra.mxu0 %v5025
        %v5067 = vpop.f32.mrf.mxu0
        %v5068 = vadd.f32 %v5015, %v5067
        %v5069 = vpop.f32.mrf.mxu0
        %v5070 = vadd.f32 %v5015, %v5069
        %5071 = vmatmul.bf16.gmra.mxu0 %v5028
        %v5072 = vpop.f32.mrf.mxu0
        %v5073 = vadd.f32 %v5015, %v5072
        %v5074 = vpop.f32.mrf.mxu0
        %v5075 = vadd.f32 %v5015, %v5074
        %5076 = vmatmul.bf16.gmra.mxu0 %v5031
        %v5077 = vpop.f32.mrf.mxu0
        %v5078 = vadd.f32 %v5015, %v5077
        %v5079 = vpop.f32.mrf.mxu0
        %v5080 = vadd.f32 %v5015, %v5079
        %5081 = vmatmul.bf16.gmra.mxu0 %v5034
        %v5082 = vpop.f32.mrf.mxu0
        %v5083 = vadd.f32 %v5015, %v5082
        %v5084 = vpop.f32.mrf.mxu0
        %v5085 = vadd.f32 %v5015, %v5084
        %5086 = vmatmul.bf16.gmra.mxu0 %v5037
        %v5087 = vpop.f32.mrf.mxu0
        %v5088 = vadd.f32 %v5015, %v5087
        %v5089 = vpop.f32.mrf.mxu0
        %v5090 = vadd.f32 %v5015, %v5089
        %5091 = vmatmul.bf16.gmra.mxu0 %v5040
        %v5092 = vpop.f32.mrf.mxu0
        %v5093 = vadd.f32 %v5015, %v5092
        %v5094 = vpop.f32.mrf.mxu0
        %v5095 = vadd.f32 %v5015, %v5094
        %5096 = vdwg.mxu0
        %v5097 = vadd.f32 %v5058, %v4732
        %v5098 = vadd.f32 %v5060, %v4733
        %v5099 = vadd.f32 %v5063, %v4734
        %v5100 = vadd.f32 %v5065, %v4735
        %v5101 = vadd.f32 %v5068, %v4736
        %v5102 = vadd.f32 %v5070, %v4737
        %v5103 = vadd.f32 %v5073, %v4738
        %v5104 = vadd.f32 %v5075, %v4739
        %v5105 = vadd.f32 %v5078, %v4740
        %v5106 = vadd.f32 %v5080, %v4741
        %v5107 = vadd.f32 %v5083, %v4742
        %v5108 = vadd.f32 %v5085, %v4743
        %v5109 = vadd.f32 %v5088, %v4744
        %v5110 = vadd.f32 %v5090, %v4745
        %v5111 = vadd.f32 %v5093, %v4746
        %v5112 = vadd.f32 %v5095, %v4747
        %v5113 = vsel %vm793, %v5097, 0.0
        %5114 = vadd.xlane.f32.xlu0 %v5113
        %v5115 = vpop.xlane.xlu0 %5114
        %v5116 = vsel %vm793, %v5098, 0.0
        %5117 = vadd.xlane.f32.xlu0 %v5116
        %v5118 = vpop.xlane.xlu0 %5117
        %v5119 = vsel %vm793, %v5099, 0.0
        %5120 = vadd.xlane.f32.xlu0 %v5119
        %v5121 = vpop.xlane.xlu0 %5120
        %v5122 = vsel %vm793, %v5100, 0.0
        %5123 = vadd.xlane.f32.xlu0 %v5122
        %v5124 = vpop.xlane.xlu0 %5123
        %v5125 = vsel %vm793, %v5101, 0.0
        %5126 = vadd.xlane.f32.xlu0 %v5125
        %v5127 = vpop.xlane.xlu0 %5126
        %v5128 = vsel %vm793, %v5102, 0.0
        %5129 = vadd.xlane.f32.xlu0 %v5128
        %v5130 = vpop.xlane.xlu0 %5129
        %v5131 = vsel %vm793, %v5103, 0.0
        %5132 = vadd.xlane.f32.xlu0 %v5131
        %v5133 = vpop.xlane.xlu0 %5132
        %v5134 = vsel %vm793, %v5104, 0.0
        %5135 = vadd.xlane.f32.xlu0 %v5134
        %v5136 = vpop.xlane.xlu0 %5135
        %v5137 = vsel %vm793, %v5105, 0.0
        %5138 = vadd.xlane.f32.xlu0 %v5137
        %v5139 = vpop.xlane.xlu0 %5138
        %v5140 = vsel %vm793, %v5106, 0.0
        %5141 = vadd.xlane.f32.xlu0 %v5140
        %v5142 = vpop.xlane.xlu0 %5141
        %v5143 = vsel %vm793, %v5107, 0.0
        %5144 = vadd.xlane.f32.xlu0 %v5143
        %v5145 = vpop.xlane.xlu0 %5144
        %v5146 = vsel %vm793, %v5108, 0.0
        %5147 = vadd.xlane.f32.xlu0 %v5146
        %v5148 = vpop.xlane.xlu0 %5147
        %v5149 = vsel %vm793, %v5109, 0.0
        %5150 = vadd.xlane.f32.xlu0 %v5149
        %v5151 = vpop.xlane.xlu0 %5150
        %v5152 = vsel %vm793, %v5110, 0.0
        %5153 = vadd.xlane.f32.xlu0 %v5152
        %v5154 = vpop.xlane.xlu0 %5153
        %v5155 = vsel %vm793, %v5111, 0.0
        %5156 = vadd.xlane.f32.xlu0 %v5155
        %v5157 = vpop.xlane.xlu0 %5156
        %v5158 = vsel %vm793, %v5112, 0.0
        %5159 = vadd.xlane.f32.xlu0 %v5158
        %v5160 = vpop.xlane.xlu0 %5159
        %v5161 = vmul.f32 %v5115, %v848
        %v5162 = vmul.f32 %v5118, %v848
        %v5163 = vmul.f32 %v5121, %v848
        %v5164 = vmul.f32 %v5124, %v848
        %v5165 = vmul.f32 %v5127, %v848
        %v5166 = vmul.f32 %v5130, %v848
        %v5167 = vmul.f32 %v5133, %v848
        %v5168 = vmul.f32 %v5136, %v848
        %v5169 = vmul.f32 %v5139, %v848
        %v5170 = vmul.f32 %v5142, %v848
        %v5171 = vmul.f32 %v5145, %v848
        %v5172 = vmul.f32 %v5148, %v848
        %v5173 = vmul.f32 %v5151, %v848
        %v5174 = vmul.f32 %v5154, %v848
        %v5175 = vmul.f32 %v5157, %v848
        %v5176 = vmul.f32 %v5160, %v848
        %v5177 = vsub.f32 %v5097, %v5161
        %v5178 = vsub.f32 %v5098, %v5162
        %v5179 = vsub.f32 %v5099, %v5163
        %v5180 = vsub.f32 %v5100, %v5164
        %v5181 = vsub.f32 %v5101, %v5165
        %v5182 = vsub.f32 %v5102, %v5166
        %v5183 = vsub.f32 %v5103, %v5167
        %v5184 = vsub.f32 %v5104, %v5168
        %v5185 = vsub.f32 %v5105, %v5169
        %v5186 = vsub.f32 %v5106, %v5170
        %v5187 = vsub.f32 %v5107, %v5171
        %v5188 = vsub.f32 %v5108, %v5172
        %v5189 = vsub.f32 %v5109, %v5173
        %v5190 = vsub.f32 %v5110, %v5174
        %v5191 = vsub.f32 %v5111, %v5175
        %v5192 = vsub.f32 %v5112, %v5176
        %v5193 = vmul.f32 %v5177, %v5177
        %v5194 = vmul.f32 %v5178, %v5178
        %v5195 = vmul.f32 %v5179, %v5179
        %v5196 = vmul.f32 %v5180, %v5180
        %v5197 = vmul.f32 %v5181, %v5181
        %v5198 = vmul.f32 %v5182, %v5182
        %v5199 = vmul.f32 %v5183, %v5183
        %v5200 = vmul.f32 %v5184, %v5184
        %v5201 = vmul.f32 %v5185, %v5185
        %v5202 = vmul.f32 %v5186, %v5186
        %v5203 = vmul.f32 %v5187, %v5187
        %v5204 = vmul.f32 %v5188, %v5188
        %v5205 = vmul.f32 %v5189, %v5189
        %v5206 = vmul.f32 %v5190, %v5190
        %v5207 = vmul.f32 %v5191, %v5191
        %v5208 = vmul.f32 %v5192, %v5192
        %v5209 = vsel %vm793, %v5193, 0.0
        %5210 = vadd.xlane.f32.xlu0 %v5209
        %v5211 = vpop.xlane.xlu0 %5210
        %v5212 = vsel %vm793, %v5194, 0.0
        %5213 = vadd.xlane.f32.xlu0 %v5212
        %v5214 = vpop.xlane.xlu0 %5213
        %v5215 = vsel %vm793, %v5195, 0.0
        %5216 = vadd.xlane.f32.xlu0 %v5215
        %v5217 = vpop.xlane.xlu0 %5216
        %v5218 = vsel %vm793, %v5196, 0.0
        %5219 = vadd.xlane.f32.xlu0 %v5218
        %v5220 = vpop.xlane.xlu0 %5219
        %v5221 = vsel %vm793, %v5197, 0.0
        %5222 = vadd.xlane.f32.xlu0 %v5221
        %v5223 = vpop.xlane.xlu0 %5222
        %v5224 = vsel %vm793, %v5198, 0.0
        %5225 = vadd.xlane.f32.xlu0 %v5224
        %v5226 = vpop.xlane.xlu0 %5225
        %v5227 = vsel %vm793, %v5199, 0.0
        %5228 = vadd.xlane.f32.xlu0 %v5227
        %v5229 = vpop.xlane.xlu0 %5228
        %v5230 = vsel %vm793, %v5200, 0.0
        %5231 = vadd.xlane.f32.xlu0 %v5230
        %v5232 = vpop.xlane.xlu0 %5231
        %v5233 = vsel %vm793, %v5201, 0.0
        %5234 = vadd.xlane.f32.xlu0 %v5233
        %v5235 = vpop.xlane.xlu0 %5234
        %v5236 = vsel %vm793, %v5202, 0.0
        %5237 = vadd.xlane.f32.xlu0 %v5236
        %v5238 = vpop.xlane.xlu0 %5237
        %v5239 = vsel %vm793, %v5203, 0.0
        %5240 = vadd.xlane.f32.xlu0 %v5239
        %v5241 = vpop.xlane.xlu0 %5240
        %v5242 = vsel %vm793, %v5204, 0.0
        %5243 = vadd.xlane.f32.xlu0 %v5242
        %v5244 = vpop.xlane.xlu0 %5243
        %v5245 = vsel %vm793, %v5205, 0.0
        %5246 = vadd.xlane.f32.xlu0 %v5245
        %v5247 = vpop.xlane.xlu0 %5246
        %v5248 = vsel %vm793, %v5206, 0.0
        %5249 = vadd.xlane.f32.xlu0 %v5248
        %v5250 = vpop.xlane.xlu0 %5249
        %v5251 = vsel %vm793, %v5207, 0.0
        %5252 = vadd.xlane.f32.xlu0 %v5251
        %v5253 = vpop.xlane.xlu0 %5252
        %v5254 = vsel %vm793, %v5208, 0.0
        %5255 = vadd.xlane.f32.xlu0 %v5254
        %v5256 = vpop.xlane.xlu0 %5255
        %v5257 = vmul.f32 %v5211, %v848
        %v5258 = vmul.f32 %v5214, %v848
        %v5259 = vmul.f32 %v5217, %v848
        %v5260 = vmul.f32 %v5220, %v848
        %v5261 = vmul.f32 %v5223, %v848
        %v5262 = vmul.f32 %v5226, %v848
        %v5263 = vmul.f32 %v5229, %v848
        %v5264 = vmul.f32 %v5232, %v848
        %v5265 = vmul.f32 %v5235, %v848
        %v5266 = vmul.f32 %v5238, %v848
        %v5267 = vmul.f32 %v5241, %v848
        %v5268 = vmul.f32 %v5244, %v848
        %v5269 = vmul.f32 %v5247, %v848
        %v5270 = vmul.f32 %v5250, %v848
        %v5271 = vmul.f32 %v5253, %v848
        %v5272 = vmul.f32 %v5256, %v848
        %v5273 = vadd.f32 %v5257, 1e-12
        %v5274 = vadd.f32 %v5258, 1e-12
        %v5275 = vadd.f32 %v5259, 1e-12
        %v5276 = vadd.f32 %v5260, 1e-12
        %v5277 = vadd.f32 %v5261, 1e-12
        %v5278 = vadd.f32 %v5262, 1e-12
        %v5279 = vadd.f32 %v5263, 1e-12
        %v5280 = vadd.f32 %v5264, 1e-12
        %v5281 = vadd.f32 %v5265, 1e-12
        %v5282 = vadd.f32 %v5266, 1e-12
        %v5283 = vadd.f32 %v5267, 1e-12
        %v5284 = vadd.f32 %v5268, 1e-12
        %v5285 = vadd.f32 %v5269, 1e-12
        %v5286 = vadd.f32 %v5270, 1e-12
        %v5287 = vadd.f32 %v5271, 1e-12
        %v5288 = vadd.f32 %v5272, 1e-12
        %v5289 = vrsqrt.pop %v5273
        %v5290 = vmul.f32 %v5289, %v5273
        %v5291 = vmul.f32 %v5290, %v5289
        %v5292 = vmul.f32 0.5, %v5291
        %v5293 = vsub.f32 1.5, %v5292
        %v5294 = vmul.f32 %v5289, %v5293
        %vm5295 = vweird.f32 %v5273
        %vm5296 = vweird.f32 %v5289
        %vm5297 = vmor %vm5295, %vm5296
        %v5298 = vsel %vm5297, %v5289, %v5294
        %v5299 = vrsqrt.pop %v5274
        %v5300 = vmul.f32 %v5299, %v5274
        %v5301 = vmul.f32 %v5300, %v5299
        %v5302 = vmul.f32 0.5, %v5301
        %v5303 = vsub.f32 1.5, %v5302
        %v5304 = vmul.f32 %v5299, %v5303
        %vm5305 = vweird.f32 %v5274
        %vm5306 = vweird.f32 %v5299
        %vm5307 = vmor %vm5305, %vm5306
        %v5308 = vsel %vm5307, %v5299, %v5304
        %v5309 = vrsqrt.pop %v5275
        %v5310 = vmul.f32 %v5309, %v5275
        %v5311 = vmul.f32 %v5310, %v5309
        %v5312 = vmul.f32 0.5, %v5311
        %v5313 = vsub.f32 1.5, %v5312
        %v5314 = vmul.f32 %v5309, %v5313
        %vm5315 = vweird.f32 %v5275
        %vm5316 = vweird.f32 %v5309
        %vm5317 = vmor %vm5315, %vm5316
        %v5318 = vsel %vm5317, %v5309, %v5314
        %v5319 = vrsqrt.pop %v5276
        %v5320 = vmul.f32 %v5319, %v5276
        %v5321 = vmul.f32 %v5320, %v5319
        %v5322 = vmul.f32 0.5, %v5321
        %v5323 = vsub.f32 1.5, %v5322
        %v5324 = vmul.f32 %v5319, %v5323
        %vm5325 = vweird.f32 %v5276
        %vm5326 = vweird.f32 %v5319
        %vm5327 = vmor %vm5325, %vm5326
        %v5328 = vsel %vm5327, %v5319, %v5324
        %v5329 = vrsqrt.pop %v5277
        %v5330 = vmul.f32 %v5329, %v5277
        %v5331 = vmul.f32 %v5330, %v5329
        %v5332 = vmul.f32 0.5, %v5331
        %v5333 = vsub.f32 1.5, %v5332
        %v5334 = vmul.f32 %v5329, %v5333
        %vm5335 = vweird.f32 %v5277
        %vm5336 = vweird.f32 %v5329
        %vm5337 = vmor %vm5335, %vm5336
        %v5338 = vsel %vm5337, %v5329, %v5334
        %v5339 = vrsqrt.pop %v5278
        %v5340 = vmul.f32 %v5339, %v5278
        %v5341 = vmul.f32 %v5340, %v5339
        %v5342 = vmul.f32 0.5, %v5341
        %v5343 = vsub.f32 1.5, %v5342
        %v5344 = vmul.f32 %v5339, %v5343
        %vm5345 = vweird.f32 %v5278
        %vm5346 = vweird.f32 %v5339
        %vm5347 = vmor %vm5345, %vm5346
        %v5348 = vsel %vm5347, %v5339, %v5344
        %v5349 = vrsqrt.pop %v5279
        %v5350 = vmul.f32 %v5349, %v5279
        %v5351 = vmul.f32 %v5350, %v5349
        %v5352 = vmul.f32 0.5, %v5351
        %v5353 = vsub.f32 1.5, %v5352
        %v5354 = vmul.f32 %v5349, %v5353
        %vm5355 = vweird.f32 %v5279
        %vm5356 = vweird.f32 %v5349
        %vm5357 = vmor %vm5355, %vm5356
        %v5358 = vsel %vm5357, %v5349, %v5354
        %v5359 = vrsqrt.pop %v5280
        %v5360 = vmul.f32 %v5359, %v5280
        %v5361 = vmul.f32 %v5360, %v5359
        %v5362 = vmul.f32 0.5, %v5361
        %v5363 = vsub.f32 1.5, %v5362
        %v5364 = vmul.f32 %v5359, %v5363
        %vm5365 = vweird.f32 %v5280
        %vm5366 = vweird.f32 %v5359
        %vm5367 = vmor %vm5365, %vm5366
        %v5368 = vsel %vm5367, %v5359, %v5364
        %v5369 = vrsqrt.pop %v5281
        %v5370 = vmul.f32 %v5369, %v5281
        %v5371 = vmul.f32 %v5370, %v5369
        %v5372 = vmul.f32 0.5, %v5371
        %v5373 = vsub.f32 1.5, %v5372
        %v5374 = vmul.f32 %v5369, %v5373
        %vm5375 = vweird.f32 %v5281
        %vm5376 = vweird.f32 %v5369
        %vm5377 = vmor %vm5375, %vm5376
        %v5378 = vsel %vm5377, %v5369, %v5374
        %v5379 = vrsqrt.pop %v5282
        %v5380 = vmul.f32 %v5379, %v5282
        %v5381 = vmul.f32 %v5380, %v5379
        %v5382 = vmul.f32 0.5, %v5381
        %v5383 = vsub.f32 1.5, %v5382
        %v5384 = vmul.f32 %v5379, %v5383
        %vm5385 = vweird.f32 %v5282
        %vm5386 = vweird.f32 %v5379
        %vm5387 = vmor %vm5385, %vm5386
        %v5388 = vsel %vm5387, %v5379, %v5384
        %v5389 = vrsqrt.pop %v5283
        %v5390 = vmul.f32 %v5389, %v5283
        %v5391 = vmul.f32 %v5390, %v5389
        %v5392 = vmul.f32 0.5, %v5391
        %v5393 = vsub.f32 1.5, %v5392
        %v5394 = vmul.f32 %v5389, %v5393
        %vm5395 = vweird.f32 %v5283
        %vm5396 = vweird.f32 %v5389
        %vm5397 = vmor %vm5395, %vm5396
        %v5398 = vsel %vm5397, %v5389, %v5394
        %v5399 = vrsqrt.pop %v5284
        %v5400 = vmul.f32 %v5399, %v5284
        %v5401 = vmul.f32 %v5400, %v5399
        %v5402 = vmul.f32 0.5, %v5401
        %v5403 = vsub.f32 1.5, %v5402
        %v5404 = vmul.f32 %v5399, %v5403
        %vm5405 = vweird.f32 %v5284
        %vm5406 = vweird.f32 %v5399
        %vm5407 = vmor %vm5405, %vm5406
        %v5408 = vsel %vm5407, %v5399, %v5404
        %v5409 = vrsqrt.pop %v5285
        %v5410 = vmul.f32 %v5409, %v5285
        %v5411 = vmul.f32 %v5410, %v5409
        %v5412 = vmul.f32 0.5, %v5411
        %v5413 = vsub.f32 1.5, %v5412
        %v5414 = vmul.f32 %v5409, %v5413
        %vm5415 = vweird.f32 %v5285
        %vm5416 = vweird.f32 %v5409
        %vm5417 = vmor %vm5415, %vm5416
        %v5418 = vsel %vm5417, %v5409, %v5414
        %v5419 = vrsqrt.pop %v5286
        %v5420 = vmul.f32 %v5419, %v5286
        %v5421 = vmul.f32 %v5420, %v5419
        %v5422 = vmul.f32 0.5, %v5421
        %v5423 = vsub.f32 1.5, %v5422
        %v5424 = vmul.f32 %v5419, %v5423
        %vm5425 = vweird.f32 %v5286
        %vm5426 = vweird.f32 %v5419
        %vm5427 = vmor %vm5425, %vm5426
        %v5428 = vsel %vm5427, %v5419, %v5424
        %v5429 = vrsqrt.pop %v5287
        %v5430 = vmul.f32 %v5429, %v5287
        %v5431 = vmul.f32 %v5430, %v5429
        %v5432 = vmul.f32 0.5, %v5431
        %v5433 = vsub.f32 1.5, %v5432
        %v5434 = vmul.f32 %v5429, %v5433
        %vm5435 = vweird.f32 %v5287
        %vm5436 = vweird.f32 %v5429
        %vm5437 = vmor %vm5435, %vm5436
        %v5438 = vsel %vm5437, %v5429, %v5434
        %v5439 = vrsqrt.pop %v5288
        %v5440 = vmul.f32 %v5439, %v5288
        %v5441 = vmul.f32 %v5440, %v5439
        %v5442 = vmul.f32 0.5, %v5441
        %v5443 = vsub.f32 1.5, %v5442
        %v5444 = vmul.f32 %v5439, %v5443
        %vm5445 = vweird.f32 %v5288
        %vm5446 = vweird.f32 %v5439
        %vm5447 = vmor %vm5445, %vm5446
        %v5448 = vsel %vm5447, %v5439, %v5444
        %v5449 = vmul.f32 %v5177, %v5298
        %v5450 = vmul.f32 %v5178, %v5308
        %v5451 = vmul.f32 %v5179, %v5318
        %v5452 = vmul.f32 %v5180, %v5328
        %v5453 = vmul.f32 %v5181, %v5338
        %v5454 = vmul.f32 %v5182, %v5348
        %v5455 = vmul.f32 %v5183, %v5358
        %v5456 = vmul.f32 %v5184, %v5368
        %v5457 = vmul.f32 %v5185, %v5378
        %v5458 = vmul.f32 %v5186, %v5388
        %v5459 = vmul.f32 %v5187, %v5398
        %v5460 = vmul.f32 %v5188, %v5408
        %v5461 = vmul.f32 %v5189, %v5418
        %v5462 = vmul.f32 %v5190, %v5428
        %v5463 = vmul.f32 %v5191, %v5438
        %v5464 = vmul.f32 %v5192, %v5448
        %5466 = vrot.lane.b32.xlu0 %v4761, 64
        %v5467 = vpop.permute.xlu0 %5466
        %v5469 = vmul.f32 %v5449, %v5467
        %v5470 = vmul.f32 %v5450, %v5467
        %v5471 = vmul.f32 %v5451, %v5467
        %v5472 = vmul.f32 %v5452, %v5467
        %v5473 = vmul.f32 %v5453, %v5467
        %v5474 = vmul.f32 %v5454, %v5467
        %v5475 = vmul.f32 %v5455, %v5467
        %v5476 = vmul.f32 %v5456, %v5467
        %v5477 = vmul.f32 %v5457, %v5467
        %v5478 = vmul.f32 %v5458, %v5467
        %v5479 = vmul.f32 %v5459, %v5467
        %v5480 = vmul.f32 %v5460, %v5467
        %v5481 = vmul.f32 %v5461, %v5467
        %v5482 = vmul.f32 %v5462, %v5467
        %v5483 = vmul.f32 %v5463, %v5467
        %v5484 = vmul.f32 %v5464, %v5467
        %5485 = vrot.lane.b32.xlu0 %v4761, 32
        %v5486 = vpop.permute.xlu0 %5485
        %v5488 = vadd.f32 %v5469, %v5486
        %v5489 = vadd.f32 %v5470, %v5486
        %v5490 = vadd.f32 %v5471, %v5486
        %v5491 = vadd.f32 %v5472, %v5486
        %v5492 = vadd.f32 %v5473, %v5486
        %v5493 = vadd.f32 %v5474, %v5486
        %v5494 = vadd.f32 %v5475, %v5486
        %v5495 = vadd.f32 %v5476, %v5486
        %v5496 = vadd.f32 %v5477, %v5486
        %v5497 = vadd.f32 %v5478, %v5486
        %v5498 = vadd.f32 %v5479, %v5486
        %v5499 = vadd.f32 %v5480, %v5486
        %v5500 = vadd.f32 %v5481, %v5486
        %v5501 = vadd.f32 %v5482, %v5486
        %v5502 = vadd.f32 %v5483, %v5486
        %v5503 = vadd.f32 %v5484, %v5486
        %v5504 = vpack.c.bf16 %v5489, %v5488
        %v5505 = vpack.c.bf16 %v5491, %v5490
        %v5506 = vpack.c.bf16 %v5493, %v5492
        %v5507 = vpack.c.bf16 %v5495, %v5494
        %v5508 = vpack.c.bf16 %v5497, %v5496
        %v5509 = vpack.c.bf16 %v5499, %v5498
        %v5510 = vpack.c.bf16 %v5501, %v5500
        %v5511 = vpack.c.bf16 %v5503, %v5502
        %s5512 = scalar_lea.vmem %s5, 96
        %v5513 = vld [vmem:[%s5512] sm:$0xf]
        %v5514 = vld [vmem:[%s5512 + $0x4] sm:$0xf]
        %v5515 = vld [vmem:[%s5512 + $0x8] sm:$0xf]
        %v5516 = vld [vmem:[%s5512 + $0xc] sm:$0xf]
        %s5517 = scalar_lea.vmem %s6, 6
        %v5518 = vld [vmem:[%s5517] sm:$0x1]
        %v5520 = vperm.slane %v5518, 0
        %v5526 = vunpack.c.l.b16 %v5513
        %v5527 = vunpack.c.l.b16 %v5514
        %v5528 = vunpack.c.l.b16 %v5515
        %v5529 = vunpack.c.l.b16 %v5516
        %v5530 = vpack.c.b16 %v5527, %v5526
        %v5531 = vpack.c.b16 %v5529, %v5528
        %v5535 = vsel %vm793, %v5504, 0
        %v5538 = vsel %vm793, %v5505, 0
        %v5541 = vsel %vm793, %v5506, 0
        %v5544 = vsel %vm793, %v5507, 0
        %v5547 = vsel %vm793, %v5508, 0
        %v5550 = vsel %vm793, %v5509, 0
        %v5553 = vsel %vm793, %v5510, 0
        %v5556 = vsel %vm793, %v5511, 0
        %5558 = vmatpush.bf16.msra.mxu0 0
        %5559 = vmatpush.bf16.msra.mxu0 0
        %5560 = vmatpush.bf16.msra.mxu0 0
        %5561 = vmatpush.bf16.msra.mxu0 0
        %5562 = vmatpush.bf16.msra.mxu0 0
        %5563 = vmatpush.bf16.msra.mxu0 0
        %5564 = vmatpush.bf16.msra.mxu0 %v5531
        %5565 = vmatpush.bf16.msra.mxu0 %v5530
        %5566 = vmatmul.bf16.gmra.mxu0 %v5535
        %v5567 = vpop.f32.mrf.mxu0
        %v5568 = vadd.f32 %v5520, %v5567
        %v5569 = vpop.f32.mrf.mxu0
        %v5570 = vadd.f32 %v5520, %v5569
        %5571 = vmatmul.bf16.gmra.mxu0 %v5538
        %v5572 = vpop.f32.mrf.mxu0
        %v5573 = vadd.f32 %v5520, %v5572
        %v5574 = vpop.f32.mrf.mxu0
        %v5575 = vadd.f32 %v5520, %v5574
        %5576 = vmatmul.bf16.gmra.mxu0 %v5541
        %v5577 = vpop.f32.mrf.mxu0
        %v5578 = vadd.f32 %v5520, %v5577
        %v5579 = vpop.f32.mrf.mxu0
        %v5580 = vadd.f32 %v5520, %v5579
        %5581 = vmatmul.bf16.gmra.mxu0 %v5544
        %v5582 = vpop.f32.mrf.mxu0
        %v5583 = vadd.f32 %v5520, %v5582
        %v5584 = vpop.f32.mrf.mxu0
        %v5585 = vadd.f32 %v5520, %v5584
        %5586 = vmatmul.bf16.gmra.mxu0 %v5547
        %v5587 = vpop.f32.mrf.mxu0
        %v5588 = vadd.f32 %v5520, %v5587
        %v5589 = vpop.f32.mrf.mxu0
        %v5590 = vadd.f32 %v5520, %v5589
        %5591 = vmatmul.bf16.gmra.mxu0 %v5550
        %v5592 = vpop.f32.mrf.mxu0
        %v5593 = vadd.f32 %v5520, %v5592
        %v5594 = vpop.f32.mrf.mxu0
        %v5595 = vadd.f32 %v5520, %v5594
        %5596 = vmatmul.bf16.gmra.mxu0 %v5553
        %v5597 = vpop.f32.mrf.mxu0
        %v5598 = vadd.f32 %v5520, %v5597
        %v5599 = vpop.f32.mrf.mxu0
        %v5600 = vadd.f32 %v5520, %v5599
        %5601 = vmatmul.bf16.gmra.mxu0 %v5556
        %v5602 = vpop.f32.mrf.mxu0
        %v5603 = vadd.f32 %v5520, %v5602
        %v5604 = vpop.f32.mrf.mxu0
        %v5605 = vadd.f32 %v5520, %v5604
        %5606 = vdwg.mxu0
        %s5607 = scalar_lea.vmem %s5, 128
        %v5608 = vld [vmem:[%s5607] sm:$0xf]
        %v5609 = vld [vmem:[%s5607 + $0x4] sm:$0xf]
        %v5610 = vld [vmem:[%s5607 + $0x8] sm:$0xf]
        %v5611 = vld [vmem:[%s5607 + $0xc] sm:$0xf]
        %s5612 = scalar_lea.vmem %s6, 8
        %v5613 = vld [vmem:[%s5612] sm:$0x1]
        %v5615 = vperm.slane %v5613, 0
        %v5621 = vunpack.c.l.b16 %v5608
        %v5622 = vunpack.c.l.b16 %v5609
        %v5623 = vunpack.c.l.b16 %v5610
        %v5624 = vunpack.c.l.b16 %v5611
        %v5625 = vpack.c.b16 %v5622, %v5621
        %v5626 = vpack.c.b16 %v5624, %v5623
        %5629 = vmatpush.bf16.msra.mxu0 0
        %5630 = vmatpush.bf16.msra.mxu0 0
        %5631 = vmatpush.bf16.msra.mxu0 0
        %5632 = vmatpush.bf16.msra.mxu0 0
        %5633 = vmatpush.bf16.msra.mxu0 0
        %5634 = vmatpush.bf16.msra.mxu0 0
        %5635 = vmatpush.bf16.msra.mxu0 %v5626
        %5636 = vmatpush.bf16.msra.mxu0 %v5625
        %5637 = vmatmul.bf16.gmra.mxu0 %v5535
        %v5638 = vpop.f32.mrf.mxu0
        %v5639 = vadd.f32 %v5615, %v5638
        %v5640 = vpop.f32.mrf.mxu0
        %v5641 = vadd.f32 %v5615, %v5640
        %5642 = vmatmul.bf16.gmra.mxu0 %v5538
        %v5643 = vpop.f32.mrf.mxu0
        %v5644 = vadd.f32 %v5615, %v5643
        %v5645 = vpop.f32.mrf.mxu0
        %v5646 = vadd.f32 %v5615, %v5645
        %5647 = vmatmul.bf16.gmra.mxu0 %v5541
        %v5648 = vpop.f32.mrf.mxu0
        %v5649 = vadd.f32 %v5615, %v5648
        %v5650 = vpop.f32.mrf.mxu0
        %v5651 = vadd.f32 %v5615, %v5650
        %5652 = vmatmul.bf16.gmra.mxu0 %v5544
        %v5653 = vpop.f32.mrf.mxu0
        %v5654 = vadd.f32 %v5615, %v5653
        %v5655 = vpop.f32.mrf.mxu0
        %v5656 = vadd.f32 %v5615, %v5655
        %5657 = vmatmul.bf16.gmra.mxu0 %v5547
        %v5658 = vpop.f32.mrf.mxu0
        %v5659 = vadd.f32 %v5615, %v5658
        %v5660 = vpop.f32.mrf.mxu0
        %v5661 = vadd.f32 %v5615, %v5660
        %5662 = vmatmul.bf16.gmra.mxu0 %v5550
        %v5663 = vpop.f32.mrf.mxu0
        %v5664 = vadd.f32 %v5615, %v5663
        %v5665 = vpop.f32.mrf.mxu0
        %v5666 = vadd.f32 %v5615, %v5665
        %5667 = vmatmul.bf16.gmra.mxu0 %v5553
        %v5668 = vpop.f32.mrf.mxu0
        %v5669 = vadd.f32 %v5615, %v5668
        %v5670 = vpop.f32.mrf.mxu0
        %v5671 = vadd.f32 %v5615, %v5670
        %5672 = vmatmul.bf16.gmra.mxu0 %v5556
        %v5673 = vpop.f32.mrf.mxu0
        %v5674 = vadd.f32 %v5615, %v5673
        %v5675 = vpop.f32.mrf.mxu0
        %v5676 = vadd.f32 %v5615, %v5675
        %5677 = vdwg.mxu0
        %s5678 = scalar_lea.vmem %s5, 160
        %v5679 = vld [vmem:[%s5678] sm:$0xf]
        %v5680 = vld [vmem:[%s5678 + $0x4] sm:$0xf]
        %v5681 = vld [vmem:[%s5678 + $0x8] sm:$0xf]
        %v5682 = vld [vmem:[%s5678 + $0xc] sm:$0xf]
        %s5683 = scalar_lea.vmem %s6, 10
        %v5684 = vld [vmem:[%s5683] sm:$0x1]
        %v5686 = vperm.slane %v5684, 0
        %v5692 = vunpack.c.l.b16 %v5679
        %v5693 = vunpack.c.l.b16 %v5680
        %v5694 = vunpack.c.l.b16 %v5681
        %v5695 = vunpack.c.l.b16 %v5682
        %v5696 = vpack.c.b16 %v5693, %v5692
        %v5697 = vpack.c.b16 %v5695, %v5694
        %5700 = vmatpush.bf16.msra.mxu0 0
        %5701 = vmatpush.bf16.msra.mxu0 0
        %5702 = vmatpush.bf16.msra.mxu0 0
        %5703 = vmatpush.bf16.msra.mxu0 0
        %5704 = vmatpush.bf16.msra.mxu0 0
        %5705 = vmatpush.bf16.msra.mxu0 0
        %5706 = vmatpush.bf16.msra.mxu0 %v5697
        %5707 = vmatpush.bf16.msra.mxu0 %v5696
        %5708 = vmatmul.bf16.gmra.mxu0 %v5535
        %v5709 = vpop.f32.mrf.mxu0
        %v5710 = vadd.f32 %v5686, %v5709
        %v5711 = vpop.f32.mrf.mxu0
        %v5712 = vadd.f32 %v5686, %v5711
        %5713 = vmatmul.bf16.gmra.mxu0 %v5538
        %v5714 = vpop.f32.mrf.mxu0
        %v5715 = vadd.f32 %v5686, %v5714
        %v5716 = vpop.f32.mrf.mxu0
        %v5717 = vadd.f32 %v5686, %v5716
        %5718 = vmatmul.bf16.gmra.mxu0 %v5541
        %v5719 = vpop.f32.mrf.mxu0
        %v5720 = vadd.f32 %v5686, %v5719
        %v5721 = vpop.f32.mrf.mxu0
        %v5722 = vadd.f32 %v5686, %v5721
        %5723 = vmatmul.bf16.gmra.mxu0 %v5544
        %v5724 = vpop.f32.mrf.mxu0
        %v5725 = vadd.f32 %v5686, %v5724
        %v5726 = vpop.f32.mrf.mxu0
        %v5727 = vadd.f32 %v5686, %v5726
        %5728 = vmatmul.bf16.gmra.mxu0 %v5547
        %v5729 = vpop.f32.mrf.mxu0
        %v5730 = vadd.f32 %v5686, %v5729
        %v5731 = vpop.f32.mrf.mxu0
        %v5732 = vadd.f32 %v5686, %v5731
        %5733 = vmatmul.bf16.gmra.mxu0 %v5550
        %v5734 = vpop.f32.mrf.mxu0
        %v5735 = vadd.f32 %v5686, %v5734
        %v5736 = vpop.f32.mrf.mxu0
        %v5737 = vadd.f32 %v5686, %v5736
        %5738 = vmatmul.bf16.gmra.mxu0 %v5553
        %v5739 = vpop.f32.mrf.mxu0
        %v5740 = vadd.f32 %v5686, %v5739
        %v5741 = vpop.f32.mrf.mxu0
        %v5742 = vadd.f32 %v5686, %v5741
        %5743 = vmatmul.bf16.gmra.mxu0 %v5556
        %v5744 = vpop.f32.mrf.mxu0
        %v5745 = vadd.f32 %v5686, %v5744
        %v5746 = vpop.f32.mrf.mxu0
        %v5747 = vadd.f32 %v5686, %v5746
        %5748 = vdwg.mxu0
        %v5750 = vsel %vm1529, %v5568, 0
        %v5753 = vsel %vm1529, %v5639, 0
        %5755 = vmatpush.xpose.msra.mxu0 0.0
        %5756 = vmatpush.xpose.msra.mxu0 0.0
        %5757 = vmatpush.xpose.msra.mxu0 0.0
        %5758 = vmatpush.xpose.msra.mxu0 0.0
        %5759 = vmatpush.xpose.msra.mxu0 0.0
        %5760 = vmatpush.xpose.msra.mxu0 0.0
        %5761 = vmatpush.xpose.msra.mxu0 0.0
        %5762 = vmatpush.xpose.msra.mxu0 0.0
        %5763 = vmatpush.xpose.msra.mxu0 0.0
        %5764 = vmatpush.xpose.msra.mxu0 0.0
        %5765 = vmatpush.xpose.msra.mxu0 0.0
        %5766 = vmatpush.xpose.msra.mxu0 0.0
        %5767 = vmatpush.xpose.msra.mxu0 0.0
        %5768 = vmatpush.xpose.msra.mxu0 0.0
        %5769 = vmatpush.xpose.msra.mxu0 0.0
        %5770 = vmatpush.xpose.msra.mxu0 %v5753
        %5771 = vmatmul.f32.gmra.mxu0 %v5750
        %v5772 = vpop.f32.mrf.mxu0
        %v5773 = vadd.f32 0.0, %v5772
        %5774 = vdwg.mxu0
        %v5776 = vsel %vm1529, %v5570, 0
        %v5779 = vsel %vm1529, %v5641, 0
        %5781 = vmatpush.xpose.msra.mxu0 0.0
        %5782 = vmatpush.xpose.msra.mxu0 0.0
        %5783 = vmatpush.xpose.msra.mxu0 0.0
        %5784 = vmatpush.xpose.msra.mxu0 0.0
        %5785 = vmatpush.xpose.msra.mxu0 0.0
        %5786 = vmatpush.xpose.msra.mxu0 0.0
        %5787 = vmatpush.xpose.msra.mxu0 0.0
        %5788 = vmatpush.xpose.msra.mxu0 0.0
        %5789 = vmatpush.xpose.msra.mxu0 0.0
        %5790 = vmatpush.xpose.msra.mxu0 0.0
        %5791 = vmatpush.xpose.msra.mxu0 0.0
        %5792 = vmatpush.xpose.msra.mxu0 0.0
        %5793 = vmatpush.xpose.msra.mxu0 0.0
        %5794 = vmatpush.xpose.msra.mxu0 0.0
        %5795 = vmatpush.xpose.msra.mxu0 0.0
        %5796 = vmatpush.xpose.msra.mxu0 %v5779
        %5797 = vmatmul.f32.gmra.mxu0 %v5776
        %v5798 = vpop.f32.mrf.mxu0
        %v5799 = vadd.f32 0.0, %v5798
        %5800 = vdwg.mxu0
        %v5802 = vsel %vm1529, %v5573, 0
        %v5805 = vsel %vm1529, %v5644, 0
        %5807 = vmatpush.xpose.msra.mxu0 0.0
        %5808 = vmatpush.xpose.msra.mxu0 0.0
        %5809 = vmatpush.xpose.msra.mxu0 0.0
        %5810 = vmatpush.xpose.msra.mxu0 0.0
        %5811 = vmatpush.xpose.msra.mxu0 0.0
        %5812 = vmatpush.xpose.msra.mxu0 0.0
        %5813 = vmatpush.xpose.msra.mxu0 0.0
        %5814 = vmatpush.xpose.msra.mxu0 0.0
        %5815 = vmatpush.xpose.msra.mxu0 0.0
        %5816 = vmatpush.xpose.msra.mxu0 0.0
        %5817 = vmatpush.xpose.msra.mxu0 0.0
        %5818 = vmatpush.xpose.msra.mxu0 0.0
        %5819 = vmatpush.xpose.msra.mxu0 0.0
        %5820 = vmatpush.xpose.msra.mxu0 0.0
        %5821 = vmatpush.xpose.msra.mxu0 0.0
        %5822 = vmatpush.xpose.msra.mxu0 %v5805
        %5823 = vmatmul.f32.gmra.mxu0 %v5802
        %v5824 = vpop.f32.mrf.mxu0
        %v5825 = vadd.f32 0.0, %v5824
        %5826 = vdwg.mxu0
        %v5828 = vsel %vm1529, %v5575, 0
        %v5831 = vsel %vm1529, %v5646, 0
        %5833 = vmatpush.xpose.msra.mxu0 0.0
        %5834 = vmatpush.xpose.msra.mxu0 0.0
        %5835 = vmatpush.xpose.msra.mxu0 0.0
        %5836 = vmatpush.xpose.msra.mxu0 0.0
        %5837 = vmatpush.xpose.msra.mxu0 0.0
        %5838 = vmatpush.xpose.msra.mxu0 0.0
        %5839 = vmatpush.xpose.msra.mxu0 0.0
        %5840 = vmatpush.xpose.msra.mxu0 0.0
        %5841 = vmatpush.xpose.msra.mxu0 0.0
        %5842 = vmatpush.xpose.msra.mxu0 0.0
        %5843 = vmatpush.xpose.msra.mxu0 0.0
        %5844 = vmatpush.xpose.msra.mxu0 0.0
        %5845 = vmatpush.xpose.msra.mxu0 0.0
        %5846 = vmatpush.xpose.msra.mxu0 0.0
        %5847 = vmatpush.xpose.msra.mxu0 0.0
        %5848 = vmatpush.xpose.msra.mxu0 %v5831
        %5849 = vmatmul.f32.gmra.mxu0 %v5828
        %v5850 = vpop.f32.mrf.mxu0
        %v5851 = vadd.f32 0.0, %v5850
        %5852 = vdwg.mxu0
        %v5854 = vsel %vm1529, %v5578, 0
        %v5857 = vsel %vm1529, %v5649, 0
        %5859 = vmatpush.xpose.msra.mxu0 0.0
        %5860 = vmatpush.xpose.msra.mxu0 0.0
        %5861 = vmatpush.xpose.msra.mxu0 0.0
        %5862 = vmatpush.xpose.msra.mxu0 0.0
        %5863 = vmatpush.xpose.msra.mxu0 0.0
        %5864 = vmatpush.xpose.msra.mxu0 0.0
        %5865 = vmatpush.xpose.msra.mxu0 0.0
        %5866 = vmatpush.xpose.msra.mxu0 0.0
        %5867 = vmatpush.xpose.msra.mxu0 0.0
        %5868 = vmatpush.xpose.msra.mxu0 0.0
        %5869 = vmatpush.xpose.msra.mxu0 0.0
        %5870 = vmatpush.xpose.msra.mxu0 0.0
        %5871 = vmatpush.xpose.msra.mxu0 0.0
        %5872 = vmatpush.xpose.msra.mxu0 0.0
        %5873 = vmatpush.xpose.msra.mxu0 0.0
        %5874 = vmatpush.xpose.msra.mxu0 %v5857
        %5875 = vmatmul.f32.gmra.mxu0 %v5854
        %v5876 = vpop.f32.mrf.mxu0
        %v5877 = vadd.f32 0.0, %v5876
        %5878 = vdwg.mxu0
        %v5880 = vsel %vm1529, %v5580, 0
        %v5883 = vsel %vm1529, %v5651, 0
        %5885 = vmatpush.xpose.msra.mxu0 0.0
        %5886 = vmatpush.xpose.msra.mxu0 0.0
        %5887 = vmatpush.xpose.msra.mxu0 0.0
        %5888 = vmatpush.xpose.msra.mxu0 0.0
        %5889 = vmatpush.xpose.msra.mxu0 0.0
        %5890 = vmatpush.xpose.msra.mxu0 0.0
        %5891 = vmatpush.xpose.msra.mxu0 0.0
        %5892 = vmatpush.xpose.msra.mxu0 0.0
        %5893 = vmatpush.xpose.msra.mxu0 0.0
        %5894 = vmatpush.xpose.msra.mxu0 0.0
        %5895 = vmatpush.xpose.msra.mxu0 0.0
        %5896 = vmatpush.xpose.msra.mxu0 0.0
        %5897 = vmatpush.xpose.msra.mxu0 0.0
        %5898 = vmatpush.xpose.msra.mxu0 0.0
        %5899 = vmatpush.xpose.msra.mxu0 0.0
        %5900 = vmatpush.xpose.msra.mxu0 %v5883
        %5901 = vmatmul.f32.gmra.mxu0 %v5880
        %v5902 = vpop.f32.mrf.mxu0
        %v5903 = vadd.f32 0.0, %v5902
        %5904 = vdwg.mxu0
        %v5906 = vsel %vm1529, %v5583, 0
        %v5909 = vsel %vm1529, %v5654, 0
        %5911 = vmatpush.xpose.msra.mxu0 0.0
        %5912 = vmatpush.xpose.msra.mxu0 0.0
        %5913 = vmatpush.xpose.msra.mxu0 0.0
        %5914 = vmatpush.xpose.msra.mxu0 0.0
        %5915 = vmatpush.xpose.msra.mxu0 0.0
        %5916 = vmatpush.xpose.msra.mxu0 0.0
        %5917 = vmatpush.xpose.msra.mxu0 0.0
        %5918 = vmatpush.xpose.msra.mxu0 0.0
        %5919 = vmatpush.xpose.msra.mxu0 0.0
        %5920 = vmatpush.xpose.msra.mxu0 0.0
        %5921 = vmatpush.xpose.msra.mxu0 0.0
        %5922 = vmatpush.xpose.msra.mxu0 0.0
        %5923 = vmatpush.xpose.msra.mxu0 0.0
        %5924 = vmatpush.xpose.msra.mxu0 0.0
        %5925 = vmatpush.xpose.msra.mxu0 0.0
        %5926 = vmatpush.xpose.msra.mxu0 %v5909
        %5927 = vmatmul.f32.gmra.mxu0 %v5906
        %v5928 = vpop.f32.mrf.mxu0
        %v5929 = vadd.f32 0.0, %v5928
        %5930 = vdwg.mxu0
        %v5932 = vsel %vm1529, %v5585, 0
        %v5935 = vsel %vm1529, %v5656, 0
        %5937 = vmatpush.xpose.msra.mxu0 0.0
        %5938 = vmatpush.xpose.msra.mxu0 0.0
        %5939 = vmatpush.xpose.msra.mxu0 0.0
        %5940 = vmatpush.xpose.msra.mxu0 0.0
        %5941 = vmatpush.xpose.msra.mxu0 0.0
        %5942 = vmatpush.xpose.msra.mxu0 0.0
        %5943 = vmatpush.xpose.msra.mxu0 0.0
        %5944 = vmatpush.xpose.msra.mxu0 0.0
        %5945 = vmatpush.xpose.msra.mxu0 0.0
        %5946 = vmatpush.xpose.msra.mxu0 0.0
        %5947 = vmatpush.xpose.msra.mxu0 0.0
        %5948 = vmatpush.xpose.msra.mxu0 0.0
        %5949 = vmatpush.xpose.msra.mxu0 0.0
        %5950 = vmatpush.xpose.msra.mxu0 0.0
        %5951 = vmatpush.xpose.msra.mxu0 0.0
        %5952 = vmatpush.xpose.msra.mxu0 %v5935
        %5953 = vmatmul.f32.gmra.mxu0 %v5932
        %v5954 = vpop.f32.mrf.mxu0
        %v5955 = vadd.f32 0.0, %v5954
        %5956 = vdwg.mxu0
        %v5958 = vsel %vm1529, %v5588, 0
        %v5961 = vsel %vm1529, %v5659, 0
        %5963 = vmatpush.xpose.msra.mxu0 0.0
        %5964 = vmatpush.xpose.msra.mxu0 0.0
        %5965 = vmatpush.xpose.msra.mxu0 0.0
        %5966 = vmatpush.xpose.msra.mxu0 0.0
        %5967 = vmatpush.xpose.msra.mxu0 0.0
        %5968 = vmatpush.xpose.msra.mxu0 0.0
        %5969 = vmatpush.xpose.msra.mxu0 0.0
        %5970 = vmatpush.xpose.msra.mxu0 0.0
        %5971 = vmatpush.xpose.msra.mxu0 0.0
        %5972 = vmatpush.xpose.msra.mxu0 0.0
        %5973 = vmatpush.xpose.msra.mxu0 0.0
        %5974 = vmatpush.xpose.msra.mxu0 0.0
        %5975 = vmatpush.xpose.msra.mxu0 0.0
        %5976 = vmatpush.xpose.msra.mxu0 0.0
        %5977 = vmatpush.xpose.msra.mxu0 0.0
        %5978 = vmatpush.xpose.msra.mxu0 %v5961
        %5979 = vmatmul.f32.gmra.mxu0 %v5958
        %v5980 = vpop.f32.mrf.mxu0
        %v5981 = vadd.f32 0.0, %v5980
        %5982 = vdwg.mxu0
        %v5984 = vsel %vm1529, %v5590, 0
        %v5987 = vsel %vm1529, %v5661, 0
        %5989 = vmatpush.xpose.msra.mxu0 0.0
        %5990 = vmatpush.xpose.msra.mxu0 0.0
        %5991 = vmatpush.xpose.msra.mxu0 0.0
        %5992 = vmatpush.xpose.msra.mxu0 0.0
        %5993 = vmatpush.xpose.msra.mxu0 0.0
        %5994 = vmatpush.xpose.msra.mxu0 0.0
        %5995 = vmatpush.xpose.msra.mxu0 0.0
        %5996 = vmatpush.xpose.msra.mxu0 0.0
        %5997 = vmatpush.xpose.msra.mxu0 0.0
        %5998 = vmatpush.xpose.msra.mxu0 0.0
        %5999 = vmatpush.xpose.msra.mxu0 0.0
        %6000 = vmatpush.xpose.msra.mxu0 0.0
        %6001 = vmatpush.xpose.msra.mxu0 0.0
        %6002 = vmatpush.xpose.msra.mxu0 0.0
        %6003 = vmatpush.xpose.msra.mxu0 0.0
        %6004 = vmatpush.xpose.msra.mxu0 %v5987
        %6005 = vmatmul.f32.gmra.mxu0 %v5984
        %v6006 = vpop.f32.mrf.mxu0
        %v6007 = vadd.f32 0.0, %v6006
        %6008 = vdwg.mxu0
        %v6010 = vsel %vm1529, %v5593, 0
        %v6013 = vsel %vm1529, %v5664, 0
        %6015 = vmatpush.xpose.msra.mxu0 0.0
        %6016 = vmatpush.xpose.msra.mxu0 0.0
        %6017 = vmatpush.xpose.msra.mxu0 0.0
        %6018 = vmatpush.xpose.msra.mxu0 0.0
        %6019 = vmatpush.xpose.msra.mxu0 0.0
        %6020 = vmatpush.xpose.msra.mxu0 0.0
        %6021 = vmatpush.xpose.msra.mxu0 0.0
        %6022 = vmatpush.xpose.msra.mxu0 0.0
        %6023 = vmatpush.xpose.msra.mxu0 0.0
        %6024 = vmatpush.xpose.msra.mxu0 0.0
        %6025 = vmatpush.xpose.msra.mxu0 0.0
        %6026 = vmatpush.xpose.msra.mxu0 0.0
        %6027 = vmatpush.xpose.msra.mxu0 0.0
        %6028 = vmatpush.xpose.msra.mxu0 0.0
        %6029 = vmatpush.xpose.msra.mxu0 0.0
        %6030 = vmatpush.xpose.msra.mxu0 %v6013
        %6031 = vmatmul.f32.gmra.mxu0 %v6010
        %v6032 = vpop.f32.mrf.mxu0
        %v6033 = vadd.f32 0.0, %v6032
        %6034 = vdwg.mxu0
        %v6036 = vsel %vm1529, %v5595, 0
        %v6039 = vsel %vm1529, %v5666, 0
        %6041 = vmatpush.xpose.msra.mxu0 0.0
        %6042 = vmatpush.xpose.msra.mxu0 0.0
        %6043 = vmatpush.xpose.msra.mxu0 0.0
        %6044 = vmatpush.xpose.msra.mxu0 0.0
        %6045 = vmatpush.xpose.msra.mxu0 0.0
        %6046 = vmatpush.xpose.msra.mxu0 0.0
        %6047 = vmatpush.xpose.msra.mxu0 0.0
        %6048 = vmatpush.xpose.msra.mxu0 0.0
        %6049 = vmatpush.xpose.msra.mxu0 0.0
        %6050 = vmatpush.xpose.msra.mxu0 0.0
        %6051 = vmatpush.xpose.msra.mxu0 0.0
        %6052 = vmatpush.xpose.msra.mxu0 0.0
        %6053 = vmatpush.xpose.msra.mxu0 0.0
        %6054 = vmatpush.xpose.msra.mxu0 0.0
        %6055 = vmatpush.xpose.msra.mxu0 0.0
        %6056 = vmatpush.xpose.msra.mxu0 %v6039
        %6057 = vmatmul.f32.gmra.mxu0 %v6036
        %v6058 = vpop.f32.mrf.mxu0
        %v6059 = vadd.f32 0.0, %v6058
        %6060 = vdwg.mxu0
        %v6062 = vsel %vm1529, %v5598, 0
        %v6065 = vsel %vm1529, %v5669, 0
        %6067 = vmatpush.xpose.msra.mxu0 0.0
        %6068 = vmatpush.xpose.msra.mxu0 0.0
        %6069 = vmatpush.xpose.msra.mxu0 0.0
        %6070 = vmatpush.xpose.msra.mxu0 0.0
        %6071 = vmatpush.xpose.msra.mxu0 0.0
        %6072 = vmatpush.xpose.msra.mxu0 0.0
        %6073 = vmatpush.xpose.msra.mxu0 0.0
        %6074 = vmatpush.xpose.msra.mxu0 0.0
        %6075 = vmatpush.xpose.msra.mxu0 0.0
        %6076 = vmatpush.xpose.msra.mxu0 0.0
        %6077 = vmatpush.xpose.msra.mxu0 0.0
        %6078 = vmatpush.xpose.msra.mxu0 0.0
        %6079 = vmatpush.xpose.msra.mxu0 0.0
        %6080 = vmatpush.xpose.msra.mxu0 0.0
        %6081 = vmatpush.xpose.msra.mxu0 0.0
        %6082 = vmatpush.xpose.msra.mxu0 %v6065
        %6083 = vmatmul.f32.gmra.mxu0 %v6062
        %v6084 = vpop.f32.mrf.mxu0
        %v6085 = vadd.f32 0.0, %v6084
        %6086 = vdwg.mxu0
        %v6088 = vsel %vm1529, %v5600, 0
        %v6091 = vsel %vm1529, %v5671, 0
        %6093 = vmatpush.xpose.msra.mxu0 0.0
        %6094 = vmatpush.xpose.msra.mxu0 0.0
        %6095 = vmatpush.xpose.msra.mxu0 0.0
        %6096 = vmatpush.xpose.msra.mxu0 0.0
        %6097 = vmatpush.xpose.msra.mxu0 0.0
        %6098 = vmatpush.xpose.msra.mxu0 0.0
        %6099 = vmatpush.xpose.msra.mxu0 0.0
        %6100 = vmatpush.xpose.msra.mxu0 0.0
        %6101 = vmatpush.xpose.msra.mxu0 0.0
        %6102 = vmatpush.xpose.msra.mxu0 0.0
        %6103 = vmatpush.xpose.msra.mxu0 0.0
        %6104 = vmatpush.xpose.msra.mxu0 0.0
        %6105 = vmatpush.xpose.msra.mxu0 0.0
        %6106 = vmatpush.xpose.msra.mxu0 0.0
        %6107 = vmatpush.xpose.msra.mxu0 0.0
        %6108 = vmatpush.xpose.msra.mxu0 %v6091
        %6109 = vmatmul.f32.gmra.mxu0 %v6088
        %v6110 = vpop.f32.mrf.mxu0
        %v6111 = vadd.f32 0.0, %v6110
        %6112 = vdwg.mxu0
        %v6114 = vsel %vm1529, %v5603, 0
        %v6117 = vsel %vm1529, %v5674, 0
        %6119 = vmatpush.xpose.msra.mxu0 0.0
        %6120 = vmatpush.xpose.msra.mxu0 0.0
        %6121 = vmatpush.xpose.msra.mxu0 0.0
        %6122 = vmatpush.xpose.msra.mxu0 0.0
        %6123 = vmatpush.xpose.msra.mxu0 0.0
        %6124 = vmatpush.xpose.msra.mxu0 0.0
        %6125 = vmatpush.xpose.msra.mxu0 0.0
        %6126 = vmatpush.xpose.msra.mxu0 0.0
        %6127 = vmatpush.xpose.msra.mxu0 0.0
        %6128 = vmatpush.xpose.msra.mxu0 0.0
        %6129 = vmatpush.xpose.msra.mxu0 0.0
        %6130 = vmatpush.xpose.msra.mxu0 0.0
        %6131 = vmatpush.xpose.msra.mxu0 0.0
        %6132 = vmatpush.xpose.msra.mxu0 0.0
        %6133 = vmatpush.xpose.msra.mxu0 0.0
        %6134 = vmatpush.xpose.msra.mxu0 %v6117
        %6135 = vmatmul.f32.gmra.mxu0 %v6114
        %v6136 = vpop.f32.mrf.mxu0
        %v6137 = vadd.f32 0.0, %v6136
        %6138 = vdwg.mxu0
        %v6140 = vsel %vm1529, %v5605, 0
        %v6143 = vsel %vm1529, %v5676, 0
        %6145 = vmatpush.xpose.msra.mxu0 0.0
        %6146 = vmatpush.xpose.msra.mxu0 0.0
        %6147 = vmatpush.xpose.msra.mxu0 0.0
        %6148 = vmatpush.xpose.msra.mxu0 0.0
        %6149 = vmatpush.xpose.msra.mxu0 0.0
        %6150 = vmatpush.xpose.msra.mxu0 0.0
        %6151 = vmatpush.xpose.msra.mxu0 0.0
        %6152 = vmatpush.xpose.msra.mxu0 0.0
        %6153 = vmatpush.xpose.msra.mxu0 0.0
        %6154 = vmatpush.xpose.msra.mxu0 0.0
        %6155 = vmatpush.xpose.msra.mxu0 0.0
        %6156 = vmatpush.xpose.msra.mxu0 0.0
        %6157 = vmatpush.xpose.msra.mxu0 0.0
        %6158 = vmatpush.xpose.msra.mxu0 0.0
        %6159 = vmatpush.xpose.msra.mxu0 0.0
        %6160 = vmatpush.xpose.msra.mxu0 %v6143
        %6161 = vmatmul.f32.gmra.mxu0 %v6140
        %v6162 = vpop.f32.mrf.mxu0
        %v6163 = vadd.f32 0.0, %v6162
        %6164 = vdwg.mxu0
        %v6165 = vmul.f32 %v5773, 0.25
        %v6166 = vmul.f32 %v5799, 0.25
        %v6167 = vmul.f32 %v5825, 0.25
        %v6168 = vmul.f32 %v5851, 0.25
        %v6169 = vmul.f32 %v5877, 0.25
        %v6170 = vmul.f32 %v5903, 0.25
        %v6171 = vmul.f32 %v5929, 0.25
        %v6172 = vmul.f32 %v5955, 0.25
        %v6173 = vmul.f32 %v5981, 0.25
        %v6174 = vmul.f32 %v6007, 0.25
        %v6175 = vmul.f32 %v6033, 0.25
        %v6176 = vmul.f32 %v6059, 0.25
        %v6177 = vmul.f32 %v6085, 0.25
        %v6178 = vmul.f32 %v6111, 0.25
        %v6179 = vmul.f32 %v6137, 0.25
        %v6180 = vmul.f32 %v6163, 0.25
        %v6181 = vadd.f32 %v6165, %v1254
        %v6182 = vadd.f32 %v6166, %v1255
        %v6183 = vadd.f32 %v6167, %v1256
        %v6184 = vadd.f32 %v6168, %v1257
        %v6185 = vadd.f32 %v6169, %v1258
        %v6186 = vadd.f32 %v6170, %v1259
        %v6187 = vadd.f32 %v6171, %v1260
        %v6188 = vadd.f32 %v6172, %v1261
        %v6189 = vadd.f32 %v6173, %v1262
        %v6190 = vadd.f32 %v6174, %v1263
        %v6191 = vadd.f32 %v6175, %v1264
        %v6192 = vadd.f32 %v6176, %v1265
        %v6193 = vadd.f32 %v6177, %v1266
        %v6194 = vadd.f32 %v6178, %v1267
        %v6195 = vadd.f32 %v6179, %v1268
        %v6196 = vadd.f32 %v6180, %v1269
        %v6197 = vsel %vm1978, %v6181, -inf
        %6198 = vmax.xlane.f32.xlu0 %v6197
        %v6199 = vpop.xlane.xlu0 %6198
        %v6200 = vsel %vm1978, %v6182, -inf
        %6201 = vmax.xlane.f32.xlu0 %v6200
        %v6202 = vpop.xlane.xlu0 %6201
        %v6203 = vsel %vm1978, %v6183, -inf
        %6204 = vmax.xlane.f32.xlu0 %v6203
        %v6205 = vpop.xlane.xlu0 %6204
        %v6206 = vsel %vm1978, %v6184, -inf
        %6207 = vmax.xlane.f32.xlu0 %v6206
        %v6208 = vpop.xlane.xlu0 %6207
        %v6209 = vsel %vm1978, %v6185, -inf
        %6210 = vmax.xlane.f32.xlu0 %v6209
        %v6211 = vpop.xlane.xlu0 %6210
        %v6212 = vsel %vm1978, %v6186, -inf
        %6213 = vmax.xlane.f32.xlu0 %v6212
        %v6214 = vpop.xlane.xlu0 %6213
        %v6215 = vsel %vm1978, %v6187, -inf
        %6216 = vmax.xlane.f32.xlu0 %v6215
        %v6217 = vpop.xlane.xlu0 %6216
        %v6218 = vsel %vm1978, %v6188, -inf
        %6219 = vmax.xlane.f32.xlu0 %v6218
        %v6220 = vpop.xlane.xlu0 %6219
        %v6221 = vsel %vm1978, %v6189, -inf
        %6222 = vmax.xlane.f32.xlu0 %v6221
        %v6223 = vpop.xlane.xlu0 %6222
        %v6224 = vsel %vm1978, %v6190, -inf
        %6225 = vmax.xlane.f32.xlu0 %v6224
        %v6226 = vpop.xlane.xlu0 %6225
        %v6227 = vsel %vm1978, %v6191, -inf
        %6228 = vmax.xlane.f32.xlu0 %v6227
        %v6229 = vpop.xlane.xlu0 %6228
        %v6230 = vsel %vm1978, %v6192, -inf
        %6231 = vmax.xlane.f32.xlu0 %v6230
        %v6232 = vpop.xlane.xlu0 %6231
        %v6233 = vsel %vm1978, %v6193, -inf
        %6234 = vmax.xlane.f32.xlu0 %v6233
        %v6235 = vpop.xlane.xlu0 %6234
        %v6236 = vsel %vm1978, %v6194, -inf
        %6237 = vmax.xlane.f32.xlu0 %v6236
        %v6238 = vpop.xlane.xlu0 %6237
        %v6239 = vsel %vm1978, %v6195, -inf
        %6240 = vmax.xlane.f32.xlu0 %v6239
        %v6241 = vpop.xlane.xlu0 %6240
        %v6242 = vsel %vm1978, %v6196, -inf
        %6243 = vmax.xlane.f32.xlu0 %v6242
        %v6244 = vpop.xlane.xlu0 %6243
        %v6245 = vsub.f32 %v6181, %v6199
        %v6246 = vsub.f32 %v6182, %v6202
        %v6247 = vsub.f32 %v6183, %v6205
        %v6248 = vsub.f32 %v6184, %v6208
        %v6249 = vsub.f32 %v6185, %v6211
        %v6250 = vsub.f32 %v6186, %v6214
        %v6251 = vsub.f32 %v6187, %v6217
        %v6252 = vsub.f32 %v6188, %v6220
        %v6253 = vsub.f32 %v6189, %v6223
        %v6254 = vsub.f32 %v6190, %v6226
        %v6255 = vsub.f32 %v6191, %v6229
        %v6256 = vsub.f32 %v6192, %v6232
        %v6257 = vsub.f32 %v6193, %v6235
        %v6258 = vsub.f32 %v6194, %v6238
        %v6259 = vsub.f32 %v6195, %v6241
        %v6260 = vsub.f32 %v6196, %v6244
        %v6261 = vmul.f32 %v6245, 1.442695
        %v6262 = vpow.pop %v6261
        %v6263 = vmul.f32 %v6246, 1.442695
        %v6264 = vpow.pop %v6263
        %v6265 = vmul.f32 %v6247, 1.442695
        %v6266 = vpow.pop %v6265
        %v6267 = vmul.f32 %v6248, 1.442695
        %v6268 = vpow.pop %v6267
        %v6269 = vmul.f32 %v6249, 1.442695
        %v6270 = vpow.pop %v6269
        %v6271 = vmul.f32 %v6250, 1.442695
        %v6272 = vpow.pop %v6271
        %v6273 = vmul.f32 %v6251, 1.442695
        %v6274 = vpow.pop %v6273
        %v6275 = vmul.f32 %v6252, 1.442695
        %v6276 = vpow.pop %v6275
        %v6277 = vmul.f32 %v6253, 1.442695
        %v6278 = vpow.pop %v6277
        %v6279 = vmul.f32 %v6254, 1.442695
        %v6280 = vpow.pop %v6279
        %v6281 = vmul.f32 %v6255, 1.442695
        %v6282 = vpow.pop %v6281
        %v6283 = vmul.f32 %v6256, 1.442695
        %v6284 = vpow.pop %v6283
        %v6285 = vmul.f32 %v6257, 1.442695
        %v6286 = vpow.pop %v6285
        %v6287 = vmul.f32 %v6258, 1.442695
        %v6288 = vpow.pop %v6287
        %v6289 = vmul.f32 %v6259, 1.442695
        %v6290 = vpow.pop %v6289
        %v6291 = vmul.f32 %v6260, 1.442695
        %v6292 = vpow.pop %v6291
        %v6293 = vsel %vm1978, %v6262, 0.0
        %6294 = vadd.xlane.f32.xlu0 %v6293
        %v6295 = vpop.xlane.xlu0 %6294
        %v6296 = vsel %vm1978, %v6264, 0.0
        %6297 = vadd.xlane.f32.xlu0 %v6296
        %v6298 = vpop.xlane.xlu0 %6297
        %v6299 = vsel %vm1978, %v6266, 0.0
        %6300 = vadd.xlane.f32.xlu0 %v6299
        %v6301 = vpop.xlane.xlu0 %6300
        %v6302 = vsel %vm1978, %v6268, 0.0
        %6303 = vadd.xlane.f32.xlu0 %v6302
        %v6304 = vpop.xlane.xlu0 %6303
        %v6305 = vsel %vm1978, %v6270, 0.0
        %6306 = vadd.xlane.f32.xlu0 %v6305
        %v6307 = vpop.xlane.xlu0 %6306
        %v6308 = vsel %vm1978, %v6272, 0.0
        %6309 = vadd.xlane.f32.xlu0 %v6308
        %v6310 = vpop.xlane.xlu0 %6309
        %v6311 = vsel %vm1978, %v6274, 0.0
        %6312 = vadd.xlane.f32.xlu0 %v6311
        %v6313 = vpop.xlane.xlu0 %6312
        %v6314 = vsel %vm1978, %v6276, 0.0
        %6315 = vadd.xlane.f32.xlu0 %v6314
        %v6316 = vpop.xlane.xlu0 %6315
        %v6317 = vsel %vm1978, %v6278, 0.0
        %6318 = vadd.xlane.f32.xlu0 %v6317
        %v6319 = vpop.xlane.xlu0 %6318
        %v6320 = vsel %vm1978, %v6280, 0.0
        %6321 = vadd.xlane.f32.xlu0 %v6320
        %v6322 = vpop.xlane.xlu0 %6321
        %v6323 = vsel %vm1978, %v6282, 0.0
        %6324 = vadd.xlane.f32.xlu0 %v6323
        %v6325 = vpop.xlane.xlu0 %6324
        %v6326 = vsel %vm1978, %v6284, 0.0
        %6327 = vadd.xlane.f32.xlu0 %v6326
        %v6328 = vpop.xlane.xlu0 %6327
        %v6329 = vsel %vm1978, %v6286, 0.0
        %6330 = vadd.xlane.f32.xlu0 %v6329
        %v6331 = vpop.xlane.xlu0 %6330
        %v6332 = vsel %vm1978, %v6288, 0.0
        %6333 = vadd.xlane.f32.xlu0 %v6332
        %v6334 = vpop.xlane.xlu0 %6333
        %v6335 = vsel %vm1978, %v6290, 0.0
        %6336 = vadd.xlane.f32.xlu0 %v6335
        %v6337 = vpop.xlane.xlu0 %6336
        %v6338 = vsel %vm1978, %v6292, 0.0
        %6339 = vadd.xlane.f32.xlu0 %v6338
        %v6340 = vpop.xlane.xlu0 %6339
        %v6341 = vrcp.pop %v6295
        %v6342 = vmul.f32 %v6295, %v6341
        %v6343 = vsub.f32 1.0, %v6342
        %v6344 = vmul.f32 %v6341, %v6343
        %v6345 = vadd.f32 %v6341, %v6344
        %vm6346 = vweird.f32 %v6295
        %vm6347 = vweird.f32 %v6341
        %vm6348 = vmor %vm6346, %vm6347
        %v6349 = vsel %vm6348, %v6341, %v6345
        %v6350 = vand.u32 2147483647, %v6295
        %vm6351 = vcmp.eq.f32.partialorder %v6350, 8.507059e+37
        %v6352 = vand.u32 %v6295, 2147483648
        %v6353 = vor.u32 1.1754944e-38, %v6352
        %v6354 = vsel %vm6351, %v6353, %v6349
        %v6355 = vmul.f32 %v6262, %v6354
        %v6356 = vrcp.pop %v6298
        %v6357 = vmul.f32 %v6298, %v6356
        %v6358 = vsub.f32 1.0, %v6357
        %v6359 = vmul.f32 %v6356, %v6358
        %v6360 = vadd.f32 %v6356, %v6359
        %vm6361 = vweird.f32 %v6298
        %vm6362 = vweird.f32 %v6356
        %vm6363 = vmor %vm6361, %vm6362
        %v6364 = vsel %vm6363, %v6356, %v6360
        %v6365 = vand.u32 2147483647, %v6298
        %vm6366 = vcmp.eq.f32.partialorder %v6365, 8.507059e+37
        %v6367 = vand.u32 %v6298, 2147483648
        %v6368 = vor.u32 1.1754944e-38, %v6367
        %v6369 = vsel %vm6366, %v6368, %v6364
        %v6370 = vmul.f32 %v6264, %v6369
        %v6371 = vrcp.pop %v6301
        %v6372 = vmul.f32 %v6301, %v6371
        %v6373 = vsub.f32 1.0, %v6372
        %v6374 = vmul.f32 %v6371, %v6373
        %v6375 = vadd.f32 %v6371, %v6374
        %vm6376 = vweird.f32 %v6301
        %vm6377 = vweird.f32 %v6371
        %vm6378 = vmor %vm6376, %vm6377
        %v6379 = vsel %vm6378, %v6371, %v6375
        %v6380 = vand.u32 2147483647, %v6301
        %vm6381 = vcmp.eq.f32.partialorder %v6380, 8.507059e+37
        %v6382 = vand.u32 %v6301, 2147483648
        %v6383 = vor.u32 1.1754944e-38, %v6382
        %v6384 = vsel %vm6381, %v6383, %v6379
        %v6385 = vmul.f32 %v6266, %v6384
        %v6386 = vrcp.pop %v6304
        %v6387 = vmul.f32 %v6304, %v6386
        %v6388 = vsub.f32 1.0, %v6387
        %v6389 = vmul.f32 %v6386, %v6388
        %v6390 = vadd.f32 %v6386, %v6389
        %vm6391 = vweird.f32 %v6304
        %vm6392 = vweird.f32 %v6386
        %vm6393 = vmor %vm6391, %vm6392
        %v6394 = vsel %vm6393, %v6386, %v6390
        %v6395 = vand.u32 2147483647, %v6304
        %vm6396 = vcmp.eq.f32.partialorder %v6395, 8.507059e+37
        %v6397 = vand.u32 %v6304, 2147483648
        %v6398 = vor.u32 1.1754944e-38, %v6397
        %v6399 = vsel %vm6396, %v6398, %v6394
        %v6400 = vmul.f32 %v6268, %v6399
        %v6401 = vrcp.pop %v6307
        %v6402 = vmul.f32 %v6307, %v6401
        %v6403 = vsub.f32 1.0, %v6402
        %v6404 = vmul.f32 %v6401, %v6403
        %v6405 = vadd.f32 %v6401, %v6404
        %vm6406 = vweird.f32 %v6307
        %vm6407 = vweird.f32 %v6401
        %vm6408 = vmor %vm6406, %vm6407
        %v6409 = vsel %vm6408, %v6401, %v6405
        %v6410 = vand.u32 2147483647, %v6307
        %vm6411 = vcmp.eq.f32.partialorder %v6410, 8.507059e+37
        %v6412 = vand.u32 %v6307, 2147483648
        %v6413 = vor.u32 1.1754944e-38, %v6412
        %v6414 = vsel %vm6411, %v6413, %v6409
        %v6415 = vmul.f32 %v6270, %v6414
        %v6416 = vrcp.pop %v6310
        %v6417 = vmul.f32 %v6310, %v6416
        %v6418 = vsub.f32 1.0, %v6417
        %v6419 = vmul.f32 %v6416, %v6418
        %v6420 = vadd.f32 %v6416, %v6419
        %vm6421 = vweird.f32 %v6310
        %vm6422 = vweird.f32 %v6416
        %vm6423 = vmor %vm6421, %vm6422
        %v6424 = vsel %vm6423, %v6416, %v6420
        %v6425 = vand.u32 2147483647, %v6310
        %vm6426 = vcmp.eq.f32.partialorder %v6425, 8.507059e+37
        %v6427 = vand.u32 %v6310, 2147483648
        %v6428 = vor.u32 1.1754944e-38, %v6427
        %v6429 = vsel %vm6426, %v6428, %v6424
        %v6430 = vmul.f32 %v6272, %v6429
        %v6431 = vrcp.pop %v6313
        %v6432 = vmul.f32 %v6313, %v6431
        %v6433 = vsub.f32 1.0, %v6432
        %v6434 = vmul.f32 %v6431, %v6433
        %v6435 = vadd.f32 %v6431, %v6434
        %vm6436 = vweird.f32 %v6313
        %vm6437 = vweird.f32 %v6431
        %vm6438 = vmor %vm6436, %vm6437
        %v6439 = vsel %vm6438, %v6431, %v6435
        %v6440 = vand.u32 2147483647, %v6313
        %vm6441 = vcmp.eq.f32.partialorder %v6440, 8.507059e+37
        %v6442 = vand.u32 %v6313, 2147483648
        %v6443 = vor.u32 1.1754944e-38, %v6442
        %v6444 = vsel %vm6441, %v6443, %v6439
        %v6445 = vmul.f32 %v6274, %v6444
        %v6446 = vrcp.pop %v6316
        %v6447 = vmul.f32 %v6316, %v6446
        %v6448 = vsub.f32 1.0, %v6447
        %v6449 = vmul.f32 %v6446, %v6448
        %v6450 = vadd.f32 %v6446, %v6449
        %vm6451 = vweird.f32 %v6316
        %vm6452 = vweird.f32 %v6446
        %vm6453 = vmor %vm6451, %vm6452
        %v6454 = vsel %vm6453, %v6446, %v6450
        %v6455 = vand.u32 2147483647, %v6316
        %vm6456 = vcmp.eq.f32.partialorder %v6455, 8.507059e+37
        %v6457 = vand.u32 %v6316, 2147483648
        %v6458 = vor.u32 1.1754944e-38, %v6457
        %v6459 = vsel %vm6456, %v6458, %v6454
        %v6460 = vmul.f32 %v6276, %v6459
        %v6461 = vrcp.pop %v6319
        %v6462 = vmul.f32 %v6319, %v6461
        %v6463 = vsub.f32 1.0, %v6462
        %v6464 = vmul.f32 %v6461, %v6463
        %v6465 = vadd.f32 %v6461, %v6464
        %vm6466 = vweird.f32 %v6319
        %vm6467 = vweird.f32 %v6461
        %vm6468 = vmor %vm6466, %vm6467
        %v6469 = vsel %vm6468, %v6461, %v6465
        %v6470 = vand.u32 2147483647, %v6319
        %vm6471 = vcmp.eq.f32.partialorder %v6470, 8.507059e+37
        %v6472 = vand.u32 %v6319, 2147483648
        %v6473 = vor.u32 1.1754944e-38, %v6472
        %v6474 = vsel %vm6471, %v6473, %v6469
        %v6475 = vmul.f32 %v6278, %v6474
        %v6476 = vrcp.pop %v6322
        %v6477 = vmul.f32 %v6322, %v6476
        %v6478 = vsub.f32 1.0, %v6477
        %v6479 = vmul.f32 %v6476, %v6478
        %v6480 = vadd.f32 %v6476, %v6479
        %vm6481 = vweird.f32 %v6322
        %vm6482 = vweird.f32 %v6476
        %vm6483 = vmor %vm6481, %vm6482
        %v6484 = vsel %vm6483, %v6476, %v6480
        %v6485 = vand.u32 2147483647, %v6322
        %vm6486 = vcmp.eq.f32.partialorder %v6485, 8.507059e+37
        %v6487 = vand.u32 %v6322, 2147483648
        %v6488 = vor.u32 1.1754944e-38, %v6487
        %v6489 = vsel %vm6486, %v6488, %v6484
        %v6490 = vmul.f32 %v6280, %v6489
        %v6491 = vrcp.pop %v6325
        %v6492 = vmul.f32 %v6325, %v6491
        %v6493 = vsub.f32 1.0, %v6492
        %v6494 = vmul.f32 %v6491, %v6493
        %v6495 = vadd.f32 %v6491, %v6494
        %vm6496 = vweird.f32 %v6325
        %vm6497 = vweird.f32 %v6491
        %vm6498 = vmor %vm6496, %vm6497
        %v6499 = vsel %vm6498, %v6491, %v6495
        %v6500 = vand.u32 2147483647, %v6325
        %vm6501 = vcmp.eq.f32.partialorder %v6500, 8.507059e+37
        %v6502 = vand.u32 %v6325, 2147483648
        %v6503 = vor.u32 1.1754944e-38, %v6502
        %v6504 = vsel %vm6501, %v6503, %v6499
        %v6505 = vmul.f32 %v6282, %v6504
        %v6506 = vrcp.pop %v6328
        %v6507 = vmul.f32 %v6328, %v6506
        %v6508 = vsub.f32 1.0, %v6507
        %v6509 = vmul.f32 %v6506, %v6508
        %v6510 = vadd.f32 %v6506, %v6509
        %vm6511 = vweird.f32 %v6328
        %vm6512 = vweird.f32 %v6506
        %vm6513 = vmor %vm6511, %vm6512
        %v6514 = vsel %vm6513, %v6506, %v6510
        %v6515 = vand.u32 2147483647, %v6328
        %vm6516 = vcmp.eq.f32.partialorder %v6515, 8.507059e+37
        %v6517 = vand.u32 %v6328, 2147483648
        %v6518 = vor.u32 1.1754944e-38, %v6517
        %v6519 = vsel %vm6516, %v6518, %v6514
        %v6520 = vmul.f32 %v6284, %v6519
        %v6521 = vrcp.pop %v6331
        %v6522 = vmul.f32 %v6331, %v6521
        %v6523 = vsub.f32 1.0, %v6522
        %v6524 = vmul.f32 %v6521, %v6523
        %v6525 = vadd.f32 %v6521, %v6524
        %vm6526 = vweird.f32 %v6331
        %vm6527 = vweird.f32 %v6521
        %vm6528 = vmor %vm6526, %vm6527
        %v6529 = vsel %vm6528, %v6521, %v6525
        %v6530 = vand.u32 2147483647, %v6331
        %vm6531 = vcmp.eq.f32.partialorder %v6530, 8.507059e+37
        %v6532 = vand.u32 %v6331, 2147483648
        %v6533 = vor.u32 1.1754944e-38, %v6532
        %v6534 = vsel %vm6531, %v6533, %v6529
        %v6535 = vmul.f32 %v6286, %v6534
        %v6536 = vrcp.pop %v6334
        %v6537 = vmul.f32 %v6334, %v6536
        %v6538 = vsub.f32 1.0, %v6537
        %v6539 = vmul.f32 %v6536, %v6538
        %v6540 = vadd.f32 %v6536, %v6539
        %vm6541 = vweird.f32 %v6334
        %vm6542 = vweird.f32 %v6536
        %vm6543 = vmor %vm6541, %vm6542
        %v6544 = vsel %vm6543, %v6536, %v6540
        %v6545 = vand.u32 2147483647, %v6334
        %vm6546 = vcmp.eq.f32.partialorder %v6545, 8.507059e+37
        %v6547 = vand.u32 %v6334, 2147483648
        %v6548 = vor.u32 1.1754944e-38, %v6547
        %v6549 = vsel %vm6546, %v6548, %v6544
        %v6550 = vmul.f32 %v6288, %v6549
        %v6551 = vrcp.pop %v6337
        %v6552 = vmul.f32 %v6337, %v6551
        %v6553 = vsub.f32 1.0, %v6552
        %v6554 = vmul.f32 %v6551, %v6553
        %v6555 = vadd.f32 %v6551, %v6554
        %vm6556 = vweird.f32 %v6337
        %vm6557 = vweird.f32 %v6551
        %vm6558 = vmor %vm6556, %vm6557
        %v6559 = vsel %vm6558, %v6551, %v6555
        %v6560 = vand.u32 2147483647, %v6337
        %vm6561 = vcmp.eq.f32.partialorder %v6560, 8.507059e+37
        %v6562 = vand.u32 %v6337, 2147483648
        %v6563 = vor.u32 1.1754944e-38, %v6562
        %v6564 = vsel %vm6561, %v6563, %v6559
        %v6565 = vmul.f32 %v6290, %v6564
        %v6566 = vrcp.pop %v6340
        %v6567 = vmul.f32 %v6340, %v6566
        %v6568 = vsub.f32 1.0, %v6567
        %v6569 = vmul.f32 %v6566, %v6568
        %v6570 = vadd.f32 %v6566, %v6569
        %vm6571 = vweird.f32 %v6340
        %vm6572 = vweird.f32 %v6566
        %vm6573 = vmor %vm6571, %vm6572
        %v6574 = vsel %vm6573, %v6566, %v6570
        %v6575 = vand.u32 2147483647, %v6340
        %vm6576 = vcmp.eq.f32.partialorder %v6575, 8.507059e+37
        %v6577 = vand.u32 %v6340, 2147483648
        %v6578 = vor.u32 1.1754944e-38, %v6577
        %v6579 = vsel %vm6576, %v6578, %v6574
        %v6580 = vmul.f32 %v6292, %v6579
        %v6582 = vsel %vm1978, %v6355, 0
        %6584 = vmatpush.msra.mxu0 0.0
        %6585 = vmatpush.msra.mxu0 0.0
        %6586 = vmatpush.msra.mxu0 0.0
        %6587 = vmatpush.msra.mxu0 0.0
        %6588 = vmatpush.msra.mxu0 0.0
        %6589 = vmatpush.msra.mxu0 0.0
        %6590 = vmatpush.msra.mxu0 0.0
        %6591 = vmatpush.msra.mxu0 0.0
        %6592 = vmatpush.msra.mxu0 0.0
        %6593 = vmatpush.msra.mxu0 0.0
        %6594 = vmatpush.msra.mxu0 0.0
        %6595 = vmatpush.msra.mxu0 0.0
        %6596 = vmatpush.msra.mxu0 0.0
        %6597 = vmatpush.msra.mxu0 0.0
        %6598 = vmatpush.msra.mxu0 0.0
        %6599 = vmatpush.msra.mxu0 %v5710
        %6600 = vmatmul.f32.gmra.mxu0 %v6582
        %v6601 = vpop.f32.mrf.mxu0
        %v6602 = vadd.f32 0.0, %v6601
        %6603 = vdwg.mxu0
        %v6605 = vsel %vm1978, %v6370, 0
        %6607 = vmatpush.msra.mxu0 0.0
        %6608 = vmatpush.msra.mxu0 0.0
        %6609 = vmatpush.msra.mxu0 0.0
        %6610 = vmatpush.msra.mxu0 0.0
        %6611 = vmatpush.msra.mxu0 0.0
        %6612 = vmatpush.msra.mxu0 0.0
        %6613 = vmatpush.msra.mxu0 0.0
        %6614 = vmatpush.msra.mxu0 0.0
        %6615 = vmatpush.msra.mxu0 0.0
        %6616 = vmatpush.msra.mxu0 0.0
        %6617 = vmatpush.msra.mxu0 0.0
        %6618 = vmatpush.msra.mxu0 0.0
        %6619 = vmatpush.msra.mxu0 0.0
        %6620 = vmatpush.msra.mxu0 0.0
        %6621 = vmatpush.msra.mxu0 0.0
        %6622 = vmatpush.msra.mxu0 %v5712
        %6623 = vmatmul.f32.gmra.mxu0 %v6605
        %v6624 = vpop.f32.mrf.mxu0
        %v6625 = vadd.f32 0.0, %v6624
        %6626 = vdwg.mxu0
        %v6628 = vsel %vm1978, %v6385, 0
        %6630 = vmatpush.msra.mxu0 0.0
        %6631 = vmatpush.msra.mxu0 0.0
        %6632 = vmatpush.msra.mxu0 0.0
        %6633 = vmatpush.msra.mxu0 0.0
        %6634 = vmatpush.msra.mxu0 0.0
        %6635 = vmatpush.msra.mxu0 0.0
        %6636 = vmatpush.msra.mxu0 0.0
        %6637 = vmatpush.msra.mxu0 0.0
        %6638 = vmatpush.msra.mxu0 0.0
        %6639 = vmatpush.msra.mxu0 0.0
        %6640 = vmatpush.msra.mxu0 0.0
        %6641 = vmatpush.msra.mxu0 0.0
        %6642 = vmatpush.msra.mxu0 0.0
        %6643 = vmatpush.msra.mxu0 0.0
        %6644 = vmatpush.msra.mxu0 0.0
        %6645 = vmatpush.msra.mxu0 %v5715
        %6646 = vmatmul.f32.gmra.mxu0 %v6628
        %v6647 = vpop.f32.mrf.mxu0
        %v6648 = vadd.f32 0.0, %v6647
        %6649 = vdwg.mxu0
        %v6651 = vsel %vm1978, %v6400, 0
        %6653 = vmatpush.msra.mxu0 0.0
        %6654 = vmatpush.msra.mxu0 0.0
        %6655 = vmatpush.msra.mxu0 0.0
        %6656 = vmatpush.msra.mxu0 0.0
        %6657 = vmatpush.msra.mxu0 0.0
        %6658 = vmatpush.msra.mxu0 0.0
        %6659 = vmatpush.msra.mxu0 0.0
        %6660 = vmatpush.msra.mxu0 0.0
        %6661 = vmatpush.msra.mxu0 0.0
        %6662 = vmatpush.msra.mxu0 0.0
        %6663 = vmatpush.msra.mxu0 0.0
        %6664 = vmatpush.msra.mxu0 0.0
        %6665 = vmatpush.msra.mxu0 0.0
        %6666 = vmatpush.msra.mxu0 0.0
        %6667 = vmatpush.msra.mxu0 0.0
        %6668 = vmatpush.msra.mxu0 %v5717
        %6669 = vmatmul.f32.gmra.mxu0 %v6651
        %v6670 = vpop.f32.mrf.mxu0
        %v6671 = vadd.f32 0.0, %v6670
        %6672 = vdwg.mxu0
        %v6674 = vsel %vm1978, %v6415, 0
        %6676 = vmatpush.msra.mxu0 0.0
        %6677 = vmatpush.msra.mxu0 0.0
        %6678 = vmatpush.msra.mxu0 0.0
        %6679 = vmatpush.msra.mxu0 0.0
        %6680 = vmatpush.msra.mxu0 0.0
        %6681 = vmatpush.msra.mxu0 0.0
        %6682 = vmatpush.msra.mxu0 0.0
        %6683 = vmatpush.msra.mxu0 0.0
        %6684 = vmatpush.msra.mxu0 0.0
        %6685 = vmatpush.msra.mxu0 0.0
        %6686 = vmatpush.msra.mxu0 0.0
        %6687 = vmatpush.msra.mxu0 0.0
        %6688 = vmatpush.msra.mxu0 0.0
        %6689 = vmatpush.msra.mxu0 0.0
        %6690 = vmatpush.msra.mxu0 0.0
        %6691 = vmatpush.msra.mxu0 %v5720
        %6692 = vmatmul.f32.gmra.mxu0 %v6674
        %v6693 = vpop.f32.mrf.mxu0
        %v6694 = vadd.f32 0.0, %v6693
        %6695 = vdwg.mxu0
        %v6697 = vsel %vm1978, %v6430, 0
        %6699 = vmatpush.msra.mxu0 0.0
        %6700 = vmatpush.msra.mxu0 0.0
        %6701 = vmatpush.msra.mxu0 0.0
        %6702 = vmatpush.msra.mxu0 0.0
        %6703 = vmatpush.msra.mxu0 0.0
        %6704 = vmatpush.msra.mxu0 0.0
        %6705 = vmatpush.msra.mxu0 0.0
        %6706 = vmatpush.msra.mxu0 0.0
        %6707 = vmatpush.msra.mxu0 0.0
        %6708 = vmatpush.msra.mxu0 0.0
        %6709 = vmatpush.msra.mxu0 0.0
        %6710 = vmatpush.msra.mxu0 0.0
        %6711 = vmatpush.msra.mxu0 0.0
        %6712 = vmatpush.msra.mxu0 0.0
        %6713 = vmatpush.msra.mxu0 0.0
        %6714 = vmatpush.msra.mxu0 %v5722
        %6715 = vmatmul.f32.gmra.mxu0 %v6697
        %v6716 = vpop.f32.mrf.mxu0
        %v6717 = vadd.f32 0.0, %v6716
        %6718 = vdwg.mxu0
        %v6720 = vsel %vm1978, %v6445, 0
        %6722 = vmatpush.msra.mxu0 0.0
        %6723 = vmatpush.msra.mxu0 0.0
        %6724 = vmatpush.msra.mxu0 0.0
        %6725 = vmatpush.msra.mxu0 0.0
        %6726 = vmatpush.msra.mxu0 0.0
        %6727 = vmatpush.msra.mxu0 0.0
        %6728 = vmatpush.msra.mxu0 0.0
        %6729 = vmatpush.msra.mxu0 0.0
        %6730 = vmatpush.msra.mxu0 0.0
        %6731 = vmatpush.msra.mxu0 0.0
        %6732 = vmatpush.msra.mxu0 0.0
        %6733 = vmatpush.msra.mxu0 0.0
        %6734 = vmatpush.msra.mxu0 0.0
        %6735 = vmatpush.msra.mxu0 0.0
        %6736 = vmatpush.msra.mxu0 0.0
        %6737 = vmatpush.msra.mxu0 %v5725
        %6738 = vmatmul.f32.gmra.mxu0 %v6720
        %v6739 = vpop.f32.mrf.mxu0
        %v6740 = vadd.f32 0.0, %v6739
        %6741 = vdwg.mxu0
        %v6743 = vsel %vm1978, %v6460, 0
        %6745 = vmatpush.msra.mxu0 0.0
        %6746 = vmatpush.msra.mxu0 0.0
        %6747 = vmatpush.msra.mxu0 0.0
        %6748 = vmatpush.msra.mxu0 0.0
        %6749 = vmatpush.msra.mxu0 0.0
        %6750 = vmatpush.msra.mxu0 0.0
        %6751 = vmatpush.msra.mxu0 0.0
        %6752 = vmatpush.msra.mxu0 0.0
        %6753 = vmatpush.msra.mxu0 0.0
        %6754 = vmatpush.msra.mxu0 0.0
        %6755 = vmatpush.msra.mxu0 0.0
        %6756 = vmatpush.msra.mxu0 0.0
        %6757 = vmatpush.msra.mxu0 0.0
        %6758 = vmatpush.msra.mxu0 0.0
        %6759 = vmatpush.msra.mxu0 0.0
        %6760 = vmatpush.msra.mxu0 %v5727
        %6761 = vmatmul.f32.gmra.mxu0 %v6743
        %v6762 = vpop.f32.mrf.mxu0
        %v6763 = vadd.f32 0.0, %v6762
        %6764 = vdwg.mxu0
        %v6766 = vsel %vm1978, %v6475, 0
        %6768 = vmatpush.msra.mxu0 0.0
        %6769 = vmatpush.msra.mxu0 0.0
        %6770 = vmatpush.msra.mxu0 0.0
        %6771 = vmatpush.msra.mxu0 0.0
        %6772 = vmatpush.msra.mxu0 0.0
        %6773 = vmatpush.msra.mxu0 0.0
        %6774 = vmatpush.msra.mxu0 0.0
        %6775 = vmatpush.msra.mxu0 0.0
        %6776 = vmatpush.msra.mxu0 0.0
        %6777 = vmatpush.msra.mxu0 0.0
        %6778 = vmatpush.msra.mxu0 0.0
        %6779 = vmatpush.msra.mxu0 0.0
        %6780 = vmatpush.msra.mxu0 0.0
        %6781 = vmatpush.msra.mxu0 0.0
        %6782 = vmatpush.msra.mxu0 0.0
        %6783 = vmatpush.msra.mxu0 %v5730
        %6784 = vmatmul.f32.gmra.mxu0 %v6766
        %v6785 = vpop.f32.mrf.mxu0
        %v6786 = vadd.f32 0.0, %v6785
        %6787 = vdwg.mxu0
        %v6789 = vsel %vm1978, %v6490, 0
        %6791 = vmatpush.msra.mxu0 0.0
        %6792 = vmatpush.msra.mxu0 0.0
        %6793 = vmatpush.msra.mxu0 0.0
        %6794 = vmatpush.msra.mxu0 0.0
        %6795 = vmatpush.msra.mxu0 0.0
        %6796 = vmatpush.msra.mxu0 0.0
        %6797 = vmatpush.msra.mxu0 0.0
        %6798 = vmatpush.msra.mxu0 0.0
        %6799 = vmatpush.msra.mxu0 0.0
        %6800 = vmatpush.msra.mxu0 0.0
        %6801 = vmatpush.msra.mxu0 0.0
        %6802 = vmatpush.msra.mxu0 0.0
        %6803 = vmatpush.msra.mxu0 0.0
        %6804 = vmatpush.msra.mxu0 0.0
        %6805 = vmatpush.msra.mxu0 0.0
        %6806 = vmatpush.msra.mxu0 %v5732
        %6807 = vmatmul.f32.gmra.mxu0 %v6789
        %v6808 = vpop.f32.mrf.mxu0
        %v6809 = vadd.f32 0.0, %v6808
        %6810 = vdwg.mxu0
        %v6812 = vsel %vm1978, %v6505, 0
        %6814 = vmatpush.msra.mxu0 0.0
        %6815 = vmatpush.msra.mxu0 0.0
        %6816 = vmatpush.msra.mxu0 0.0
        %6817 = vmatpush.msra.mxu0 0.0
        %6818 = vmatpush.msra.mxu0 0.0
        %6819 = vmatpush.msra.mxu0 0.0
        %6820 = vmatpush.msra.mxu0 0.0
        %6821 = vmatpush.msra.mxu0 0.0
        %6822 = vmatpush.msra.mxu0 0.0
        %6823 = vmatpush.msra.mxu0 0.0
        %6824 = vmatpush.msra.mxu0 0.0
        %6825 = vmatpush.msra.mxu0 0.0
        %6826 = vmatpush.msra.mxu0 0.0
        %6827 = vmatpush.msra.mxu0 0.0
        %6828 = vmatpush.msra.mxu0 0.0
        %6829 = vmatpush.msra.mxu0 %v5735
        %6830 = vmatmul.f32.gmra.mxu0 %v6812
        %v6831 = vpop.f32.mrf.mxu0
        %v6832 = vadd.f32 0.0, %v6831
        %6833 = vdwg.mxu0
        %v6835 = vsel %vm1978, %v6520, 0
        %6837 = vmatpush.msra.mxu0 0.0
        %6838 = vmatpush.msra.mxu0 0.0
        %6839 = vmatpush.msra.mxu0 0.0
        %6840 = vmatpush.msra.mxu0 0.0
        %6841 = vmatpush.msra.mxu0 0.0
        %6842 = vmatpush.msra.mxu0 0.0
        %6843 = vmatpush.msra.mxu0 0.0
        %6844 = vmatpush.msra.mxu0 0.0
        %6845 = vmatpush.msra.mxu0 0.0
        %6846 = vmatpush.msra.mxu0 0.0
        %6847 = vmatpush.msra.mxu0 0.0
        %6848 = vmatpush.msra.mxu0 0.0
        %6849 = vmatpush.msra.mxu0 0.0
        %6850 = vmatpush.msra.mxu0 0.0
        %6851 = vmatpush.msra.mxu0 0.0
        %6852 = vmatpush.msra.mxu0 %v5737
        %6853 = vmatmul.f32.gmra.mxu0 %v6835
        %v6854 = vpop.f32.mrf.mxu0
        %v6855 = vadd.f32 0.0, %v6854
        %6856 = vdwg.mxu0
        %v6858 = vsel %vm1978, %v6535, 0
        %6860 = vmatpush.msra.mxu0 0.0
        %6861 = vmatpush.msra.mxu0 0.0
        %6862 = vmatpush.msra.mxu0 0.0
        %6863 = vmatpush.msra.mxu0 0.0
        %6864 = vmatpush.msra.mxu0 0.0
        %6865 = vmatpush.msra.mxu0 0.0
        %6866 = vmatpush.msra.mxu0 0.0
        %6867 = vmatpush.msra.mxu0 0.0
        %6868 = vmatpush.msra.mxu0 0.0
        %6869 = vmatpush.msra.mxu0 0.0
        %6870 = vmatpush.msra.mxu0 0.0
        %6871 = vmatpush.msra.mxu0 0.0
        %6872 = vmatpush.msra.mxu0 0.0
        %6873 = vmatpush.msra.mxu0 0.0
        %6874 = vmatpush.msra.mxu0 0.0
        %6875 = vmatpush.msra.mxu0 %v5740
        %6876 = vmatmul.f32.gmra.mxu0 %v6858
        %v6877 = vpop.f32.mrf.mxu0
        %v6878 = vadd.f32 0.0, %v6877
        %6879 = vdwg.mxu0
        %v6881 = vsel %vm1978, %v6550, 0
        %6883 = vmatpush.msra.mxu0 0.0
        %6884 = vmatpush.msra.mxu0 0.0
        %6885 = vmatpush.msra.mxu0 0.0
        %6886 = vmatpush.msra.mxu0 0.0
        %6887 = vmatpush.msra.mxu0 0.0
        %6888 = vmatpush.msra.mxu0 0.0
        %6889 = vmatpush.msra.mxu0 0.0
        %6890 = vmatpush.msra.mxu0 0.0
        %6891 = vmatpush.msra.mxu0 0.0
        %6892 = vmatpush.msra.mxu0 0.0
        %6893 = vmatpush.msra.mxu0 0.0
        %6894 = vmatpush.msra.mxu0 0.0
        %6895 = vmatpush.msra.mxu0 0.0
        %6896 = vmatpush.msra.mxu0 0.0
        %6897 = vmatpush.msra.mxu0 0.0
        %6898 = vmatpush.msra.mxu0 %v5742
        %6899 = vmatmul.f32.gmra.mxu0 %v6881
        %v6900 = vpop.f32.mrf.mxu0
        %v6901 = vadd.f32 0.0, %v6900
        %6902 = vdwg.mxu0
        %v6904 = vsel %vm1978, %v6565, 0
        %6906 = vmatpush.msra.mxu0 0.0
        %6907 = vmatpush.msra.mxu0 0.0
        %6908 = vmatpush.msra.mxu0 0.0
        %6909 = vmatpush.msra.mxu0 0.0
        %6910 = vmatpush.msra.mxu0 0.0
        %6911 = vmatpush.msra.mxu0 0.0
        %6912 = vmatpush.msra.mxu0 0.0
        %6913 = vmatpush.msra.mxu0 0.0
        %6914 = vmatpush.msra.mxu0 0.0
        %6915 = vmatpush.msra.mxu0 0.0
        %6916 = vmatpush.msra.mxu0 0.0
        %6917 = vmatpush.msra.mxu0 0.0
        %6918 = vmatpush.msra.mxu0 0.0
        %6919 = vmatpush.msra.mxu0 0.0
        %6920 = vmatpush.msra.mxu0 0.0
        %6921 = vmatpush.msra.mxu0 %v5745
        %6922 = vmatmul.f32.gmra.mxu0 %v6904
        %v6923 = vpop.f32.mrf.mxu0
        %v6924 = vadd.f32 0.0, %v6923
        %6925 = vdwg.mxu0
        %v6927 = vsel %vm1978, %v6580, 0
        %6929 = vmatpush.msra.mxu0 0.0
        %6930 = vmatpush.msra.mxu0 0.0
        %6931 = vmatpush.msra.mxu0 0.0
        %6932 = vmatpush.msra.mxu0 0.0
        %6933 = vmatpush.msra.mxu0 0.0
        %6934 = vmatpush.msra.mxu0 0.0
        %6935 = vmatpush.msra.mxu0 0.0
        %6936 = vmatpush.msra.mxu0 0.0
        %6937 = vmatpush.msra.mxu0 0.0
        %6938 = vmatpush.msra.mxu0 0.0
        %6939 = vmatpush.msra.mxu0 0.0
        %6940 = vmatpush.msra.mxu0 0.0
        %6941 = vmatpush.msra.mxu0 0.0
        %6942 = vmatpush.msra.mxu0 0.0
        %6943 = vmatpush.msra.mxu0 0.0
        %6944 = vmatpush.msra.mxu0 %v5747
        %6945 = vmatmul.f32.gmra.mxu0 %v6927
        %v6946 = vpop.f32.mrf.mxu0
        %v6947 = vadd.f32 0.0, %v6946
        %6948 = vdwg.mxu0
        %v6949 = vpack.c.bf16 %v6625, %v6602
        %v6950 = vpack.c.bf16 %v6671, %v6648
        %v6951 = vpack.c.bf16 %v6717, %v6694
        %v6952 = vpack.c.bf16 %v6763, %v6740
        %v6953 = vpack.c.bf16 %v6809, %v6786
        %v6954 = vpack.c.bf16 %v6855, %v6832
        %v6955 = vpack.c.bf16 %v6901, %v6878
        %v6956 = vpack.c.bf16 %v6947, %v6924
        %s6957 = scalar_lea.vmem %s7, 16
        %v6958 = vld [vmem:[%s6957] sm:$0xf]
        %v6959 = vld [vmem:[%s6957 + $0x4] sm:$0xf]
        %s6960 = scalar_lea.vmem %s5, 112
        %v6961 = vld [vmem:[%s6960] sm:$0xf]
        %v6962 = vld [vmem:[%s6960 + $0x4] sm:$0xf]
        %v6963 = vld [vmem:[%s6960 + $0x8] sm:$0xf]
        %v6964 = vld [vmem:[%s6960 + $0xc] sm:$0xf]
        %s6965 = scalar_lea.vmem %s6, 7
        %v6966 = vld [vmem:[%s6965] sm:$0x1]
        %v6968 = vperm.slane %v6966, 0
        %v6974 = vunpack.c.l.b16 %v6961
        %v6975 = vunpack.c.l.b16 %v6962
        %v6976 = vunpack.c.l.b16 %v6963
        %v6977 = vunpack.c.l.b16 %v6964
        %v6978 = vpack.c.b16 %v6975, %v6974
        %v6979 = vpack.c.b16 %v6977, %v6976
        %6982 = vmatpush.bf16.msra.mxu0 0
        %6983 = vmatpush.bf16.msra.mxu0 0
        %6984 = vmatpush.bf16.msra.mxu0 0
        %6985 = vmatpush.bf16.msra.mxu0 0
        %6986 = vmatpush.bf16.msra.mxu0 0
        %6987 = vmatpush.bf16.msra.mxu0 0
        %6988 = vmatpush.bf16.msra.mxu0 %v6979
        %6989 = vmatpush.bf16.msra.mxu0 %v6978
        %6990 = vmatmul.bf16.gmra.mxu0 %v5535
        %v6991 = vpop.f32.mrf.mxu0
        %v6992 = vadd.f32 %v6968, %v6991
        %v6993 = vpop.f32.mrf.mxu0
        %v6994 = vadd.f32 %v6968, %v6993
        %6995 = vmatmul.bf16.gmra.mxu0 %v5538
        %v6996 = vpop.f32.mrf.mxu0
        %v6997 = vadd.f32 %v6968, %v6996
        %v6998 = vpop.f32.mrf.mxu0
        %v6999 = vadd.f32 %v6968, %v6998
        %7000 = vmatmul.bf16.gmra.mxu0 %v5541
        %v7001 = vpop.f32.mrf.mxu0
        %v7002 = vadd.f32 %v6968, %v7001
        %v7003 = vpop.f32.mrf.mxu0
        %v7004 = vadd.f32 %v6968, %v7003
        %7005 = vmatmul.bf16.gmra.mxu0 %v5544
        %v7006 = vpop.f32.mrf.mxu0
        %v7007 = vadd.f32 %v6968, %v7006
        %v7008 = vpop.f32.mrf.mxu0
        %v7009 = vadd.f32 %v6968, %v7008
        %7010 = vmatmul.bf16.gmra.mxu0 %v5547
        %v7011 = vpop.f32.mrf.mxu0
        %v7012 = vadd.f32 %v6968, %v7011
        %v7013 = vpop.f32.mrf.mxu0
        %v7014 = vadd.f32 %v6968, %v7013
        %7015 = vmatmul.bf16.gmra.mxu0 %v5550
        %v7016 = vpop.f32.mrf.mxu0
        %v7017 = vadd.f32 %v6968, %v7016
        %v7018 = vpop.f32.mrf.mxu0
        %v7019 = vadd.f32 %v6968, %v7018
        %7020 = vmatmul.bf16.gmra.mxu0 %v5553
        %v7021 = vpop.f32.mrf.mxu0
        %v7022 = vadd.f32 %v6968, %v7021
        %v7023 = vpop.f32.mrf.mxu0
        %v7024 = vadd.f32 %v6968, %v7023
        %7025 = vmatmul.bf16.gmra.mxu0 %v5556
        %v7026 = vpop.f32.mrf.mxu0
        %v7027 = vadd.f32 %v6968, %v7026
        %v7028 = vpop.f32.mrf.mxu0
        %v7029 = vadd.f32 %v6968, %v7028
        %7030 = vdwg.mxu0
        %s7031 = scalar_lea.vmem %s5, 144
        %v7032 = vld [vmem:[%s7031] sm:$0xf]
        %v7033 = vld [vmem:[%s7031 + $0x4] sm:$0xf]
        %v7034 = vld [vmem:[%s7031 + $0x8] sm:$0xf]
        %v7035 = vld [vmem:[%s7031 + $0xc] sm:$0xf]
        %s7036 = scalar_lea.vmem %s6, 9
        %v7037 = vld [vmem:[%s7036] sm:$0x1]
        %v7039 = vperm.slane %v7037, 0
        %v7045 = vunpack.c.l.b16 %v7032
        %v7046 = vunpack.c.l.b16 %v7033
        %v7047 = vunpack.c.l.b16 %v7034
        %v7048 = vunpack.c.l.b16 %v7035
        %v7049 = vpack.c.b16 %v7046, %v7045
        %v7050 = vpack.c.b16 %v7048, %v7047
        %7053 = vmatpush.bf16.msra.mxu0 0
        %7054 = vmatpush.bf16.msra.mxu0 0
        %7055 = vmatpush.bf16.msra.mxu0 0
        %7056 = vmatpush.bf16.msra.mxu0 0
        %7057 = vmatpush.bf16.msra.mxu0 0
        %7058 = vmatpush.bf16.msra.mxu0 0
        %7059 = vmatpush.bf16.msra.mxu0 %v7050
        %7060 = vmatpush.bf16.msra.mxu0 %v7049
        %7061 = vmatmul.bf16.gmra.mxu0 %v5535
        %v7062 = vpop.f32.mrf.mxu0
        %v7063 = vadd.f32 %v7039, %v7062
        %v7064 = vpop.f32.mrf.mxu0
        %v7065 = vadd.f32 %v7039, %v7064
        %7066 = vmatmul.bf16.gmra.mxu0 %v5538
        %v7067 = vpop.f32.mrf.mxu0
        %v7068 = vadd.f32 %v7039, %v7067
        %v7069 = vpop.f32.mrf.mxu0
        %v7070 = vadd.f32 %v7039, %v7069
        %7071 = vmatmul.bf16.gmra.mxu0 %v5541
        %v7072 = vpop.f32.mrf.mxu0
        %v7073 = vadd.f32 %v7039, %v7072
        %v7074 = vpop.f32.mrf.mxu0
        %v7075 = vadd.f32 %v7039, %v7074
        %7076 = vmatmul.bf16.gmra.mxu0 %v5544
        %v7077 = vpop.f32.mrf.mxu0
        %v7078 = vadd.f32 %v7039, %v7077
        %v7079 = vpop.f32.mrf.mxu0
        %v7080 = vadd.f32 %v7039, %v7079
        %7081 = vmatmul.bf16.gmra.mxu0 %v5547
        %v7082 = vpop.f32.mrf.mxu0
        %v7083 = vadd.f32 %v7039, %v7082
        %v7084 = vpop.f32.mrf.mxu0
        %v7085 = vadd.f32 %v7039, %v7084
        %7086 = vmatmul.bf16.gmra.mxu0 %v5550
        %v7087 = vpop.f32.mrf.mxu0
        %v7088 = vadd.f32 %v7039, %v7087
        %v7089 = vpop.f32.mrf.mxu0
        %v7090 = vadd.f32 %v7039, %v7089
        %7091 = vmatmul.bf16.gmra.mxu0 %v5553
        %v7092 = vpop.f32.mrf.mxu0
        %v7093 = vadd.f32 %v7039, %v7092
        %v7094 = vpop.f32.mrf.mxu0
        %v7095 = vadd.f32 %v7039, %v7094
        %7096 = vmatmul.bf16.gmra.mxu0 %v5556
        %v7097 = vpop.f32.mrf.mxu0
        %v7098 = vadd.f32 %v7039, %v7097
        %v7099 = vpop.f32.mrf.mxu0
        %v7100 = vadd.f32 %v7039, %v7099
        %7101 = vdwg.mxu0
        %s7102 = scalar_lea.vmem %s5, 176
        %v7103 = vld [vmem:[%s7102] sm:$0xf]
        %v7104 = vld [vmem:[%s7102 + $0x4] sm:$0xf]
        %v7105 = vld [vmem:[%s7102 + $0x8] sm:$0xf]
        %v7106 = vld [vmem:[%s7102 + $0xc] sm:$0xf]
        %s7107 = scalar_lea.vmem %s6, 11
        %v7108 = vld [vmem:[%s7107] sm:$0x1]
        %v7110 = vperm.slane %v7108, 0
        %v7116 = vunpack.c.l.b16 %v7103
        %v7117 = vunpack.c.l.b16 %v7104
        %v7118 = vunpack.c.l.b16 %v7105
        %v7119 = vunpack.c.l.b16 %v7106
        %v7120 = vpack.c.b16 %v7117, %v7116
        %v7121 = vpack.c.b16 %v7119, %v7118
        %7124 = vmatpush.bf16.msra.mxu0 0
        %7125 = vmatpush.bf16.msra.mxu0 0
        %7126 = vmatpush.bf16.msra.mxu0 0
        %7127 = vmatpush.bf16.msra.mxu0 0
        %7128 = vmatpush.bf16.msra.mxu0 0
        %7129 = vmatpush.bf16.msra.mxu0 0
        %7130 = vmatpush.bf16.msra.mxu0 %v7121
        %7131 = vmatpush.bf16.msra.mxu0 %v7120
        %7132 = vmatmul.bf16.gmra.mxu0 %v5535
        %v7133 = vpop.f32.mrf.mxu0
        %v7134 = vadd.f32 %v7110, %v7133
        %v7135 = vpop.f32.mrf.mxu0
        %v7136 = vadd.f32 %v7110, %v7135
        %7137 = vmatmul.bf16.gmra.mxu0 %v5538
        %v7138 = vpop.f32.mrf.mxu0
        %v7139 = vadd.f32 %v7110, %v7138
        %v7140 = vpop.f32.mrf.mxu0
        %v7141 = vadd.f32 %v7110, %v7140
        %7142 = vmatmul.bf16.gmra.mxu0 %v5541
        %v7143 = vpop.f32.mrf.mxu0
        %v7144 = vadd.f32 %v7110, %v7143
        %v7145 = vpop.f32.mrf.mxu0
        %v7146 = vadd.f32 %v7110, %v7145
        %7147 = vmatmul.bf16.gmra.mxu0 %v5544
        %v7148 = vpop.f32.mrf.mxu0
        %v7149 = vadd.f32 %v7110, %v7148
        %v7150 = vpop.f32.mrf.mxu0
        %v7151 = vadd.f32 %v7110, %v7150
        %7152 = vmatmul.bf16.gmra.mxu0 %v5547
        %v7153 = vpop.f32.mrf.mxu0
        %v7154 = vadd.f32 %v7110, %v7153
        %v7155 = vpop.f32.mrf.mxu0
        %v7156 = vadd.f32 %v7110, %v7155
        %7157 = vmatmul.bf16.gmra.mxu0 %v5550
        %v7158 = vpop.f32.mrf.mxu0
        %v7159 = vadd.f32 %v7110, %v7158
        %v7160 = vpop.f32.mrf.mxu0
        %v7161 = vadd.f32 %v7110, %v7160
        %7162 = vmatmul.bf16.gmra.mxu0 %v5553
        %v7163 = vpop.f32.mrf.mxu0
        %v7164 = vadd.f32 %v7110, %v7163
        %v7165 = vpop.f32.mrf.mxu0
        %v7166 = vadd.f32 %v7110, %v7165
        %7167 = vmatmul.bf16.gmra.mxu0 %v5556
        %v7168 = vpop.f32.mrf.mxu0
        %v7169 = vadd.f32 %v7110, %v7168
        %v7170 = vpop.f32.mrf.mxu0
        %v7171 = vadd.f32 %v7110, %v7170
        %7172 = vdwg.mxu0
        %v7174 = vsel %vm1529, %v6992, 0
        %v7177 = vsel %vm1529, %v7063, 0
        %7179 = vmatpush.xpose.msra.mxu0 0.0
        %7180 = vmatpush.xpose.msra.mxu0 0.0
        %7181 = vmatpush.xpose.msra.mxu0 0.0
        %7182 = vmatpush.xpose.msra.mxu0 0.0
        %7183 = vmatpush.xpose.msra.mxu0 0.0
        %7184 = vmatpush.xpose.msra.mxu0 0.0
        %7185 = vmatpush.xpose.msra.mxu0 0.0
        %7186 = vmatpush.xpose.msra.mxu0 0.0
        %7187 = vmatpush.xpose.msra.mxu0 0.0
        %7188 = vmatpush.xpose.msra.mxu0 0.0
        %7189 = vmatpush.xpose.msra.mxu0 0.0
        %7190 = vmatpush.xpose.msra.mxu0 0.0
        %7191 = vmatpush.xpose.msra.mxu0 0.0
        %7192 = vmatpush.xpose.msra.mxu0 0.0
        %7193 = vmatpush.xpose.msra.mxu0 0.0
        %7194 = vmatpush.xpose.msra.mxu0 %v7177
        %7195 = vmatmul.f32.gmra.mxu0 %v7174
        %v7196 = vpop.f32.mrf.mxu0
        %v7197 = vadd.f32 0.0, %v7196
        %7198 = vdwg.mxu0
        %v7200 = vsel %vm1529, %v6994, 0
        %v7203 = vsel %vm1529, %v7065, 0
        %7205 = vmatpush.xpose.msra.mxu0 0.0
        %7206 = vmatpush.xpose.msra.mxu0 0.0
        %7207 = vmatpush.xpose.msra.mxu0 0.0
        %7208 = vmatpush.xpose.msra.mxu0 0.0
        %7209 = vmatpush.xpose.msra.mxu0 0.0
        %7210 = vmatpush.xpose.msra.mxu0 0.0
        %7211 = vmatpush.xpose.msra.mxu0 0.0
        %7212 = vmatpush.xpose.msra.mxu0 0.0
        %7213 = vmatpush.xpose.msra.mxu0 0.0
        %7214 = vmatpush.xpose.msra.mxu0 0.0
        %7215 = vmatpush.xpose.msra.mxu0 0.0
        %7216 = vmatpush.xpose.msra.mxu0 0.0
        %7217 = vmatpush.xpose.msra.mxu0 0.0
        %7218 = vmatpush.xpose.msra.mxu0 0.0
        %7219 = vmatpush.xpose.msra.mxu0 0.0
        %7220 = vmatpush.xpose.msra.mxu0 %v7203
        %7221 = vmatmul.f32.gmra.mxu0 %v7200
        %v7222 = vpop.f32.mrf.mxu0
        %v7223 = vadd.f32 0.0, %v7222
        %7224 = vdwg.mxu0
        %v7226 = vsel %vm1529, %v6997, 0
        %v7229 = vsel %vm1529, %v7068, 0
        %7231 = vmatpush.xpose.msra.mxu0 0.0
        %7232 = vmatpush.xpose.msra.mxu0 0.0
        %7233 = vmatpush.xpose.msra.mxu0 0.0
        %7234 = vmatpush.xpose.msra.mxu0 0.0
        %7235 = vmatpush.xpose.msra.mxu0 0.0
        %7236 = vmatpush.xpose.msra.mxu0 0.0
        %7237 = vmatpush.xpose.msra.mxu0 0.0
        %7238 = vmatpush.xpose.msra.mxu0 0.0
        %7239 = vmatpush.xpose.msra.mxu0 0.0
        %7240 = vmatpush.xpose.msra.mxu0 0.0
        %7241 = vmatpush.xpose.msra.mxu0 0.0
        %7242 = vmatpush.xpose.msra.mxu0 0.0
        %7243 = vmatpush.xpose.msra.mxu0 0.0
        %7244 = vmatpush.xpose.msra.mxu0 0.0
        %7245 = vmatpush.xpose.msra.mxu0 0.0
        %7246 = vmatpush.xpose.msra.mxu0 %v7229
        %7247 = vmatmul.f32.gmra.mxu0 %v7226
        %v7248 = vpop.f32.mrf.mxu0
        %v7249 = vadd.f32 0.0, %v7248
        %7250 = vdwg.mxu0
        %v7252 = vsel %vm1529, %v6999, 0
        %v7255 = vsel %vm1529, %v7070, 0
        %7257 = vmatpush.xpose.msra.mxu0 0.0
        %7258 = vmatpush.xpose.msra.mxu0 0.0
        %7259 = vmatpush.xpose.msra.mxu0 0.0
        %7260 = vmatpush.xpose.msra.mxu0 0.0
        %7261 = vmatpush.xpose.msra.mxu0 0.0
        %7262 = vmatpush.xpose.msra.mxu0 0.0
        %7263 = vmatpush.xpose.msra.mxu0 0.0
        %7264 = vmatpush.xpose.msra.mxu0 0.0
        %7265 = vmatpush.xpose.msra.mxu0 0.0
        %7266 = vmatpush.xpose.msra.mxu0 0.0
        %7267 = vmatpush.xpose.msra.mxu0 0.0
        %7268 = vmatpush.xpose.msra.mxu0 0.0
        %7269 = vmatpush.xpose.msra.mxu0 0.0
        %7270 = vmatpush.xpose.msra.mxu0 0.0
        %7271 = vmatpush.xpose.msra.mxu0 0.0
        %7272 = vmatpush.xpose.msra.mxu0 %v7255
        %7273 = vmatmul.f32.gmra.mxu0 %v7252
        %v7274 = vpop.f32.mrf.mxu0
        %v7275 = vadd.f32 0.0, %v7274
        %7276 = vdwg.mxu0
        %v7278 = vsel %vm1529, %v7002, 0
        %v7281 = vsel %vm1529, %v7073, 0
        %7283 = vmatpush.xpose.msra.mxu0 0.0
        %7284 = vmatpush.xpose.msra.mxu0 0.0
        %7285 = vmatpush.xpose.msra.mxu0 0.0
        %7286 = vmatpush.xpose.msra.mxu0 0.0
        %7287 = vmatpush.xpose.msra.mxu0 0.0
        %7288 = vmatpush.xpose.msra.mxu0 0.0
        %7289 = vmatpush.xpose.msra.mxu0 0.0
        %7290 = vmatpush.xpose.msra.mxu0 0.0
        %7291 = vmatpush.xpose.msra.mxu0 0.0
        %7292 = vmatpush.xpose.msra.mxu0 0.0
        %7293 = vmatpush.xpose.msra.mxu0 0.0
        %7294 = vmatpush.xpose.msra.mxu0 0.0
        %7295 = vmatpush.xpose.msra.mxu0 0.0
        %7296 = vmatpush.xpose.msra.mxu0 0.0
        %7297 = vmatpush.xpose.msra.mxu0 0.0
        %7298 = vmatpush.xpose.msra.mxu0 %v7281
        %7299 = vmatmul.f32.gmra.mxu0 %v7278
        %v7300 = vpop.f32.mrf.mxu0
        %v7301 = vadd.f32 0.0, %v7300
        %7302 = vdwg.mxu0
        %v7304 = vsel %vm1529, %v7004, 0
        %v7307 = vsel %vm1529, %v7075, 0
        %7309 = vmatpush.xpose.msra.mxu0 0.0
        %7310 = vmatpush.xpose.msra.mxu0 0.0
        %7311 = vmatpush.xpose.msra.mxu0 0.0
        %7312 = vmatpush.xpose.msra.mxu0 0.0
        %7313 = vmatpush.xpose.msra.mxu0 0.0
        %7314 = vmatpush.xpose.msra.mxu0 0.0
        %7315 = vmatpush.xpose.msra.mxu0 0.0
        %7316 = vmatpush.xpose.msra.mxu0 0.0
        %7317 = vmatpush.xpose.msra.mxu0 0.0
        %7318 = vmatpush.xpose.msra.mxu0 0.0
        %7319 = vmatpush.xpose.msra.mxu0 0.0
        %7320 = vmatpush.xpose.msra.mxu0 0.0
        %7321 = vmatpush.xpose.msra.mxu0 0.0
        %7322 = vmatpush.xpose.msra.mxu0 0.0
        %7323 = vmatpush.xpose.msra.mxu0 0.0
        %7324 = vmatpush.xpose.msra.mxu0 %v7307
        %7325 = vmatmul.f32.gmra.mxu0 %v7304
        %v7326 = vpop.f32.mrf.mxu0
        %v7327 = vadd.f32 0.0, %v7326
        %7328 = vdwg.mxu0
        %v7330 = vsel %vm1529, %v7007, 0
        %v7333 = vsel %vm1529, %v7078, 0
        %7335 = vmatpush.xpose.msra.mxu0 0.0
        %7336 = vmatpush.xpose.msra.mxu0 0.0
        %7337 = vmatpush.xpose.msra.mxu0 0.0
        %7338 = vmatpush.xpose.msra.mxu0 0.0
        %7339 = vmatpush.xpose.msra.mxu0 0.0
        %7340 = vmatpush.xpose.msra.mxu0 0.0
        %7341 = vmatpush.xpose.msra.mxu0 0.0
        %7342 = vmatpush.xpose.msra.mxu0 0.0
        %7343 = vmatpush.xpose.msra.mxu0 0.0
        %7344 = vmatpush.xpose.msra.mxu0 0.0
        %7345 = vmatpush.xpose.msra.mxu0 0.0
        %7346 = vmatpush.xpose.msra.mxu0 0.0
        %7347 = vmatpush.xpose.msra.mxu0 0.0
        %7348 = vmatpush.xpose.msra.mxu0 0.0
        %7349 = vmatpush.xpose.msra.mxu0 0.0
        %7350 = vmatpush.xpose.msra.mxu0 %v7333
        %7351 = vmatmul.f32.gmra.mxu0 %v7330
        %v7352 = vpop.f32.mrf.mxu0
        %v7353 = vadd.f32 0.0, %v7352
        %7354 = vdwg.mxu0
        %v7356 = vsel %vm1529, %v7009, 0
        %v7359 = vsel %vm1529, %v7080, 0
        %7361 = vmatpush.xpose.msra.mxu0 0.0
        %7362 = vmatpush.xpose.msra.mxu0 0.0
        %7363 = vmatpush.xpose.msra.mxu0 0.0
        %7364 = vmatpush.xpose.msra.mxu0 0.0
        %7365 = vmatpush.xpose.msra.mxu0 0.0
        %7366 = vmatpush.xpose.msra.mxu0 0.0
        %7367 = vmatpush.xpose.msra.mxu0 0.0
        %7368 = vmatpush.xpose.msra.mxu0 0.0
        %7369 = vmatpush.xpose.msra.mxu0 0.0
        %7370 = vmatpush.xpose.msra.mxu0 0.0
        %7371 = vmatpush.xpose.msra.mxu0 0.0
        %7372 = vmatpush.xpose.msra.mxu0 0.0
        %7373 = vmatpush.xpose.msra.mxu0 0.0
        %7374 = vmatpush.xpose.msra.mxu0 0.0
        %7375 = vmatpush.xpose.msra.mxu0 0.0
        %7376 = vmatpush.xpose.msra.mxu0 %v7359
        %7377 = vmatmul.f32.gmra.mxu0 %v7356
        %v7378 = vpop.f32.mrf.mxu0
        %v7379 = vadd.f32 0.0, %v7378
        %7380 = vdwg.mxu0
        %v7382 = vsel %vm1529, %v7012, 0
        %v7385 = vsel %vm1529, %v7083, 0
        %7387 = vmatpush.xpose.msra.mxu0 0.0
        %7388 = vmatpush.xpose.msra.mxu0 0.0
        %7389 = vmatpush.xpose.msra.mxu0 0.0
        %7390 = vmatpush.xpose.msra.mxu0 0.0
        %7391 = vmatpush.xpose.msra.mxu0 0.0
        %7392 = vmatpush.xpose.msra.mxu0 0.0
        %7393 = vmatpush.xpose.msra.mxu0 0.0
        %7394 = vmatpush.xpose.msra.mxu0 0.0
        %7395 = vmatpush.xpose.msra.mxu0 0.0
        %7396 = vmatpush.xpose.msra.mxu0 0.0
        %7397 = vmatpush.xpose.msra.mxu0 0.0
        %7398 = vmatpush.xpose.msra.mxu0 0.0
        %7399 = vmatpush.xpose.msra.mxu0 0.0
        %7400 = vmatpush.xpose.msra.mxu0 0.0
        %7401 = vmatpush.xpose.msra.mxu0 0.0
        %7402 = vmatpush.xpose.msra.mxu0 %v7385
        %7403 = vmatmul.f32.gmra.mxu0 %v7382
        %v7404 = vpop.f32.mrf.mxu0
        %v7405 = vadd.f32 0.0, %v7404
        %7406 = vdwg.mxu0
        %v7408 = vsel %vm1529, %v7014, 0
        %v7411 = vsel %vm1529, %v7085, 0
        %7413 = vmatpush.xpose.msra.mxu0 0.0
        %7414 = vmatpush.xpose.msra.mxu0 0.0
        %7415 = vmatpush.xpose.msra.mxu0 0.0
        %7416 = vmatpush.xpose.msra.mxu0 0.0
        %7417 = vmatpush.xpose.msra.mxu0 0.0
        %7418 = vmatpush.xpose.msra.mxu0 0.0
        %7419 = vmatpush.xpose.msra.mxu0 0.0
        %7420 = vmatpush.xpose.msra.mxu0 0.0
        %7421 = vmatpush.xpose.msra.mxu0 0.0
        %7422 = vmatpush.xpose.msra.mxu0 0.0
        %7423 = vmatpush.xpose.msra.mxu0 0.0
        %7424 = vmatpush.xpose.msra.mxu0 0.0
        %7425 = vmatpush.xpose.msra.mxu0 0.0
        %7426 = vmatpush.xpose.msra.mxu0 0.0
        %7427 = vmatpush.xpose.msra.mxu0 0.0
        %7428 = vmatpush.xpose.msra.mxu0 %v7411
        %7429 = vmatmul.f32.gmra.mxu0 %v7408
        %v7430 = vpop.f32.mrf.mxu0
        %v7431 = vadd.f32 0.0, %v7430
        %7432 = vdwg.mxu0
        %v7434 = vsel %vm1529, %v7017, 0
        %v7437 = vsel %vm1529, %v7088, 0
        %7439 = vmatpush.xpose.msra.mxu0 0.0
        %7440 = vmatpush.xpose.msra.mxu0 0.0
        %7441 = vmatpush.xpose.msra.mxu0 0.0
        %7442 = vmatpush.xpose.msra.mxu0 0.0
        %7443 = vmatpush.xpose.msra.mxu0 0.0
        %7444 = vmatpush.xpose.msra.mxu0 0.0
        %7445 = vmatpush.xpose.msra.mxu0 0.0
        %7446 = vmatpush.xpose.msra.mxu0 0.0
        %7447 = vmatpush.xpose.msra.mxu0 0.0
        %7448 = vmatpush.xpose.msra.mxu0 0.0
        %7449 = vmatpush.xpose.msra.mxu0 0.0
        %7450 = vmatpush.xpose.msra.mxu0 0.0
        %7451 = vmatpush.xpose.msra.mxu0 0.0
        %7452 = vmatpush.xpose.msra.mxu0 0.0
        %7453 = vmatpush.xpose.msra.mxu0 0.0
        %7454 = vmatpush.xpose.msra.mxu0 %v7437
        %7455 = vmatmul.f32.gmra.mxu0 %v7434
        %v7456 = vpop.f32.mrf.mxu0
        %v7457 = vadd.f32 0.0, %v7456
        %7458 = vdwg.mxu0
        %v7460 = vsel %vm1529, %v7019, 0
        %v7463 = vsel %vm1529, %v7090, 0
        %7465 = vmatpush.xpose.msra.mxu0 0.0
        %7466 = vmatpush.xpose.msra.mxu0 0.0
        %7467 = vmatpush.xpose.msra.mxu0 0.0
        %7468 = vmatpush.xpose.msra.mxu0 0.0
        %7469 = vmatpush.xpose.msra.mxu0 0.0
        %7470 = vmatpush.xpose.msra.mxu0 0.0
        %7471 = vmatpush.xpose.msra.mxu0 0.0
        %7472 = vmatpush.xpose.msra.mxu0 0.0
        %7473 = vmatpush.xpose.msra.mxu0 0.0
        %7474 = vmatpush.xpose.msra.mxu0 0.0
        %7475 = vmatpush.xpose.msra.mxu0 0.0
        %7476 = vmatpush.xpose.msra.mxu0 0.0
        %7477 = vmatpush.xpose.msra.mxu0 0.0
        %7478 = vmatpush.xpose.msra.mxu0 0.0
        %7479 = vmatpush.xpose.msra.mxu0 0.0
        %7480 = vmatpush.xpose.msra.mxu0 %v7463
        %7481 = vmatmul.f32.gmra.mxu0 %v7460
        %v7482 = vpop.f32.mrf.mxu0
        %v7483 = vadd.f32 0.0, %v7482
        %7484 = vdwg.mxu0
        %v7486 = vsel %vm1529, %v7022, 0
        %v7489 = vsel %vm1529, %v7093, 0
        %7491 = vmatpush.xpose.msra.mxu0 0.0
        %7492 = vmatpush.xpose.msra.mxu0 0.0
        %7493 = vmatpush.xpose.msra.mxu0 0.0
        %7494 = vmatpush.xpose.msra.mxu0 0.0
        %7495 = vmatpush.xpose.msra.mxu0 0.0
        %7496 = vmatpush.xpose.msra.mxu0 0.0
        %7497 = vmatpush.xpose.msra.mxu0 0.0
        %7498 = vmatpush.xpose.msra.mxu0 0.0
        %7499 = vmatpush.xpose.msra.mxu0 0.0
        %7500 = vmatpush.xpose.msra.mxu0 0.0
        %7501 = vmatpush.xpose.msra.mxu0 0.0
        %7502 = vmatpush.xpose.msra.mxu0 0.0
        %7503 = vmatpush.xpose.msra.mxu0 0.0
        %7504 = vmatpush.xpose.msra.mxu0 0.0
        %7505 = vmatpush.xpose.msra.mxu0 0.0
        %7506 = vmatpush.xpose.msra.mxu0 %v7489
        %7507 = vmatmul.f32.gmra.mxu0 %v7486
        %v7508 = vpop.f32.mrf.mxu0
        %v7509 = vadd.f32 0.0, %v7508
        %7510 = vdwg.mxu0
        %v7512 = vsel %vm1529, %v7024, 0
        %v7515 = vsel %vm1529, %v7095, 0
        %7517 = vmatpush.xpose.msra.mxu0 0.0
        %7518 = vmatpush.xpose.msra.mxu0 0.0
        %7519 = vmatpush.xpose.msra.mxu0 0.0
        %7520 = vmatpush.xpose.msra.mxu0 0.0
        %7521 = vmatpush.xpose.msra.mxu0 0.0
        %7522 = vmatpush.xpose.msra.mxu0 0.0
        %7523 = vmatpush.xpose.msra.mxu0 0.0
        %7524 = vmatpush.xpose.msra.mxu0 0.0
        %7525 = vmatpush.xpose.msra.mxu0 0.0
        %7526 = vmatpush.xpose.msra.mxu0 0.0
        %7527 = vmatpush.xpose.msra.mxu0 0.0
        %7528 = vmatpush.xpose.msra.mxu0 0.0
        %7529 = vmatpush.xpose.msra.mxu0 0.0
        %7530 = vmatpush.xpose.msra.mxu0 0.0
        %7531 = vmatpush.xpose.msra.mxu0 0.0
        %7532 = vmatpush.xpose.msra.mxu0 %v7515
        %7533 = vmatmul.f32.gmra.mxu0 %v7512
        %v7534 = vpop.f32.mrf.mxu0
        %v7535 = vadd.f32 0.0, %v7534
        %7536 = vdwg.mxu0
        %v7538 = vsel %vm1529, %v7027, 0
        %v7541 = vsel %vm1529, %v7098, 0
        %7543 = vmatpush.xpose.msra.mxu0 0.0
        %7544 = vmatpush.xpose.msra.mxu0 0.0
        %7545 = vmatpush.xpose.msra.mxu0 0.0
        %7546 = vmatpush.xpose.msra.mxu0 0.0
        %7547 = vmatpush.xpose.msra.mxu0 0.0
        %7548 = vmatpush.xpose.msra.mxu0 0.0
        %7549 = vmatpush.xpose.msra.mxu0 0.0
        %7550 = vmatpush.xpose.msra.mxu0 0.0
        %7551 = vmatpush.xpose.msra.mxu0 0.0
        %7552 = vmatpush.xpose.msra.mxu0 0.0
        %7553 = vmatpush.xpose.msra.mxu0 0.0
        %7554 = vmatpush.xpose.msra.mxu0 0.0
        %7555 = vmatpush.xpose.msra.mxu0 0.0
        %7556 = vmatpush.xpose.msra.mxu0 0.0
        %7557 = vmatpush.xpose.msra.mxu0 0.0
        %7558 = vmatpush.xpose.msra.mxu0 %v7541
        %7559 = vmatmul.f32.gmra.mxu0 %v7538
        %v7560 = vpop.f32.mrf.mxu0
        %v7561 = vadd.f32 0.0, %v7560
        %7562 = vdwg.mxu0
        %v7564 = vsel %vm1529, %v7029, 0
        %v7567 = vsel %vm1529, %v7100, 0
        %7569 = vmatpush.xpose.msra.mxu0 0.0
        %7570 = vmatpush.xpose.msra.mxu0 0.0
        %7571 = vmatpush.xpose.msra.mxu0 0.0
        %7572 = vmatpush.xpose.msra.mxu0 0.0
        %7573 = vmatpush.xpose.msra.mxu0 0.0
        %7574 = vmatpush.xpose.msra.mxu0 0.0
        %7575 = vmatpush.xpose.msra.mxu0 0.0
        %7576 = vmatpush.xpose.msra.mxu0 0.0
        %7577 = vmatpush.xpose.msra.mxu0 0.0
        %7578 = vmatpush.xpose.msra.mxu0 0.0
        %7579 = vmatpush.xpose.msra.mxu0 0.0
        %7580 = vmatpush.xpose.msra.mxu0 0.0
        %7581 = vmatpush.xpose.msra.mxu0 0.0
        %7582 = vmatpush.xpose.msra.mxu0 0.0
        %7583 = vmatpush.xpose.msra.mxu0 0.0
        %7584 = vmatpush.xpose.msra.mxu0 %v7567
        %7585 = vmatmul.f32.gmra.mxu0 %v7564
        %v7586 = vpop.f32.mrf.mxu0
        %v7587 = vadd.f32 0.0, %v7586
        %7588 = vdwg.mxu0
        %v7589 = vmul.f32 %v7197, 0.25
        %v7590 = vmul.f32 %v7223, 0.25
        %v7591 = vmul.f32 %v7249, 0.25
        %v7592 = vmul.f32 %v7275, 0.25
        %v7593 = vmul.f32 %v7301, 0.25
        %v7594 = vmul.f32 %v7327, 0.25
        %v7595 = vmul.f32 %v7353, 0.25
        %v7596 = vmul.f32 %v7379, 0.25
        %v7597 = vmul.f32 %v7405, 0.25
        %v7598 = vmul.f32 %v7431, 0.25
        %v7599 = vmul.f32 %v7457, 0.25
        %v7600 = vmul.f32 %v7483, 0.25
        %v7601 = vmul.f32 %v7509, 0.25
        %v7602 = vmul.f32 %v7535, 0.25
        %v7603 = vmul.f32 %v7561, 0.25
        %v7604 = vmul.f32 %v7587, 0.25
        %v7605 = vadd.f32 %v7589, %v1254
        %v7606 = vadd.f32 %v7590, %v1255
        %v7607 = vadd.f32 %v7591, %v1256
        %v7608 = vadd.f32 %v7592, %v1257
        %v7609 = vadd.f32 %v7593, %v1258
        %v7610 = vadd.f32 %v7594, %v1259
        %v7611 = vadd.f32 %v7595, %v1260
        %v7612 = vadd.f32 %v7596, %v1261
        %v7613 = vadd.f32 %v7597, %v1262
        %v7614 = vadd.f32 %v7598, %v1263
        %v7615 = vadd.f32 %v7599, %v1264
        %v7616 = vadd.f32 %v7600, %v1265
        %v7617 = vadd.f32 %v7601, %v1266
        %v7618 = vadd.f32 %v7602, %v1267
        %v7619 = vadd.f32 %v7603, %v1268
        %v7620 = vadd.f32 %v7604, %v1269
        %v7621 = vsel %vm1978, %v7605, -inf
        %7622 = vmax.xlane.f32.xlu0 %v7621
        %v7623 = vpop.xlane.xlu0 %7622
        %v7624 = vsel %vm1978, %v7606, -inf
        %7625 = vmax.xlane.f32.xlu0 %v7624
        %v7626 = vpop.xlane.xlu0 %7625
        %v7627 = vsel %vm1978, %v7607, -inf
        %7628 = vmax.xlane.f32.xlu0 %v7627
        %v7629 = vpop.xlane.xlu0 %7628
        %v7630 = vsel %vm1978, %v7608, -inf
        %7631 = vmax.xlane.f32.xlu0 %v7630
        %v7632 = vpop.xlane.xlu0 %7631
        %v7633 = vsel %vm1978, %v7609, -inf
        %7634 = vmax.xlane.f32.xlu0 %v7633
        %v7635 = vpop.xlane.xlu0 %7634
        %v7636 = vsel %vm1978, %v7610, -inf
        %7637 = vmax.xlane.f32.xlu0 %v7636
        %v7638 = vpop.xlane.xlu0 %7637
        %v7639 = vsel %vm1978, %v7611, -inf
        %7640 = vmax.xlane.f32.xlu0 %v7639
        %v7641 = vpop.xlane.xlu0 %7640
        %v7642 = vsel %vm1978, %v7612, -inf
        %7643 = vmax.xlane.f32.xlu0 %v7642
        %v7644 = vpop.xlane.xlu0 %7643
        %v7645 = vsel %vm1978, %v7613, -inf
        %7646 = vmax.xlane.f32.xlu0 %v7645
        %v7647 = vpop.xlane.xlu0 %7646
        %v7648 = vsel %vm1978, %v7614, -inf
        %7649 = vmax.xlane.f32.xlu0 %v7648
        %v7650 = vpop.xlane.xlu0 %7649
        %v7651 = vsel %vm1978, %v7615, -inf
        %7652 = vmax.xlane.f32.xlu0 %v7651
        %v7653 = vpop.xlane.xlu0 %7652
        %v7654 = vsel %vm1978, %v7616, -inf
        %7655 = vmax.xlane.f32.xlu0 %v7654
        %v7656 = vpop.xlane.xlu0 %7655
        %v7657 = vsel %vm1978, %v7617, -inf
        %7658 = vmax.xlane.f32.xlu0 %v7657
        %v7659 = vpop.xlane.xlu0 %7658
        %v7660 = vsel %vm1978, %v7618, -inf
        %7661 = vmax.xlane.f32.xlu0 %v7660
        %v7662 = vpop.xlane.xlu0 %7661
        %v7663 = vsel %vm1978, %v7619, -inf
        %7664 = vmax.xlane.f32.xlu0 %v7663
        %v7665 = vpop.xlane.xlu0 %7664
        %v7666 = vsel %vm1978, %v7620, -inf
        %7667 = vmax.xlane.f32.xlu0 %v7666
        %v7668 = vpop.xlane.xlu0 %7667
        %v7669 = vsub.f32 %v7605, %v7623
        %v7670 = vsub.f32 %v7606, %v7626
        %v7671 = vsub.f32 %v7607, %v7629
        %v7672 = vsub.f32 %v7608, %v7632
        %v7673 = vsub.f32 %v7609, %v7635
        %v7674 = vsub.f32 %v7610, %v7638
        %v7675 = vsub.f32 %v7611, %v7641
        %v7676 = vsub.f32 %v7612, %v7644
        %v7677 = vsub.f32 %v7613, %v7647
        %v7678 = vsub.f32 %v7614, %v7650
        %v7679 = vsub.f32 %v7615, %v7653
        %v7680 = vsub.f32 %v7616, %v7656
        %v7681 = vsub.f32 %v7617, %v7659
        %v7682 = vsub.f32 %v7618, %v7662
        %v7683 = vsub.f32 %v7619, %v7665
        %v7684 = vsub.f32 %v7620, %v7668
        %v7685 = vmul.f32 %v7669, 1.442695
        %v7686 = vpow.pop %v7685
        %v7687 = vmul.f32 %v7670, 1.442695
        %v7688 = vpow.pop %v7687
        %v7689 = vmul.f32 %v7671, 1.442695
        %v7690 = vpow.pop %v7689
        %v7691 = vmul.f32 %v7672, 1.442695
        %v7692 = vpow.pop %v7691
        %v7693 = vmul.f32 %v7673, 1.442695
        %v7694 = vpow.pop %v7693
        %v7695 = vmul.f32 %v7674, 1.442695
        %v7696 = vpow.pop %v7695
        %v7697 = vmul.f32 %v7675, 1.442695
        %v7698 = vpow.pop %v7697
        %v7699 = vmul.f32 %v7676, 1.442695
        %v7700 = vpow.pop %v7699
        %v7701 = vmul.f32 %v7677, 1.442695
        %v7702 = vpow.pop %v7701
        %v7703 = vmul.f32 %v7678, 1.442695
        %v7704 = vpow.pop %v7703
        %v7705 = vmul.f32 %v7679, 1.442695
        %v7706 = vpow.pop %v7705
        %v7707 = vmul.f32 %v7680, 1.442695
        %v7708 = vpow.pop %v7707
        %v7709 = vmul.f32 %v7681, 1.442695
        %v7710 = vpow.pop %v7709
        %v7711 = vmul.f32 %v7682, 1.442695
        %v7712 = vpow.pop %v7711
        %v7713 = vmul.f32 %v7683, 1.442695
        %v7714 = vpow.pop %v7713
        %v7715 = vmul.f32 %v7684, 1.442695
        %v7716 = vpow.pop %v7715
        %v7717 = vsel %vm1978, %v7686, 0.0
        %7718 = vadd.xlane.f32.xlu0 %v7717
        %v7719 = vpop.xlane.xlu0 %7718
        %v7720 = vsel %vm1978, %v7688, 0.0
        %7721 = vadd.xlane.f32.xlu0 %v7720
        %v7722 = vpop.xlane.xlu0 %7721
        %v7723 = vsel %vm1978, %v7690, 0.0
        %7724 = vadd.xlane.f32.xlu0 %v7723
        %v7725 = vpop.xlane.xlu0 %7724
        %v7726 = vsel %vm1978, %v7692, 0.0
        %7727 = vadd.xlane.f32.xlu0 %v7726
        %v7728 = vpop.xlane.xlu0 %7727
        %v7729 = vsel %vm1978, %v7694, 0.0
        %7730 = vadd.xlane.f32.xlu0 %v7729
        %v7731 = vpop.xlane.xlu0 %7730
        %v7732 = vsel %vm1978, %v7696, 0.0
        %7733 = vadd.xlane.f32.xlu0 %v7732
        %v7734 = vpop.xlane.xlu0 %7733
        %v7735 = vsel %vm1978, %v7698, 0.0
        %7736 = vadd.xlane.f32.xlu0 %v7735
        %v7737 = vpop.xlane.xlu0 %7736
        %v7738 = vsel %vm1978, %v7700, 0.0
        %7739 = vadd.xlane.f32.xlu0 %v7738
        %v7740 = vpop.xlane.xlu0 %7739
        %v7741 = vsel %vm1978, %v7702, 0.0
        %7742 = vadd.xlane.f32.xlu0 %v7741
        %v7743 = vpop.xlane.xlu0 %7742
        %v7744 = vsel %vm1978, %v7704, 0.0
        %7745 = vadd.xlane.f32.xlu0 %v7744
        %v7746 = vpop.xlane.xlu0 %7745
        %v7747 = vsel %vm1978, %v7706, 0.0
        %7748 = vadd.xlane.f32.xlu0 %v7747
        %v7749 = vpop.xlane.xlu0 %7748
        %v7750 = vsel %vm1978, %v7708, 0.0
        %7751 = vadd.xlane.f32.xlu0 %v7750
        %v7752 = vpop.xlane.xlu0 %7751
        %v7753 = vsel %vm1978, %v7710, 0.0
        %7754 = vadd.xlane.f32.xlu0 %v7753
        %v7755 = vpop.xlane.xlu0 %7754
        %v7756 = vsel %vm1978, %v7712, 0.0
        %7757 = vadd.xlane.f32.xlu0 %v7756
        %v7758 = vpop.xlane.xlu0 %7757
        %v7759 = vsel %vm1978, %v7714, 0.0
        %7760 = vadd.xlane.f32.xlu0 %v7759
        %v7761 = vpop.xlane.xlu0 %7760
        %v7762 = vsel %vm1978, %v7716, 0.0
        %7763 = vadd.xlane.f32.xlu0 %v7762
        %v7764 = vpop.xlane.xlu0 %7763
        %v7765 = vrcp.pop %v7719
        %v7766 = vmul.f32 %v7719, %v7765
        %v7767 = vsub.f32 1.0, %v7766
        %v7768 = vmul.f32 %v7765, %v7767
        %v7769 = vadd.f32 %v7765, %v7768
        %vm7770 = vweird.f32 %v7719
        %vm7771 = vweird.f32 %v7765
        %vm7772 = vmor %vm7770, %vm7771
        %v7773 = vsel %vm7772, %v7765, %v7769
        %v7774 = vand.u32 2147483647, %v7719
        %vm7775 = vcmp.eq.f32.partialorder %v7774, 8.507059e+37
        %v7776 = vand.u32 %v7719, 2147483648
        %v7777 = vor.u32 1.1754944e-38, %v7776
        %v7778 = vsel %vm7775, %v7777, %v7773
        %v7779 = vmul.f32 %v7686, %v7778
        %v7780 = vrcp.pop %v7722
        %v7781 = vmul.f32 %v7722, %v7780
        %v7782 = vsub.f32 1.0, %v7781
        %v7783 = vmul.f32 %v7780, %v7782
        %v7784 = vadd.f32 %v7780, %v7783
        %vm7785 = vweird.f32 %v7722
        %vm7786 = vweird.f32 %v7780
        %vm7787 = vmor %vm7785, %vm7786
        %v7788 = vsel %vm7787, %v7780, %v7784
        %v7789 = vand.u32 2147483647, %v7722
        %vm7790 = vcmp.eq.f32.partialorder %v7789, 8.507059e+37
        %v7791 = vand.u32 %v7722, 2147483648
        %v7792 = vor.u32 1.1754944e-38, %v7791
        %v7793 = vsel %vm7790, %v7792, %v7788
        %v7794 = vmul.f32 %v7688, %v7793
        %v7795 = vrcp.pop %v7725
        %v7796 = vmul.f32 %v7725, %v7795
        %v7797 = vsub.f32 1.0, %v7796
        %v7798 = vmul.f32 %v7795, %v7797
        %v7799 = vadd.f32 %v7795, %v7798
        %vm7800 = vweird.f32 %v7725
        %vm7801 = vweird.f32 %v7795
        %vm7802 = vmor %vm7800, %vm7801
        %v7803 = vsel %vm7802, %v7795, %v7799
        %v7804 = vand.u32 2147483647, %v7725
        %vm7805 = vcmp.eq.f32.partialorder %v7804, 8.507059e+37
        %v7806 = vand.u32 %v7725, 2147483648
        %v7807 = vor.u32 1.1754944e-38, %v7806
        %v7808 = vsel %vm7805, %v7807, %v7803
        %v7809 = vmul.f32 %v7690, %v7808
        %v7810 = vrcp.pop %v7728
        %v7811 = vmul.f32 %v7728, %v7810
        %v7812 = vsub.f32 1.0, %v7811
        %v7813 = vmul.f32 %v7810, %v7812
        %v7814 = vadd.f32 %v7810, %v7813
        %vm7815 = vweird.f32 %v7728
        %vm7816 = vweird.f32 %v7810
        %vm7817 = vmor %vm7815, %vm7816
        %v7818 = vsel %vm7817, %v7810, %v7814
        %v7819 = vand.u32 2147483647, %v7728
        %vm7820 = vcmp.eq.f32.partialorder %v7819, 8.507059e+37
        %v7821 = vand.u32 %v7728, 2147483648
        %v7822 = vor.u32 1.1754944e-38, %v7821
        %v7823 = vsel %vm7820, %v7822, %v7818
        %v7824 = vmul.f32 %v7692, %v7823
        %v7825 = vrcp.pop %v7731
        %v7826 = vmul.f32 %v7731, %v7825
        %v7827 = vsub.f32 1.0, %v7826
        %v7828 = vmul.f32 %v7825, %v7827
        %v7829 = vadd.f32 %v7825, %v7828
        %vm7830 = vweird.f32 %v7731
        %vm7831 = vweird.f32 %v7825
        %vm7832 = vmor %vm7830, %vm7831
        %v7833 = vsel %vm7832, %v7825, %v7829
        %v7834 = vand.u32 2147483647, %v7731
        %vm7835 = vcmp.eq.f32.partialorder %v7834, 8.507059e+37
        %v7836 = vand.u32 %v7731, 2147483648
        %v7837 = vor.u32 1.1754944e-38, %v7836
        %v7838 = vsel %vm7835, %v7837, %v7833
        %v7839 = vmul.f32 %v7694, %v7838
        %v7840 = vrcp.pop %v7734
        %v7841 = vmul.f32 %v7734, %v7840
        %v7842 = vsub.f32 1.0, %v7841
        %v7843 = vmul.f32 %v7840, %v7842
        %v7844 = vadd.f32 %v7840, %v7843
        %vm7845 = vweird.f32 %v7734
        %vm7846 = vweird.f32 %v7840
        %vm7847 = vmor %vm7845, %vm7846
        %v7848 = vsel %vm7847, %v7840, %v7844
        %v7849 = vand.u32 2147483647, %v7734
        %vm7850 = vcmp.eq.f32.partialorder %v7849, 8.507059e+37
        %v7851 = vand.u32 %v7734, 2147483648
        %v7852 = vor.u32 1.1754944e-38, %v7851
        %v7853 = vsel %vm7850, %v7852, %v7848
        %v7854 = vmul.f32 %v7696, %v7853
        %v7855 = vrcp.pop %v7737
        %v7856 = vmul.f32 %v7737, %v7855
        %v7857 = vsub.f32 1.0, %v7856
        %v7858 = vmul.f32 %v7855, %v7857
        %v7859 = vadd.f32 %v7855, %v7858
        %vm7860 = vweird.f32 %v7737
        %vm7861 = vweird.f32 %v7855
        %vm7862 = vmor %vm7860, %vm7861
        %v7863 = vsel %vm7862, %v7855, %v7859
        %v7864 = vand.u32 2147483647, %v7737
        %vm7865 = vcmp.eq.f32.partialorder %v7864, 8.507059e+37
        %v7866 = vand.u32 %v7737, 2147483648
        %v7867 = vor.u32 1.1754944e-38, %v7866
        %v7868 = vsel %vm7865, %v7867, %v7863
        %v7869 = vmul.f32 %v7698, %v7868
        %v7870 = vrcp.pop %v7740
        %v7871 = vmul.f32 %v7740, %v7870
        %v7872 = vsub.f32 1.0, %v7871
        %v7873 = vmul.f32 %v7870, %v7872
        %v7874 = vadd.f32 %v7870, %v7873
        %vm7875 = vweird.f32 %v7740
        %vm7876 = vweird.f32 %v7870
        %vm7877 = vmor %vm7875, %vm7876
        %v7878 = vsel %vm7877, %v7870, %v7874
        %v7879 = vand.u32 2147483647, %v7740
        %vm7880 = vcmp.eq.f32.partialorder %v7879, 8.507059e+37
        %v7881 = vand.u32 %v7740, 2147483648
        %v7882 = vor.u32 1.1754944e-38, %v7881
        %v7883 = vsel %vm7880, %v7882, %v7878
        %v7884 = vmul.f32 %v7700, %v7883
        %v7885 = vrcp.pop %v7743
        %v7886 = vmul.f32 %v7743, %v7885
        %v7887 = vsub.f32 1.0, %v7886
        %v7888 = vmul.f32 %v7885, %v7887
        %v7889 = vadd.f32 %v7885, %v7888
        %vm7890 = vweird.f32 %v7743
        %vm7891 = vweird.f32 %v7885
        %vm7892 = vmor %vm7890, %vm7891
        %v7893 = vsel %vm7892, %v7885, %v7889
        %v7894 = vand.u32 2147483647, %v7743
        %vm7895 = vcmp.eq.f32.partialorder %v7894, 8.507059e+37
        %v7896 = vand.u32 %v7743, 2147483648
        %v7897 = vor.u32 1.1754944e-38, %v7896
        %v7898 = vsel %vm7895, %v7897, %v7893
        %v7899 = vmul.f32 %v7702, %v7898
        %v7900 = vrcp.pop %v7746
        %v7901 = vmul.f32 %v7746, %v7900
        %v7902 = vsub.f32 1.0, %v7901
        %v7903 = vmul.f32 %v7900, %v7902
        %v7904 = vadd.f32 %v7900, %v7903
        %vm7905 = vweird.f32 %v7746
        %vm7906 = vweird.f32 %v7900
        %vm7907 = vmor %vm7905, %vm7906
        %v7908 = vsel %vm7907, %v7900, %v7904
        %v7909 = vand.u32 2147483647, %v7746
        %vm7910 = vcmp.eq.f32.partialorder %v7909, 8.507059e+37
        %v7911 = vand.u32 %v7746, 2147483648
        %v7912 = vor.u32 1.1754944e-38, %v7911
        %v7913 = vsel %vm7910, %v7912, %v7908
        %v7914 = vmul.f32 %v7704, %v7913
        %v7915 = vrcp.pop %v7749
        %v7916 = vmul.f32 %v7749, %v7915
        %v7917 = vsub.f32 1.0, %v7916
        %v7918 = vmul.f32 %v7915, %v7917
        %v7919 = vadd.f32 %v7915, %v7918
        %vm7920 = vweird.f32 %v7749
        %vm7921 = vweird.f32 %v7915
        %vm7922 = vmor %vm7920, %vm7921
        %v7923 = vsel %vm7922, %v7915, %v7919
        %v7924 = vand.u32 2147483647, %v7749
        %vm7925 = vcmp.eq.f32.partialorder %v7924, 8.507059e+37
        %v7926 = vand.u32 %v7749, 2147483648
        %v7927 = vor.u32 1.1754944e-38, %v7926
        %v7928 = vsel %vm7925, %v7927, %v7923
        %v7929 = vmul.f32 %v7706, %v7928
        %v7930 = vrcp.pop %v7752
        %v7931 = vmul.f32 %v7752, %v7930
        %v7932 = vsub.f32 1.0, %v7931
        %v7933 = vmul.f32 %v7930, %v7932
        %v7934 = vadd.f32 %v7930, %v7933
        %vm7935 = vweird.f32 %v7752
        %vm7936 = vweird.f32 %v7930
        %vm7937 = vmor %vm7935, %vm7936
        %v7938 = vsel %vm7937, %v7930, %v7934
        %v7939 = vand.u32 2147483647, %v7752
        %vm7940 = vcmp.eq.f32.partialorder %v7939, 8.507059e+37
        %v7941 = vand.u32 %v7752, 2147483648
        %v7942 = vor.u32 1.1754944e-38, %v7941
        %v7943 = vsel %vm7940, %v7942, %v7938
        %v7944 = vmul.f32 %v7708, %v7943
        %v7945 = vrcp.pop %v7755
        %v7946 = vmul.f32 %v7755, %v7945
        %v7947 = vsub.f32 1.0, %v7946
        %v7948 = vmul.f32 %v7945, %v7947
        %v7949 = vadd.f32 %v7945, %v7948
        %vm7950 = vweird.f32 %v7755
        %vm7951 = vweird.f32 %v7945
        %vm7952 = vmor %vm7950, %vm7951
        %v7953 = vsel %vm7952, %v7945, %v7949
        %v7954 = vand.u32 2147483647, %v7755
        %vm7955 = vcmp.eq.f32.partialorder %v7954, 8.507059e+37
        %v7956 = vand.u32 %v7755, 2147483648
        %v7957 = vor.u32 1.1754944e-38, %v7956
        %v7958 = vsel %vm7955, %v7957, %v7953
        %v7959 = vmul.f32 %v7710, %v7958
        %v7960 = vrcp.pop %v7758
        %v7961 = vmul.f32 %v7758, %v7960
        %v7962 = vsub.f32 1.0, %v7961
        %v7963 = vmul.f32 %v7960, %v7962
        %v7964 = vadd.f32 %v7960, %v7963
        %vm7965 = vweird.f32 %v7758
        %vm7966 = vweird.f32 %v7960
        %vm7967 = vmor %vm7965, %vm7966
        %v7968 = vsel %vm7967, %v7960, %v7964
        %v7969 = vand.u32 2147483647, %v7758
        %vm7970 = vcmp.eq.f32.partialorder %v7969, 8.507059e+37
        %v7971 = vand.u32 %v7758, 2147483648
        %v7972 = vor.u32 1.1754944e-38, %v7971
        %v7973 = vsel %vm7970, %v7972, %v7968
        %v7974 = vmul.f32 %v7712, %v7973
        %v7975 = vrcp.pop %v7761
        %v7976 = vmul.f32 %v7761, %v7975
        %v7977 = vsub.f32 1.0, %v7976
        %v7978 = vmul.f32 %v7975, %v7977
        %v7979 = vadd.f32 %v7975, %v7978
        %vm7980 = vweird.f32 %v7761
        %vm7981 = vweird.f32 %v7975
        %vm7982 = vmor %vm7980, %vm7981
        %v7983 = vsel %vm7982, %v7975, %v7979
        %v7984 = vand.u32 2147483647, %v7761
        %vm7985 = vcmp.eq.f32.partialorder %v7984, 8.507059e+37
        %v7986 = vand.u32 %v7761, 2147483648
        %v7987 = vor.u32 1.1754944e-38, %v7986
        %v7988 = vsel %vm7985, %v7987, %v7983
        %v7989 = vmul.f32 %v7714, %v7988
        %v7990 = vrcp.pop %v7764
        %v7991 = vmul.f32 %v7764, %v7990
        %v7992 = vsub.f32 1.0, %v7991
        %v7993 = vmul.f32 %v7990, %v7992
        %v7994 = vadd.f32 %v7990, %v7993
        %vm7995 = vweird.f32 %v7764
        %vm7996 = vweird.f32 %v7990
        %vm7997 = vmor %vm7995, %vm7996
        %v7998 = vsel %vm7997, %v7990, %v7994
        %v7999 = vand.u32 2147483647, %v7764
        %vm8000 = vcmp.eq.f32.partialorder %v7999, 8.507059e+37
        %v8001 = vand.u32 %v7764, 2147483648
        %v8002 = vor.u32 1.1754944e-38, %v8001
        %v8003 = vsel %vm8000, %v8002, %v7998
        %v8004 = vmul.f32 %v7716, %v8003
        %v8006 = vsel %vm1978, %v7779, 0
        %8008 = vmatpush.msra.mxu0 0.0
        %8009 = vmatpush.msra.mxu0 0.0
        %8010 = vmatpush.msra.mxu0 0.0
        %8011 = vmatpush.msra.mxu0 0.0
        %8012 = vmatpush.msra.mxu0 0.0
        %8013 = vmatpush.msra.mxu0 0.0
        %8014 = vmatpush.msra.mxu0 0.0
        %8015 = vmatpush.msra.mxu0 0.0
        %8016 = vmatpush.msra.mxu0 0.0
        %8017 = vmatpush.msra.mxu0 0.0
        %8018 = vmatpush.msra.mxu0 0.0
        %8019 = vmatpush.msra.mxu0 0.0
        %8020 = vmatpush.msra.mxu0 0.0
        %8021 = vmatpush.msra.mxu0 0.0
        %8022 = vmatpush.msra.mxu0 0.0
        %8023 = vmatpush.msra.mxu0 %v7134
        %8024 = vmatmul.f32.gmra.mxu0 %v8006
        %v8025 = vpop.f32.mrf.mxu0
        %v8026 = vadd.f32 0.0, %v8025
        %8027 = vdwg.mxu0
        %v8029 = vsel %vm1978, %v7794, 0
        %8031 = vmatpush.msra.mxu0 0.0
        %8032 = vmatpush.msra.mxu0 0.0
        %8033 = vmatpush.msra.mxu0 0.0
        %8034 = vmatpush.msra.mxu0 0.0
        %8035 = vmatpush.msra.mxu0 0.0
        %8036 = vmatpush.msra.mxu0 0.0
        %8037 = vmatpush.msra.mxu0 0.0
        %8038 = vmatpush.msra.mxu0 0.0
        %8039 = vmatpush.msra.mxu0 0.0
        %8040 = vmatpush.msra.mxu0 0.0
        %8041 = vmatpush.msra.mxu0 0.0
        %8042 = vmatpush.msra.mxu0 0.0
        %8043 = vmatpush.msra.mxu0 0.0
        %8044 = vmatpush.msra.mxu0 0.0
        %8045 = vmatpush.msra.mxu0 0.0
        %8046 = vmatpush.msra.mxu0 %v7136
        %8047 = vmatmul.f32.gmra.mxu0 %v8029
        %v8048 = vpop.f32.mrf.mxu0
        %v8049 = vadd.f32 0.0, %v8048
        %8050 = vdwg.mxu0
        %v8052 = vsel %vm1978, %v7809, 0
        %8054 = vmatpush.msra.mxu0 0.0
        %8055 = vmatpush.msra.mxu0 0.0
        %8056 = vmatpush.msra.mxu0 0.0
        %8057 = vmatpush.msra.mxu0 0.0
        %8058 = vmatpush.msra.mxu0 0.0
        %8059 = vmatpush.msra.mxu0 0.0
        %8060 = vmatpush.msra.mxu0 0.0
        %8061 = vmatpush.msra.mxu0 0.0
        %8062 = vmatpush.msra.mxu0 0.0
        %8063 = vmatpush.msra.mxu0 0.0
        %8064 = vmatpush.msra.mxu0 0.0
        %8065 = vmatpush.msra.mxu0 0.0
        %8066 = vmatpush.msra.mxu0 0.0
        %8067 = vmatpush.msra.mxu0 0.0
        %8068 = vmatpush.msra.mxu0 0.0
        %8069 = vmatpush.msra.mxu0 %v7139
        %8070 = vmatmul.f32.gmra.mxu0 %v8052
        %v8071 = vpop.f32.mrf.mxu0
        %v8072 = vadd.f32 0.0, %v8071
        %8073 = vdwg.mxu0
        %v8075 = vsel %vm1978, %v7824, 0
        %8077 = vmatpush.msra.mxu0 0.0
        %8078 = vmatpush.msra.mxu0 0.0
        %8079 = vmatpush.msra.mxu0 0.0
        %8080 = vmatpush.msra.mxu0 0.0
        %8081 = vmatpush.msra.mxu0 0.0
        %8082 = vmatpush.msra.mxu0 0.0
        %8083 = vmatpush.msra.mxu0 0.0
        %8084 = vmatpush.msra.mxu0 0.0
        %8085 = vmatpush.msra.mxu0 0.0
        %8086 = vmatpush.msra.mxu0 0.0
        %8087 = vmatpush.msra.mxu0 0.0
        %8088 = vmatpush.msra.mxu0 0.0
        %8089 = vmatpush.msra.mxu0 0.0
        %8090 = vmatpush.msra.mxu0 0.0
        %8091 = vmatpush.msra.mxu0 0.0
        %8092 = vmatpush.msra.mxu0 %v7141
        %8093 = vmatmul.f32.gmra.mxu0 %v8075
        %v8094 = vpop.f32.mrf.mxu0
        %v8095 = vadd.f32 0.0, %v8094
        %8096 = vdwg.mxu0
        %v8098 = vsel %vm1978, %v7839, 0
        %8100 = vmatpush.msra.mxu0 0.0
        %8101 = vmatpush.msra.mxu0 0.0
        %8102 = vmatpush.msra.mxu0 0.0
        %8103 = vmatpush.msra.mxu0 0.0
        %8104 = vmatpush.msra.mxu0 0.0
        %8105 = vmatpush.msra.mxu0 0.0
        %8106 = vmatpush.msra.mxu0 0.0
        %8107 = vmatpush.msra.mxu0 0.0
        %8108 = vmatpush.msra.mxu0 0.0
        %8109 = vmatpush.msra.mxu0 0.0
        %8110 = vmatpush.msra.mxu0 0.0
        %8111 = vmatpush.msra.mxu0 0.0
        %8112 = vmatpush.msra.mxu0 0.0
        %8113 = vmatpush.msra.mxu0 0.0
        %8114 = vmatpush.msra.mxu0 0.0
        %8115 = vmatpush.msra.mxu0 %v7144
        %8116 = vmatmul.f32.gmra.mxu0 %v8098
        %v8117 = vpop.f32.mrf.mxu0
        %v8118 = vadd.f32 0.0, %v8117
        %8119 = vdwg.mxu0
        %v8121 = vsel %vm1978, %v7854, 0
        %8123 = vmatpush.msra.mxu0 0.0
        %8124 = vmatpush.msra.mxu0 0.0
        %8125 = vmatpush.msra.mxu0 0.0
        %8126 = vmatpush.msra.mxu0 0.0
        %8127 = vmatpush.msra.mxu0 0.0
        %8128 = vmatpush.msra.mxu0 0.0
        %8129 = vmatpush.msra.mxu0 0.0
        %8130 = vmatpush.msra.mxu0 0.0
        %8131 = vmatpush.msra.mxu0 0.0
        %8132 = vmatpush.msra.mxu0 0.0
        %8133 = vmatpush.msra.mxu0 0.0
        %8134 = vmatpush.msra.mxu0 0.0
        %8135 = vmatpush.msra.mxu0 0.0
        %8136 = vmatpush.msra.mxu0 0.0
        %8137 = vmatpush.msra.mxu0 0.0
        %8138 = vmatpush.msra.mxu0 %v7146
        %8139 = vmatmul.f32.gmra.mxu0 %v8121
        %v8140 = vpop.f32.mrf.mxu0
        %v8141 = vadd.f32 0.0, %v8140
        %8142 = vdwg.mxu0
        %v8144 = vsel %vm1978, %v7869, 0
        %8146 = vmatpush.msra.mxu0 0.0
        %8147 = vmatpush.msra.mxu0 0.0
        %8148 = vmatpush.msra.mxu0 0.0
        %8149 = vmatpush.msra.mxu0 0.0
        %8150 = vmatpush.msra.mxu0 0.0
        %8151 = vmatpush.msra.mxu0 0.0
        %8152 = vmatpush.msra.mxu0 0.0
        %8153 = vmatpush.msra.mxu0 0.0
        %8154 = vmatpush.msra.mxu0 0.0
        %8155 = vmatpush.msra.mxu0 0.0
        %8156 = vmatpush.msra.mxu0 0.0
        %8157 = vmatpush.msra.mxu0 0.0
        %8158 = vmatpush.msra.mxu0 0.0
        %8159 = vmatpush.msra.mxu0 0.0
        %8160 = vmatpush.msra.mxu0 0.0
        %8161 = vmatpush.msra.mxu0 %v7149
        %8162 = vmatmul.f32.gmra.mxu0 %v8144
        %v8163 = vpop.f32.mrf.mxu0
        %v8164 = vadd.f32 0.0, %v8163
        %8165 = vdwg.mxu0
        %v8167 = vsel %vm1978, %v7884, 0
        %8169 = vmatpush.msra.mxu0 0.0
        %8170 = vmatpush.msra.mxu0 0.0
        %8171 = vmatpush.msra.mxu0 0.0
        %8172 = vmatpush.msra.mxu0 0.0
        %8173 = vmatpush.msra.mxu0 0.0
        %8174 = vmatpush.msra.mxu0 0.0
        %8175 = vmatpush.msra.mxu0 0.0
        %8176 = vmatpush.msra.mxu0 0.0
        %8177 = vmatpush.msra.mxu0 0.0
        %8178 = vmatpush.msra.mxu0 0.0
        %8179 = vmatpush.msra.mxu0 0.0
        %8180 = vmatpush.msra.mxu0 0.0
        %8181 = vmatpush.msra.mxu0 0.0
        %8182 = vmatpush.msra.mxu0 0.0
        %8183 = vmatpush.msra.mxu0 0.0
        %8184 = vmatpush.msra.mxu0 %v7151
        %8185 = vmatmul.f32.gmra.mxu0 %v8167
        %v8186 = vpop.f32.mrf.mxu0
        %v8187 = vadd.f32 0.0, %v8186
        %8188 = vdwg.mxu0
        %v8190 = vsel %vm1978, %v7899, 0
        %8192 = vmatpush.msra.mxu0 0.0
        %8193 = vmatpush.msra.mxu0 0.0
        %8194 = vmatpush.msra.mxu0 0.0
        %8195 = vmatpush.msra.mxu0 0.0
        %8196 = vmatpush.msra.mxu0 0.0
        %8197 = vmatpush.msra.mxu0 0.0
        %8198 = vmatpush.msra.mxu0 0.0
        %8199 = vmatpush.msra.mxu0 0.0
        %8200 = vmatpush.msra.mxu0 0.0
        %8201 = vmatpush.msra.mxu0 0.0
        %8202 = vmatpush.msra.mxu0 0.0
        %8203 = vmatpush.msra.mxu0 0.0
        %8204 = vmatpush.msra.mxu0 0.0
        %8205 = vmatpush.msra.mxu0 0.0
        %8206 = vmatpush.msra.mxu0 0.0
        %8207 = vmatpush.msra.mxu0 %v7154
        %8208 = vmatmul.f32.gmra.mxu0 %v8190
        %v8209 = vpop.f32.mrf.mxu0
        %v8210 = vadd.f32 0.0, %v8209
        %8211 = vdwg.mxu0
        %v8213 = vsel %vm1978, %v7914, 0
        %8215 = vmatpush.msra.mxu0 0.0
        %8216 = vmatpush.msra.mxu0 0.0
        %8217 = vmatpush.msra.mxu0 0.0
        %8218 = vmatpush.msra.mxu0 0.0
        %8219 = vmatpush.msra.mxu0 0.0
        %8220 = vmatpush.msra.mxu0 0.0
        %8221 = vmatpush.msra.mxu0 0.0
        %8222 = vmatpush.msra.mxu0 0.0
        %8223 = vmatpush.msra.mxu0 0.0
        %8224 = vmatpush.msra.mxu0 0.0
        %8225 = vmatpush.msra.mxu0 0.0
        %8226 = vmatpush.msra.mxu0 0.0
        %8227 = vmatpush.msra.mxu0 0.0
        %8228 = vmatpush.msra.mxu0 0.0
        %8229 = vmatpush.msra.mxu0 0.0
        %8230 = vmatpush.msra.mxu0 %v7156
        %8231 = vmatmul.f32.gmra.mxu0 %v8213
        %v8232 = vpop.f32.mrf.mxu0
        %v8233 = vadd.f32 0.0, %v8232
        %8234 = vdwg.mxu0
        %v8236 = vsel %vm1978, %v7929, 0
        %8238 = vmatpush.msra.mxu0 0.0
        %8239 = vmatpush.msra.mxu0 0.0
        %8240 = vmatpush.msra.mxu0 0.0
        %8241 = vmatpush.msra.mxu0 0.0
        %8242 = vmatpush.msra.mxu0 0.0
        %8243 = vmatpush.msra.mxu0 0.0
        %8244 = vmatpush.msra.mxu0 0.0
        %8245 = vmatpush.msra.mxu0 0.0
        %8246 = vmatpush.msra.mxu0 0.0
        %8247 = vmatpush.msra.mxu0 0.0
        %8248 = vmatpush.msra.mxu0 0.0
        %8249 = vmatpush.msra.mxu0 0.0
        %8250 = vmatpush.msra.mxu0 0.0
        %8251 = vmatpush.msra.mxu0 0.0
        %8252 = vmatpush.msra.mxu0 0.0
        %8253 = vmatpush.msra.mxu0 %v7159
        %8254 = vmatmul.f32.gmra.mxu0 %v8236
        %v8255 = vpop.f32.mrf.mxu0
        %v8256 = vadd.f32 0.0, %v8255
        %8257 = vdwg.mxu0
        %v8259 = vsel %vm1978, %v7944, 0
        %8261 = vmatpush.msra.mxu0 0.0
        %8262 = vmatpush.msra.mxu0 0.0
        %8263 = vmatpush.msra.mxu0 0.0
        %8264 = vmatpush.msra.mxu0 0.0
        %8265 = vmatpush.msra.mxu0 0.0
        %8266 = vmatpush.msra.mxu0 0.0
        %8267 = vmatpush.msra.mxu0 0.0
        %8268 = vmatpush.msra.mxu0 0.0
        %8269 = vmatpush.msra.mxu0 0.0
        %8270 = vmatpush.msra.mxu0 0.0
        %8271 = vmatpush.msra.mxu0 0.0
        %8272 = vmatpush.msra.mxu0 0.0
        %8273 = vmatpush.msra.mxu0 0.0
        %8274 = vmatpush.msra.mxu0 0.0
        %8275 = vmatpush.msra.mxu0 0.0
        %8276 = vmatpush.msra.mxu0 %v7161
        %8277 = vmatmul.f32.gmra.mxu0 %v8259
        %v8278 = vpop.f32.mrf.mxu0
        %v8279 = vadd.f32 0.0, %v8278
        %8280 = vdwg.mxu0
        %v8282 = vsel %vm1978, %v7959, 0
        %8284 = vmatpush.msra.mxu0 0.0
        %8285 = vmatpush.msra.mxu0 0.0
        %8286 = vmatpush.msra.mxu0 0.0
        %8287 = vmatpush.msra.mxu0 0.0
        %8288 = vmatpush.msra.mxu0 0.0
        %8289 = vmatpush.msra.mxu0 0.0
        %8290 = vmatpush.msra.mxu0 0.0
        %8291 = vmatpush.msra.mxu0 0.0
        %8292 = vmatpush.msra.mxu0 0.0
        %8293 = vmatpush.msra.mxu0 0.0
        %8294 = vmatpush.msra.mxu0 0.0
        %8295 = vmatpush.msra.mxu0 0.0
        %8296 = vmatpush.msra.mxu0 0.0
        %8297 = vmatpush.msra.mxu0 0.0
        %8298 = vmatpush.msra.mxu0 0.0
        %8299 = vmatpush.msra.mxu0 %v7164
        %8300 = vmatmul.f32.gmra.mxu0 %v8282
        %v8301 = vpop.f32.mrf.mxu0
        %v8302 = vadd.f32 0.0, %v8301
        %8303 = vdwg.mxu0
        %v8305 = vsel %vm1978, %v7974, 0
        %8307 = vmatpush.msra.mxu0 0.0
        %8308 = vmatpush.msra.mxu0 0.0
        %8309 = vmatpush.msra.mxu0 0.0
        %8310 = vmatpush.msra.mxu0 0.0
        %8311 = vmatpush.msra.mxu0 0.0
        %8312 = vmatpush.msra.mxu0 0.0
        %8313 = vmatpush.msra.mxu0 0.0
        %8314 = vmatpush.msra.mxu0 0.0
        %8315 = vmatpush.msra.mxu0 0.0
        %8316 = vmatpush.msra.mxu0 0.0
        %8317 = vmatpush.msra.mxu0 0.0
        %8318 = vmatpush.msra.mxu0 0.0
        %8319 = vmatpush.msra.mxu0 0.0
        %8320 = vmatpush.msra.mxu0 0.0
        %8321 = vmatpush.msra.mxu0 0.0
        %8322 = vmatpush.msra.mxu0 %v7166
        %8323 = vmatmul.f32.gmra.mxu0 %v8305
        %v8324 = vpop.f32.mrf.mxu0
        %v8325 = vadd.f32 0.0, %v8324
        %8326 = vdwg.mxu0
        %v8328 = vsel %vm1978, %v7989, 0
        %8330 = vmatpush.msra.mxu0 0.0
        %8331 = vmatpush.msra.mxu0 0.0
        %8332 = vmatpush.msra.mxu0 0.0
        %8333 = vmatpush.msra.mxu0 0.0
        %8334 = vmatpush.msra.mxu0 0.0
        %8335 = vmatpush.msra.mxu0 0.0
        %8336 = vmatpush.msra.mxu0 0.0
        %8337 = vmatpush.msra.mxu0 0.0
        %8338 = vmatpush.msra.mxu0 0.0
        %8339 = vmatpush.msra.mxu0 0.0
        %8340 = vmatpush.msra.mxu0 0.0
        %8341 = vmatpush.msra.mxu0 0.0
        %8342 = vmatpush.msra.mxu0 0.0
        %8343 = vmatpush.msra.mxu0 0.0
        %8344 = vmatpush.msra.mxu0 0.0
        %8345 = vmatpush.msra.mxu0 %v7169
        %8346 = vmatmul.f32.gmra.mxu0 %v8328
        %v8347 = vpop.f32.mrf.mxu0
        %v8348 = vadd.f32 0.0, %v8347
        %8349 = vdwg.mxu0
        %v8351 = vsel %vm1978, %v8004, 0
        %8353 = vmatpush.msra.mxu0 0.0
        %8354 = vmatpush.msra.mxu0 0.0
        %8355 = vmatpush.msra.mxu0 0.0
        %8356 = vmatpush.msra.mxu0 0.0
        %8357 = vmatpush.msra.mxu0 0.0
        %8358 = vmatpush.msra.mxu0 0.0
        %8359 = vmatpush.msra.mxu0 0.0
        %8360 = vmatpush.msra.mxu0 0.0
        %8361 = vmatpush.msra.mxu0 0.0
        %8362 = vmatpush.msra.mxu0 0.0
        %8363 = vmatpush.msra.mxu0 0.0
        %8364 = vmatpush.msra.mxu0 0.0
        %8365 = vmatpush.msra.mxu0 0.0
        %8366 = vmatpush.msra.mxu0 0.0
        %8367 = vmatpush.msra.mxu0 0.0
        %8368 = vmatpush.msra.mxu0 %v7171
        %8369 = vmatmul.f32.gmra.mxu0 %v8351
        %v8370 = vpop.f32.mrf.mxu0
        %v8371 = vadd.f32 0.0, %v8370
        %8372 = vdwg.mxu0
        %v8373 = vpack.c.bf16 %v8049, %v8026
        %v8374 = vpack.c.bf16 %v8095, %v8072
        %v8375 = vpack.c.bf16 %v8141, %v8118
        %v8376 = vpack.c.bf16 %v8187, %v8164
        %v8377 = vpack.c.bf16 %v8233, %v8210
        %v8378 = vpack.c.bf16 %v8279, %v8256
        %v8379 = vpack.c.bf16 %v8325, %v8302
        %v8380 = vpack.c.bf16 %v8371, %v8348
        %s8381 = scalar_lea.vmem %s7, 24
        %v8382 = vld [vmem:[%s8381] sm:$0xf]
        %v8383 = vld [vmem:[%s8381 + $0x4] sm:$0xf]
        %v8386 = vunpack.c.l.b16 %v8382
        %v8387 = vunpack.c.l.b16 %v8383
        %v8388 = vpack.c.b16 %v8387, %v8386
        %v8391 = vsel %vm1529, %v8373, 0
        %v8394 = vsel %vm1529, %v8374, 0
        %v8397 = vsel %vm1529, %v8375, 0
        %v8400 = vsel %vm1529, %v8376, 0
        %v8403 = vsel %vm1529, %v8377, 0
        %v8406 = vsel %vm1529, %v8378, 0
        %v8409 = vsel %vm1529, %v8379, 0
        %v8412 = vsel %vm1529, %v8380, 0
        %8414 = vmatpush.bf16.msra.mxu0 0
        %8415 = vmatpush.bf16.msra.mxu0 0
        %8416 = vmatpush.bf16.msra.mxu0 0
        %8417 = vmatpush.bf16.msra.mxu0 0
        %8418 = vmatpush.bf16.msra.mxu0 0
        %8419 = vmatpush.bf16.msra.mxu0 0
        %8420 = vmatpush.bf16.msra.mxu0 0
        %8421 = vmatpush.bf16.msra.mxu0 %v8388
        %8422 = vmatmul.bf16.gmra.mxu0 %v8391
        %v8423 = vpop.f32.mrf.mxu0
        %v8424 = vadd.f32 0.0, %v8423
        %v8425 = vpop.f32.mrf.mxu0
        %v8426 = vadd.f32 0.0, %v8425
        %8427 = vmatmul.bf16.gmra.mxu0 %v8394
        %v8428 = vpop.f32.mrf.mxu0
        %v8429 = vadd.f32 0.0, %v8428
        %v8430 = vpop.f32.mrf.mxu0
        %v8431 = vadd.f32 0.0, %v8430
        %8432 = vmatmul.bf16.gmra.mxu0 %v8397
        %v8433 = vpop.f32.mrf.mxu0
        %v8434 = vadd.f32 0.0, %v8433
        %v8435 = vpop.f32.mrf.mxu0
        %v8436 = vadd.f32 0.0, %v8435
        %8437 = vmatmul.bf16.gmra.mxu0 %v8400
        %v8438 = vpop.f32.mrf.mxu0
        %v8439 = vadd.f32 0.0, %v8438
        %v8440 = vpop.f32.mrf.mxu0
        %v8441 = vadd.f32 0.0, %v8440
        %8442 = vmatmul.bf16.gmra.mxu0 %v8403
        %v8443 = vpop.f32.mrf.mxu0
        %v8444 = vadd.f32 0.0, %v8443
        %v8445 = vpop.f32.mrf.mxu0
        %v8446 = vadd.f32 0.0, %v8445
        %8447 = vmatmul.bf16.gmra.mxu0 %v8406
        %v8448 = vpop.f32.mrf.mxu0
        %v8449 = vadd.f32 0.0, %v8448
        %v8450 = vpop.f32.mrf.mxu0
        %v8451 = vadd.f32 0.0, %v8450
        %8452 = vmatmul.bf16.gmra.mxu0 %v8409
        %v8453 = vpop.f32.mrf.mxu0
        %v8454 = vadd.f32 0.0, %v8453
        %v8455 = vpop.f32.mrf.mxu0
        %v8456 = vadd.f32 0.0, %v8455
        %8457 = vmatmul.bf16.gmra.mxu0 %v8412
        %v8458 = vpop.f32.mrf.mxu0
        %v8459 = vadd.f32 0.0, %v8458
        %v8460 = vpop.f32.mrf.mxu0
        %v8461 = vadd.f32 0.0, %v8460
        %8462 = vdwg.mxu0
        %v8465 = vunpack.c.l.b16 %v6958
        %v8466 = vunpack.c.l.b16 %v6959
        %v8467 = vpack.c.b16 %v8466, %v8465
        %v8470 = vsel %vm1529, %v6949, 0
        %v8473 = vsel %vm1529, %v6950, 0
        %v8476 = vsel %vm1529, %v6951, 0
        %v8479 = vsel %vm1529, %v6952, 0
        %v8482 = vsel %vm1529, %v6953, 0
        %v8485 = vsel %vm1529, %v6954, 0
        %v8488 = vsel %vm1529, %v6955, 0
        %v8491 = vsel %vm1529, %v6956, 0
        %8493 = vmatpush.bf16.msra.mxu0 0
        %8494 = vmatpush.bf16.msra.mxu0 0
        %8495 = vmatpush.bf16.msra.mxu0 0
        %8496 = vmatpush.bf16.msra.mxu0 0
        %8497 = vmatpush.bf16.msra.mxu0 0
        %8498 = vmatpush.bf16.msra.mxu0 0
        %8499 = vmatpush.bf16.msra.mxu0 0
        %8500 = vmatpush.bf16.msra.mxu0 %v8467
        %8501 = vmatmul.bf16.gmra.mxu0 %v8470
        %v8502 = vpop.f32.mrf.mxu0
        %v8503 = vadd.f32 %v8424, %v8502
        %v8504 = vpop.f32.mrf.mxu0
        %v8505 = vadd.f32 %v8426, %v8504
        %8506 = vmatmul.bf16.gmra.mxu0 %v8473
        %v8507 = vpop.f32.mrf.mxu0
        %v8508 = vadd.f32 %v8429, %v8507
        %v8509 = vpop.f32.mrf.mxu0
        %v8510 = vadd.f32 %v8431, %v8509
        %8511 = vmatmul.bf16.gmra.mxu0 %v8476
        %v8512 = vpop.f32.mrf.mxu0
        %v8513 = vadd.f32 %v8434, %v8512
        %v8514 = vpop.f32.mrf.mxu0
        %v8515 = vadd.f32 %v8436, %v8514
        %8516 = vmatmul.bf16.gmra.mxu0 %v8479
        %v8517 = vpop.f32.mrf.mxu0
        %v8518 = vadd.f32 %v8439, %v8517
        %v8519 = vpop.f32.mrf.mxu0
        %v8520 = vadd.f32 %v8441, %v8519
        %8521 = vmatmul.bf16.gmra.mxu0 %v8482
        %v8522 = vpop.f32.mrf.mxu0
        %v8523 = vadd.f32 %v8444, %v8522
        %v8524 = vpop.f32.mrf.mxu0
        %v8525 = vadd.f32 %v8446, %v8524
        %8526 = vmatmul.bf16.gmra.mxu0 %v8485
        %v8527 = vpop.f32.mrf.mxu0
        %v8528 = vadd.f32 %v8449, %v8527
        %v8529 = vpop.f32.mrf.mxu0
        %v8530 = vadd.f32 %v8451, %v8529
        %8531 = vmatmul.bf16.gmra.mxu0 %v8488
        %v8532 = vpop.f32.mrf.mxu0
        %v8533 = vadd.f32 %v8454, %v8532
        %v8534 = vpop.f32.mrf.mxu0
        %v8535 = vadd.f32 %v8456, %v8534
        %8536 = vmatmul.bf16.gmra.mxu0 %v8491
        %v8537 = vpop.f32.mrf.mxu0
        %v8538 = vadd.f32 %v8459, %v8537
        %v8539 = vpop.f32.mrf.mxu0
        %v8540 = vadd.f32 %v8461, %v8539
        %8541 = vdwg.mxu0
        %v8542 = vld [vmem:[%s9 + $0x3] sm:$0x1]
        %v8543 = vperm.slane %v8542, 0
        %v8544 = vadd.f32 %v8503, %v8543
        %v8545 = vadd.f32 %v8505, %v8543
        %v8546 = vadd.f32 %v8508, %v8543
        %v8547 = vadd.f32 %v8510, %v8543
        %v8548 = vadd.f32 %v8513, %v8543
        %v8549 = vadd.f32 %v8515, %v8543
        %v8550 = vadd.f32 %v8518, %v8543
        %v8551 = vadd.f32 %v8520, %v8543
        %v8552 = vadd.f32 %v8523, %v8543
        %v8553 = vadd.f32 %v8525, %v8543
        %v8554 = vadd.f32 %v8528, %v8543
        %v8555 = vadd.f32 %v8530, %v8543
        %v8556 = vadd.f32 %v8533, %v8543
        %v8557 = vadd.f32 %v8535, %v8543
        %v8558 = vadd.f32 %v8538, %v8543
        %v8559 = vadd.f32 %v8540, %v8543
        %v8560 = vadd.f32 %v8544, %v5488
        %v8561 = vadd.f32 %v8545, %v5489
        %v8562 = vadd.f32 %v8546, %v5490
        %v8563 = vadd.f32 %v8547, %v5491
        %v8564 = vadd.f32 %v8548, %v5492
        %v8565 = vadd.f32 %v8549, %v5493
        %v8566 = vadd.f32 %v8550, %v5494
        %v8567 = vadd.f32 %v8551, %v5495
        %v8568 = vadd.f32 %v8552, %v5496
        %v8569 = vadd.f32 %v8553, %v5497
        %v8570 = vadd.f32 %v8554, %v5498
        %v8571 = vadd.f32 %v8555, %v5499
        %v8572 = vadd.f32 %v8556, %v5500
        %v8573 = vadd.f32 %v8557, %v5501
        %v8574 = vadd.f32 %v8558, %v5502
        %v8575 = vadd.f32 %v8559, %v5503
        %v8576 = vsel %vm793, %v8560, 0.0
        %8577 = vadd.xlane.f32.xlu0 %v8576
        %v8578 = vpop.xlane.xlu0 %8577
        %v8579 = vsel %vm793, %v8561, 0.0
        %8580 = vadd.xlane.f32.xlu0 %v8579
        %v8581 = vpop.xlane.xlu0 %8580
        %v8582 = vsel %vm793, %v8562, 0.0
        %8583 = vadd.xlane.f32.xlu0 %v8582
        %v8584 = vpop.xlane.xlu0 %8583
        %v8585 = vsel %vm793, %v8563, 0.0
        %8586 = vadd.xlane.f32.xlu0 %v8585
        %v8587 = vpop.xlane.xlu0 %8586
        %v8588 = vsel %vm793, %v8564, 0.0
        %8589 = vadd.xlane.f32.xlu0 %v8588
        %v8590 = vpop.xlane.xlu0 %8589
        %v8591 = vsel %vm793, %v8565, 0.0
        %8592 = vadd.xlane.f32.xlu0 %v8591
        %v8593 = vpop.xlane.xlu0 %8592
        %v8594 = vsel %vm793, %v8566, 0.0
        %8595 = vadd.xlane.f32.xlu0 %v8594
        %v8596 = vpop.xlane.xlu0 %8595
        %v8597 = vsel %vm793, %v8567, 0.0
        %8598 = vadd.xlane.f32.xlu0 %v8597
        %v8599 = vpop.xlane.xlu0 %8598
        %v8600 = vsel %vm793, %v8568, 0.0
        %8601 = vadd.xlane.f32.xlu0 %v8600
        %v8602 = vpop.xlane.xlu0 %8601
        %v8603 = vsel %vm793, %v8569, 0.0
        %8604 = vadd.xlane.f32.xlu0 %v8603
        %v8605 = vpop.xlane.xlu0 %8604
        %v8606 = vsel %vm793, %v8570, 0.0
        %8607 = vadd.xlane.f32.xlu0 %v8606
        %v8608 = vpop.xlane.xlu0 %8607
        %v8609 = vsel %vm793, %v8571, 0.0
        %8610 = vadd.xlane.f32.xlu0 %v8609
        %v8611 = vpop.xlane.xlu0 %8610
        %v8612 = vsel %vm793, %v8572, 0.0
        %8613 = vadd.xlane.f32.xlu0 %v8612
        %v8614 = vpop.xlane.xlu0 %8613
        %v8615 = vsel %vm793, %v8573, 0.0
        %8616 = vadd.xlane.f32.xlu0 %v8615
        %v8617 = vpop.xlane.xlu0 %8616
        %v8618 = vsel %vm793, %v8574, 0.0
        %8619 = vadd.xlane.f32.xlu0 %v8618
        %v8620 = vpop.xlane.xlu0 %8619
        %v8621 = vsel %vm793, %v8575, 0.0
        %8622 = vadd.xlane.f32.xlu0 %v8621
        %v8623 = vpop.xlane.xlu0 %8622
        %v8624 = vmul.f32 %v8578, %v848
        %v8625 = vmul.f32 %v8581, %v848
        %v8626 = vmul.f32 %v8584, %v848
        %v8627 = vmul.f32 %v8587, %v848
        %v8628 = vmul.f32 %v8590, %v848
        %v8629 = vmul.f32 %v8593, %v848
        %v8630 = vmul.f32 %v8596, %v848
        %v8631 = vmul.f32 %v8599, %v848
        %v8632 = vmul.f32 %v8602, %v848
        %v8633 = vmul.f32 %v8605, %v848
        %v8634 = vmul.f32 %v8608, %v848
        %v8635 = vmul.f32 %v8611, %v848
        %v8636 = vmul.f32 %v8614, %v848
        %v8637 = vmul.f32 %v8617, %v848
        %v8638 = vmul.f32 %v8620, %v848
        %v8639 = vmul.f32 %v8623, %v848
        %v8640 = vsub.f32 %v8560, %v8624
        %v8641 = vsub.f32 %v8561, %v8625
        %v8642 = vsub.f32 %v8562, %v8626
        %v8643 = vsub.f32 %v8563, %v8627
        %v8644 = vsub.f32 %v8564, %v8628
        %v8645 = vsub.f32 %v8565, %v8629
        %v8646 = vsub.f32 %v8566, %v8630
        %v8647 = vsub.f32 %v8567, %v8631
        %v8648 = vsub.f32 %v8568, %v8632
        %v8649 = vsub.f32 %v8569, %v8633
        %v8650 = vsub.f32 %v8570, %v8634
        %v8651 = vsub.f32 %v8571, %v8635
        %v8652 = vsub.f32 %v8572, %v8636
        %v8653 = vsub.f32 %v8573, %v8637
        %v8654 = vsub.f32 %v8574, %v8638
        %v8655 = vsub.f32 %v8575, %v8639
        %v8656 = vmul.f32 %v8640, %v8640
        %v8657 = vmul.f32 %v8641, %v8641
        %v8658 = vmul.f32 %v8642, %v8642
        %v8659 = vmul.f32 %v8643, %v8643
        %v8660 = vmul.f32 %v8644, %v8644
        %v8661 = vmul.f32 %v8645, %v8645
        %v8662 = vmul.f32 %v8646, %v8646
        %v8663 = vmul.f32 %v8647, %v8647
        %v8664 = vmul.f32 %v8648, %v8648
        %v8665 = vmul.f32 %v8649, %v8649
        %v8666 = vmul.f32 %v8650, %v8650
        %v8667 = vmul.f32 %v8651, %v8651
        %v8668 = vmul.f32 %v8652, %v8652
        %v8669 = vmul.f32 %v8653, %v8653
        %v8670 = vmul.f32 %v8654, %v8654
        %v8671 = vmul.f32 %v8655, %v8655
        %v8672 = vsel %vm793, %v8656, 0.0
        %8673 = vadd.xlane.f32.xlu0 %v8672
        %v8674 = vpop.xlane.xlu0 %8673
        %v8675 = vsel %vm793, %v8657, 0.0
        %8676 = vadd.xlane.f32.xlu0 %v8675
        %v8677 = vpop.xlane.xlu0 %8676
        %v8678 = vsel %vm793, %v8658, 0.0
        %8679 = vadd.xlane.f32.xlu0 %v8678
        %v8680 = vpop.xlane.xlu0 %8679
        %v8681 = vsel %vm793, %v8659, 0.0
        %8682 = vadd.xlane.f32.xlu0 %v8681
        %v8683 = vpop.xlane.xlu0 %8682
        %v8684 = vsel %vm793, %v8660, 0.0
        %8685 = vadd.xlane.f32.xlu0 %v8684
        %v8686 = vpop.xlane.xlu0 %8685
        %v8687 = vsel %vm793, %v8661, 0.0
        %8688 = vadd.xlane.f32.xlu0 %v8687
        %v8689 = vpop.xlane.xlu0 %8688
        %v8690 = vsel %vm793, %v8662, 0.0
        %8691 = vadd.xlane.f32.xlu0 %v8690
        %v8692 = vpop.xlane.xlu0 %8691
        %v8693 = vsel %vm793, %v8663, 0.0
        %8694 = vadd.xlane.f32.xlu0 %v8693
        %v8695 = vpop.xlane.xlu0 %8694
        %v8696 = vsel %vm793, %v8664, 0.0
        %8697 = vadd.xlane.f32.xlu0 %v8696
        %v8698 = vpop.xlane.xlu0 %8697
        %v8699 = vsel %vm793, %v8665, 0.0
        %8700 = vadd.xlane.f32.xlu0 %v8699
        %v8701 = vpop.xlane.xlu0 %8700
        %v8702 = vsel %vm793, %v8666, 0.0
        %8703 = vadd.xlane.f32.xlu0 %v8702
        %v8704 = vpop.xlane.xlu0 %8703
        %v8705 = vsel %vm793, %v8667, 0.0
        %8706 = vadd.xlane.f32.xlu0 %v8705
        %v8707 = vpop.xlane.xlu0 %8706
        %v8708 = vsel %vm793, %v8668, 0.0
        %8709 = vadd.xlane.f32.xlu0 %v8708
        %v8710 = vpop.xlane.xlu0 %8709
        %v8711 = vsel %vm793, %v8669, 0.0
        %8712 = vadd.xlane.f32.xlu0 %v8711
        %v8713 = vpop.xlane.xlu0 %8712
        %v8714 = vsel %vm793, %v8670, 0.0
        %8715 = vadd.xlane.f32.xlu0 %v8714
        %v8716 = vpop.xlane.xlu0 %8715
        %v8717 = vsel %vm793, %v8671, 0.0
        %8718 = vadd.xlane.f32.xlu0 %v8717
        %v8719 = vpop.xlane.xlu0 %8718
        %v8720 = vmul.f32 %v8674, %v848
        %v8721 = vmul.f32 %v8677, %v848
        %v8722 = vmul.f32 %v8680, %v848
        %v8723 = vmul.f32 %v8683, %v848
        %v8724 = vmul.f32 %v8686, %v848
        %v8725 = vmul.f32 %v8689, %v848
        %v8726 = vmul.f32 %v8692, %v848
        %v8727 = vmul.f32 %v8695, %v848
        %v8728 = vmul.f32 %v8698, %v848
        %v8729 = vmul.f32 %v8701, %v848
        %v8730 = vmul.f32 %v8704, %v848
        %v8731 = vmul.f32 %v8707, %v848
        %v8732 = vmul.f32 %v8710, %v848
        %v8733 = vmul.f32 %v8713, %v848
        %v8734 = vmul.f32 %v8716, %v848
        %v8735 = vmul.f32 %v8719, %v848
        %v8736 = vadd.f32 %v8720, 1e-12
        %v8737 = vadd.f32 %v8721, 1e-12
        %v8738 = vadd.f32 %v8722, 1e-12
        %v8739 = vadd.f32 %v8723, 1e-12
        %v8740 = vadd.f32 %v8724, 1e-12
        %v8741 = vadd.f32 %v8725, 1e-12
        %v8742 = vadd.f32 %v8726, 1e-12
        %v8743 = vadd.f32 %v8727, 1e-12
        %v8744 = vadd.f32 %v8728, 1e-12
        %v8745 = vadd.f32 %v8729, 1e-12
        %v8746 = vadd.f32 %v8730, 1e-12
        %v8747 = vadd.f32 %v8731, 1e-12
        %v8748 = vadd.f32 %v8732, 1e-12
        %v8749 = vadd.f32 %v8733, 1e-12
        %v8750 = vadd.f32 %v8734, 1e-12
        %v8751 = vadd.f32 %v8735, 1e-12
        %v8752 = vrsqrt.pop %v8736
        %v8753 = vmul.f32 %v8752, %v8736
        %v8754 = vmul.f32 %v8753, %v8752
        %v8755 = vmul.f32 0.5, %v8754
        %v8756 = vsub.f32 1.5, %v8755
        %v8757 = vmul.f32 %v8752, %v8756
        %vm8758 = vweird.f32 %v8736
        %vm8759 = vweird.f32 %v8752
        %vm8760 = vmor %vm8758, %vm8759
        %v8761 = vsel %vm8760, %v8752, %v8757
        %v8762 = vrsqrt.pop %v8737
        %v8763 = vmul.f32 %v8762, %v8737
        %v8764 = vmul.f32 %v8763, %v8762
        %v8765 = vmul.f32 0.5, %v8764
        %v8766 = vsub.f32 1.5, %v8765
        %v8767 = vmul.f32 %v8762, %v8766
        %vm8768 = vweird.f32 %v8737
        %vm8769 = vweird.f32 %v8762
        %vm8770 = vmor %vm8768, %vm8769
        %v8771 = vsel %vm8770, %v8762, %v8767
        %v8772 = vrsqrt.pop %v8738
        %v8773 = vmul.f32 %v8772, %v8738
        %v8774 = vmul.f32 %v8773, %v8772
        %v8775 = vmul.f32 0.5, %v8774
        %v8776 = vsub.f32 1.5, %v8775
        %v8777 = vmul.f32 %v8772, %v8776
        %vm8778 = vweird.f32 %v8738
        %vm8779 = vweird.f32 %v8772
        %vm8780 = vmor %vm8778, %vm8779
        %v8781 = vsel %vm8780, %v8772, %v8777
        %v8782 = vrsqrt.pop %v8739
        %v8783 = vmul.f32 %v8782, %v8739
        %v8784 = vmul.f32 %v8783, %v8782
        %v8785 = vmul.f32 0.5, %v8784
        %v8786 = vsub.f32 1.5, %v8785
        %v8787 = vmul.f32 %v8782, %v8786
        %vm8788 = vweird.f32 %v8739
        %vm8789 = vweird.f32 %v8782
        %vm8790 = vmor %vm8788, %vm8789
        %v8791 = vsel %vm8790, %v8782, %v8787
        %v8792 = vrsqrt.pop %v8740
        %v8793 = vmul.f32 %v8792, %v8740
        %v8794 = vmul.f32 %v8793, %v8792
        %v8795 = vmul.f32 0.5, %v8794
        %v8796 = vsub.f32 1.5, %v8795
        %v8797 = vmul.f32 %v8792, %v8796
        %vm8798 = vweird.f32 %v8740
        %vm8799 = vweird.f32 %v8792
        %vm8800 = vmor %vm8798, %vm8799
        %v8801 = vsel %vm8800, %v8792, %v8797
        %v8802 = vrsqrt.pop %v8741
        %v8803 = vmul.f32 %v8802, %v8741
        %v8804 = vmul.f32 %v8803, %v8802
        %v8805 = vmul.f32 0.5, %v8804
        %v8806 = vsub.f32 1.5, %v8805
        %v8807 = vmul.f32 %v8802, %v8806
        %vm8808 = vweird.f32 %v8741
        %vm8809 = vweird.f32 %v8802
        %vm8810 = vmor %vm8808, %vm8809
        %v8811 = vsel %vm8810, %v8802, %v8807
        %v8812 = vrsqrt.pop %v8742
        %v8813 = vmul.f32 %v8812, %v8742
        %v8814 = vmul.f32 %v8813, %v8812
        %v8815 = vmul.f32 0.5, %v8814
        %v8816 = vsub.f32 1.5, %v8815
        %v8817 = vmul.f32 %v8812, %v8816
        %vm8818 = vweird.f32 %v8742
        %vm8819 = vweird.f32 %v8812
        %vm8820 = vmor %vm8818, %vm8819
        %v8821 = vsel %vm8820, %v8812, %v8817
        %v8822 = vrsqrt.pop %v8743
        %v8823 = vmul.f32 %v8822, %v8743
        %v8824 = vmul.f32 %v8823, %v8822
        %v8825 = vmul.f32 0.5, %v8824
        %v8826 = vsub.f32 1.5, %v8825
        %v8827 = vmul.f32 %v8822, %v8826
        %vm8828 = vweird.f32 %v8743
        %vm8829 = vweird.f32 %v8822
        %vm8830 = vmor %vm8828, %vm8829
        %v8831 = vsel %vm8830, %v8822, %v8827
        %v8832 = vrsqrt.pop %v8744
        %v8833 = vmul.f32 %v8832, %v8744
        %v8834 = vmul.f32 %v8833, %v8832
        %v8835 = vmul.f32 0.5, %v8834
        %v8836 = vsub.f32 1.5, %v8835
        %v8837 = vmul.f32 %v8832, %v8836
        %vm8838 = vweird.f32 %v8744
        %vm8839 = vweird.f32 %v8832
        %vm8840 = vmor %vm8838, %vm8839
        %v8841 = vsel %vm8840, %v8832, %v8837
        %v8842 = vrsqrt.pop %v8745
        %v8843 = vmul.f32 %v8842, %v8745
        %v8844 = vmul.f32 %v8843, %v8842
        %v8845 = vmul.f32 0.5, %v8844
        %v8846 = vsub.f32 1.5, %v8845
        %v8847 = vmul.f32 %v8842, %v8846
        %vm8848 = vweird.f32 %v8745
        %vm8849 = vweird.f32 %v8842
        %vm8850 = vmor %vm8848, %vm8849
        %v8851 = vsel %vm8850, %v8842, %v8847
        %v8852 = vrsqrt.pop %v8746
        %v8853 = vmul.f32 %v8852, %v8746
        %v8854 = vmul.f32 %v8853, %v8852
        %v8855 = vmul.f32 0.5, %v8854
        %v8856 = vsub.f32 1.5, %v8855
        %v8857 = vmul.f32 %v8852, %v8856
        %vm8858 = vweird.f32 %v8746
        %vm8859 = vweird.f32 %v8852
        %vm8860 = vmor %vm8858, %vm8859
        %v8861 = vsel %vm8860, %v8852, %v8857
        %v8862 = vrsqrt.pop %v8747
        %v8863 = vmul.f32 %v8862, %v8747
        %v8864 = vmul.f32 %v8863, %v8862
        %v8865 = vmul.f32 0.5, %v8864
        %v8866 = vsub.f32 1.5, %v8865
        %v8867 = vmul.f32 %v8862, %v8866
        %vm8868 = vweird.f32 %v8747
        %vm8869 = vweird.f32 %v8862
        %vm8870 = vmor %vm8868, %vm8869
        %v8871 = vsel %vm8870, %v8862, %v8867
        %v8872 = vrsqrt.pop %v8748
        %v8873 = vmul.f32 %v8872, %v8748
        %v8874 = vmul.f32 %v8873, %v8872
        %v8875 = vmul.f32 0.5, %v8874
        %v8876 = vsub.f32 1.5, %v8875
        %v8877 = vmul.f32 %v8872, %v8876
        %vm8878 = vweird.f32 %v8748
        %vm8879 = vweird.f32 %v8872
        %vm8880 = vmor %vm8878, %vm8879
        %v8881 = vsel %vm8880, %v8872, %v8877
        %v8882 = vrsqrt.pop %v8749
        %v8883 = vmul.f32 %v8882, %v8749
        %v8884 = vmul.f32 %v8883, %v8882
        %v8885 = vmul.f32 0.5, %v8884
        %v8886 = vsub.f32 1.5, %v8885
        %v8887 = vmul.f32 %v8882, %v8886
        %vm8888 = vweird.f32 %v8749
        %vm8889 = vweird.f32 %v8882
        %vm8890 = vmor %vm8888, %vm8889
        %v8891 = vsel %vm8890, %v8882, %v8887
        %v8892 = vrsqrt.pop %v8750
        %v8893 = vmul.f32 %v8892, %v8750
        %v8894 = vmul.f32 %v8893, %v8892
        %v8895 = vmul.f32 0.5, %v8894
        %v8896 = vsub.f32 1.5, %v8895
        %v8897 = vmul.f32 %v8892, %v8896
        %vm8898 = vweird.f32 %v8750
        %vm8899 = vweird.f32 %v8892
        %vm8900 = vmor %vm8898, %vm8899
        %v8901 = vsel %vm8900, %v8892, %v8897
        %v8902 = vrsqrt.pop %v8751
        %v8903 = vmul.f32 %v8902, %v8751
        %v8904 = vmul.f32 %v8903, %v8902
        %v8905 = vmul.f32 0.5, %v8904
        %v8906 = vsub.f32 1.5, %v8905
        %v8907 = vmul.f32 %v8902, %v8906
        %vm8908 = vweird.f32 %v8751
        %vm8909 = vweird.f32 %v8902
        %vm8910 = vmor %vm8908, %vm8909
        %v8911 = vsel %vm8910, %v8902, %v8907
        %v8912 = vmul.f32 %v8640, %v8761
        %v8913 = vmul.f32 %v8641, %v8771
        %v8914 = vmul.f32 %v8642, %v8781
        %v8915 = vmul.f32 %v8643, %v8791
        %v8916 = vmul.f32 %v8644, %v8801
        %v8917 = vmul.f32 %v8645, %v8811
        %v8918 = vmul.f32 %v8646, %v8821
        %v8919 = vmul.f32 %v8647, %v8831
        %v8920 = vmul.f32 %v8648, %v8841
        %v8921 = vmul.f32 %v8649, %v8851
        %v8922 = vmul.f32 %v8650, %v8861
        %v8923 = vmul.f32 %v8651, %v8871
        %v8924 = vmul.f32 %v8652, %v8881
        %v8925 = vmul.f32 %v8653, %v8891
        %v8926 = vmul.f32 %v8654, %v8901
        %v8927 = vmul.f32 %v8655, %v8911
        %8929 = vrot.lane.b32.xlu0 %v8543, 96
        %v8930 = vpop.permute.xlu0 %8929
        %v8932 = vmul.f32 %v8912, %v8930
        %v8933 = vmul.f32 %v8913, %v8930
        %v8934 = vmul.f32 %v8914, %v8930
        %v8935 = vmul.f32 %v8915, %v8930
        %v8936 = vmul.f32 %v8916, %v8930
        %v8937 = vmul.f32 %v8917, %v8930
        %v8938 = vmul.f32 %v8918, %v8930
        %v8939 = vmul.f32 %v8919, %v8930
        %v8940 = vmul.f32 %v8920, %v8930
        %v8941 = vmul.f32 %v8921, %v8930
        %v8942 = vmul.f32 %v8922, %v8930
        %v8943 = vmul.f32 %v8923, %v8930
        %v8944 = vmul.f32 %v8924, %v8930
        %v8945 = vmul.f32 %v8925, %v8930
        %v8946 = vmul.f32 %v8926, %v8930
        %v8947 = vmul.f32 %v8927, %v8930
        %8948 = vrot.lane.b32.xlu0 %v8543, 64
        %v8949 = vpop.permute.xlu0 %8948
        %v8951 = vadd.f32 %v8932, %v8949
        %v8952 = vadd.f32 %v8933, %v8949
        %v8953 = vadd.f32 %v8934, %v8949
        %v8954 = vadd.f32 %v8935, %v8949
        %v8955 = vadd.f32 %v8936, %v8949
        %v8956 = vadd.f32 %v8937, %v8949
        %v8957 = vadd.f32 %v8938, %v8949
        %v8958 = vadd.f32 %v8939, %v8949
        %v8959 = vadd.f32 %v8940, %v8949
        %v8960 = vadd.f32 %v8941, %v8949
        %v8961 = vadd.f32 %v8942, %v8949
        %v8962 = vadd.f32 %v8943, %v8949
        %v8963 = vadd.f32 %v8944, %v8949
        %v8964 = vadd.f32 %v8945, %v8949
        %v8965 = vadd.f32 %v8946, %v8949
        %v8966 = vadd.f32 %v8947, %v8949
        %v8967 = vpack.c.bf16 %v8952, %v8951
        %v8968 = vpack.c.bf16 %v8954, %v8953
        %v8969 = vpack.c.bf16 %v8956, %v8955
        %v8970 = vpack.c.bf16 %v8958, %v8957
        %v8971 = vpack.c.bf16 %v8960, %v8959
        %v8972 = vpack.c.bf16 %v8962, %v8961
        %v8973 = vpack.c.bf16 %v8964, %v8963
        %v8974 = vpack.c.bf16 %v8966, %v8965
        %s8975 = scalar_lea.vmem %s8, 32
        %v8976 = vld [vmem:[%s8975] sm:$0xf]
        %v8977 = vld [vmem:[%s8975 + $0x4] sm:$0xf]
        %v8978 = vld [vmem:[%s8975 + $0x8] sm:$0xf]
        %v8979 = vld [vmem:[%s8975 + $0xc] sm:$0xf]
        %v8980 = vld [vmem:[%s9 + $0x4] sm:$0x1]
        %v8981 = vperm.slane %v8980, 0
        %v8986 = vunpack.c.l.b16 %v8976
        %v8987 = vunpack.c.l.b16 %v8977
        %v8988 = vunpack.c.l.b16 %v8978
        %v8989 = vunpack.c.l.b16 %v8979
        %v8990 = vpack.c.b16 %v8987, %v8986
        %v8991 = vpack.c.b16 %v8989, %v8988
        %v8995 = vsel %vm793, %v8967, 0
        %v8998 = vsel %vm793, %v8968, 0
        %v9001 = vsel %vm793, %v8969, 0
        %v9004 = vsel %vm793, %v8970, 0
        %v9007 = vsel %vm793, %v8971, 0
        %v9010 = vsel %vm793, %v8972, 0
        %v9013 = vsel %vm793, %v8973, 0
        %v9016 = vsel %vm793, %v8974, 0
        %9018 = vmatpush.bf16.msra.mxu0 0
        %9019 = vmatpush.bf16.msra.mxu0 0
        %9020 = vmatpush.bf16.msra.mxu0 0
        %9021 = vmatpush.bf16.msra.mxu0 0
        %9022 = vmatpush.bf16.msra.mxu0 0
        %9023 = vmatpush.bf16.msra.mxu0 0
        %9024 = vmatpush.bf16.msra.mxu0 %v8991
        %9025 = vmatpush.bf16.msra.mxu0 %v8990
        %9026 = vmatmul.bf16.gmra.mxu0 %v8995
        %v9027 = vpop.f32.mrf.mxu0
        %v9028 = vadd.f32 %v8981, %v9027
        %v9029 = vpop.f32.mrf.mxu0
        %v9030 = vadd.f32 %v8981, %v9029
        %9031 = vmatmul.bf16.gmra.mxu0 %v8998
        %v9032 = vpop.f32.mrf.mxu0
        %v9033 = vadd.f32 %v8981, %v9032
        %v9034 = vpop.f32.mrf.mxu0
        %v9035 = vadd.f32 %v8981, %v9034
        %9036 = vmatmul.bf16.gmra.mxu0 %v9001
        %v9037 = vpop.f32.mrf.mxu0
        %v9038 = vadd.f32 %v8981, %v9037
        %v9039 = vpop.f32.mrf.mxu0
        %v9040 = vadd.f32 %v8981, %v9039
        %9041 = vmatmul.bf16.gmra.mxu0 %v9004
        %v9042 = vpop.f32.mrf.mxu0
        %v9043 = vadd.f32 %v8981, %v9042
        %v9044 = vpop.f32.mrf.mxu0
        %v9045 = vadd.f32 %v8981, %v9044
        %9046 = vmatmul.bf16.gmra.mxu0 %v9007
        %v9047 = vpop.f32.mrf.mxu0
        %v9048 = vadd.f32 %v8981, %v9047
        %v9049 = vpop.f32.mrf.mxu0
        %v9050 = vadd.f32 %v8981, %v9049
        %9051 = vmatmul.bf16.gmra.mxu0 %v9010
        %v9052 = vpop.f32.mrf.mxu0
        %v9053 = vadd.f32 %v8981, %v9052
        %v9054 = vpop.f32.mrf.mxu0
        %v9055 = vadd.f32 %v8981, %v9054
        %9056 = vmatmul.bf16.gmra.mxu0 %v9013
        %v9057 = vpop.f32.mrf.mxu0
        %v9058 = vadd.f32 %v8981, %v9057
        %v9059 = vpop.f32.mrf.mxu0
        %v9060 = vadd.f32 %v8981, %v9059
        %9061 = vmatmul.bf16.gmra.mxu0 %v9016
        %v9062 = vpop.f32.mrf.mxu0
        %v9063 = vadd.f32 %v8981, %v9062
        %v9064 = vpop.f32.mrf.mxu0
        %v9065 = vadd.f32 %v8981, %v9064
        %9066 = vdwg.mxu0
        %v9067 = vmul.f32 %v9028, %v9028
        %v9068 = vmul.f32 %v9030, %v9030
        %v9069 = vmul.f32 %v9033, %v9033
        %v9070 = vmul.f32 %v9035, %v9035
        %v9071 = vmul.f32 %v9038, %v9038
        %v9072 = vmul.f32 %v9040, %v9040
        %v9073 = vmul.f32 %v9043, %v9043
        %v9074 = vmul.f32 %v9045, %v9045
        %v9075 = vmul.f32 %v9048, %v9048
        %v9076 = vmul.f32 %v9050, %v9050
        %v9077 = vmul.f32 %v9053, %v9053
        %v9078 = vmul.f32 %v9055, %v9055
        %v9079 = vmul.f32 %v9058, %v9058
        %v9080 = vmul.f32 %v9060, %v9060
        %v9081 = vmul.f32 %v9063, %v9063
        %v9082 = vmul.f32 %v9065, %v9065
        %v9083 = vmul.f32 %v9028, %v9067
        %v9084 = vmul.f32 %v9030, %v9068
        %v9085 = vmul.f32 %v9033, %v9069
        %v9086 = vmul.f32 %v9035, %v9070
        %v9087 = vmul.f32 %v9038, %v9071
        %v9088 = vmul.f32 %v9040, %v9072
        %v9089 = vmul.f32 %v9043, %v9073
        %v9090 = vmul.f32 %v9045, %v9074
        %v9091 = vmul.f32 %v9048, %v9075
        %v9092 = vmul.f32 %v9050, %v9076
        %v9093 = vmul.f32 %v9053, %v9077
        %v9094 = vmul.f32 %v9055, %v9078
        %v9095 = vmul.f32 %v9058, %v9079
        %v9096 = vmul.f32 %v9060, %v9080
        %v9097 = vmul.f32 %v9063, %v9081
        %v9098 = vmul.f32 %v9065, %v9082
        %v9099 = vmul.f32 %v9083, 0.044715
        %v9100 = vmul.f32 %v9084, 0.044715
        %v9101 = vmul.f32 %v9085, 0.044715
        %v9102 = vmul.f32 %v9086, 0.044715
        %v9103 = vmul.f32 %v9087, 0.044715
        %v9104 = vmul.f32 %v9088, 0.044715
        %v9105 = vmul.f32 %v9089, 0.044715
        %v9106 = vmul.f32 %v9090, 0.044715
        %v9107 = vmul.f32 %v9091, 0.044715
        %v9108 = vmul.f32 %v9092, 0.044715
        %v9109 = vmul.f32 %v9093, 0.044715
        %v9110 = vmul.f32 %v9094, 0.044715
        %v9111 = vmul.f32 %v9095, 0.044715
        %v9112 = vmul.f32 %v9096, 0.044715
        %v9113 = vmul.f32 %v9097, 0.044715
        %v9114 = vmul.f32 %v9098, 0.044715
        %v9115 = vadd.f32 %v9028, %v9099
        %v9116 = vadd.f32 %v9030, %v9100
        %v9117 = vadd.f32 %v9033, %v9101
        %v9118 = vadd.f32 %v9035, %v9102
        %v9119 = vadd.f32 %v9038, %v9103
        %v9120 = vadd.f32 %v9040, %v9104
        %v9121 = vadd.f32 %v9043, %v9105
        %v9122 = vadd.f32 %v9045, %v9106
        %v9123 = vadd.f32 %v9048, %v9107
        %v9124 = vadd.f32 %v9050, %v9108
        %v9125 = vadd.f32 %v9053, %v9109
        %v9126 = vadd.f32 %v9055, %v9110
        %v9127 = vadd.f32 %v9058, %v9111
        %v9128 = vadd.f32 %v9060, %v9112
        %v9129 = vadd.f32 %v9063, %v9113
        %v9130 = vadd.f32 %v9065, %v9114
        %v9131 = vmul.f32 %v9115, 0.7978846
        %v9132 = vmul.f32 %v9116, 0.7978846
        %v9133 = vmul.f32 %v9117, 0.7978846
        %v9134 = vmul.f32 %v9118, 0.7978846
        %v9135 = vmul.f32 %v9119, 0.7978846
        %v9136 = vmul.f32 %v9120, 0.7978846
        %v9137 = vmul.f32 %v9121, 0.7978846
        %v9138 = vmul.f32 %v9122, 0.7978846
        %v9139 = vmul.f32 %v9123, 0.7978846
        %v9140 = vmul.f32 %v9124, 0.7978846
        %v9141 = vmul.f32 %v9125, 0.7978846
        %v9142 = vmul.f32 %v9126, 0.7978846
        %v9143 = vmul.f32 %v9127, 0.7978846
        %v9144 = vmul.f32 %v9128, 0.7978846
        %v9145 = vmul.f32 %v9129, 0.7978846
        %v9146 = vmul.f32 %v9130, 0.7978846
        %v9147 = vtanh.pop %v9131
        %v9148 = vtanh.pop %v9132
        %v9149 = vtanh.pop %v9133
        %v9150 = vtanh.pop %v9134
        %v9151 = vtanh.pop %v9135
        %v9152 = vtanh.pop %v9136
        %v9153 = vtanh.pop %v9137
        %v9154 = vtanh.pop %v9138
        %v9155 = vtanh.pop %v9139
        %v9156 = vtanh.pop %v9140
        %v9157 = vtanh.pop %v9141
        %v9158 = vtanh.pop %v9142
        %v9159 = vtanh.pop %v9143
        %v9160 = vtanh.pop %v9144
        %v9161 = vtanh.pop %v9145
        %v9162 = vtanh.pop %v9146
        %v9163 = vadd.f32 %v9147, 1.0
        %v9164 = vadd.f32 %v9148, 1.0
        %v9165 = vadd.f32 %v9149, 1.0
        %v9166 = vadd.f32 %v9150, 1.0
        %v9167 = vadd.f32 %v9151, 1.0
        %v9168 = vadd.f32 %v9152, 1.0
        %v9169 = vadd.f32 %v9153, 1.0
        %v9170 = vadd.f32 %v9154, 1.0
        %v9171 = vadd.f32 %v9155, 1.0
        %v9172 = vadd.f32 %v9156, 1.0
        %v9173 = vadd.f32 %v9157, 1.0
        %v9174 = vadd.f32 %v9158, 1.0
        %v9175 = vadd.f32 %v9159, 1.0
        %v9176 = vadd.f32 %v9160, 1.0
        %v9177 = vadd.f32 %v9161, 1.0
        %v9178 = vadd.f32 %v9162, 1.0
        %v9179 = vmul.f32 %v9163, 0.5
        %v9180 = vmul.f32 %v9164, 0.5
        %v9181 = vmul.f32 %v9165, 0.5
        %v9182 = vmul.f32 %v9166, 0.5
        %v9183 = vmul.f32 %v9167, 0.5
        %v9184 = vmul.f32 %v9168, 0.5
        %v9185 = vmul.f32 %v9169, 0.5
        %v9186 = vmul.f32 %v9170, 0.5
        %v9187 = vmul.f32 %v9171, 0.5
        %v9188 = vmul.f32 %v9172, 0.5
        %v9189 = vmul.f32 %v9173, 0.5
        %v9190 = vmul.f32 %v9174, 0.5
        %v9191 = vmul.f32 %v9175, 0.5
        %v9192 = vmul.f32 %v9176, 0.5
        %v9193 = vmul.f32 %v9177, 0.5
        %v9194 = vmul.f32 %v9178, 0.5
        %v9195 = vmul.f32 %v9028, %v9179
        %v9196 = vmul.f32 %v9030, %v9180
        %v9197 = vmul.f32 %v9033, %v9181
        %v9198 = vmul.f32 %v9035, %v9182
        %v9199 = vmul.f32 %v9038, %v9183
        %v9200 = vmul.f32 %v9040, %v9184
        %v9201 = vmul.f32 %v9043, %v9185
        %v9202 = vmul.f32 %v9045, %v9186
        %v9203 = vmul.f32 %v9048, %v9187
        %v9204 = vmul.f32 %v9050, %v9188
        %v9205 = vmul.f32 %v9053, %v9189
        %v9206 = vmul.f32 %v9055, %v9190
        %v9207 = vmul.f32 %v9058, %v9191
        %v9208 = vmul.f32 %v9060, %v9192
        %v9209 = vmul.f32 %v9063, %v9193
        %v9210 = vmul.f32 %v9065, %v9194
        %v9211 = vpack.c.bf16 %v9196, %v9195
        %v9212 = vpack.c.bf16 %v9198, %v9197
        %v9213 = vpack.c.bf16 %v9200, %v9199
        %v9214 = vpack.c.bf16 %v9202, %v9201
        %v9215 = vpack.c.bf16 %v9204, %v9203
        %v9216 = vpack.c.bf16 %v9206, %v9205
        %v9217 = vpack.c.bf16 %v9208, %v9207
        %v9218 = vpack.c.bf16 %v9210, %v9209
        %s9219 = scalar_lea.vmem %s8, 48
        %v9220 = vld [vmem:[%s9219] sm:$0xf]
        %v9221 = vld [vmem:[%s9219 + $0x4] sm:$0xf]
        %v9222 = vld [vmem:[%s9219 + $0x8] sm:$0xf]
        %v9223 = vld [vmem:[%s9219 + $0xc] sm:$0xf]
        %v9228 = vunpack.c.l.b16 %v9220
        %v9229 = vunpack.c.l.b16 %v9221
        %v9230 = vunpack.c.l.b16 %v9222
        %v9231 = vunpack.c.l.b16 %v9223
        %v9232 = vpack.c.b16 %v9229, %v9228
        %v9233 = vpack.c.b16 %v9231, %v9230
        %9234 = vrot.lane.b32.xlu0 %v8543, 32
        %v9235 = vpop.permute.xlu0 %9234
        %v9238 = vsel %vm5017, %v9211, 0
        %v9241 = vsel %vm5017, %v9212, 0
        %v9244 = vsel %vm5017, %v9213, 0
        %v9247 = vsel %vm5017, %v9214, 0
        %v9250 = vsel %vm5017, %v9215, 0
        %v9253 = vsel %vm5017, %v9216, 0
        %v9256 = vsel %vm5017, %v9217, 0
        %v9259 = vsel %vm5017, %v9218, 0
        %v9262 = vsel %vm5017, %v9232, 0
        %v9265 = vsel %vm5017, %v9233, 0
        %9267 = vmatpush.bf16.xpose.msra.mxu0 0
        %9268 = vmatpush.bf16.xpose.msra.mxu0 0
        %9269 = vmatpush.bf16.xpose.msra.mxu0 0
        %9270 = vmatpush.bf16.xpose.msra.mxu0 0
        %9271 = vmatpush.bf16.xpose.msra.mxu0 0
        %9272 = vmatpush.bf16.xpose.msra.mxu0 0
        %9273 = vmatpush.bf16.xpose.msra.mxu0 %v9265
        %9274 = vmatpush.bf16.xpose.msra.mxu0 %v9262
        %9275 = vmatmul.bf16.gmra.mxu0 %v9238
        %v9276 = vpop.f32.mrf.mxu0
        %v9277 = vadd.f32 %v9235, %v9276
        %v9278 = vpop.f32.mrf.mxu0
        %v9279 = vadd.f32 %v9235, %v9278
        %9280 = vmatmul.bf16.gmra.mxu0 %v9241
        %v9281 = vpop.f32.mrf.mxu0
        %v9282 = vadd.f32 %v9235, %v9281
        %v9283 = vpop.f32.mrf.mxu0
        %v9284 = vadd.f32 %v9235, %v9283
        %9285 = vmatmul.bf16.gmra.mxu0 %v9244
        %v9286 = vpop.f32.mrf.mxu0
        %v9287 = vadd.f32 %v9235, %v9286
        %v9288 = vpop.f32.mrf.mxu0
        %v9289 = vadd.f32 %v9235, %v9288
        %9290 = vmatmul.bf16.gmra.mxu0 %v9247
        %v9291 = vpop.f32.mrf.mxu0
        %v9292 = vadd.f32 %v9235, %v9291
        %v9293 = vpop.f32.mrf.mxu0
        %v9294 = vadd.f32 %v9235, %v9293
        %9295 = vmatmul.bf16.gmra.mxu0 %v9250
        %v9296 = vpop.f32.mrf.mxu0
        %v9297 = vadd.f32 %v9235, %v9296
        %v9298 = vpop.f32.mrf.mxu0
        %v9299 = vadd.f32 %v9235, %v9298
        %9300 = vmatmul.bf16.gmra.mxu0 %v9253
        %v9301 = vpop.f32.mrf.mxu0
        %v9302 = vadd.f32 %v9235, %v9301
        %v9303 = vpop.f32.mrf.mxu0
        %v9304 = vadd.f32 %v9235, %v9303
        %9305 = vmatmul.bf16.gmra.mxu0 %v9256
        %v9306 = vpop.f32.mrf.mxu0
        %v9307 = vadd.f32 %v9235, %v9306
        %v9308 = vpop.f32.mrf.mxu0
        %v9309 = vadd.f32 %v9235, %v9308
        %9310 = vmatmul.bf16.gmra.mxu0 %v9259
        %v9311 = vpop.f32.mrf.mxu0
        %v9312 = vadd.f32 %v9235, %v9311
        %v9313 = vpop.f32.mrf.mxu0
        %v9314 = vadd.f32 %v9235, %v9313
        %9315 = vdwg.mxu0
        %v9316 = vadd.f32 %v9277, %v8951
        %v9317 = vadd.f32 %v9279, %v8952
        %v9318 = vadd.f32 %v9282, %v8953
        %v9319 = vadd.f32 %v9284, %v8954
        %v9320 = vadd.f32 %v9287, %v8955
        %v9321 = vadd.f32 %v9289, %v8956
        %v9322 = vadd.f32 %v9292, %v8957
        %v9323 = vadd.f32 %v9294, %v8958
        %v9324 = vadd.f32 %v9297, %v8959
        %v9325 = vadd.f32 %v9299, %v8960
        %v9326 = vadd.f32 %v9302, %v8961
        %v9327 = vadd.f32 %v9304, %v8962
        %v9328 = vadd.f32 %v9307, %v8963
        %v9329 = vadd.f32 %v9309, %v8964
        %v9330 = vadd.f32 %v9312, %v8965
        %v9331 = vadd.f32 %v9314, %v8966
        %v9332 = vsel %vm793, %v9316, 0.0
        %9333 = vadd.xlane.f32.xlu0 %v9332
        %v9334 = vpop.xlane.xlu0 %9333
        %v9335 = vsel %vm793, %v9317, 0.0
        %9336 = vadd.xlane.f32.xlu0 %v9335
        %v9337 = vpop.xlane.xlu0 %9336
        %v9338 = vsel %vm793, %v9318, 0.0
        %9339 = vadd.xlane.f32.xlu0 %v9338
        %v9340 = vpop.xlane.xlu0 %9339
        %v9341 = vsel %vm793, %v9319, 0.0
        %9342 = vadd.xlane.f32.xlu0 %v9341
        %v9343 = vpop.xlane.xlu0 %9342
        %v9344 = vsel %vm793, %v9320, 0.0
        %9345 = vadd.xlane.f32.xlu0 %v9344
        %v9346 = vpop.xlane.xlu0 %9345
        %v9347 = vsel %vm793, %v9321, 0.0
        %9348 = vadd.xlane.f32.xlu0 %v9347
        %v9349 = vpop.xlane.xlu0 %9348
        %v9350 = vsel %vm793, %v9322, 0.0
        %9351 = vadd.xlane.f32.xlu0 %v9350
        %v9352 = vpop.xlane.xlu0 %9351
        %v9353 = vsel %vm793, %v9323, 0.0
        %9354 = vadd.xlane.f32.xlu0 %v9353
        %v9355 = vpop.xlane.xlu0 %9354
        %v9356 = vsel %vm793, %v9324, 0.0
        %9357 = vadd.xlane.f32.xlu0 %v9356
        %v9358 = vpop.xlane.xlu0 %9357
        %v9359 = vsel %vm793, %v9325, 0.0
        %9360 = vadd.xlane.f32.xlu0 %v9359
        %v9361 = vpop.xlane.xlu0 %9360
        %v9362 = vsel %vm793, %v9326, 0.0
        %9363 = vadd.xlane.f32.xlu0 %v9362
        %v9364 = vpop.xlane.xlu0 %9363
        %v9365 = vsel %vm793, %v9327, 0.0
        %9366 = vadd.xlane.f32.xlu0 %v9365
        %v9367 = vpop.xlane.xlu0 %9366
        %v9368 = vsel %vm793, %v9328, 0.0
        %9369 = vadd.xlane.f32.xlu0 %v9368
        %v9370 = vpop.xlane.xlu0 %9369
        %v9371 = vsel %vm793, %v9329, 0.0
        %9372 = vadd.xlane.f32.xlu0 %v9371
        %v9373 = vpop.xlane.xlu0 %9372
        %v9374 = vsel %vm793, %v9330, 0.0
        %9375 = vadd.xlane.f32.xlu0 %v9374
        %v9376 = vpop.xlane.xlu0 %9375
        %v9377 = vsel %vm793, %v9331, 0.0
        %9378 = vadd.xlane.f32.xlu0 %v9377
        %v9379 = vpop.xlane.xlu0 %9378
        %v9380 = vmul.f32 %v9334, %v848
        %v9381 = vmul.f32 %v9337, %v848
        %v9382 = vmul.f32 %v9340, %v848
        %v9383 = vmul.f32 %v9343, %v848
        %v9384 = vmul.f32 %v9346, %v848
        %v9385 = vmul.f32 %v9349, %v848
        %v9386 = vmul.f32 %v9352, %v848
        %v9387 = vmul.f32 %v9355, %v848
        %v9388 = vmul.f32 %v9358, %v848
        %v9389 = vmul.f32 %v9361, %v848
        %v9390 = vmul.f32 %v9364, %v848
        %v9391 = vmul.f32 %v9367, %v848
        %v9392 = vmul.f32 %v9370, %v848
        %v9393 = vmul.f32 %v9373, %v848
        %v9394 = vmul.f32 %v9376, %v848
        %v9395 = vmul.f32 %v9379, %v848
        %v9396 = vsub.f32 %v9316, %v9380
        %v9397 = vsub.f32 %v9317, %v9381
        %v9398 = vsub.f32 %v9318, %v9382
        %v9399 = vsub.f32 %v9319, %v9383
        %v9400 = vsub.f32 %v9320, %v9384
        %v9401 = vsub.f32 %v9321, %v9385
        %v9402 = vsub.f32 %v9322, %v9386
        %v9403 = vsub.f32 %v9323, %v9387
        %v9404 = vsub.f32 %v9324, %v9388
        %v9405 = vsub.f32 %v9325, %v9389
        %v9406 = vsub.f32 %v9326, %v9390
        %v9407 = vsub.f32 %v9327, %v9391
        %v9408 = vsub.f32 %v9328, %v9392
        %v9409 = vsub.f32 %v9329, %v9393
        %v9410 = vsub.f32 %v9330, %v9394
        %v9411 = vsub.f32 %v9331, %v9395
        %v9412 = vmul.f32 %v9396, %v9396
        %v9413 = vmul.f32 %v9397, %v9397
        %v9414 = vmul.f32 %v9398, %v9398
        %v9415 = vmul.f32 %v9399, %v9399
        %v9416 = vmul.f32 %v9400, %v9400
        %v9417 = vmul.f32 %v9401, %v9401
        %v9418 = vmul.f32 %v9402, %v9402
        %v9419 = vmul.f32 %v9403, %v9403
        %v9420 = vmul.f32 %v9404, %v9404
        %v9421 = vmul.f32 %v9405, %v9405
        %v9422 = vmul.f32 %v9406, %v9406
        %v9423 = vmul.f32 %v9407, %v9407
        %v9424 = vmul.f32 %v9408, %v9408
        %v9425 = vmul.f32 %v9409, %v9409
        %v9426 = vmul.f32 %v9410, %v9410
        %v9427 = vmul.f32 %v9411, %v9411
        %v9428 = vsel %vm793, %v9412, 0.0
        %9429 = vadd.xlane.f32.xlu0 %v9428
        %v9430 = vpop.xlane.xlu0 %9429
        %v9431 = vsel %vm793, %v9413, 0.0
        %9432 = vadd.xlane.f32.xlu0 %v9431
        %v9433 = vpop.xlane.xlu0 %9432
        %v9434 = vsel %vm793, %v9414, 0.0
        %9435 = vadd.xlane.f32.xlu0 %v9434
        %v9436 = vpop.xlane.xlu0 %9435
        %v9437 = vsel %vm793, %v9415, 0.0
        %9438 = vadd.xlane.f32.xlu0 %v9437
        %v9439 = vpop.xlane.xlu0 %9438
        %v9440 = vsel %vm793, %v9416, 0.0
        %9441 = vadd.xlane.f32.xlu0 %v9440
        %v9442 = vpop.xlane.xlu0 %9441
        %v9443 = vsel %vm793, %v9417, 0.0
        %9444 = vadd.xlane.f32.xlu0 %v9443
        %v9445 = vpop.xlane.xlu0 %9444
        %v9446 = vsel %vm793, %v9418, 0.0
        %9447 = vadd.xlane.f32.xlu0 %v9446
        %v9448 = vpop.xlane.xlu0 %9447
        %v9449 = vsel %vm793, %v9419, 0.0
        %9450 = vadd.xlane.f32.xlu0 %v9449
        %v9451 = vpop.xlane.xlu0 %9450
        %v9452 = vsel %vm793, %v9420, 0.0
        %9453 = vadd.xlane.f32.xlu0 %v9452
        %v9454 = vpop.xlane.xlu0 %9453
        %v9455 = vsel %vm793, %v9421, 0.0
        %9456 = vadd.xlane.f32.xlu0 %v9455
        %v9457 = vpop.xlane.xlu0 %9456
        %v9458 = vsel %vm793, %v9422, 0.0
        %9459 = vadd.xlane.f32.xlu0 %v9458
        %v9460 = vpop.xlane.xlu0 %9459
        %v9461 = vsel %vm793, %v9423, 0.0
        %9462 = vadd.xlane.f32.xlu0 %v9461
        %v9463 = vpop.xlane.xlu0 %9462
        %v9464 = vsel %vm793, %v9424, 0.0
        %9465 = vadd.xlane.f32.xlu0 %v9464
        %v9466 = vpop.xlane.xlu0 %9465
        %v9467 = vsel %vm793, %v9425, 0.0
        %9468 = vadd.xlane.f32.xlu0 %v9467
        %v9469 = vpop.xlane.xlu0 %9468
        %v9470 = vsel %vm793, %v9426, 0.0
        %9471 = vadd.xlane.f32.xlu0 %v9470
        %v9472 = vpop.xlane.xlu0 %9471
        %v9473 = vsel %vm793, %v9427, 0.0
        %9474 = vadd.xlane.f32.xlu0 %v9473
        %v9475 = vpop.xlane.xlu0 %9474
        %v9476 = vmul.f32 %v9430, %v848
        %v9477 = vmul.f32 %v9433, %v848
        %v9478 = vmul.f32 %v9436, %v848
        %v9479 = vmul.f32 %v9439, %v848
        %v9480 = vmul.f32 %v9442, %v848
        %v9481 = vmul.f32 %v9445, %v848
        %v9482 = vmul.f32 %v9448, %v848
        %v9483 = vmul.f32 %v9451, %v848
        %v9484 = vmul.f32 %v9454, %v848
        %v9485 = vmul.f32 %v9457, %v848
        %v9486 = vmul.f32 %v9460, %v848
        %v9487 = vmul.f32 %v9463, %v848
        %v9488 = vmul.f32 %v9466, %v848
        %v9489 = vmul.f32 %v9469, %v848
        %v9490 = vmul.f32 %v9472, %v848
        %v9491 = vmul.f32 %v9475, %v848
        %v9492 = vadd.f32 %v9476, 1e-12
        %v9493 = vadd.f32 %v9477, 1e-12
        %v9494 = vadd.f32 %v9478, 1e-12
        %v9495 = vadd.f32 %v9479, 1e-12
        %v9496 = vadd.f32 %v9480, 1e-12
        %v9497 = vadd.f32 %v9481, 1e-12
        %v9498 = vadd.f32 %v9482, 1e-12
        %v9499 = vadd.f32 %v9483, 1e-12
        %v9500 = vadd.f32 %v9484, 1e-12
        %v9501 = vadd.f32 %v9485, 1e-12
        %v9502 = vadd.f32 %v9486, 1e-12
        %v9503 = vadd.f32 %v9487, 1e-12
        %v9504 = vadd.f32 %v9488, 1e-12
        %v9505 = vadd.f32 %v9489, 1e-12
        %v9506 = vadd.f32 %v9490, 1e-12
        %v9507 = vadd.f32 %v9491, 1e-12
        %v9508 = vrsqrt.pop %v9492
        %v9509 = vmul.f32 %v9508, %v9492
        %v9510 = vmul.f32 %v9509, %v9508
        %v9511 = vmul.f32 0.5, %v9510
        %v9512 = vsub.f32 1.5, %v9511
        %v9513 = vmul.f32 %v9508, %v9512
        %vm9514 = vweird.f32 %v9492
        %vm9515 = vweird.f32 %v9508
        %vm9516 = vmor %vm9514, %vm9515
        %v9517 = vsel %vm9516, %v9508, %v9513
        %v9518 = vrsqrt.pop %v9493
        %v9519 = vmul.f32 %v9518, %v9493
        %v9520 = vmul.f32 %v9519, %v9518
        %v9521 = vmul.f32 0.5, %v9520
        %v9522 = vsub.f32 1.5, %v9521
        %v9523 = vmul.f32 %v9518, %v9522
        %vm9524 = vweird.f32 %v9493
        %vm9525 = vweird.f32 %v9518
        %vm9526 = vmor %vm9524, %vm9525
        %v9527 = vsel %vm9526, %v9518, %v9523
        %v9528 = vrsqrt.pop %v9494
        %v9529 = vmul.f32 %v9528, %v9494
        %v9530 = vmul.f32 %v9529, %v9528
        %v9531 = vmul.f32 0.5, %v9530
        %v9532 = vsub.f32 1.5, %v9531
        %v9533 = vmul.f32 %v9528, %v9532
        %vm9534 = vweird.f32 %v9494
        %vm9535 = vweird.f32 %v9528
        %vm9536 = vmor %vm9534, %vm9535
        %v9537 = vsel %vm9536, %v9528, %v9533
        %v9538 = vrsqrt.pop %v9495
        %v9539 = vmul.f32 %v9538, %v9495
        %v9540 = vmul.f32 %v9539, %v9538
        %v9541 = vmul.f32 0.5, %v9540
        %v9542 = vsub.f32 1.5, %v9541
        %v9543 = vmul.f32 %v9538, %v9542
        %vm9544 = vweird.f32 %v9495
        %vm9545 = vweird.f32 %v9538
        %vm9546 = vmor %vm9544, %vm9545
        %v9547 = vsel %vm9546, %v9538, %v9543
        %v9548 = vrsqrt.pop %v9496
        %v9549 = vmul.f32 %v9548, %v9496
        %v9550 = vmul.f32 %v9549, %v9548
        %v9551 = vmul.f32 0.5, %v9550
        %v9552 = vsub.f32 1.5, %v9551
        %v9553 = vmul.f32 %v9548, %v9552
        %vm9554 = vweird.f32 %v9496
        %vm9555 = vweird.f32 %v9548
        %vm9556 = vmor %vm9554, %vm9555
        %v9557 = vsel %vm9556, %v9548, %v9553
        %v9558 = vrsqrt.pop %v9497
        %v9559 = vmul.f32 %v9558, %v9497
        %v9560 = vmul.f32 %v9559, %v9558
        %v9561 = vmul.f32 0.5, %v9560
        %v9562 = vsub.f32 1.5, %v9561
        %v9563 = vmul.f32 %v9558, %v9562
        %vm9564 = vweird.f32 %v9497
        %vm9565 = vweird.f32 %v9558
        %vm9566 = vmor %vm9564, %vm9565
        %v9567 = vsel %vm9566, %v9558, %v9563
        %v9568 = vrsqrt.pop %v9498
        %v9569 = vmul.f32 %v9568, %v9498
        %v9570 = vmul.f32 %v9569, %v9568
        %v9571 = vmul.f32 0.5, %v9570
        %v9572 = vsub.f32 1.5, %v9571
        %v9573 = vmul.f32 %v9568, %v9572
        %vm9574 = vweird.f32 %v9498
        %vm9575 = vweird.f32 %v9568
        %vm9576 = vmor %vm9574, %vm9575
        %v9577 = vsel %vm9576, %v9568, %v9573
        %v9578 = vrsqrt.pop %v9499
        %v9579 = vmul.f32 %v9578, %v9499
        %v9580 = vmul.f32 %v9579, %v9578
        %v9581 = vmul.f32 0.5, %v9580
        %v9582 = vsub.f32 1.5, %v9581
        %v9583 = vmul.f32 %v9578, %v9582
        %vm9584 = vweird.f32 %v9499
        %vm9585 = vweird.f32 %v9578
        %vm9586 = vmor %vm9584, %vm9585
        %v9587 = vsel %vm9586, %v9578, %v9583
        %v9588 = vrsqrt.pop %v9500
        %v9589 = vmul.f32 %v9588, %v9500
        %v9590 = vmul.f32 %v9589, %v9588
        %v9591 = vmul.f32 0.5, %v9590
        %v9592 = vsub.f32 1.5, %v9591
        %v9593 = vmul.f32 %v9588, %v9592
        %vm9594 = vweird.f32 %v9500
        %vm9595 = vweird.f32 %v9588
        %vm9596 = vmor %vm9594, %vm9595
        %v9597 = vsel %vm9596, %v9588, %v9593
        %v9598 = vrsqrt.pop %v9501
        %v9599 = vmul.f32 %v9598, %v9501
        %v9600 = vmul.f32 %v9599, %v9598
        %v9601 = vmul.f32 0.5, %v9600
        %v9602 = vsub.f32 1.5, %v9601
        %v9603 = vmul.f32 %v9598, %v9602
        %vm9604 = vweird.f32 %v9501
        %vm9605 = vweird.f32 %v9598
        %vm9606 = vmor %vm9604, %vm9605
        %v9607 = vsel %vm9606, %v9598, %v9603
        %v9608 = vrsqrt.pop %v9502
        %v9609 = vmul.f32 %v9608, %v9502
        %v9610 = vmul.f32 %v9609, %v9608
        %v9611 = vmul.f32 0.5, %v9610
        %v9612 = vsub.f32 1.5, %v9611
        %v9613 = vmul.f32 %v9608, %v9612
        %vm9614 = vweird.f32 %v9502
        %vm9615 = vweird.f32 %v9608
        %vm9616 = vmor %vm9614, %vm9615
        %v9617 = vsel %vm9616, %v9608, %v9613
        %v9618 = vrsqrt.pop %v9503
        %v9619 = vmul.f32 %v9618, %v9503
        %v9620 = vmul.f32 %v9619, %v9618
        %v9621 = vmul.f32 0.5, %v9620
        %v9622 = vsub.f32 1.5, %v9621
        %v9623 = vmul.f32 %v9618, %v9622
        %vm9624 = vweird.f32 %v9503
        %vm9625 = vweird.f32 %v9618
        %vm9626 = vmor %vm9624, %vm9625
        %v9627 = vsel %vm9626, %v9618, %v9623
        %v9628 = vrsqrt.pop %v9504
        %v9629 = vmul.f32 %v9628, %v9504
        %v9630 = vmul.f32 %v9629, %v9628
        %v9631 = vmul.f32 0.5, %v9630
        %v9632 = vsub.f32 1.5, %v9631
        %v9633 = vmul.f32 %v9628, %v9632
        %vm9634 = vweird.f32 %v9504
        %vm9635 = vweird.f32 %v9628
        %vm9636 = vmor %vm9634, %vm9635
        %v9637 = vsel %vm9636, %v9628, %v9633
        %v9638 = vrsqrt.pop %v9505
        %v9639 = vmul.f32 %v9638, %v9505
        %v9640 = vmul.f32 %v9639, %v9638
        %v9641 = vmul.f32 0.5, %v9640
        %v9642 = vsub.f32 1.5, %v9641
        %v9643 = vmul.f32 %v9638, %v9642
        %vm9644 = vweird.f32 %v9505
        %vm9645 = vweird.f32 %v9638
        %vm9646 = vmor %vm9644, %vm9645
        %v9647 = vsel %vm9646, %v9638, %v9643
        %v9648 = vrsqrt.pop %v9506
        %v9649 = vmul.f32 %v9648, %v9506
        %v9650 = vmul.f32 %v9649, %v9648
        %v9651 = vmul.f32 0.5, %v9650
        %v9652 = vsub.f32 1.5, %v9651
        %v9653 = vmul.f32 %v9648, %v9652
        %vm9654 = vweird.f32 %v9506
        %vm9655 = vweird.f32 %v9648
        %vm9656 = vmor %vm9654, %vm9655
        %v9657 = vsel %vm9656, %v9648, %v9653
        %v9658 = vrsqrt.pop %v9507
        %v9659 = vmul.f32 %v9658, %v9507
        %v9660 = vmul.f32 %v9659, %v9658
        %v9661 = vmul.f32 0.5, %v9660
        %v9662 = vsub.f32 1.5, %v9661
        %v9663 = vmul.f32 %v9658, %v9662
        %vm9664 = vweird.f32 %v9507
        %vm9665 = vweird.f32 %v9658
        %vm9666 = vmor %vm9664, %vm9665
        %v9667 = vsel %vm9666, %v9658, %v9663
        %v9668 = vmul.f32 %v9396, %v9517
        %v9669 = vmul.f32 %v9397, %v9527
        %v9670 = vmul.f32 %v9398, %v9537
        %v9671 = vmul.f32 %v9399, %v9547
        %v9672 = vmul.f32 %v9400, %v9557
        %v9673 = vmul.f32 %v9401, %v9567
        %v9674 = vmul.f32 %v9402, %v9577
        %v9675 = vmul.f32 %v9403, %v9587
        %v9676 = vmul.f32 %v9404, %v9597
        %v9677 = vmul.f32 %v9405, %v9607
        %v9678 = vmul.f32 %v9406, %v9617
        %v9679 = vmul.f32 %v9407, %v9627
        %v9680 = vmul.f32 %v9408, %v9637
        %v9681 = vmul.f32 %v9409, %v9647
        %v9682 = vmul.f32 %v9410, %v9657
        %v9683 = vmul.f32 %v9411, %v9667
        %9685 = vrot.lane.b32.xlu0 %v8981, 64
        %v9686 = vpop.permute.xlu0 %9685
        %v9688 = vmul.f32 %v9668, %v9686
        %v9689 = vmul.f32 %v9669, %v9686
        %v9690 = vmul.f32 %v9670, %v9686
        %v9691 = vmul.f32 %v9671, %v9686
        %v9692 = vmul.f32 %v9672, %v9686
        %v9693 = vmul.f32 %v9673, %v9686
        %v9694 = vmul.f32 %v9674, %v9686
        %v9695 = vmul.f32 %v9675, %v9686
        %v9696 = vmul.f32 %v9676, %v9686
        %v9697 = vmul.f32 %v9677, %v9686
        %v9698 = vmul.f32 %v9678, %v9686
        %v9699 = vmul.f32 %v9679, %v9686
        %v9700 = vmul.f32 %v9680, %v9686
        %v9701 = vmul.f32 %v9681, %v9686
        %v9702 = vmul.f32 %v9682, %v9686
        %v9703 = vmul.f32 %v9683, %v9686
        %9704 = vrot.lane.b32.xlu0 %v8981, 32
        %v9705 = vpop.permute.xlu0 %9704
        %v9707 = vadd.f32 %v9688, %v9705
        %v9708 = vadd.f32 %v9689, %v9705
        %v9709 = vadd.f32 %v9690, %v9705
        %v9710 = vadd.f32 %v9691, %v9705
        %v9711 = vadd.f32 %v9692, %v9705
        %v9712 = vadd.f32 %v9693, %v9705
        %v9713 = vadd.f32 %v9694, %v9705
        %v9714 = vadd.f32 %v9695, %v9705
        %v9715 = vadd.f32 %v9696, %v9705
        %v9716 = vadd.f32 %v9697, %v9705
        %v9717 = vadd.f32 %v9698, %v9705
        %v9718 = vadd.f32 %v9699, %v9705
        %v9719 = vadd.f32 %v9700, %v9705
        %v9720 = vadd.f32 %v9701, %v9705
        %v9721 = vadd.f32 %v9702, %v9705
        %v9722 = vadd.f32 %v9703, %v9705
        %v9723 = vld [vmem:[%s421] sm:$0xff]
        %v9724 = vld [vmem:[%s421 + $0x8] sm:$0xff]
        %v9725 = vld [vmem:[%s421 + $0x10] sm:$0xff]
        %v9726 = vld [vmem:[%s421 + $0x18] sm:$0xff]
        %v9727 = vld [vmem:[%s421 + $0x20] sm:$0xff]
        %v9728 = vld [vmem:[%s421 + $0x28] sm:$0xff]
        %v9729 = vld [vmem:[%s421 + $0x30] sm:$0xff]
        %v9730 = vld [vmem:[%s421 + $0x38] sm:$0xff]
        %v9731 = vld [vmem:[%s421 + $0x40] sm:$0xff]
        %v9732 = vld [vmem:[%s421 + $0x48] sm:$0xff]
        %v9733 = vld [vmem:[%s421 + $0x50] sm:$0xff]
        %v9734 = vld [vmem:[%s421 + $0x58] sm:$0xff]
        %v9735 = vld [vmem:[%s421 + $0x60] sm:$0xff]
        %v9736 = vld [vmem:[%s421 + $0x68] sm:$0xff]
        %v9737 = vld [vmem:[%s421 + $0x70] sm:$0xff]
        %v9738 = vld [vmem:[%s421 + $0x78] sm:$0xff]
        %9740 = vset.pattern.permute.xlu0 0
        %9741 = vperm.xlu0 %9740, %v9723
        %v9742 = vpop.permute.xlu0 %9741
        %9745 = vset.pattern.permute.xlu0 0
        %9746 = vperm.xlu0 %9745, %v9724
        %v9747 = vpop.permute.xlu0 %9746
        %9750 = vset.pattern.permute.xlu0 0
        %9751 = vperm.xlu0 %9750, %v9725
        %v9752 = vpop.permute.xlu0 %9751
        %9755 = vset.pattern.permute.xlu0 0
        %9756 = vperm.xlu0 %9755, %v9726
        %v9757 = vpop.permute.xlu0 %9756
        %9760 = vset.pattern.permute.xlu0 0
        %9761 = vperm.xlu0 %9760, %v9727
        %v9762 = vpop.permute.xlu0 %9761
        %9765 = vset.pattern.permute.xlu0 0
        %9766 = vperm.xlu0 %9765, %v9728
        %v9767 = vpop.permute.xlu0 %9766
        %9770 = vset.pattern.permute.xlu0 0
        %9771 = vperm.xlu0 %9770, %v9729
        %v9772 = vpop.permute.xlu0 %9771
        %9775 = vset.pattern.permute.xlu0 0
        %9776 = vperm.xlu0 %9775, %v9730
        %v9777 = vpop.permute.xlu0 %9776
        %9780 = vset.pattern.permute.xlu0 0
        %9781 = vperm.xlu0 %9780, %v9731
        %v9782 = vpop.permute.xlu0 %9781
        %9785 = vset.pattern.permute.xlu0 0
        %9786 = vperm.xlu0 %9785, %v9732
        %v9787 = vpop.permute.xlu0 %9786
        %9790 = vset.pattern.permute.xlu0 0
        %9791 = vperm.xlu0 %9790, %v9733
        %v9792 = vpop.permute.xlu0 %9791
        %9795 = vset.pattern.permute.xlu0 0
        %9796 = vperm.xlu0 %9795, %v9734
        %v9797 = vpop.permute.xlu0 %9796
        %9800 = vset.pattern.permute.xlu0 0
        %9801 = vperm.xlu0 %9800, %v9735
        %v9802 = vpop.permute.xlu0 %9801
        %9805 = vset.pattern.permute.xlu0 0
        %9806 = vperm.xlu0 %9805, %v9736
        %v9807 = vpop.permute.xlu0 %9806
        %9810 = vset.pattern.permute.xlu0 0
        %9811 = vperm.xlu0 %9810, %v9737
        %v9812 = vpop.permute.xlu0 %9811
        %9815 = vset.pattern.permute.xlu0 0
        %9816 = vperm.xlu0 %9815, %v9738
        %v9817 = vpop.permute.xlu0 %9816
        %v9819 = vmul.f32 %v9707, %v9742
        %v9820 = vmul.f32 %v9708, %v9747
        %v9821 = vmul.f32 %v9709, %v9752
        %v9822 = vmul.f32 %v9710, %v9757
        %v9823 = vmul.f32 %v9711, %v9762
        %v9824 = vmul.f32 %v9712, %v9767
        %v9825 = vmul.f32 %v9713, %v9772
        %v9826 = vmul.f32 %v9714, %v9777
        %v9827 = vmul.f32 %v9715, %v9782
        %v9828 = vmul.f32 %v9716, %v9787
        %v9829 = vmul.f32 %v9717, %v9792
        %v9830 = vmul.f32 %v9718, %v9797
        %v9831 = vmul.f32 %v9719, %v9802
        %v9832 = vmul.f32 %v9720, %v9807
        %v9833 = vmul.f32 %v9721, %v9812
        %v9834 = vmul.f32 %v9722, %v9817
        %v9835 = vsel %vm793, %v9819, 0.0
        %v9836 = vrot.slane %v9835, 4
        %v9837 = vadd.f32 %v9835, %v9836
        %v9838 = vrot.slane %v9837, 2
        %v9839 = vadd.f32 %v9837, %v9838
        %v9840 = vrot.slane %v9839, 1
        %v9841 = vadd.f32 %v9839, %v9840
        %v9842 = vsel %vm793, %v9820, 0.0
        %v9843 = vrot.slane %v9842, 4
        %v9844 = vadd.f32 %v9842, %v9843
        %v9845 = vrot.slane %v9844, 2
        %v9846 = vadd.f32 %v9844, %v9845
        %v9847 = vrot.slane %v9846, 1
        %v9848 = vadd.f32 %v9846, %v9847
        %v9849 = vsel %vm793, %v9821, 0.0
        %v9850 = vrot.slane %v9849, 4
        %v9851 = vadd.f32 %v9849, %v9850
        %v9852 = vrot.slane %v9851, 2
        %v9853 = vadd.f32 %v9851, %v9852
        %v9854 = vrot.slane %v9853, 1
        %v9855 = vadd.f32 %v9853, %v9854
        %v9856 = vsel %vm793, %v9822, 0.0
        %v9857 = vrot.slane %v9856, 4
        %v9858 = vadd.f32 %v9856, %v9857
        %v9859 = vrot.slane %v9858, 2
        %v9860 = vadd.f32 %v9858, %v9859
        %v9861 = vrot.slane %v9860, 1
        %v9862 = vadd.f32 %v9860, %v9861
        %v9863 = vsel %vm793, %v9823, 0.0
        %v9864 = vrot.slane %v9863, 4
        %v9865 = vadd.f32 %v9863, %v9864
        %v9866 = vrot.slane %v9865, 2
        %v9867 = vadd.f32 %v9865, %v9866
        %v9868 = vrot.slane %v9867, 1
        %v9869 = vadd.f32 %v9867, %v9868
        %v9870 = vsel %vm793, %v9824, 0.0
        %v9871 = vrot.slane %v9870, 4
        %v9872 = vadd.f32 %v9870, %v9871
        %v9873 = vrot.slane %v9872, 2
        %v9874 = vadd.f32 %v9872, %v9873
        %v9875 = vrot.slane %v9874, 1
        %v9876 = vadd.f32 %v9874, %v9875
        %v9877 = vsel %vm793, %v9825, 0.0
        %v9878 = vrot.slane %v9877, 4
        %v9879 = vadd.f32 %v9877, %v9878
        %v9880 = vrot.slane %v9879, 2
        %v9881 = vadd.f32 %v9879, %v9880
        %v9882 = vrot.slane %v9881, 1
        %v9883 = vadd.f32 %v9881, %v9882
        %v9884 = vsel %vm793, %v9826, 0.0
        %v9885 = vrot.slane %v9884, 4
        %v9886 = vadd.f32 %v9884, %v9885
        %v9887 = vrot.slane %v9886, 2
        %v9888 = vadd.f32 %v9886, %v9887
        %v9889 = vrot.slane %v9888, 1
        %v9890 = vadd.f32 %v9888, %v9889
        %v9891 = vsel %vm793, %v9827, 0.0
        %v9892 = vrot.slane %v9891, 4
        %v9893 = vadd.f32 %v9891, %v9892
        %v9894 = vrot.slane %v9893, 2
        %v9895 = vadd.f32 %v9893, %v9894
        %v9896 = vrot.slane %v9895, 1
        %v9897 = vadd.f32 %v9895, %v9896
        %v9898 = vsel %vm793, %v9828, 0.0
        %v9899 = vrot.slane %v9898, 4
        %v9900 = vadd.f32 %v9898, %v9899
        %v9901 = vrot.slane %v9900, 2
        %v9902 = vadd.f32 %v9900, %v9901
        %v9903 = vrot.slane %v9902, 1
        %v9904 = vadd.f32 %v9902, %v9903
        %v9905 = vsel %vm793, %v9829, 0.0
        %v9906 = vrot.slane %v9905, 4
        %v9907 = vadd.f32 %v9905, %v9906
        %v9908 = vrot.slane %v9907, 2
        %v9909 = vadd.f32 %v9907, %v9908
        %v9910 = vrot.slane %v9909, 1
        %v9911 = vadd.f32 %v9909, %v9910
        %v9912 = vsel %vm793, %v9830, 0.0
        %v9913 = vrot.slane %v9912, 4
        %v9914 = vadd.f32 %v9912, %v9913
        %v9915 = vrot.slane %v9914, 2
        %v9916 = vadd.f32 %v9914, %v9915
        %v9917 = vrot.slane %v9916, 1
        %v9918 = vadd.f32 %v9916, %v9917
        %v9919 = vsel %vm793, %v9831, 0.0
        %v9920 = vrot.slane %v9919, 4
        %v9921 = vadd.f32 %v9919, %v9920
        %v9922 = vrot.slane %v9921, 2
        %v9923 = vadd.f32 %v9921, %v9922
        %v9924 = vrot.slane %v9923, 1
        %v9925 = vadd.f32 %v9923, %v9924
        %v9926 = vsel %vm793, %v9832, 0.0
        %v9927 = vrot.slane %v9926, 4
        %v9928 = vadd.f32 %v9926, %v9927
        %v9929 = vrot.slane %v9928, 2
        %v9930 = vadd.f32 %v9928, %v9929
        %v9931 = vrot.slane %v9930, 1
        %v9932 = vadd.f32 %v9930, %v9931
        %v9933 = vsel %vm793, %v9833, 0.0
        %v9934 = vrot.slane %v9933, 4
        %v9935 = vadd.f32 %v9933, %v9934
        %v9936 = vrot.slane %v9935, 2
        %v9937 = vadd.f32 %v9935, %v9936
        %v9938 = vrot.slane %v9937, 1
        %v9939 = vadd.f32 %v9937, %v9938
        %v9940 = vsel %vm793, %v9834, 0.0
        %v9941 = vrot.slane %v9940, 4
        %v9942 = vadd.f32 %v9940, %v9941
        %v9943 = vrot.slane %v9942, 2
        %v9944 = vadd.f32 %v9942, %v9943
        %v9945 = vrot.slane %v9944, 1
        %v9946 = vadd.f32 %v9944, %v9945
        %vm9947 = vcmask 7168
        %v9948 = vsel %vm9947, %v9723, 0.0
        %v9949 = vrot.slane %v9948, 4
        %v9950 = vadd.f32 %v9948, %v9949
        %v9951 = vrot.slane %v9950, 2
        %v9952 = vadd.f32 %v9950, %v9951
        %v9953 = vrot.slane %v9952, 1
        %v9954 = vadd.f32 %v9952, %v9953
        %v9955 = vsel %vm9947, %v9724, 0.0
        %v9956 = vrot.slane %v9955, 4
        %v9957 = vadd.f32 %v9955, %v9956
        %v9958 = vrot.slane %v9957, 2
        %v9959 = vadd.f32 %v9957, %v9958
        %v9960 = vrot.slane %v9959, 1
        %v9961 = vadd.f32 %v9959, %v9960
        %v9962 = vsel %vm9947, %v9725, 0.0
        %v9963 = vrot.slane %v9962, 4
        %v9964 = vadd.f32 %v9962, %v9963
        %v9965 = vrot.slane %v9964, 2
        %v9966 = vadd.f32 %v9964, %v9965
        %v9967 = vrot.slane %v9966, 1
        %v9968 = vadd.f32 %v9966, %v9967
        %v9969 = vsel %vm9947, %v9726, 0.0
        %v9970 = vrot.slane %v9969, 4
        %v9971 = vadd.f32 %v9969, %v9970
        %v9972 = vrot.slane %v9971, 2
        %v9973 = vadd.f32 %v9971, %v9972
        %v9974 = vrot.slane %v9973, 1
        %v9975 = vadd.f32 %v9973, %v9974
        %v9976 = vsel %vm9947, %v9727, 0.0
        %v9977 = vrot.slane %v9976, 4
        %v9978 = vadd.f32 %v9976, %v9977
        %v9979 = vrot.slane %v9978, 2
        %v9980 = vadd.f32 %v9978, %v9979
        %v9981 = vrot.slane %v9980, 1
        %v9982 = vadd.f32 %v9980, %v9981
        %v9983 = vsel %vm9947, %v9728, 0.0
        %v9984 = vrot.slane %v9983, 4
        %v9985 = vadd.f32 %v9983, %v9984
        %v9986 = vrot.slane %v9985, 2
        %v9987 = vadd.f32 %v9985, %v9986
        %v9988 = vrot.slane %v9987, 1
        %v9989 = vadd.f32 %v9987, %v9988
        %v9990 = vsel %vm9947, %v9729, 0.0
        %v9991 = vrot.slane %v9990, 4
        %v9992 = vadd.f32 %v9990, %v9991
        %v9993 = vrot.slane %v9992, 2
        %v9994 = vadd.f32 %v9992, %v9993
        %v9995 = vrot.slane %v9994, 1
        %v9996 = vadd.f32 %v9994, %v9995
        %v9997 = vsel %vm9947, %v9730, 0.0
        %v9998 = vrot.slane %v9997, 4
        %v9999 = vadd.f32 %v9997, %v9998
        %v10000 = vrot.slane %v9999, 2
        %v10001 = vadd.f32 %v9999, %v10000
        %v10002 = vrot.slane %v10001, 1
        %v10003 = vadd.f32 %v10001, %v10002
        %v10004 = vsel %vm9947, %v9731, 0.0
        %v10005 = vrot.slane %v10004, 4
        %v10006 = vadd.f32 %v10004, %v10005
        %v10007 = vrot.slane %v10006, 2
        %v10008 = vadd.f32 %v10006, %v10007
        %v10009 = vrot.slane %v10008, 1
        %v10010 = vadd.f32 %v10008, %v10009
        %v10011 = vsel %vm9947, %v9732, 0.0
        %v10012 = vrot.slane %v10011, 4
        %v10013 = vadd.f32 %v10011, %v10012
        %v10014 = vrot.slane %v10013, 2
        %v10015 = vadd.f32 %v10013, %v10014
        %v10016 = vrot.slane %v10015, 1
        %v10017 = vadd.f32 %v10015, %v10016
        %v10018 = vsel %vm9947, %v9733, 0.0
        %v10019 = vrot.slane %v10018, 4
        %v10020 = vadd.f32 %v10018, %v10019
        %v10021 = vrot.slane %v10020, 2
        %v10022 = vadd.f32 %v10020, %v10021
        %v10023 = vrot.slane %v10022, 1
        %v10024 = vadd.f32 %v10022, %v10023
        %v10025 = vsel %vm9947, %v9734, 0.0
        %v10026 = vrot.slane %v10025, 4
        %v10027 = vadd.f32 %v10025, %v10026
        %v10028 = vrot.slane %v10027, 2
        %v10029 = vadd.f32 %v10027, %v10028
        %v10030 = vrot.slane %v10029, 1
        %v10031 = vadd.f32 %v10029, %v10030
        %v10032 = vsel %vm9947, %v9735, 0.0
        %v10033 = vrot.slane %v10032, 4
        %v10034 = vadd.f32 %v10032, %v10033
        %v10035 = vrot.slane %v10034, 2
        %v10036 = vadd.f32 %v10034, %v10035
        %v10037 = vrot.slane %v10036, 1
        %v10038 = vadd.f32 %v10036, %v10037
        %v10039 = vsel %vm9947, %v9736, 0.0
        %v10040 = vrot.slane %v10039, 4
        %v10041 = vadd.f32 %v10039, %v10040
        %v10042 = vrot.slane %v10041, 2
        %v10043 = vadd.f32 %v10041, %v10042
        %v10044 = vrot.slane %v10043, 1
        %v10045 = vadd.f32 %v10043, %v10044
        %v10046 = vsel %vm9947, %v9737, 0.0
        %v10047 = vrot.slane %v10046, 4
        %v10048 = vadd.f32 %v10046, %v10047
        %v10049 = vrot.slane %v10048, 2
        %v10050 = vadd.f32 %v10048, %v10049
        %v10051 = vrot.slane %v10050, 1
        %v10052 = vadd.f32 %v10050, %v10051
        %v10053 = vsel %vm9947, %v9738, 0.0
        %v10054 = vrot.slane %v10053, 4
        %v10055 = vadd.f32 %v10053, %v10054
        %v10056 = vrot.slane %v10055, 2
        %v10057 = vadd.f32 %v10055, %v10056
        %v10058 = vrot.slane %v10057, 1
        %v10059 = vadd.f32 %v10057, %v10058
        %v10060 = vmax.f32 %v9954, 1e-09
        %v10061 = vmax.f32 %v9961, 1e-09
        %v10062 = vmax.f32 %v9968, 1e-09
        %v10063 = vmax.f32 %v9975, 1e-09
        %v10064 = vmax.f32 %v9982, 1e-09
        %v10065 = vmax.f32 %v9989, 1e-09
        %v10066 = vmax.f32 %v9996, 1e-09
        %v10067 = vmax.f32 %v10003, 1e-09
        %v10068 = vmax.f32 %v10010, 1e-09
        %v10069 = vmax.f32 %v10017, 1e-09
        %v10070 = vmax.f32 %v10024, 1e-09
        %v10071 = vmax.f32 %v10031, 1e-09
        %v10072 = vmax.f32 %v10038, 1e-09
        %v10073 = vmax.f32 %v10045, 1e-09
        %v10074 = vmax.f32 %v10052, 1e-09
        %v10075 = vmax.f32 %v10059, 1e-09
        %10077 = vset.pattern.permute.xlu0 0
        %10078 = vperm.xlu0 %10077, %v10060
        %v10079 = vpop.permute.xlu0 %10078
        %10082 = vset.pattern.permute.xlu0 0
        %10083 = vperm.xlu0 %10082, %v10061
        %v10084 = vpop.permute.xlu0 %10083
        %10087 = vset.pattern.permute.xlu0 0
        %10088 = vperm.xlu0 %10087, %v10062
        %v10089 = vpop.permute.xlu0 %10088
        %10092 = vset.pattern.permute.xlu0 0
        %10093 = vperm.xlu0 %10092, %v10063
        %v10094 = vpop.permute.xlu0 %10093
        %10097 = vset.pattern.permute.xlu0 0
        %10098 = vperm.xlu0 %10097, %v10064
        %v10099 = vpop.permute.xlu0 %10098
        %10102 = vset.pattern.permute.xlu0 0
        %10103 = vperm.xlu0 %10102, %v10065
        %v10104 = vpop.permute.xlu0 %10103
        %10107 = vset.pattern.permute.xlu0 0
        %10108 = vperm.xlu0 %10107, %v10066
        %v10109 = vpop.permute.xlu0 %10108
        %10112 = vset.pattern.permute.xlu0 0
        %10113 = vperm.xlu0 %10112, %v10067
        %v10114 = vpop.permute.xlu0 %10113
        %10117 = vset.pattern.permute.xlu0 0
        %10118 = vperm.xlu0 %10117, %v10068
        %v10119 = vpop.permute.xlu0 %10118
        %10122 = vset.pattern.permute.xlu0 0
        %10123 = vperm.xlu0 %10122, %v10069
        %v10124 = vpop.permute.xlu0 %10123
        %10127 = vset.pattern.permute.xlu0 0
        %10128 = vperm.xlu0 %10127, %v10070
        %v10129 = vpop.permute.xlu0 %10128
        %10132 = vset.pattern.permute.xlu0 0
        %10133 = vperm.xlu0 %10132, %v10071
        %v10134 = vpop.permute.xlu0 %10133
        %10137 = vset.pattern.permute.xlu0 0
        %10138 = vperm.xlu0 %10137, %v10072
        %v10139 = vpop.permute.xlu0 %10138
        %10142 = vset.pattern.permute.xlu0 0
        %10143 = vperm.xlu0 %10142, %v10073
        %v10144 = vpop.permute.xlu0 %10143
        %10147 = vset.pattern.permute.xlu0 0
        %10148 = vperm.xlu0 %10147, %v10074
        %v10149 = vpop.permute.xlu0 %10148
        %10152 = vset.pattern.permute.xlu0 0
        %10153 = vperm.xlu0 %10152, %v10075
        %v10154 = vpop.permute.xlu0 %10153
        %v10156 = vrcp.pop %v10079
        %v10157 = vmul.f32 %v10079, %v10156
        %v10158 = vsub.f32 1.0, %v10157
        %v10159 = vmul.f32 %v10156, %v10158
        %v10160 = vadd.f32 %v10156, %v10159
        %vm10161 = vweird.f32 %v10079
        %vm10162 = vweird.f32 %v10156
        %vm10163 = vmor %vm10161, %vm10162
        %v10164 = vsel %vm10163, %v10156, %v10160
        %v10165 = vand.u32 2147483647, %v10079
        %vm10166 = vcmp.eq.f32.partialorder %v10165, 8.507059e+37
        %v10167 = vand.u32 %v10079, 2147483648
        %v10168 = vor.u32 1.1754944e-38, %v10167
        %v10169 = vsel %vm10166, %v10168, %v10164
        %v10170 = vmul.f32 %v9841, %v10169
        %v10171 = vrcp.pop %v10084
        %v10172 = vmul.f32 %v10084, %v10171
        %v10173 = vsub.f32 1.0, %v10172
        %v10174 = vmul.f32 %v10171, %v10173
        %v10175 = vadd.f32 %v10171, %v10174
        %vm10176 = vweird.f32 %v10084
        %vm10177 = vweird.f32 %v10171
        %vm10178 = vmor %vm10176, %vm10177
        %v10179 = vsel %vm10178, %v10171, %v10175
        %v10180 = vand.u32 2147483647, %v10084
        %vm10181 = vcmp.eq.f32.partialorder %v10180, 8.507059e+37
        %v10182 = vand.u32 %v10084, 2147483648
        %v10183 = vor.u32 1.1754944e-38, %v10182
        %v10184 = vsel %vm10181, %v10183, %v10179
        %v10185 = vmul.f32 %v9848, %v10184
        %v10186 = vrcp.pop %v10089
        %v10187 = vmul.f32 %v10089, %v10186
        %v10188 = vsub.f32 1.0, %v10187
        %v10189 = vmul.f32 %v10186, %v10188
        %v10190 = vadd.f32 %v10186, %v10189
        %vm10191 = vweird.f32 %v10089
        %vm10192 = vweird.f32 %v10186
        %vm10193 = vmor %vm10191, %vm10192
        %v10194 = vsel %vm10193, %v10186, %v10190
        %v10195 = vand.u32 2147483647, %v10089
        %vm10196 = vcmp.eq.f32.partialorder %v10195, 8.507059e+37
        %v10197 = vand.u32 %v10089, 2147483648
        %v10198 = vor.u32 1.1754944e-38, %v10197
        %v10199 = vsel %vm10196, %v10198, %v10194
        %v10200 = vmul.f32 %v9855, %v10199
        %v10201 = vrcp.pop %v10094
        %v10202 = vmul.f32 %v10094, %v10201
        %v10203 = vsub.f32 1.0, %v10202
        %v10204 = vmul.f32 %v10201, %v10203
        %v10205 = vadd.f32 %v10201, %v10204
        %vm10206 = vweird.f32 %v10094
        %vm10207 = vweird.f32 %v10201
        %vm10208 = vmor %vm10206, %vm10207
        %v10209 = vsel %vm10208, %v10201, %v10205
        %v10210 = vand.u32 2147483647, %v10094
        %vm10211 = vcmp.eq.f32.partialorder %v10210, 8.507059e+37
        %v10212 = vand.u32 %v10094, 2147483648
        %v10213 = vor.u32 1.1754944e-38, %v10212
        %v10214 = vsel %vm10211, %v10213, %v10209
        %v10215 = vmul.f32 %v9862, %v10214
        %v10216 = vrcp.pop %v10099
        %v10217 = vmul.f32 %v10099, %v10216
        %v10218 = vsub.f32 1.0, %v10217
        %v10219 = vmul.f32 %v10216, %v10218
        %v10220 = vadd.f32 %v10216, %v10219
        %vm10221 = vweird.f32 %v10099
        %vm10222 = vweird.f32 %v10216
        %vm10223 = vmor %vm10221, %vm10222
        %v10224 = vsel %vm10223, %v10216, %v10220
        %v10225 = vand.u32 2147483647, %v10099
        %vm10226 = vcmp.eq.f32.partialorder %v10225, 8.507059e+37
        %v10227 = vand.u32 %v10099, 2147483648
        %v10228 = vor.u32 1.1754944e-38, %v10227
        %v10229 = vsel %vm10226, %v10228, %v10224
        %v10230 = vmul.f32 %v9869, %v10229
        %v10231 = vrcp.pop %v10104
        %v10232 = vmul.f32 %v10104, %v10231
        %v10233 = vsub.f32 1.0, %v10232
        %v10234 = vmul.f32 %v10231, %v10233
        %v10235 = vadd.f32 %v10231, %v10234
        %vm10236 = vweird.f32 %v10104
        %vm10237 = vweird.f32 %v10231
        %vm10238 = vmor %vm10236, %vm10237
        %v10239 = vsel %vm10238, %v10231, %v10235
        %v10240 = vand.u32 2147483647, %v10104
        %vm10241 = vcmp.eq.f32.partialorder %v10240, 8.507059e+37
        %v10242 = vand.u32 %v10104, 2147483648
        %v10243 = vor.u32 1.1754944e-38, %v10242
        %v10244 = vsel %vm10241, %v10243, %v10239
        %v10245 = vmul.f32 %v9876, %v10244
        %v10246 = vrcp.pop %v10109
        %v10247 = vmul.f32 %v10109, %v10246
        %v10248 = vsub.f32 1.0, %v10247
        %v10249 = vmul.f32 %v10246, %v10248
        %v10250 = vadd.f32 %v10246, %v10249
        %vm10251 = vweird.f32 %v10109
        %vm10252 = vweird.f32 %v10246
        %vm10253 = vmor %vm10251, %vm10252
        %v10254 = vsel %vm10253, %v10246, %v10250
        %v10255 = vand.u32 2147483647, %v10109
        %vm10256 = vcmp.eq.f32.partialorder %v10255, 8.507059e+37
        %v10257 = vand.u32 %v10109, 2147483648
        %v10258 = vor.u32 1.1754944e-38, %v10257
        %v10259 = vsel %vm10256, %v10258, %v10254
        %v10260 = vmul.f32 %v9883, %v10259
        %v10261 = vrcp.pop %v10114
        %v10262 = vmul.f32 %v10114, %v10261
        %v10263 = vsub.f32 1.0, %v10262
        %v10264 = vmul.f32 %v10261, %v10263
        %v10265 = vadd.f32 %v10261, %v10264
        %vm10266 = vweird.f32 %v10114
        %vm10267 = vweird.f32 %v10261
        %vm10268 = vmor %vm10266, %vm10267
        %v10269 = vsel %vm10268, %v10261, %v10265
        %v10270 = vand.u32 2147483647, %v10114
        %vm10271 = vcmp.eq.f32.partialorder %v10270, 8.507059e+37
        %v10272 = vand.u32 %v10114, 2147483648
        %v10273 = vor.u32 1.1754944e-38, %v10272
        %v10274 = vsel %vm10271, %v10273, %v10269
        %v10275 = vmul.f32 %v9890, %v10274
        %v10276 = vrcp.pop %v10119
        %v10277 = vmul.f32 %v10119, %v10276
        %v10278 = vsub.f32 1.0, %v10277
        %v10279 = vmul.f32 %v10276, %v10278
        %v10280 = vadd.f32 %v10276, %v10279
        %vm10281 = vweird.f32 %v10119
        %vm10282 = vweird.f32 %v10276
        %vm10283 = vmor %vm10281, %vm10282
        %v10284 = vsel %vm10283, %v10276, %v10280
        %v10285 = vand.u32 2147483647, %v10119
        %vm10286 = vcmp.eq.f32.partialorder %v10285, 8.507059e+37
        %v10287 = vand.u32 %v10119, 2147483648
        %v10288 = vor.u32 1.1754944e-38, %v10287
        %v10289 = vsel %vm10286, %v10288, %v10284
        %v10290 = vmul.f32 %v9897, %v10289
        %v10291 = vrcp.pop %v10124
        %v10292 = vmul.f32 %v10124, %v10291
        %v10293 = vsub.f32 1.0, %v10292
        %v10294 = vmul.f32 %v10291, %v10293
        %v10295 = vadd.f32 %v10291, %v10294
        %vm10296 = vweird.f32 %v10124
        %vm10297 = vweird.f32 %v10291
        %vm10298 = vmor %vm10296, %vm10297
        %v10299 = vsel %vm10298, %v10291, %v10295
        %v10300 = vand.u32 2147483647, %v10124
        %vm10301 = vcmp.eq.f32.partialorder %v10300, 8.507059e+37
        %v10302 = vand.u32 %v10124, 2147483648
        %v10303 = vor.u32 1.1754944e-38, %v10302
        %v10304 = vsel %vm10301, %v10303, %v10299
        %v10305 = vmul.f32 %v9904, %v10304
        %v10306 = vrcp.pop %v10129
        %v10307 = vmul.f32 %v10129, %v10306
        %v10308 = vsub.f32 1.0, %v10307
        %v10309 = vmul.f32 %v10306, %v10308
        %v10310 = vadd.f32 %v10306, %v10309
        %vm10311 = vweird.f32 %v10129
        %vm10312 = vweird.f32 %v10306
        %vm10313 = vmor %vm10311, %vm10312
        %v10314 = vsel %vm10313, %v10306, %v10310
        %v10315 = vand.u32 2147483647, %v10129
        %vm10316 = vcmp.eq.f32.partialorder %v10315, 8.507059e+37
        %v10317 = vand.u32 %v10129, 2147483648
        %v10318 = vor.u32 1.1754944e-38, %v10317
        %v10319 = vsel %vm10316, %v10318, %v10314
        %v10320 = vmul.f32 %v9911, %v10319
        %v10321 = vrcp.pop %v10134
        %v10322 = vmul.f32 %v10134, %v10321
        %v10323 = vsub.f32 1.0, %v10322
        %v10324 = vmul.f32 %v10321, %v10323
        %v10325 = vadd.f32 %v10321, %v10324
        %vm10326 = vweird.f32 %v10134
        %vm10327 = vweird.f32 %v10321
        %vm10328 = vmor %vm10326, %vm10327
        %v10329 = vsel %vm10328, %v10321, %v10325
        %v10330 = vand.u32 2147483647, %v10134
        %vm10331 = vcmp.eq.f32.partialorder %v10330, 8.507059e+37
        %v10332 = vand.u32 %v10134, 2147483648
        %v10333 = vor.u32 1.1754944e-38, %v10332
        %v10334 = vsel %vm10331, %v10333, %v10329
        %v10335 = vmul.f32 %v9918, %v10334
        %v10336 = vrcp.pop %v10139
        %v10337 = vmul.f32 %v10139, %v10336
        %v10338 = vsub.f32 1.0, %v10337
        %v10339 = vmul.f32 %v10336, %v10338
        %v10340 = vadd.f32 %v10336, %v10339
        %vm10341 = vweird.f32 %v10139
        %vm10342 = vweird.f32 %v10336
        %vm10343 = vmor %vm10341, %vm10342
        %v10344 = vsel %vm10343, %v10336, %v10340
        %v10345 = vand.u32 2147483647, %v10139
        %vm10346 = vcmp.eq.f32.partialorder %v10345, 8.507059e+37
        %v10347 = vand.u32 %v10139, 2147483648
        %v10348 = vor.u32 1.1754944e-38, %v10347
        %v10349 = vsel %vm10346, %v10348, %v10344
        %v10350 = vmul.f32 %v9925, %v10349
        %v10351 = vrcp.pop %v10144
        %v10352 = vmul.f32 %v10144, %v10351
        %v10353 = vsub.f32 1.0, %v10352
        %v10354 = vmul.f32 %v10351, %v10353
        %v10355 = vadd.f32 %v10351, %v10354
        %vm10356 = vweird.f32 %v10144
        %vm10357 = vweird.f32 %v10351
        %vm10358 = vmor %vm10356, %vm10357
        %v10359 = vsel %vm10358, %v10351, %v10355
        %v10360 = vand.u32 2147483647, %v10144
        %vm10361 = vcmp.eq.f32.partialorder %v10360, 8.507059e+37
        %v10362 = vand.u32 %v10144, 2147483648
        %v10363 = vor.u32 1.1754944e-38, %v10362
        %v10364 = vsel %vm10361, %v10363, %v10359
        %v10365 = vmul.f32 %v9932, %v10364
        %v10366 = vrcp.pop %v10149
        %v10367 = vmul.f32 %v10149, %v10366
        %v10368 = vsub.f32 1.0, %v10367
        %v10369 = vmul.f32 %v10366, %v10368
        %v10370 = vadd.f32 %v10366, %v10369
        %vm10371 = vweird.f32 %v10149
        %vm10372 = vweird.f32 %v10366
        %vm10373 = vmor %vm10371, %vm10372
        %v10374 = vsel %vm10373, %v10366, %v10370
        %v10375 = vand.u32 2147483647, %v10149
        %vm10376 = vcmp.eq.f32.partialorder %v10375, 8.507059e+37
        %v10377 = vand.u32 %v10149, 2147483648
        %v10378 = vor.u32 1.1754944e-38, %v10377
        %v10379 = vsel %vm10376, %v10378, %v10374
        %v10380 = vmul.f32 %v9939, %v10379
        %v10381 = vrcp.pop %v10154
        %v10382 = vmul.f32 %v10154, %v10381
        %v10383 = vsub.f32 1.0, %v10382
        %v10384 = vmul.f32 %v10381, %v10383
        %v10385 = vadd.f32 %v10381, %v10384
        %vm10386 = vweird.f32 %v10154
        %vm10387 = vweird.f32 %v10381
        %vm10388 = vmor %vm10386, %vm10387
        %v10389 = vsel %vm10388, %v10381, %v10385
        %v10390 = vand.u32 2147483647, %v10154
        %vm10391 = vcmp.eq.f32.partialorder %v10390, 8.507059e+37
        %v10392 = vand.u32 %v10154, 2147483648
        %v10393 = vor.u32 1.1754944e-38, %v10392
        %v10394 = vsel %vm10391, %v10393, %v10389
        %v10395 = vmul.f32 %v9946, %v10394
        %v10396 = vmul.f32 %v10170, %v10170
        %v10397 = vmul.f32 %v10185, %v10185
        %v10398 = vmul.f32 %v10200, %v10200
        %v10399 = vmul.f32 %v10215, %v10215
        %v10400 = vmul.f32 %v10230, %v10230
        %v10401 = vmul.f32 %v10245, %v10245
        %v10402 = vmul.f32 %v10260, %v10260
        %v10403 = vmul.f32 %v10275, %v10275
        %v10404 = vmul.f32 %v10290, %v10290
        %v10405 = vmul.f32 %v10305, %v10305
        %v10406 = vmul.f32 %v10320, %v10320
        %v10407 = vmul.f32 %v10335, %v10335
        %v10408 = vmul.f32 %v10350, %v10350
        %v10409 = vmul.f32 %v10365, %v10365
        %v10410 = vmul.f32 %v10380, %v10380
        %v10411 = vmul.f32 %v10395, %v10395
        %vm10428 = vcmask 1041409
        %v10429 = vsel %vm10428, %v10397, %v10396
        %vm10430 = vcmask 1042434
        %v10431 = vsel %vm10430, %v10398, %v10429
        %vm10432 = vcmask 1043459
        %v10433 = vsel %vm10432, %v10399, %v10431
        %vm10434 = vcmask 1044484
        %v10435 = vsel %vm10434, %v10400, %v10433
        %vm10436 = vcmask 1045509
        %v10437 = vsel %vm10436, %v10401, %v10435
        %vm10438 = vcmask 1046534
        %v10439 = vsel %vm10438, %v10402, %v10437
        %vm10440 = vcmask 1047559
        %v10441 = vsel %vm10440, %v10403, %v10439
        %v10442 = vsel %vm10428, %v10405, %v10404
        %v10443 = vsel %vm10430, %v10406, %v10442
        %v10444 = vsel %vm10432, %v10407, %v10443
        %v10445 = vsel %vm10434, %v10408, %v10444
        %v10446 = vsel %vm10436, %v10409, %v10445
        %v10447 = vsel %vm10438, %v10410, %v10446
        %v10448 = vsel %vm10440, %v10411, %v10447
        %v10451 = vsel %vm793, %v10441, 0.0
        %10452 = vadd.xlane.f32.xlu0 %v10451
        %v10453 = vpop.xlane.xlu0 %10452
        %v10454 = vsel %vm793, %v10448, 0.0
        %10455 = vadd.xlane.f32.xlu0 %v10454
        %v10456 = vpop.xlane.xlu0 %10455
        %v10457 = vrsqrt.pop %v10453
        %v10458 = vmul.f32 %v10457, %v10453
        %v10459 = vmul.f32 %v10458, %v10457
        %v10460 = vmul.f32 0.5, %v10459
        %v10461 = vsub.f32 1.5, %v10460
        %v10462 = vmul.f32 %v10457, %v10461
        %v10463 = vmul.f32 %v10453, %v10462
        %vm10464 = vcmp.eq.f32.partialorder %v10453, inf
        %v10465 = vsel %vm10464, %v10453, %v10463
        %vm10466 = vcmp.eq.f32.partialorder %v10453, 0.0
        %v10467 = vand.u32 %v10453, 2147483648
        %v10468 = vsel %vm10466, %v10467, %v10465
        %v10469 = vrsqrt.pop %v10456
        %v10470 = vmul.f32 %v10469, %v10456
        %v10471 = vmul.f32 %v10470, %v10469
        %v10472 = vmul.f32 0.5, %v10471
        %v10473 = vsub.f32 1.5, %v10472
        %v10474 = vmul.f32 %v10469, %v10473
        %v10475 = vmul.f32 %v10456, %v10474
        %vm10476 = vcmp.eq.f32.partialorder %v10456, inf
        %v10477 = vsel %vm10476, %v10456, %v10475
        %vm10478 = vcmp.eq.f32.partialorder %v10456, 0.0
        %v10479 = vand.u32 %v10456, 2147483648
        %v10480 = vsel %vm10478, %v10479, %v10477
        %v10481 = vmax.f32 %v10468, 1e-12
        %v10482 = vmax.f32 %v10480, 1e-12
        %v10485 = vrot.slane %v10481, 1
        %v10486 = vrot.slane %v10481, 2
        %v10487 = vrot.slane %v10481, 3
        %v10488 = vrot.slane %v10481, 4
        %v10489 = vrot.slane %v10481, 5
        %v10490 = vrot.slane %v10481, 6
        %v10491 = vrot.slane %v10481, 7
        %v10492 = vrot.slane %v10482, 1
        %v10493 = vrot.slane %v10482, 2
        %v10494 = vrot.slane %v10482, 3
        %v10495 = vrot.slane %v10482, 4
        %v10496 = vrot.slane %v10482, 5
        %v10497 = vrot.slane %v10482, 6
        %v10498 = vrot.slane %v10482, 7
        %v10515 = vrcp.pop %v10481
        %v10516 = vmul.f32 %v10481, %v10515
        %v10517 = vsub.f32 1.0, %v10516
        %v10518 = vmul.f32 %v10515, %v10517
        %v10519 = vadd.f32 %v10515, %v10518
        %vm10520 = vweird.f32 %v10481
        %vm10521 = vweird.f32 %v10515
        %vm10522 = vmor %vm10520, %vm10521
        %v10523 = vsel %vm10522, %v10515, %v10519
        %v10524 = vand.u32 2147483647, %v10481
        %vm10525 = vcmp.eq.f32.partialorder %v10524, 8.507059e+37
        %v10526 = vand.u32 %v10481, 2147483648
        %v10527 = vor.u32 1.1754944e-38, %v10526
        %v10528 = vsel %vm10525, %v10527, %v10523
        %v10529 = vmul.f32 %v10170, %v10528
        %v10530 = vrcp.pop %v10485
        %v10531 = vmul.f32 %v10485, %v10530
        %v10532 = vsub.f32 1.0, %v10531
        %v10533 = vmul.f32 %v10530, %v10532
        %v10534 = vadd.f32 %v10530, %v10533
        %vm10535 = vweird.f32 %v10485
        %vm10536 = vweird.f32 %v10530
        %vm10537 = vmor %vm10535, %vm10536
        %v10538 = vsel %vm10537, %v10530, %v10534
        %v10539 = vand.u32 2147483647, %v10485
        %vm10540 = vcmp.eq.f32.partialorder %v10539, 8.507059e+37
        %v10541 = vand.u32 %v10485, 2147483648
        %v10542 = vor.u32 1.1754944e-38, %v10541
        %v10543 = vsel %vm10540, %v10542, %v10538
        %v10544 = vmul.f32 %v10185, %v10543
        %v10545 = vrcp.pop %v10486
        %v10546 = vmul.f32 %v10486, %v10545
        %v10547 = vsub.f32 1.0, %v10546
        %v10548 = vmul.f32 %v10545, %v10547
        %v10549 = vadd.f32 %v10545, %v10548
        %vm10550 = vweird.f32 %v10486
        %vm10551 = vweird.f32 %v10545
        %vm10552 = vmor %vm10550, %vm10551
        %v10553 = vsel %vm10552, %v10545, %v10549
        %v10554 = vand.u32 2147483647, %v10486
        %vm10555 = vcmp.eq.f32.partialorder %v10554, 8.507059e+37
        %v10556 = vand.u32 %v10486, 2147483648
        %v10557 = vor.u32 1.1754944e-38, %v10556
        %v10558 = vsel %vm10555, %v10557, %v10553
        %v10559 = vmul.f32 %v10200, %v10558
        %v10560 = vrcp.pop %v10487
        %v10561 = vmul.f32 %v10487, %v10560
        %v10562 = vsub.f32 1.0, %v10561
        %v10563 = vmul.f32 %v10560, %v10562
        %v10564 = vadd.f32 %v10560, %v10563
        %vm10565 = vweird.f32 %v10487
        %vm10566 = vweird.f32 %v10560
        %vm10567 = vmor %vm10565, %vm10566
        %v10568 = vsel %vm10567, %v10560, %v10564
        %v10569 = vand.u32 2147483647, %v10487
        %vm10570 = vcmp.eq.f32.partialorder %v10569, 8.507059e+37
        %v10571 = vand.u32 %v10487, 2147483648
        %v10572 = vor.u32 1.1754944e-38, %v10571
        %v10573 = vsel %vm10570, %v10572, %v10568
        %v10574 = vmul.f32 %v10215, %v10573
        %v10575 = vrcp.pop %v10488
        %v10576 = vmul.f32 %v10488, %v10575
        %v10577 = vsub.f32 1.0, %v10576
        %v10578 = vmul.f32 %v10575, %v10577
        %v10579 = vadd.f32 %v10575, %v10578
        %vm10580 = vweird.f32 %v10488
        %vm10581 = vweird.f32 %v10575
        %vm10582 = vmor %vm10580, %vm10581
        %v10583 = vsel %vm10582, %v10575, %v10579
        %v10584 = vand.u32 2147483647, %v10488
        %vm10585 = vcmp.eq.f32.partialorder %v10584, 8.507059e+37
        %v10586 = vand.u32 %v10488, 2147483648
        %v10587 = vor.u32 1.1754944e-38, %v10586
        %v10588 = vsel %vm10585, %v10587, %v10583
        %v10589 = vmul.f32 %v10230, %v10588
        %v10590 = vrcp.pop %v10489
        %v10591 = vmul.f32 %v10489, %v10590
        %v10592 = vsub.f32 1.0, %v10591
        %v10593 = vmul.f32 %v10590, %v10592
        %v10594 = vadd.f32 %v10590, %v10593
        %vm10595 = vweird.f32 %v10489
        %vm10596 = vweird.f32 %v10590
        %vm10597 = vmor %vm10595, %vm10596
        %v10598 = vsel %vm10597, %v10590, %v10594
        %v10599 = vand.u32 2147483647, %v10489
        %vm10600 = vcmp.eq.f32.partialorder %v10599, 8.507059e+37
        %v10601 = vand.u32 %v10489, 2147483648
        %v10602 = vor.u32 1.1754944e-38, %v10601
        %v10603 = vsel %vm10600, %v10602, %v10598
        %v10604 = vmul.f32 %v10245, %v10603
        %v10605 = vrcp.pop %v10490
        %v10606 = vmul.f32 %v10490, %v10605
        %v10607 = vsub.f32 1.0, %v10606
        %v10608 = vmul.f32 %v10605, %v10607
        %v10609 = vadd.f32 %v10605, %v10608
        %vm10610 = vweird.f32 %v10490
        %vm10611 = vweird.f32 %v10605
        %vm10612 = vmor %vm10610, %vm10611
        %v10613 = vsel %vm10612, %v10605, %v10609
        %v10614 = vand.u32 2147483647, %v10490
        %vm10615 = vcmp.eq.f32.partialorder %v10614, 8.507059e+37
        %v10616 = vand.u32 %v10490, 2147483648
        %v10617 = vor.u32 1.1754944e-38, %v10616
        %v10618 = vsel %vm10615, %v10617, %v10613
        %v10619 = vmul.f32 %v10260, %v10618
        %v10620 = vrcp.pop %v10491
        %v10621 = vmul.f32 %v10491, %v10620
        %v10622 = vsub.f32 1.0, %v10621
        %v10623 = vmul.f32 %v10620, %v10622
        %v10624 = vadd.f32 %v10620, %v10623
        %vm10625 = vweird.f32 %v10491
        %vm10626 = vweird.f32 %v10620
        %vm10627 = vmor %vm10625, %vm10626
        %v10628 = vsel %vm10627, %v10620, %v10624
        %v10629 = vand.u32 2147483647, %v10491
        %vm10630 = vcmp.eq.f32.partialorder %v10629, 8.507059e+37
        %v10631 = vand.u32 %v10491, 2147483648
        %v10632 = vor.u32 1.1754944e-38, %v10631
        %v10633 = vsel %vm10630, %v10632, %v10628
        %v10634 = vmul.f32 %v10275, %v10633
        %v10635 = vrcp.pop %v10482
        %v10636 = vmul.f32 %v10482, %v10635
        %v10637 = vsub.f32 1.0, %v10636
        %v10638 = vmul.f32 %v10635, %v10637
        %v10639 = vadd.f32 %v10635, %v10638
        %vm10640 = vweird.f32 %v10482
        %vm10641 = vweird.f32 %v10635
        %vm10642 = vmor %vm10640, %vm10641
        %v10643 = vsel %vm10642, %v10635, %v10639
        %v10644 = vand.u32 2147483647, %v10482
        %vm10645 = vcmp.eq.f32.partialorder %v10644, 8.507059e+37
        %v10646 = vand.u32 %v10482, 2147483648
        %v10647 = vor.u32 1.1754944e-38, %v10646
        %v10648 = vsel %vm10645, %v10647, %v10643
        %v10649 = vmul.f32 %v10290, %v10648
        %v10650 = vrcp.pop %v10492
        %v10651 = vmul.f32 %v10492, %v10650
        %v10652 = vsub.f32 1.0, %v10651
        %v10653 = vmul.f32 %v10650, %v10652
        %v10654 = vadd.f32 %v10650, %v10653
        %vm10655 = vweird.f32 %v10492
        %vm10656 = vweird.f32 %v10650
        %vm10657 = vmor %vm10655, %vm10656
        %v10658 = vsel %vm10657, %v10650, %v10654
        %v10659 = vand.u32 2147483647, %v10492
        %vm10660 = vcmp.eq.f32.partialorder %v10659, 8.507059e+37
        %v10661 = vand.u32 %v10492, 2147483648
        %v10662 = vor.u32 1.1754944e-38, %v10661
        %v10663 = vsel %vm10660, %v10662, %v10658
        %v10664 = vmul.f32 %v10305, %v10663
        %v10665 = vrcp.pop %v10493
        %v10666 = vmul.f32 %v10493, %v10665
        %v10667 = vsub.f32 1.0, %v10666
        %v10668 = vmul.f32 %v10665, %v10667
        %v10669 = vadd.f32 %v10665, %v10668
        %vm10670 = vweird.f32 %v10493
        %vm10671 = vweird.f32 %v10665
        %vm10672 = vmor %vm10670, %vm10671
        %v10673 = vsel %vm10672, %v10665, %v10669
        %v10674 = vand.u32 2147483647, %v10493
        %vm10675 = vcmp.eq.f32.partialorder %v10674, 8.507059e+37
        %v10676 = vand.u32 %v10493, 2147483648
        %v10677 = vor.u32 1.1754944e-38, %v10676
        %v10678 = vsel %vm10675, %v10677, %v10673
        %v10679 = vmul.f32 %v10320, %v10678
        %v10680 = vrcp.pop %v10494
        %v10681 = vmul.f32 %v10494, %v10680
        %v10682 = vsub.f32 1.0, %v10681
        %v10683 = vmul.f32 %v10680, %v10682
        %v10684 = vadd.f32 %v10680, %v10683
        %vm10685 = vweird.f32 %v10494
        %vm10686 = vweird.f32 %v10680
        %vm10687 = vmor %vm10685, %vm10686
        %v10688 = vsel %vm10687, %v10680, %v10684
        %v10689 = vand.u32 2147483647, %v10494
        %vm10690 = vcmp.eq.f32.partialorder %v10689, 8.507059e+37
        %v10691 = vand.u32 %v10494, 2147483648
        %v10692 = vor.u32 1.1754944e-38, %v10691
        %v10693 = vsel %vm10690, %v10692, %v10688
        %v10694 = vmul.f32 %v10335, %v10693
        %v10695 = vrcp.pop %v10495
        %v10696 = vmul.f32 %v10495, %v10695
        %v10697 = vsub.f32 1.0, %v10696
        %v10698 = vmul.f32 %v10695, %v10697
        %v10699 = vadd.f32 %v10695, %v10698
        %vm10700 = vweird.f32 %v10495
        %vm10701 = vweird.f32 %v10695
        %vm10702 = vmor %vm10700, %vm10701
        %v10703 = vsel %vm10702, %v10695, %v10699
        %v10704 = vand.u32 2147483647, %v10495
        %vm10705 = vcmp.eq.f32.partialorder %v10704, 8.507059e+37
        %v10706 = vand.u32 %v10495, 2147483648
        %v10707 = vor.u32 1.1754944e-38, %v10706
        %v10708 = vsel %vm10705, %v10707, %v10703
        %v10709 = vmul.f32 %v10350, %v10708
        %v10710 = vrcp.pop %v10496
        %v10711 = vmul.f32 %v10496, %v10710
        %v10712 = vsub.f32 1.0, %v10711
        %v10713 = vmul.f32 %v10710, %v10712
        %v10714 = vadd.f32 %v10710, %v10713
        %vm10715 = vweird.f32 %v10496
        %vm10716 = vweird.f32 %v10710
        %vm10717 = vmor %vm10715, %vm10716
        %v10718 = vsel %vm10717, %v10710, %v10714
        %v10719 = vand.u32 2147483647, %v10496
        %vm10720 = vcmp.eq.f32.partialorder %v10719, 8.507059e+37
        %v10721 = vand.u32 %v10496, 2147483648
        %v10722 = vor.u32 1.1754944e-38, %v10721
        %v10723 = vsel %vm10720, %v10722, %v10718
        %v10724 = vmul.f32 %v10365, %v10723
        %v10725 = vrcp.pop %v10497
        %v10726 = vmul.f32 %v10497, %v10725
        %v10727 = vsub.f32 1.0, %v10726
        %v10728 = vmul.f32 %v10725, %v10727
        %v10729 = vadd.f32 %v10725, %v10728
        %vm10730 = vweird.f32 %v10497
        %vm10731 = vweird.f32 %v10725
        %vm10732 = vmor %vm10730, %vm10731
        %v10733 = vsel %vm10732, %v10725, %v10729
        %v10734 = vand.u32 2147483647, %v10497
        %vm10735 = vcmp.eq.f32.partialorder %v10734, 8.507059e+37
        %v10736 = vand.u32 %v10497, 2147483648
        %v10737 = vor.u32 1.1754944e-38, %v10736
        %v10738 = vsel %vm10735, %v10737, %v10733
        %v10739 = vmul.f32 %v10380, %v10738
        %v10740 = vrcp.pop %v10498
        %v10741 = vmul.f32 %v10498, %v10740
        %v10742 = vsub.f32 1.0, %v10741
        %v10743 = vmul.f32 %v10740, %v10742
        %v10744 = vadd.f32 %v10740, %v10743
        %vm10745 = vweird.f32 %v10498
        %vm10746 = vweird.f32 %v10740
        %vm10747 = vmor %vm10745, %vm10746
        %v10748 = vsel %vm10747, %v10740, %v10744
        %v10749 = vand.u32 2147483647, %v10498
        %vm10750 = vcmp.eq.f32.partialorder %v10749, 8.507059e+37
        %v10751 = vand.u32 %v10498, 2147483648
        %v10752 = vor.u32 1.1754944e-38, %v10751
        %v10753 = vsel %vm10750, %v10752, %v10748
        %v10754 = vmul.f32 %v10395, %v10753
        %v10771 = vrot.slane %v10544, 7
        %v10772 = vsel %vm10428, %v10771, %v10529
        %v10773 = vrot.slane %v10559, 6
        %v10774 = vsel %vm10430, %v10773, %v10772
        %v10775 = vrot.slane %v10574, 5
        %v10776 = vsel %vm10432, %v10775, %v10774
        %v10777 = vrot.slane %v10589, 4
        %v10778 = vsel %vm10434, %v10777, %v10776
        %v10779 = vrot.slane %v10604, 3
        %v10780 = vsel %vm10436, %v10779, %v10778
        %v10781 = vrot.slane %v10619, 2
        %v10782 = vsel %vm10438, %v10781, %v10780
        %v10783 = vrot.slane %v10634, 1
        %v10784 = vsel %vm10440, %v10783, %v10782
        %v10785 = vrot.slane %v10664, 7
        %v10786 = vsel %vm10428, %v10785, %v10649
        %v10787 = vrot.slane %v10679, 6
        %v10788 = vsel %vm10430, %v10787, %v10786
        %v10789 = vrot.slane %v10694, 5
        %v10790 = vsel %vm10432, %v10789, %v10788
        %v10791 = vrot.slane %v10709, 4
        %v10792 = vsel %vm10434, %v10791, %v10790
        %v10793 = vrot.slane %v10724, 3
        %v10794 = vsel %vm10436, %v10793, %v10792
        %v10795 = vrot.slane %v10739, 2
        %v10796 = vsel %vm10438, %v10795, %v10794
        %v10797 = vrot.slane %v10754, 1
        %v10798 = vsel %vm10440, %v10797, %v10796
        %10801 = vst.msk [vmem:[%s399] sm:$0xff] %vm793, %v10784
        %10802 = vst.msk [vmem:[%s399 + $0x8] sm:$0xff] %vm793, %v10798
        %s10803 = sand.u32 %s262, 1
        %s10804 = scalar_lea.sflag [#allocation3], %s10803
        %s10805 = sand.u32 %s262, 1
        %s10806 = smul.addr %s10805, 16
        %s10807 = scalar_lea.vmem [#allocation2], %s10806
        // Predicated region
        $region61: #{encode.1} parent=59 // pred_check
          %p10808 = pneg %p272
        $region62: #{encode.1} parent=59 // pred_check_branch
          %10810 = sbr.rel (%p10808) target = $region64
        $region63: #{encode.1} parent=59 // pred_region
          %s10811 = smul.u32 2, %s24
          %10813 = vsyncadd %s10804, 0
          %s10814 = smul.addr %s10811, 8
          %s10815 = scalar_lea.hbm %s10, %s10814
          %s10816 = sshll.u32 %s10807, 4
          %s10817 = int_to_ptr.vmem [resolvable:$true] %s10816
          %s10818 = sshll.u32 %s10815, 4
          %s10819 = int_to_ptr.hbm [resolvable:$true] %s10818
          %10824 = dma.vmem_to_hbm [thread:$0]  %s10817, 256, %s10819, %s10804, 128, 128, 8
        $region64: #{encode.1} parent=59 // pred_fallthru
          _
      $region60: #{encode.1} parent=5 // pred_fallthru
        _
      %p10825 = scmp.le.s32.totalorder 2, %s19
      // Predicated region
      $region65: #{encode.1} parent=5 // pred_check
        %p10826 = pneg %p10825
      $region66: #{encode.1} parent=5 // pred_check_branch
        %10828 = sbr.rel (%p10826) target = $region68
      $region67: #{encode.1} parent=5 // pred_region
        %s10829 = ssub.s32 %s19, 2
        // Predicated region
        $region69: #{encode.1} parent=67 // pred_check
          %p10830 = pneg %p278
        $region70: #{encode.1} parent=67 // pred_check_branch
          %10832 = sbr.rel (%p10830) target = $region72
        $region71: #{encode.1} parent=67 // pred_region
          %s10833 = sand.u32 %s263, 1
          %s10834 = scalar_lea.sflag [#allocation3], %s10833
          %s10835 = sand.u32 %s263, 1
          %s10836 = smul.addr %s10835, 16
          %s10837 = scalar_lea.vmem [#allocation2], %s10836
          %10839 = dma.done %s10834, 256
        $region72: #{encode.1} parent=67 // pred_fallthru
          _
      $region68: #{encode.1} parent=5 // pred_fallthru
        _
    $region6: #{encode.1} parent=1 // loop_footer
      %s23 = sadd.s32 1, %s19
    $region7: #{encode.1} parent=1 // loop_footer_branch
      %18 = sbr.rel target = $region3
    $region8: #{encode.1} parent=1 // loop_exit
      _
    %10840 = vsyncpa [#allocation3], 1
    %s10841 = scalar_lea.sflag [#allocation3], 1
    %10842 = vsyncpa %s10841, 1

</llo_original>
